<compile_context>
chip_gen: v6e
topology: v6e:2x2x1
jax: 0.10.0
libtpu: 0.0.40
codegen_flags: <defaults>
</compile_context>

<pallas_src>
import jax
import jax.numpy as jnp
import numpy as np
from jax.experimental import pallas as pl
from jax.experimental.pallas import tpu as pltpu

# ----- model hyper-parameters implied by the module -----
MAX_WORDS = 100          # small vocab (synthetic weights)
EMBED     = 64           # embedding_size / conv in_channels
CONV_OUT  = 32           # conv out_channels
KSIZE     = 3            # conv kernel_size (padding=1)
POOL      = 4            # MaxPool1d(kernel_size=4)
SEQ_LEN   = 500          # nn.LSTM(input_size=125) forces SEQ_LEN // 4 == 125
POOLED    = SEQ_LEN // POOL   # 125
HIDDEN    = 64           # hidden_units
FC1       = 250

OFF = 8                  # zero-halo rows in front of the first conv slab (8-aligned)


def _round_up(x, m):
    return ((x + m - 1) // m) * m


def _slab_rows(t):
    # Per-batch slab stride inside the conv halo scratch: at least one zero row between
    # consecutive batch elements and a multiple of 8 so every embedding-slab store lands
    # on a sublane-aligned offset (only the shifted *loads* are unaligned).
    return _round_up(t + 1, 8)


# ---------------------------------------------------------------------------
# Single fused kernel: conv1d(k=3,pad=1) + relu + maxpool(4) + LSTM + head.
# ---------------------------------------------------------------------------
def fused_forward_kernel(emb_ref, convw_ref, convb_ref, wih_ref, whh_ref,
                         lstmb_ref, w1_ref, b1_ref, w2t_ref, b2_ref,
                         o_ref, xpad_scr, y_scr, xproj_scr):
    B, T, E = emb_ref.shape
    K, _, C = convw_ref.shape                 # (3, 64, 32)
    H = whh_ref.shape[1]                      # 64
    P = T // POOL                             # 125
    SLAB = _slab_rows(T)
    NTOT = SLAB * (B - 1) + T                 # contiguous conv-output rows, all batches

    # ---- Conv1d + ReLU for every batch element at once -----------------------------
    # Zero the halo scratch once; store each batch's (T, E) slab at an 8-aligned offset.
    # The untouched rows between slabs act as the conv zero padding (no host jnp.pad).
    xpad_scr[...] = jnp.zeros_like(xpad_scr)
    for b in range(B):                                          # static unroll (B small)
        xpad_scr[pl.ds(OFF + SLAB * b, T), :] = emb_ref[b]

    acc = jnp.broadcast_to(convb_ref[...], (NTOT, C)).astype(jnp.float32)
    for k in range(K):                                          # 3 MXU pushes total
        acc = acc + jnp.dot(xpad_scr[pl.ds(OFF - 1 + k, NTOT), :], convw_ref[k],
                            preferred_element_type=jnp.float32)
    y_scr[pl.ds(0, NTOT), :] = jnp.maximum(acc, 0.0)            # ReLU

    # ---- MaxPool1d(4) + LSTM input projection (hoisted off the serial chain) -------
    # x_t handed to the LSTM by the module is pooled^T (32, 125); keeping the whole
    # recurrence transposed means no in-kernel transpose:  W_ih @ x_t^T == W_ih @ pooled.
    for b in range(B):
        base = SLAB * b
        pooled = y_scr[pl.ds(base, P, stride=POOL), :]          # (125, 32)
        for r in range(1, POOL):
            pooled = jnp.maximum(pooled, y_scr[pl.ds(base + r, P, stride=POOL), :])
        xproj_scr[b] = (jnp.dot(wih_ref[...], pooled,
                                preferred_element_type=jnp.float32)
                        + lstmb_ref[...])                       # (4H, 32)

    # ---- LSTM recurrence over t = batch index (exactly as the PyTorch module) ------
    col_last = (jax.lax.broadcasted_iota(jnp.int32, (1, C), 1)
                == (C - 1)).astype(jnp.float32)                 # selects output[:, -1]
    hT = jnp.zeros((H, C), jnp.float32)                         # h^T: (hidden, lstm_batch)
    cT = jnp.zeros((H, C), jnp.float32)
    for t in range(B):                                          # serial recurrence
        gT = xproj_scr[t] + jnp.dot(whh_ref[...], hT,
                                    preferred_element_type=jnp.float32)   # (4H, 32)
        i_g = jax.nn.sigmoid(gT[0:H, :])
        f_g = jax.nn.sigmoid(gT[H:2 * H, :])
        g_g = jnp.tanh(gT[2 * H:3 * H, :])
        o_g = jax.nn.sigmoid(gT[3 * H:4 * H, :])
        cT = f_g * cT + i_g * g_g
        hT = o_g * jnp.tanh(cT)

        # head for sample t: tanh -> fc1 -> relu -> fc2 -> sigmoid, fused per sample.
        hl = jnp.tanh(jnp.sum(hT * col_last, axis=1, keepdims=True))      # (H, 1)
        z1 = jnp.dot(w1_ref[...], hl, preferred_element_type=jnp.float32) + b1_ref[...]
        z1 = jnp.maximum(z1, 0.0)                                          # (250, 1)
        z2 = jnp.sum(w2t_ref[...] * z1, axis=0, keepdims=True) + b2_ref[...]  # (1, 1)
        o_ref[pl.ds(t, 1), :] = jax.nn.sigmoid(z2)


# ---------------------------------------------------------------------------
# Wrapper: the only JAX glue left is the embedding row-gather.
# ---------------------------------------------------------------------------
@jax.jit
def review_sentiment_forward(tokens, params):
    # TODO(synk): embedding row-gather kept in JAX glue (data-dependent gather has no
    # clean rectangular BlockSpec equivalent).
    emb = jnp.take(params["emb"], tokens, axis=0)               # (B, T, E) f32
    B, T, E = emb.shape
    C, H, G = CONV_OUT, HIDDEN, 4 * HIDDEN
    P = T // POOL
    SLAB = _slab_rows(T)
    NTOT = SLAB * (B - 1) + T

    grid_spec = pltpu.PrefetchScalarGridSpec(
        num_scalar_prefetch=0,
        grid=(1,),                                              # fully fused single step
        in_specs=[
            pl.BlockSpec((B, T, E), lambda i: (0, 0, 0)),       # embedded tokens
            pl.BlockSpec((KSIZE, E, C), lambda i: (0, 0, 0)),   # conv taps (K, E, C)
            pl.BlockSpec((1, C), lambda i: (0, 0)),             # conv bias
            pl.BlockSpec((G, P), lambda i: (0, 0)),             # W_ih  (4H, 125)
            pl.BlockSpec((G, H), lambda i: (0, 0)),             # W_hh  (4H, 64)
            pl.BlockSpec((G, 1), lambda i: (0, 0)),             # b_ih + b_hh  (4H, 1)
            pl.BlockSpec((FC1, H), lambda i: (0, 0)),           # fc1 weight (250, 64)
            pl.BlockSpec((FC1, 1), lambda i: (0, 0)),           # fc1 bias   (250, 1)
            pl.BlockSpec((FC1, 1), lambda i: (0, 0)),           # fc2 weight^T (250, 1)
            pl.BlockSpec((1, 1), lambda i: (0, 0)),             # fc2 bias
        ],
        out_specs=pl.BlockSpec((B, 1), lambda i: (0, 0)),
        scratch_shapes=[
            pltpu.VMEM((OFF + SLAB * B, E), jnp.float32),       # zero-halo conv input
            pltpu.VMEM((_round_up(NTOT, 8), C), jnp.float32),   # relu(conv) output
            pltpu.VMEM((B, G, C), jnp.float32),                 # hoisted W_ih @ x_t^T
        ],
    )
    return pl.pallas_call(
        fused_forward_kernel,
        out_shape=jax.ShapeDtypeStruct((B, 1), jnp.float32),
        grid_spec=grid_spec,
        compiler_params=pltpu.CompilerParams(dimension_semantics=("arbitrary",)),
    )(emb, params["conv_w"], params["conv_b"], params["wih"], params["whh"],
      params["lstm_b"], params["w1"], params["b1"], params["w2t"], params["b2"])


# ---------------------------------------------------------------------------
# Pure-JAX reference (same math, no Pallas) for a sanity check.
# ---------------------------------------------------------------------------
def ref_forward(tokens, Pm):
    B, T = tokens.shape
    emb = jnp.take(Pm["emb"], tokens, axis=0)                   # (B, T, E)
    xp = jnp.pad(emb, ((0, 0), (1, 1), (0, 0)))
    y = Pm["conv_b"]
    for k in range(KSIZE):
        y = y + jnp.einsum("bte,ec->btc", xp[:, k:k + T], Pm["conv_w"][k])
    y = jnp.maximum(y, 0.0)
    p = y.reshape(B, T // POOL, POOL, CONV_OUT).max(axis=2)     # (B, 125, 32)
    x_lstm = jnp.transpose(p, (0, 2, 1))                        # (B, 32, 125)
    h = jnp.zeros((CONV_OUT, HIDDEN), jnp.float32)
    c = jnp.zeros((CONV_OUT, HIDDEN), jnp.float32)
    rows = []
    for t in range(B):
        g = x_lstm[t] @ Pm["wih"].T + h @ Pm["whh"].T + Pm["lstm_b"][:, 0]
        i_g = jax.nn.sigmoid(g[:, :HIDDEN])
        f_g = jax.nn.sigmoid(g[:, HIDDEN:2 * HIDDEN])
        g_g = jnp.tanh(g[:, 2 * HIDDEN:3 * HIDDEN])
        o_g = jax.nn.sigmoid(g[:, 3 * HIDDEN:4 * HIDDEN])
        c = f_g * c + i_g * g_g
        h = o_g * jnp.tanh(c)
        rows.append(h[-1])
    h_last = jnp.stack(rows)                                    # (B, 64)
    z = jnp.tanh(h_last) @ Pm["w1"].T + Pm["b1"][:, 0]
    z = jnp.maximum(z, 0.0)
    z = z @ Pm["w2t"] + Pm["b2"][:, 0]
    return jax.nn.sigmoid(z)


# ---------------------------------------------------------------------------
# Deterministic synthetic parameters (shapes match the nn.Module __init__).
# ---------------------------------------------------------------------------
def init_params(key):
    ks = jax.random.split(key, 10)

    def u(k, shape, scale=0.1):
        return jax.random.uniform(k, shape, jnp.float32, -scale, scale)

    conv_w_pt = u(ks[1], (CONV_OUT, EMBED, KSIZE))              # PyTorch Conv1d (O, I, K)
    fc1_w = u(ks[6], (FC1, HIDDEN))                             # PyTorch Linear (out, in)
    fc2_w = u(ks[8], (1, FC1))
    return {
        "emb":    u(ks[0], (MAX_WORDS, EMBED), 1.0),
        "conv_w": jnp.transpose(conv_w_pt, (2, 1, 0)),          # (K, E, C) tap matrices
        "conv_b": u(ks[2], (1, CONV_OUT)),
        "wih":    u(ks[3], (4 * HIDDEN, POOLED)),               # weight_ih_l0 (4H, 125)
        "whh":    u(ks[4], (4 * HIDDEN, HIDDEN)),               # weight_hh_l0 (4H, 64)
        "lstm_b": u(ks[5], (4 * HIDDEN, 1)),                    # b_ih + b_hh (column)
        "w1":     fc1_w,                                        # (250, 64)
        "b1":     u(ks[7], (FC1, 1)),
        "w2t":    jnp.transpose(fc2_w),                         # (250, 1)
        "b2":     u(ks[9], (1, 1)),
    }


if __name__ == "__main__":
    key = jax.random.PRNGKey(0)
    kp, kt = jax.random.split(key)
    params = init_params(kp)
    tokens = jax.random.randint(kt, (2, SEQ_LEN), 0, MAX_WORDS, dtype=jnp.int32)

    out = jax.block_until_ready(review_sentiment_forward(tokens, params))
    assert out.shape == (2, 1) and out.dtype == jnp.float32

    ref = jax.block_until_ready(ref_forward(tokens, params))
    np.testing.assert_allclose(np.asarray(out), np.asarray(ref), rtol=2e-3, atol=2e-3)
    print("KERNEL_OK")
</pallas_src>

<mosaic_0001>
module attributes {stable_mosaic.version = 11 : i64} {
  func.func @fused_forward_kernel(%arg0: i32, %arg1: memref<2x500x64xf32, #tpu.memory_space<vmem>>, %arg2: memref<3x64x32xf32, #tpu.memory_space<vmem>>, %arg3: memref<1x32xf32, #tpu.memory_space<vmem>>, %arg4: memref<256x125xf32, #tpu.memory_space<vmem>>, %arg5: memref<256x64xf32, #tpu.memory_space<vmem>>, %arg6: memref<256x1xf32, #tpu.memory_space<vmem>>, %arg7: memref<250x64xf32, #tpu.memory_space<vmem>>, %arg8: memref<250x1xf32, #tpu.memory_space<vmem>>, %arg9: memref<250x1xf32, #tpu.memory_space<vmem>>, %arg10: memref<1x1xf32, #tpu.memory_space<vmem>>, %arg11: memref<2x1xf32, #tpu.memory_space<vmem>>, %arg12: memref<1016x64xf32, #tpu.memory_space<vmem>>, %arg13: memref<1008x32xf32, #tpu.memory_space<vmem>>, %arg14: memref<2x256x32xf32, #tpu.memory_space<vmem>>) attributes {dimension_semantics = [#tpu.dimension_semantics<arbitrary>], iteration_bounds = array<i64: 1>, scalar_prefetch = 0 : i64, scratch_operands = 3 : i64, tpu.core_type = #tpu.core_type<tc>, window_params = [{pipeline_mode = #tpu.pipeline_mode<synchronous>, transform_indices = @transform_0, window_bounds = array<i64: 2, 500, 64>}, {pipeline_mode = #tpu.pipeline_mode<synchronous>, transform_indices = @transform_1, window_bounds = array<i64: 3, 64, 32>}, {pipeline_mode = #tpu.pipeline_mode<synchronous>, transform_indices = @transform_2, window_bounds = array<i64: 1, 32>}, {pipeline_mode = #tpu.pipeline_mode<synchronous>, transform_indices = @transform_3, window_bounds = array<i64: 256, 125>}, {pipeline_mode = #tpu.pipeline_mode<synchronous>, transform_indices = @transform_4, window_bounds = array<i64: 256, 64>}, {pipeline_mode = #tpu.pipeline_mode<synchronous>, transform_indices = @transform_5, window_bounds = array<i64: 256, 1>}, {pipeline_mode = #tpu.pipeline_mode<synchronous>, transform_indices = @transform_6, window_bounds = array<i64: 250, 64>}, {pipeline_mode = #tpu.pipeline_mode<synchronous>, transform_indices = @transform_7, window_bounds = array<i64: 250, 1>}, {pipeline_mode = #tpu.pipeline_mode<synchronous>, transform_indices = @transform_8, window_bounds = array<i64: 250, 1>}, {pipeline_mode = #tpu.pipeline_mode<synchronous>, transform_indices = @transform_9, window_bounds = array<i64: 1, 1>}, {pipeline_mode = #tpu.pipeline_mode<synchronous>, transform_indices = @transform_10, window_bounds = array<i64: 2, 1>}]} {
    %cst = arith.constant 0.000000e+00 : f32
    %0 = vector.broadcast %cst : f32 to vector<1016x64xf32>
    %c0 = arith.constant 0 : index
    %c0_0 = arith.constant 0 : index
    %1 = vector.load %arg12[%c0, %c0_0] : memref<1016x64xf32, #tpu.memory_space<vmem>>, vector<1016x64xf32>
    tpu.vector_store %arg12[%c0, %c0_0], %0 {strides = array<i32>} : memref<1016x64xf32, #tpu.memory_space<vmem>>, vector<1016x64xf32>,
    %c0_1 = arith.constant 0 : index
    %c0_2 = arith.constant 0 : index
    %c0_3 = arith.constant 0 : index
    %2 = vector.load %arg1[%c0_1, %c0_2, %c0_3] : memref<2x500x64xf32, #tpu.memory_space<vmem>>, vector<1x500x64xf32>
    %3 = vector.shape_cast %2 : vector<1x500x64xf32> to vector<500x64xf32>
    %c8 = arith.constant 8 : index
    %c0_4 = arith.constant 0 : index
    %4 = vector.load %arg12[%c8, %c0_4] : memref<1016x64xf32, #tpu.memory_space<vmem>>, vector<500x64xf32>
    tpu.vector_store %arg12[%c8, %c0_4], %3 {strides = array<i32>} : memref<1016x64xf32, #tpu.memory_space<vmem>>, vector<500x64xf32>,
    %c1 = arith.constant 1 : index
    %c0_5 = arith.constant 0 : index
    %c0_6 = arith.constant 0 : index
    %5 = vector.load %arg1[%c1, %c0_5, %c0_6] : memref<2x500x64xf32, #tpu.memory_space<vmem>>, vector<1x500x64xf32>
    %6 = vector.shape_cast %5 : vector<1x500x64xf32> to vector<500x64xf32>
    %c512 = arith.constant 512 : index
    %c0_7 = arith.constant 0 : index
    %7 = vector.load %arg12[%c512, %c0_7] : memref<1016x64xf32, #tpu.memory_space<vmem>>, vector<500x64xf32>
    tpu.vector_store %arg12[%c512, %c0_7], %6 {strides = array<i32>} : memref<1016x64xf32, #tpu.memory_space<vmem>>, vector<500x64xf32>,
    %c0_8 = arith.constant 0 : index
    %c0_9 = arith.constant 0 : index
    %8 = vector.load %arg3[%c0_8, %c0_9] : memref<1x32xf32, #tpu.memory_space<vmem>>, vector<1x32xf32>
    %9 = vector.shape_cast %8 : vector<1x32xf32> to vector<1x32xf32>
    %10 = vector.broadcast %9 : vector<1x32xf32> to vector<1004x32xf32>
    %c7 = arith.constant 7 : index
    %c0_10 = arith.constant 0 : index
    %11 = vector.load %arg12[%c7, %c0_10] : memref<1016x64xf32, #tpu.memory_space<vmem>>, vector<1004x64xf32>
    %c0_11 = arith.constant 0 : index
    %c0_12 = arith.constant 0 : index
    %c0_13 = arith.constant 0 : index
    %12 = vector.load %arg2[%c0_11, %c0_12, %c0_13] : memref<3x64x32xf32, #tpu.memory_space<vmem>>, vector<1x64x32xf32>
    %13 = vector.shape_cast %12 : vector<1x64x32xf32> to vector<64x32xf32>
    %cst_14 = arith.constant dense<0.000000e+00> : vector<1004x32xf32>
    %14 = tpu.matmul %11, %13, %cst_14 {dimension_numbers = #tpu.dot_dimension_numbers<[1], [0], [0], [1], [0, 0, 1, 1], [], []>} : vector<1004x64xf32>, vector<64x32xf32>, vector<1004x32xf32> -> vector<1004x32xf32>
    %15 = arith.addf %10, %14 : vector<1004x32xf32>
    %c8_15 = arith.constant 8 : index
    %c0_16 = arith.constant 0 : index
    %16 = vector.load %arg12[%c8_15, %c0_16] : memref<1016x64xf32, #tpu.memory_space<vmem>>, vector<1004x64xf32>
    %c1_17 = arith.constant 1 : index
    %c0_18 = arith.constant 0 : index
    %c0_19 = arith.constant 0 : index
    %17 = vector.load %arg2[%c1_17, %c0_18, %c0_19] : memref<3x64x32xf32, #tpu.memory_space<vmem>>, vector<1x64x32xf32>
    %18 = vector.shape_cast %17 : vector<1x64x32xf32> to vector<64x32xf32>
    %cst_20 = arith.constant dense<0.000000e+00> : vector<1004x32xf32>
    %19 = tpu.matmul %16, %18, %cst_20 {dimension_numbers = #tpu.dot_dimension_numbers<[1], [0], [0], [1], [0, 0, 1, 1], [], []>} : vector<1004x64xf32>, vector<64x32xf32>, vector<1004x32xf32> -> vector<1004x32xf32>
    %20 = arith.addf %15, %19 : vector<1004x32xf32>
    %c9 = arith.constant 9 : index
    %c0_21 = arith.constant 0 : index
    %21 = vector.load %arg12[%c9, %c0_21] : memref<1016x64xf32, #tpu.memory_space<vmem>>, vector<1004x64xf32>
    %c2 = arith.constant 2 : index
    %c0_22 = arith.constant 0 : index
    %c0_23 = arith.constant 0 : index
    %22 = vector.load %arg2[%c2, %c0_22, %c0_23] : memref<3x64x32xf32, #tpu.memory_space<vmem>>, vector<1x64x32xf32>
    %23 = vector.shape_cast %22 : vector<1x64x32xf32> to vector<64x32xf32>
    %cst_24 = arith.constant dense<0.000000e+00> : vector<1004x32xf32>
    %24 = tpu.matmul %21, %23, %cst_24 {dimension_numbers = #tpu.dot_dimension_numbers<[1], [0], [0], [1], [0, 0, 1, 1], [], []>} : vector<1004x64xf32>, vector<64x32xf32>, vector<1004x32xf32> -> vector<1004x32xf32>
    %25 = arith.addf %20, %24 : vector<1004x32xf32>
    %cst_25 = arith.constant 0.000000e+00 : f32
    %26 = vector.broadcast %cst_25 : f32 to vector<1004x32xf32>
    %27 = arith.maximumf %25, %26 : vector<1004x32xf32>
    %c0_26 = arith.constant 0 : index
    %c0_27 = arith.constant 0 : index
    %28 = vector.load %arg13[%c0_26, %c0_27] : memref<1008x32xf32, #tpu.memory_space<vmem>>, vector<1004x32xf32>
    tpu.vector_store %arg13[%c0_26, %c0_27], %27 {strides = array<i32>} : memref<1008x32xf32, #tpu.memory_space<vmem>>, vector<1004x32xf32>,
    %c0_28 = arith.constant 0 : index
    %c0_29 = arith.constant 0 : index
    %29 = tpu.strided_load %arg13[%c0_28, %c0_29] {strides = array<i32: 4, 1>} : memref<1008x32xf32, #tpu.memory_space<vmem>>, vector<125x32xf32>
    %c1_30 = arith.constant 1 : index
    %c0_31 = arith.constant 0 : index
    %30 = tpu.strided_load %arg13[%c1_30, %c0_31] {strides = array<i32: 4, 1>} : memref<1008x32xf32, #tpu.memory_space<vmem>>, vector<125x32xf32>
    %31 = arith.maximumf %29, %30 : vector<125x32xf32>
    %c2_32 = arith.constant 2 : index
    %c0_33 = arith.constant 0 : index
    %32 = tpu.strided_load %arg13[%c2_32, %c0_33] {strides = array<i32: 4, 1>} : memref<1008x32xf32, #tpu.memory_space<vmem>>, vector<125x32xf32>
    %33 = arith.maximumf %31, %32 : vector<125x32xf32>
    %c3 = arith.constant 3 : index
    %c0_34 = arith.constant 0 : index
    %34 = tpu.strided_load %arg13[%c3, %c0_34] {strides = array<i32: 4, 1>} : memref<1008x32xf32, #tpu.memory_space<vmem>>, vector<125x32xf32>
    %35 = arith.maximumf %33, %34 : vector<125x32xf32>
    %c0_35 = arith.constant 0 : index
    %c0_36 = arith.constant 0 : index
    %36 = vector.load %arg4[%c0_35, %c0_36] : memref<256x125xf32, #tpu.memory_space<vmem>>, vector<256x125xf32>
    %cst_37 = arith.constant dense<0.000000e+00> : vector<256x32xf32>
    %37 = tpu.matmul %36, %35, %cst_37 {dimension_numbers = #tpu.dot_dimension_numbers<[1], [0], [0], [1], [0, 0, 1, 1], [], []>} : vector<256x125xf32>, vector<125x32xf32>, vector<256x32xf32> -> vector<256x32xf32>
    %c0_38 = arith.constant 0 : index
    %c0_39 = arith.constant 0 : index
    %38 = vector.load %arg6[%c0_38, %c0_39] : memref<256x1xf32, #tpu.memory_space<vmem>>, vector<256x1xf32>
    %39 = vector.broadcast %38 : vector<256x1xf32> to vector<256x32xf32>
    %40 = arith.addf %37, %39 : vector<256x32xf32>
    %c0_40 = arith.constant 0 : index
    %c0_41 = arith.constant 0 : index
    %c0_42 = arith.constant 0 : index
    %41 = vector.load %arg14[%c0_40, %c0_41, %c0_42] : memref<2x256x32xf32, #tpu.memory_space<vmem>>, vector<1x256x32xf32>
    %42 = vector.shape_cast %41 : vector<1x256x32xf32> to vector<256x32xf32>
    %43 = vector.shape_cast %40 : vector<256x32xf32> to vector<1x256x32xf32>
    tpu.vector_store %arg14[%c0_40, %c0_41, %c0_42], %43 {strides = array<i32>} : memref<2x256x32xf32, #tpu.memory_space<vmem>>, vector<1x256x32xf32>,
    %c504 = arith.constant 504 : index
    %c0_43 = arith.constant 0 : index
    %44 = tpu.strided_load %arg13[%c504, %c0_43] {strides = array<i32: 4, 1>} : memref<1008x32xf32, #tpu.memory_space<vmem>>, vector<125x32xf32>
    %c505 = arith.constant 505 : index
    %c0_44 = arith.constant 0 : index
    %45 = tpu.strided_load %arg13[%c505, %c0_44] {strides = array<i32: 4, 1>} : memref<1008x32xf32, #tpu.memory_space<vmem>>, vector<125x32xf32>
    %46 = arith.maximumf %44, %45 : vector<125x32xf32>
    %c506 = arith.constant 506 : index
    %c0_45 = arith.constant 0 : index
    %47 = tpu.strided_load %arg13[%c506, %c0_45] {strides = array<i32: 4, 1>} : memref<1008x32xf32, #tpu.memory_space<vmem>>, vector<125x32xf32>
    %48 = arith.maximumf %46, %47 : vector<125x32xf32>
    %c507 = arith.constant 507 : index
    %c0_46 = arith.constant 0 : index
    %49 = tpu.strided_load %arg13[%c507, %c0_46] {strides = array<i32: 4, 1>} : memref<1008x32xf32, #tpu.memory_space<vmem>>, vector<125x32xf32>
    %50 = arith.maximumf %48, %49 : vector<125x32xf32>
    %c0_47 = arith.constant 0 : index
    %c0_48 = arith.constant 0 : index
    %51 = vector.load %arg4[%c0_47, %c0_48] : memref<256x125xf32, #tpu.memory_space<vmem>>, vector<256x125xf32>
    %cst_49 = arith.constant dense<0.000000e+00> : vector<256x32xf32>
    %52 = tpu.matmul %51, %50, %cst_49 {dimension_numbers = #tpu.dot_dimension_numbers<[1], [0], [0], [1], [0, 0, 1, 1], [], []>} : vector<256x125xf32>, vector<125x32xf32>, vector<256x32xf32> -> vector<256x32xf32>
    %c0_50 = arith.constant 0 : index
    %c0_51 = arith.constant 0 : index
    %53 = vector.load %arg6[%c0_50, %c0_51] : memref<256x1xf32, #tpu.memory_space<vmem>>, vector<256x1xf32>
    %54 = vector.broadcast %53 : vector<256x1xf32> to vector<256x32xf32>
    %55 = arith.addf %52, %54 : vector<256x32xf32>
    %c1_52 = arith.constant 1 : index
    %c0_53 = arith.constant 0 : index
    %c0_54 = arith.constant 0 : index
    %56 = vector.load %arg14[%c1_52, %c0_53, %c0_54] : memref<2x256x32xf32, #tpu.memory_space<vmem>>, vector<1x256x32xf32>
    %57 = vector.shape_cast %56 : vector<1x256x32xf32> to vector<256x32xf32>
    %58 = vector.shape_cast %55 : vector<256x32xf32> to vector<1x256x32xf32>
    tpu.vector_store %arg14[%c1_52, %c0_53, %c0_54], %58 {strides = array<i32>} : memref<2x256x32xf32, #tpu.memory_space<vmem>>, vector<1x256x32xf32>,
    %59 = tpu.iota {dimensions = array<i32: 1>} : vector<1x32xi32>
    %c31_i32 = arith.constant 31 : i32
    %60 = vector.broadcast %c31_i32 : i32 to vector<1x32xi32>
    %61 = arith.cmpi eq, %59, %60 : vector<1x32xi32>
    %62 = arith.extui %61 : vector<1x32xi1> to vector<1x32xi32>
    %63 = arith.sitofp %62 : vector<1x32xi32> to vector<1x32xf32>
    %cst_55 = arith.constant 0.000000e+00 : f32
    %64 = vector.broadcast %cst_55 : f32 to vector<64x32xf32>
    %cst_56 = arith.constant 0.000000e+00 : f32
    %65 = vector.broadcast %cst_56 : f32 to vector<64x32xf32>
    %c0_57 = arith.constant 0 : index
    %c0_58 = arith.constant 0 : index
    %c0_59 = arith.constant 0 : index
    %66 = vector.load %arg14[%c0_57, %c0_58, %c0_59] : memref<2x256x32xf32, #tpu.memory_space<vmem>>, vector<1x256x32xf32>
    %67 = vector.shape_cast %66 : vector<1x256x32xf32> to vector<256x32xf32>
    %c0_60 = arith.constant 0 : index
    %c0_61 = arith.constant 0 : index
    %68 = vector.load %arg5[%c0_60, %c0_61] : memref<256x64xf32, #tpu.memory_space<vmem>>, vector<256x64xf32>
    %cst_62 = arith.constant dense<0.000000e+00> : vector<256x32xf32>
    %69 = tpu.matmul %68, %64, %cst_62 {dimension_numbers = #tpu.dot_dimension_numbers<[1], [0], [0], [1], [0, 0, 1, 1], [], []>} : vector<256x64xf32>, vector<64x32xf32>, vector<256x32xf32> -> vector<256x32xf32>
    %70 = arith.addf %67, %69 : vector<256x32xf32>
    %71 = vector.extract_strided_slice %70 {offsets = [0, 0], sizes = [64, 32], strides = [1, 1]} : vector<256x32xf32> to vector<64x32xf32>
    %72 = arith.negf %71 : vector<64x32xf32>
    %73 = math.exp %72 : vector<64x32xf32>
    %cst_63 = arith.constant 1.000000e+00 : f32
    %74 = vector.broadcast %cst_63 : f32 to vector<64x32xf32>
    %75 = arith.addf %74, %73 : vector<64x32xf32>
    %76 = arith.divf %74, %75 : vector<64x32xf32>
    %77 = vector.extract_strided_slice %70 {offsets = [64, 0], sizes = [64, 32], strides = [1, 1]} : vector<256x32xf32> to vector<64x32xf32>
    %78 = arith.negf %77 : vector<64x32xf32>
    %79 = math.exp %78 : vector<64x32xf32>
    %cst_64 = arith.constant 1.000000e+00 : f32
    %80 = vector.broadcast %cst_64 : f32 to vector<64x32xf32>
    %81 = arith.addf %80, %79 : vector<64x32xf32>
    %82 = arith.divf %80, %81 : vector<64x32xf32>
    %83 = vector.extract_strided_slice %70 {offsets = [128, 0], sizes = [64, 32], strides = [1, 1]} : vector<256x32xf32> to vector<64x32xf32>
    %84 = math.tanh %83 : vector<64x32xf32>
    %85 = vector.extract_strided_slice %70 {offsets = [192, 0], sizes = [64, 32], strides = [1, 1]} : vector<256x32xf32> to vector<64x32xf32>
    %86 = arith.negf %85 : vector<64x32xf32>
    %87 = math.exp %86 : vector<64x32xf32>
    %cst_65 = arith.constant 1.000000e+00 : f32
    %88 = vector.broadcast %cst_65 : f32 to vector<64x32xf32>
    %89 = arith.addf %88, %87 : vector<64x32xf32>
    %90 = arith.divf %88, %89 : vector<64x32xf32>
    %91 = arith.mulf %82, %65 : vector<64x32xf32>
    %92 = arith.mulf %76, %84 : vector<64x32xf32>
    %93 = arith.addf %91, %92 : vector<64x32xf32>
    %94 = math.tanh %93 : vector<64x32xf32>
    %95 = arith.mulf %90, %94 : vector<64x32xf32>
    %96 = vector.broadcast %63 : vector<1x32xf32> to vector<64x32xf32>
    %97 = arith.mulf %95, %96 : vector<64x32xf32>
    %cst_66 = arith.constant dense<0.000000e+00> : vector<64xf32>
    %98 = vector.multi_reduction <add>, %97, %cst_66 [1] : vector<64x32xf32> to vector<64xf32>
    %99 = vector.shape_cast %98 : vector<64xf32> to vector<64x1xf32>
    %100 = math.tanh %99 : vector<64x1xf32>
    %c0_67 = arith.constant 0 : index
    %c0_68 = arith.constant 0 : index
    %101 = vector.load %arg7[%c0_67, %c0_68] : memref<250x64xf32, #tpu.memory_space<vmem>>, vector<250x64xf32>
    %cst_69 = arith.constant dense<0.000000e+00> : vector<250x1xf32>
    %102 = tpu.matmul %101, %100, %cst_69 {dimension_numbers = #tpu.dot_dimension_numbers<[1], [0], [0], [1], [0, 0, 1, 1], [], []>} : vector<250x64xf32>, vector<64x1xf32>, vector<250x1xf32> -> vector<250x1xf32>
    %c0_70 = arith.constant 0 : index
    %c0_71 = arith.constant 0 : index
    %103 = vector.load %arg8[%c0_70, %c0_71] : memref<250x1xf32, #tpu.memory_space<vmem>>, vector<250x1xf32>
    %104 = arith.addf %102, %103 : vector<250x1xf32>
    %cst_72 = arith.constant 0.000000e+00 : f32
    %105 = vector.broadcast %cst_72 : f32 to vector<250x1xf32>
    %106 = arith.maximumf %104, %105 : vector<250x1xf32>
    %c0_73 = arith.constant 0 : index
    %c0_74 = arith.constant 0 : index
    %107 = vector.load %arg9[%c0_73, %c0_74] : memref<250x1xf32, #tpu.memory_space<vmem>>, vector<250x1xf32>
    %108 = arith.mulf %107, %106 : vector<250x1xf32>
    %cst_75 = arith.constant dense<0.000000e+00> : vector<1xf32>
    %109 = vector.multi_reduction <add>, %108, %cst_75 [0] : vector<250x1xf32> to vector<1xf32>
    %110 = vector.shape_cast %109 : vector<1xf32> to vector<1x1xf32>
    %c0_76 = arith.constant 0 : index
    %c0_77 = arith.constant 0 : index
    %111 = vector.load %arg10[%c0_76, %c0_77] : memref<1x1xf32, #tpu.memory_space<vmem>>, vector<1x1xf32>
    %112 = arith.addf %110, %111 : vector<1x1xf32>
    %113 = arith.negf %112 : vector<1x1xf32>
    %114 = math.exp %113 : vector<1x1xf32>
    %cst_78 = arith.constant 1.000000e+00 : f32
    %115 = vector.broadcast %cst_78 : f32 to vector<1x1xf32>
    %116 = arith.addf %115, %114 : vector<1x1xf32>
    %117 = arith.divf %115, %116 : vector<1x1xf32>
    %c0_79 = arith.constant 0 : index
    %c0_80 = arith.constant 0 : index
    %118 = vector.load %arg11[%c0_79, %c0_80] : memref<2x1xf32, #tpu.memory_space<vmem>>, vector<1x1xf32>
    tpu.vector_store %arg11[%c0_79, %c0_80], %117 {strides = array<i32>} : memref<2x1xf32, #tpu.memory_space<vmem>>, vector<1x1xf32>,
    %c1_81 = arith.constant 1 : index
    %c0_82 = arith.constant 0 : index
    %c0_83 = arith.constant 0 : index
    %119 = vector.load %arg14[%c1_81, %c0_82, %c0_83] : memref<2x256x32xf32, #tpu.memory_space<vmem>>, vector<1x256x32xf32>
    %120 = vector.shape_cast %119 : vector<1x256x32xf32> to vector<256x32xf32>
    %c0_84 = arith.constant 0 : index
    %c0_85 = arith.constant 0 : index
    %121 = vector.load %arg5[%c0_84, %c0_85] : memref<256x64xf32, #tpu.memory_space<vmem>>, vector<256x64xf32>
    %cst_86 = arith.constant dense<0.000000e+00> : vector<256x32xf32>
    %122 = tpu.matmul %121, %95, %cst_86 {dimension_numbers = #tpu.dot_dimension_numbers<[1], [0], [0], [1], [0, 0, 1, 1], [], []>} : vector<256x64xf32>, vector<64x32xf32>, vector<256x32xf32> -> vector<256x32xf32>
    %123 = arith.addf %120, %122 : vector<256x32xf32>
    %124 = vector.extract_strided_slice %123 {offsets = [0, 0], sizes = [64, 32], strides = [1, 1]} : vector<256x32xf32> to vector<64x32xf32>
    %125 = arith.negf %124 : vector<64x32xf32>
    %126 = math.exp %125 : vector<64x32xf32>
    %cst_87 = arith.constant 1.000000e+00 : f32
    %127 = vector.broadcast %cst_87 : f32 to vector<64x32xf32>
    %128 = arith.addf %127, %126 : vector<64x32xf32>
    %129 = arith.divf %127, %128 : vector<64x32xf32>
    %130 = vector.extract_strided_slice %123 {offsets = [64, 0], sizes = [64, 32], strides = [1, 1]} : vector<256x32xf32> to vector<64x32xf32>
    %131 = arith.negf %130 : vector<64x32xf32>
    %132 = math.exp %131 : vector<64x32xf32>
    %cst_88 = arith.constant 1.000000e+00 : f32
    %133 = vector.broadcast %cst_88 : f32 to vector<64x32xf32>
    %134 = arith.addf %133, %132 : vector<64x32xf32>
    %135 = arith.divf %133, %134 : vector<64x32xf32>
    %136 = vector.extract_strided_slice %123 {offsets = [128, 0], sizes = [64, 32], strides = [1, 1]} : vector<256x32xf32> to vector<64x32xf32>
    %137 = math.tanh %136 : vector<64x32xf32>
    %138 = vector.extract_strided_slice %123 {offsets = [192, 0], sizes = [64, 32], strides = [1, 1]} : vector<256x32xf32> to vector<64x32xf32>
    %139 = arith.negf %138 : vector<64x32xf32>
    %140 = math.exp %139 : vector<64x32xf32>
    %cst_89 = arith.constant 1.000000e+00 : f32
    %141 = vector.broadcast %cst_89 : f32 to vector<64x32xf32>
    %142 = arith.addf %141, %140 : vector<64x32xf32>
    %143 = arith.divf %141, %142 : vector<64x32xf32>
    %144 = arith.mulf %135, %93 : vector<64x32xf32>
    %145 = arith.mulf %129, %137 : vector<64x32xf32>
    %146 = arith.addf %144, %145 : vector<64x32xf32>
    %147 = math.tanh %146 : vector<64x32xf32>
    %148 = arith.mulf %143, %147 : vector<64x32xf32>
    %149 = vector.broadcast %63 : vector<1x32xf32> to vector<64x32xf32>
    %150 = arith.mulf %148, %149 : vector<64x32xf32>
    %cst_90 = arith.constant dense<0.000000e+00> : vector<64xf32>
    %151 = vector.multi_reduction <add>, %150, %cst_90 [1] : vector<64x32xf32> to vector<64xf32>
    %152 = vector.shape_cast %151 : vector<64xf32> to vector<64x1xf32>
    %153 = math.tanh %152 : vector<64x1xf32>
    %c0_91 = arith.constant 0 : index
    %c0_92 = arith.constant 0 : index
    %154 = vector.load %arg7[%c0_91, %c0_92] : memref<250x64xf32, #tpu.memory_space<vmem>>, vector<250x64xf32>
    %cst_93 = arith.constant dense<0.000000e+00> : vector<250x1xf32>
    %155 = tpu.matmul %154, %153, %cst_93 {dimension_numbers = #tpu.dot_dimension_numbers<[1], [0], [0], [1], [0, 0, 1, 1], [], []>} : vector<250x64xf32>, vector<64x1xf32>, vector<250x1xf32> -> vector<250x1xf32>
    %c0_94 = arith.constant 0 : index
    %c0_95 = arith.constant 0 : index
    %156 = vector.load %arg8[%c0_94, %c0_95] : memref<250x1xf32, #tpu.memory_space<vmem>>, vector<250x1xf32>
    %157 = arith.addf %155, %156 : vector<250x1xf32>
    %cst_96 = arith.constant 0.000000e+00 : f32
    %158 = vector.broadcast %cst_96 : f32 to vector<250x1xf32>
    %159 = arith.maximumf %157, %158 : vector<250x1xf32>
    %c0_97 = arith.constant 0 : index
    %c0_98 = arith.constant 0 : index
    %160 = vector.load %arg9[%c0_97, %c0_98] : memref<250x1xf32, #tpu.memory_space<vmem>>, vector<250x1xf32>
    %161 = arith.mulf %160, %159 : vector<250x1xf32>
    %cst_99 = arith.constant dense<0.000000e+00> : vector<1xf32>
    %162 = vector.multi_reduction <add>, %161, %cst_99 [0] : vector<250x1xf32> to vector<1xf32>
    %163 = vector.shape_cast %162 : vector<1xf32> to vector<1x1xf32>
    %c0_100 = arith.constant 0 : index
    %c0_101 = arith.constant 0 : index
    %164 = vector.load %arg10[%c0_100, %c0_101] : memref<1x1xf32, #tpu.memory_space<vmem>>, vector<1x1xf32>
    %165 = arith.addf %163, %164 : vector<1x1xf32>
    %166 = arith.negf %165 : vector<1x1xf32>
    %167 = math.exp %166 : vector<1x1xf32>
    %cst_102 = arith.constant 1.000000e+00 : f32
    %168 = vector.broadcast %cst_102 : f32 to vector<1x1xf32>
    %169 = arith.addf %168, %167 : vector<1x1xf32>
    %170 = arith.divf %168, %169 : vector<1x1xf32>
    %c1_103 = arith.constant 1 : index
    %c0_104 = arith.constant 0 : index
    %171 = vector.load %arg11[%c1_103, %c0_104] : memref<2x1xf32, #tpu.memory_space<vmem>>, vector<1x1xf32>
    tpu.vector_store %arg11[%c1_103, %c0_104], %170 {strides = array<i32>} : memref<2x1xf32, #tpu.memory_space<vmem>>, vector<1x1xf32>,
    return
  }
  func.func @transform_0(%arg0: i32) -> (i32, i32, i32) {
    %c0_i32 = arith.constant 0 : i32
    %c0_i32_0 = arith.constant 0 : i32
    %c0_i32_1 = arith.constant 0 : i32
    %c0_i32_2 = arith.constant 0 : i32
    return %c0_i32, %c0_i32_0, %c0_i32_1 : i32, i32, i32
  }
  func.func @transform_1(%arg0: i32) -> (i32, i32, i32) {
    %c0_i32 = arith.constant 0 : i32
    %c0_i32_0 = arith.constant 0 : i32
    %c0_i32_1 = arith.constant 0 : i32
    %c0_i32_2 = arith.constant 0 : i32
    return %c0_i32, %c0_i32_0, %c0_i32_1 : i32, i32, i32
  }
  func.func @transform_2(%arg0: i32) -> (i32, i32) {
    %c0_i32 = arith.constant 0 : i32
    %c0_i32_0 = arith.constant 0 : i32
    %c0_i32_1 = arith.constant 0 : i32
    return %c0_i32, %c0_i32_0 : i32, i32
  }
  func.func @transform_3(%arg0: i32) -> (i32, i32) {
    %c0_i32 = arith.constant 0 : i32
    %c0_i32_0 = arith.constant 0 : i32
    %c0_i32_1 = arith.constant 0 : i32
    return %c0_i32, %c0_i32_0 : i32, i32
  }
  func.func @transform_4(%arg0: i32) -> (i32, i32) {
    %c0_i32 = arith.constant 0 : i32
    %c0_i32_0 = arith.constant 0 : i32
    %c0_i32_1 = arith.constant 0 : i32
    return %c0_i32, %c0_i32_0 : i32, i32
  }
  func.func @transform_5(%arg0: i32) -> (i32, i32) {
    %c0_i32 = arith.constant 0 : i32
    %c0_i32_0 = arith.constant 0 : i32
    %c0_i32_1 = arith.constant 0 : i32
    return %c0_i32, %c0_i32_0 : i32, i32
  }
  func.func @transform_6(%arg0: i32) -> (i32, i32) {
    %c0_i32 = arith.constant 0 : i32
    %c0_i32_0 = arith.constant 0 : i32
    %c0_i32_1 = arith.constant 0 : i32
    return %c0_i32, %c0_i32_0 : i32, i32
  }
  func.func @transform_7(%arg0: i32) -> (i32, i32) {
    %c0_i32 = arith.constant 0 : i32
    %c0_i32_0 = arith.constant 0 : i32
    %c0_i32_1 = arith.constant 0 : i32
    return %c0_i32, %c0_i32_0 : i32, i32
  }
  func.func @transform_8(%arg0: i32) -> (i32, i32) {
    %c0_i32 = arith.constant 0 : i32
    %c0_i32_0 = arith.constant 0 : i32
    %c0_i32_1 = arith.constant 0 : i32
    return %c0_i32, %c0_i32_0 : i32, i32
  }
  func.func @transform_9(%arg0: i32) -> (i32, i32) {
    %c0_i32 = arith.constant 0 : i32
    %c0_i32_0 = arith.constant 0 : i32
    %c0_i32_1 = arith.constant 0 : i32
    return %c0_i32, %c0_i32_0 : i32, i32
  }
  func.func @transform_10(%arg0: i32) -> (i32, i32) {
    %c0_i32 = arith.constant 0 : i32
    %c0_i32_0 = arith.constant 0 : i32
    %c0_i32_1 = arith.constant 0 : i32
    return %c0_i32, %c0_i32_0 : i32, i32
  }
}

</mosaic_0001>

<llo_original>
// kernel: review_sentiment_forward.1
$region0: #{review_sentiment_forward.1}
  #allocation0 [shape = 'u32[]', space=smem, size = 0x4, offset = 0x4, fixed_abs, tag = 'smem constant byte address 0x4 - core index']
  #allocation1 [shape = 'u32[144,128]{1,0:T(1,128)}', space=vmem, size = 0x12000, scoped, tag = 'internal scratch']
  #allocation2 [shape = 'f32[1016,64]{1,0:T(8,128)}', space=vmem, size = 0x7f000, scoped, tag = 'scratch operand']
  #allocation3 [shape = 'f32[1008,32]{1,0:T(8,128)}', space=vmem, size = 0x7e000, scoped, tag = 'scratch operand']
  #allocation4 [shape = 'f32[2,256,32]{2,1,0:T(8,128)}', space=vmem, size = 0x40000, scoped, tag = 'scratch operand']
  #allocation5 [shape = 'f32[1,1]{1,0:T(1,128)S(1)}', space=vmem, size = 0x200, scoped, tag = 'scoped memory for review_sentiment_forward.1']
  %s0 = inlined_call_operand.vmem [shape: f32[2,500,64], index: 0, kind: input, shape index: {}]
  %s1 = inlined_call_operand.vmem [shape: f32[3,64,32], index: 1, kind: input, shape index: {}]
  %s2 = inlined_call_operand.vmem [shape: f32[1,32], index: 2, kind: input, shape index: {}]
  %s3 = inlined_call_operand.vmem [shape: f32[256,125], index: 3, kind: input, shape index: {}]
  %s4 = inlined_call_operand.vmem [shape: f32[256,64], index: 4, kind: input, shape index: {}]
  %s5 = inlined_call_operand.vmem [shape: f32[256,1], index: 5, kind: input, shape index: {}]
  %s6 = inlined_call_operand.vmem [shape: f32[250,64], index: 6, kind: input, shape index: {}]
  %s7 = inlined_call_operand.vmem [shape: f32[250,1], index: 7, kind: input, shape index: {}]
  %s8 = inlined_call_operand.vmem [shape: f32[250,1], index: 8, kind: input, shape index: {}]
  %s9 = inlined_call_operand.<no memory space> [shape: f32[1,1], index: 9, kind: input, shape index: {}]
  %s10 = inlined_call_operand.vmem [shape: f32[2,1], index: 10, kind: output, shape index: {}]
  %s11 = sld [smem:[#allocation0]]
  $region50: #{review_sentiment_forward.1} parent=0
    _
  %s13 = ssub.s32 1, %s11
  %s14 = scalar_select 0, %s13, %s11
  %v15 = vstv %s9
  %16 = vst [vmem:[#allocation5] sm:$0x1] %v15
  // Predicated region
  $region2: #{review_sentiment_forward.1} parent=0 // pred_check
    _
  $region3: #{review_sentiment_forward.1} parent=0 // pred_check_branch
    %18 = sbr.rel (0) target = $region5
  $region4: #{review_sentiment_forward.1} parent=0 // pred_region
    _
  $region5: #{review_sentiment_forward.1} parent=0 // pred_fallthru
    _
  // Predicated region
  $region6: #{review_sentiment_forward.1} parent=0 // pred_check
    _
  $region7: #{review_sentiment_forward.1} parent=0 // pred_check_branch
    %20 = sbr.rel (0) target = $region9
  $region8: #{review_sentiment_forward.1} parent=0 // pred_region
    _
  $region9: #{review_sentiment_forward.1} parent=0 // pred_fallthru
    _
  // Predicated region
  $region10: #{review_sentiment_forward.1} parent=0 // pred_check
    _
  $region11: #{review_sentiment_forward.1} parent=0 // pred_check_branch
    %22 = sbr.rel (0) target = $region13
  $region12: #{review_sentiment_forward.1} parent=0 // pred_region
    _
  $region13: #{review_sentiment_forward.1} parent=0 // pred_fallthru
    _
  // Predicated region
  $region14: #{review_sentiment_forward.1} parent=0 // pred_check
    _
  $region15: #{review_sentiment_forward.1} parent=0 // pred_check_branch
    %24 = sbr.rel (0) target = $region17
  $region16: #{review_sentiment_forward.1} parent=0 // pred_region
    _
  $region17: #{review_sentiment_forward.1} parent=0 // pred_fallthru
    _
  // Predicated region
  $region18: #{review_sentiment_forward.1} parent=0 // pred_check
    _
  $region19: #{review_sentiment_forward.1} parent=0 // pred_check_branch
    %26 = sbr.rel (0) target = $region21
  $region20: #{review_sentiment_forward.1} parent=0 // pred_region
    _
  $region21: #{review_sentiment_forward.1} parent=0 // pred_fallthru
    _
  // Predicated region
  $region22: #{review_sentiment_forward.1} parent=0 // pred_check
    _
  $region23: #{review_sentiment_forward.1} parent=0 // pred_check_branch
    %28 = sbr.rel (0) target = $region25
  $region24: #{review_sentiment_forward.1} parent=0 // pred_region
    _
  $region25: #{review_sentiment_forward.1} parent=0 // pred_fallthru
    _
  // Predicated region
  $region26: #{review_sentiment_forward.1} parent=0 // pred_check
    _
  $region27: #{review_sentiment_forward.1} parent=0 // pred_check_branch
    %30 = sbr.rel (0) target = $region29
  $region28: #{review_sentiment_forward.1} parent=0 // pred_region
    _
  $region29: #{review_sentiment_forward.1} parent=0 // pred_fallthru
    _
  // Predicated region
  $region30: #{review_sentiment_forward.1} parent=0 // pred_check
    _
  $region31: #{review_sentiment_forward.1} parent=0 // pred_check_branch
    %32 = sbr.rel (0) target = $region33
  $region32: #{review_sentiment_forward.1} parent=0 // pred_region
    _
  $region33: #{review_sentiment_forward.1} parent=0 // pred_fallthru
    _
  // Predicated region
  $region34: #{review_sentiment_forward.1} parent=0 // pred_check
    _
  $region35: #{review_sentiment_forward.1} parent=0 // pred_check_branch
    %34 = sbr.rel (0) target = $region37
  $region36: #{review_sentiment_forward.1} parent=0 // pred_region
    _
  $region37: #{review_sentiment_forward.1} parent=0 // pred_fallthru
    _
  // Predicated region
  $region38: #{review_sentiment_forward.1} parent=0 // pred_check
    _
  $region39: #{review_sentiment_forward.1} parent=0 // pred_check_branch
    %36 = sbr.rel (0) target = $region41
  $region40: #{review_sentiment_forward.1} parent=0 // pred_region
    _
  $region41: #{review_sentiment_forward.1} parent=0 // pred_fallthru
    _
  %vm37 = vcmask 523264
  %38 = vst.msk [vmem:[#allocation2] sm:$0xff] %vm37, 0.0
  %39 = vst.msk [vmem:[#allocation2 + $0x8] sm:$0xff] %vm37, 0.0
  %40 = vst.msk [vmem:[#allocation2 + $0x10] sm:$0xff] %vm37, 0.0
  %41 = vst.msk [vmem:[#allocation2 + $0x18] sm:$0xff] %vm37, 0.0
  %42 = vst.msk [vmem:[#allocation2 + $0x20] sm:$0xff] %vm37, 0.0
  %43 = vst.msk [vmem:[#allocation2 + $0x28] sm:$0xff] %vm37, 0.0
  %44 = vst.msk [vmem:[#allocation2 + $0x30] sm:$0xff] %vm37, 0.0
  %45 = vst.msk [vmem:[#allocation2 + $0x38] sm:$0xff] %vm37, 0.0
  %46 = vst.msk [vmem:[#allocation2 + $0x40] sm:$0xff] %vm37, 0.0
  %47 = vst.msk [vmem:[#allocation2 + $0x48] sm:$0xff] %vm37, 0.0
  %48 = vst.msk [vmem:[#allocation2 + $0x50] sm:$0xff] %vm37, 0.0
  %49 = vst.msk [vmem:[#allocation2 + $0x58] sm:$0xff] %vm37, 0.0
  %50 = vst.msk [vmem:[#allocation2 + $0x60] sm:$0xff] %vm37, 0.0
  %51 = vst.msk [vmem:[#allocation2 + $0x68] sm:$0xff] %vm37, 0.0
  %52 = vst.msk [vmem:[#allocation2 + $0x70] sm:$0xff] %vm37, 0.0
  %53 = vst.msk [vmem:[#allocation2 + $0x78] sm:$0xff] %vm37, 0.0
  %54 = vst.msk [vmem:[#allocation2 + $0x80] sm:$0xff] %vm37, 0.0
  %55 = vst.msk [vmem:[#allocation2 + $0x88] sm:$0xff] %vm37, 0.0
  %56 = vst.msk [vmem:[#allocation2 + $0x90] sm:$0xff] %vm37, 0.0
  %57 = vst.msk [vmem:[#allocation2 + $0x98] sm:$0xff] %vm37, 0.0
  %58 = vst.msk [vmem:[#allocation2 + $0xa0] sm:$0xff] %vm37, 0.0
  %59 = vst.msk [vmem:[#allocation2 + $0xa8] sm:$0xff] %vm37, 0.0
  %60 = vst.msk [vmem:[#allocation2 + $0xb0] sm:$0xff] %vm37, 0.0
  %61 = vst.msk [vmem:[#allocation2 + $0xb8] sm:$0xff] %vm37, 0.0
  %62 = vst.msk [vmem:[#allocation2 + $0xc0] sm:$0xff] %vm37, 0.0
  %63 = vst.msk [vmem:[#allocation2 + $0xc8] sm:$0xff] %vm37, 0.0
  %64 = vst.msk [vmem:[#allocation2 + $0xd0] sm:$0xff] %vm37, 0.0
  %65 = vst.msk [vmem:[#allocation2 + $0xd8] sm:$0xff] %vm37, 0.0
  %66 = vst.msk [vmem:[#allocation2 + $0xe0] sm:$0xff] %vm37, 0.0
  %67 = vst.msk [vmem:[#allocation2 + $0xe8] sm:$0xff] %vm37, 0.0
  %68 = vst.msk [vmem:[#allocation2 + $0xf0] sm:$0xff] %vm37, 0.0
  %69 = vst.msk [vmem:[#allocation2 + $0xf8] sm:$0xff] %vm37, 0.0
  %70 = vst.msk [vmem:[#allocation2 + $0x100] sm:$0xff] %vm37, 0.0
  %71 = vst.msk [vmem:[#allocation2 + $0x108] sm:$0xff] %vm37, 0.0
  %72 = vst.msk [vmem:[#allocation2 + $0x110] sm:$0xff] %vm37, 0.0
  %73 = vst.msk [vmem:[#allocation2 + $0x118] sm:$0xff] %vm37, 0.0
  %74 = vst.msk [vmem:[#allocation2 + $0x120] sm:$0xff] %vm37, 0.0
  %75 = vst.msk [vmem:[#allocation2 + $0x128] sm:$0xff] %vm37, 0.0
  %76 = vst.msk [vmem:[#allocation2 + $0x130] sm:$0xff] %vm37, 0.0
  %77 = vst.msk [vmem:[#allocation2 + $0x138] sm:$0xff] %vm37, 0.0
  %78 = vst.msk [vmem:[#allocation2 + $0x140] sm:$0xff] %vm37, 0.0
  %79 = vst.msk [vmem:[#allocation2 + $0x148] sm:$0xff] %vm37, 0.0
  %80 = vst.msk [vmem:[#allocation2 + $0x150] sm:$0xff] %vm37, 0.0
  %81 = vst.msk [vmem:[#allocation2 + $0x158] sm:$0xff] %vm37, 0.0
  %82 = vst.msk [vmem:[#allocation2 + $0x160] sm:$0xff] %vm37, 0.0
  %83 = vst.msk [vmem:[#allocation2 + $0x168] sm:$0xff] %vm37, 0.0
  %84 = vst.msk [vmem:[#allocation2 + $0x170] sm:$0xff] %vm37, 0.0
  %85 = vst.msk [vmem:[#allocation2 + $0x178] sm:$0xff] %vm37, 0.0
  %86 = vst.msk [vmem:[#allocation2 + $0x180] sm:$0xff] %vm37, 0.0
  %87 = vst.msk [vmem:[#allocation2 + $0x188] sm:$0xff] %vm37, 0.0
  %88 = vst.msk [vmem:[#allocation2 + $0x190] sm:$0xff] %vm37, 0.0
  %89 = vst.msk [vmem:[#allocation2 + $0x198] sm:$0xff] %vm37, 0.0
  %90 = vst.msk [vmem:[#allocation2 + $0x1a0] sm:$0xff] %vm37, 0.0
  %91 = vst.msk [vmem:[#allocation2 + $0x1a8] sm:$0xff] %vm37, 0.0
  %92 = vst.msk [vmem:[#allocation2 + $0x1b0] sm:$0xff] %vm37, 0.0
  %93 = vst.msk [vmem:[#allocation2 + $0x1b8] sm:$0xff] %vm37, 0.0
  %94 = vst.msk [vmem:[#allocation2 + $0x1c0] sm:$0xff] %vm37, 0.0
  %95 = vst.msk [vmem:[#allocation2 + $0x1c8] sm:$0xff] %vm37, 0.0
  %96 = vst.msk [vmem:[#allocation2 + $0x1d0] sm:$0xff] %vm37, 0.0
  %97 = vst.msk [vmem:[#allocation2 + $0x1d8] sm:$0xff] %vm37, 0.0
  %98 = vst.msk [vmem:[#allocation2 + $0x1e0] sm:$0xff] %vm37, 0.0
  %99 = vst.msk [vmem:[#allocation2 + $0x1e8] sm:$0xff] %vm37, 0.0
  %100 = vst.msk [vmem:[#allocation2 + $0x1f0] sm:$0xff] %vm37, 0.0
  %101 = vst.msk [vmem:[#allocation2 + $0x1f8] sm:$0xff] %vm37, 0.0
  %102 = vst.msk [vmem:[#allocation2 + $0x200] sm:$0xff] %vm37, 0.0
  %103 = vst.msk [vmem:[#allocation2 + $0x208] sm:$0xff] %vm37, 0.0
  %104 = vst.msk [vmem:[#allocation2 + $0x210] sm:$0xff] %vm37, 0.0
  %105 = vst.msk [vmem:[#allocation2 + $0x218] sm:$0xff] %vm37, 0.0
  %106 = vst.msk [vmem:[#allocation2 + $0x220] sm:$0xff] %vm37, 0.0
  %107 = vst.msk [vmem:[#allocation2 + $0x228] sm:$0xff] %vm37, 0.0
  %108 = vst.msk [vmem:[#allocation2 + $0x230] sm:$0xff] %vm37, 0.0
  %109 = vst.msk [vmem:[#allocation2 + $0x238] sm:$0xff] %vm37, 0.0
  %110 = vst.msk [vmem:[#allocation2 + $0x240] sm:$0xff] %vm37, 0.0
  %111 = vst.msk [vmem:[#allocation2 + $0x248] sm:$0xff] %vm37, 0.0
  %112 = vst.msk [vmem:[#allocation2 + $0x250] sm:$0xff] %vm37, 0.0
  %113 = vst.msk [vmem:[#allocation2 + $0x258] sm:$0xff] %vm37, 0.0
  %114 = vst.msk [vmem:[#allocation2 + $0x260] sm:$0xff] %vm37, 0.0
  %115 = vst.msk [vmem:[#allocation2 + $0x268] sm:$0xff] %vm37, 0.0
  %116 = vst.msk [vmem:[#allocation2 + $0x270] sm:$0xff] %vm37, 0.0
  %117 = vst.msk [vmem:[#allocation2 + $0x278] sm:$0xff] %vm37, 0.0
  %118 = vst.msk [vmem:[#allocation2 + $0x280] sm:$0xff] %vm37, 0.0
  %119 = vst.msk [vmem:[#allocation2 + $0x288] sm:$0xff] %vm37, 0.0
  %120 = vst.msk [vmem:[#allocation2 + $0x290] sm:$0xff] %vm37, 0.0
  %121 = vst.msk [vmem:[#allocation2 + $0x298] sm:$0xff] %vm37, 0.0
  %122 = vst.msk [vmem:[#allocation2 + $0x2a0] sm:$0xff] %vm37, 0.0
  %123 = vst.msk [vmem:[#allocation2 + $0x2a8] sm:$0xff] %vm37, 0.0
  %124 = vst.msk [vmem:[#allocation2 + $0x2b0] sm:$0xff] %vm37, 0.0
  %125 = vst.msk [vmem:[#allocation2 + $0x2b8] sm:$0xff] %vm37, 0.0
  %126 = vst.msk [vmem:[#allocation2 + $0x2c0] sm:$0xff] %vm37, 0.0
  %127 = vst.msk [vmem:[#allocation2 + $0x2c8] sm:$0xff] %vm37, 0.0
  %128 = vst.msk [vmem:[#allocation2 + $0x2d0] sm:$0xff] %vm37, 0.0
  %129 = vst.msk [vmem:[#allocation2 + $0x2d8] sm:$0xff] %vm37, 0.0
  %130 = vst.msk [vmem:[#allocation2 + $0x2e0] sm:$0xff] %vm37, 0.0
  %131 = vst.msk [vmem:[#allocation2 + $0x2e8] sm:$0xff] %vm37, 0.0
  %132 = vst.msk [vmem:[#allocation2 + $0x2f0] sm:$0xff] %vm37, 0.0
  %133 = vst.msk [vmem:[#allocation2 + $0x2f8] sm:$0xff] %vm37, 0.0
  %134 = vst.msk [vmem:[#allocation2 + $0x300] sm:$0xff] %vm37, 0.0
  %135 = vst.msk [vmem:[#allocation2 + $0x308] sm:$0xff] %vm37, 0.0
  %136 = vst.msk [vmem:[#allocation2 + $0x310] sm:$0xff] %vm37, 0.0
  %137 = vst.msk [vmem:[#allocation2 + $0x318] sm:$0xff] %vm37, 0.0
  %138 = vst.msk [vmem:[#allocation2 + $0x320] sm:$0xff] %vm37, 0.0
  %139 = vst.msk [vmem:[#allocation2 + $0x328] sm:$0xff] %vm37, 0.0
  %140 = vst.msk [vmem:[#allocation2 + $0x330] sm:$0xff] %vm37, 0.0
  %141 = vst.msk [vmem:[#allocation2 + $0x338] sm:$0xff] %vm37, 0.0
  %142 = vst.msk [vmem:[#allocation2 + $0x340] sm:$0xff] %vm37, 0.0
  %143 = vst.msk [vmem:[#allocation2 + $0x348] sm:$0xff] %vm37, 0.0
  %144 = vst.msk [vmem:[#allocation2 + $0x350] sm:$0xff] %vm37, 0.0
  %145 = vst.msk [vmem:[#allocation2 + $0x358] sm:$0xff] %vm37, 0.0
  %146 = vst.msk [vmem:[#allocation2 + $0x360] sm:$0xff] %vm37, 0.0
  %147 = vst.msk [vmem:[#allocation2 + $0x368] sm:$0xff] %vm37, 0.0
  %148 = vst.msk [vmem:[#allocation2 + $0x370] sm:$0xff] %vm37, 0.0
  %149 = vst.msk [vmem:[#allocation2 + $0x378] sm:$0xff] %vm37, 0.0
  %150 = vst.msk [vmem:[#allocation2 + $0x380] sm:$0xff] %vm37, 0.0
  %151 = vst.msk [vmem:[#allocation2 + $0x388] sm:$0xff] %vm37, 0.0
  %152 = vst.msk [vmem:[#allocation2 + $0x390] sm:$0xff] %vm37, 0.0
  %153 = vst.msk [vmem:[#allocation2 + $0x398] sm:$0xff] %vm37, 0.0
  %154 = vst.msk [vmem:[#allocation2 + $0x3a0] sm:$0xff] %vm37, 0.0
  %155 = vst.msk [vmem:[#allocation2 + $0x3a8] sm:$0xff] %vm37, 0.0
  %156 = vst.msk [vmem:[#allocation2 + $0x3b0] sm:$0xff] %vm37, 0.0
  %157 = vst.msk [vmem:[#allocation2 + $0x3b8] sm:$0xff] %vm37, 0.0
  %158 = vst.msk [vmem:[#allocation2 + $0x3c0] sm:$0xff] %vm37, 0.0
  %159 = vst.msk [vmem:[#allocation2 + $0x3c8] sm:$0xff] %vm37, 0.0
  %160 = vst.msk [vmem:[#allocation2 + $0x3d0] sm:$0xff] %vm37, 0.0
  %161 = vst.msk [vmem:[#allocation2 + $0x3d8] sm:$0xff] %vm37, 0.0
  %162 = vst.msk [vmem:[#allocation2 + $0x3e0] sm:$0xff] %vm37, 0.0
  %163 = vst.msk [vmem:[#allocation2 + $0x3e8] sm:$0xff] %vm37, 0.0
  %164 = vst.msk [vmem:[#allocation2 + $0x3f0] sm:$0xff] %vm37, 0.0
  %v165 = vld [vmem:[%s0] sm:$0xff]
  %v166 = vld [vmem:[%s0 + $0x8] sm:$0xff]
  %v167 = vld [vmem:[%s0 + $0x10] sm:$0xff]
  %v168 = vld [vmem:[%s0 + $0x18] sm:$0xff]
  %v169 = vld [vmem:[%s0 + $0x20] sm:$0xff]
  %v170 = vld [vmem:[%s0 + $0x28] sm:$0xff]
  %v171 = vld [vmem:[%s0 + $0x30] sm:$0xff]
  %v172 = vld [vmem:[%s0 + $0x38] sm:$0xff]
  %v173 = vld [vmem:[%s0 + $0x40] sm:$0xff]
  %v174 = vld [vmem:[%s0 + $0x48] sm:$0xff]
  %v175 = vld [vmem:[%s0 + $0x50] sm:$0xff]
  %v176 = vld [vmem:[%s0 + $0x58] sm:$0xff]
  %v177 = vld [vmem:[%s0 + $0x60] sm:$0xff]
  %v178 = vld [vmem:[%s0 + $0x68] sm:$0xff]
  %v179 = vld [vmem:[%s0 + $0x70] sm:$0xff]
  %v180 = vld [vmem:[%s0 + $0x78] sm:$0xff]
  %v181 = vld [vmem:[%s0 + $0x80] sm:$0xff]
  %v182 = vld [vmem:[%s0 + $0x88] sm:$0xff]
  %v183 = vld [vmem:[%s0 + $0x90] sm:$0xff]
  %v184 = vld [vmem:[%s0 + $0x98] sm:$0xff]
  %v185 = vld [vmem:[%s0 + $0xa0] sm:$0xff]
  %v186 = vld [vmem:[%s0 + $0xa8] sm:$0xff]
  %v187 = vld [vmem:[%s0 + $0xb0] sm:$0xff]
  %v188 = vld [vmem:[%s0 + $0xb8] sm:$0xff]
  %v189 = vld [vmem:[%s0 + $0xc0] sm:$0xff]
  %v190 = vld [vmem:[%s0 + $0xc8] sm:$0xff]
  %v191 = vld [vmem:[%s0 + $0xd0] sm:$0xff]
  %v192 = vld [vmem:[%s0 + $0xd8] sm:$0xff]
  %v193 = vld [vmem:[%s0 + $0xe0] sm:$0xff]
  %v194 = vld [vmem:[%s0 + $0xe8] sm:$0xff]
  %v195 = vld [vmem:[%s0 + $0xf0] sm:$0xff]
  %v196 = vld [vmem:[%s0 + $0xf8] sm:$0xff]
  %v197 = vld [vmem:[%s0 + $0x100] sm:$0xff]
  %v198 = vld [vmem:[%s0 + $0x108] sm:$0xff]
  %v199 = vld [vmem:[%s0 + $0x110] sm:$0xff]
  %v200 = vld [vmem:[%s0 + $0x118] sm:$0xff]
  %v201 = vld [vmem:[%s0 + $0x120] sm:$0xff]
  %v202 = vld [vmem:[%s0 + $0x128] sm:$0xff]
  %v203 = vld [vmem:[%s0 + $0x130] sm:$0xff]
  %v204 = vld [vmem:[%s0 + $0x138] sm:$0xff]
  %v205 = vld [vmem:[%s0 + $0x140] sm:$0xff]
  %v206 = vld [vmem:[%s0 + $0x148] sm:$0xff]
  %v207 = vld [vmem:[%s0 + $0x150] sm:$0xff]
  %v208 = vld [vmem:[%s0 + $0x158] sm:$0xff]
  %v209 = vld [vmem:[%s0 + $0x160] sm:$0xff]
  %v210 = vld [vmem:[%s0 + $0x168] sm:$0xff]
  %v211 = vld [vmem:[%s0 + $0x170] sm:$0xff]
  %v212 = vld [vmem:[%s0 + $0x178] sm:$0xff]
  %v213 = vld [vmem:[%s0 + $0x180] sm:$0xff]
  %v214 = vld [vmem:[%s0 + $0x188] sm:$0xff]
  %v215 = vld [vmem:[%s0 + $0x190] sm:$0xff]
  %v216 = vld [vmem:[%s0 + $0x198] sm:$0xff]
  %v217 = vld [vmem:[%s0 + $0x1a0] sm:$0xff]
  %v218 = vld [vmem:[%s0 + $0x1a8] sm:$0xff]
  %v219 = vld [vmem:[%s0 + $0x1b0] sm:$0xff]
  %v220 = vld [vmem:[%s0 + $0x1b8] sm:$0xff]
  %v221 = vld [vmem:[%s0 + $0x1c0] sm:$0xff]
  %v222 = vld [vmem:[%s0 + $0x1c8] sm:$0xff]
  %v223 = vld [vmem:[%s0 + $0x1d0] sm:$0xff]
  %v224 = vld [vmem:[%s0 + $0x1d8] sm:$0xff]
  %v225 = vld [vmem:[%s0 + $0x1e0] sm:$0xff]
  %v226 = vld [vmem:[%s0 + $0x1e8] sm:$0xff]
  %v227 = vld [vmem:[%s0 + $0x1f0] sm:$0xf]
  %228 = vst.msk [vmem:[#allocation2 + $0x8] sm:$0xff] %vm37, %v165
  %229 = vst.msk [vmem:[#allocation2 + $0x10] sm:$0xff] %vm37, %v166
  %230 = vst.msk [vmem:[#allocation2 + $0x18] sm:$0xff] %vm37, %v167
  %231 = vst.msk [vmem:[#allocation2 + $0x20] sm:$0xff] %vm37, %v168
  %232 = vst.msk [vmem:[#allocation2 + $0x28] sm:$0xff] %vm37, %v169
  %233 = vst.msk [vmem:[#allocation2 + $0x30] sm:$0xff] %vm37, %v170
  %234 = vst.msk [vmem:[#allocation2 + $0x38] sm:$0xff] %vm37, %v171
  %235 = vst.msk [vmem:[#allocation2 + $0x40] sm:$0xff] %vm37, %v172
  %236 = vst.msk [vmem:[#allocation2 + $0x48] sm:$0xff] %vm37, %v173
  %237 = vst.msk [vmem:[#allocation2 + $0x50] sm:$0xff] %vm37, %v174
  %238 = vst.msk [vmem:[#allocation2 + $0x58] sm:$0xff] %vm37, %v175
  %239 = vst.msk [vmem:[#allocation2 + $0x60] sm:$0xff] %vm37, %v176
  %240 = vst.msk [vmem:[#allocation2 + $0x68] sm:$0xff] %vm37, %v177
  %241 = vst.msk [vmem:[#allocation2 + $0x70] sm:$0xff] %vm37, %v178
  %242 = vst.msk [vmem:[#allocation2 + $0x78] sm:$0xff] %vm37, %v179
  %243 = vst.msk [vmem:[#allocation2 + $0x80] sm:$0xff] %vm37, %v180
  %244 = vst.msk [vmem:[#allocation2 + $0x88] sm:$0xff] %vm37, %v181
  %245 = vst.msk [vmem:[#allocation2 + $0x90] sm:$0xff] %vm37, %v182
  %246 = vst.msk [vmem:[#allocation2 + $0x98] sm:$0xff] %vm37, %v183
  %247 = vst.msk [vmem:[#allocation2 + $0xa0] sm:$0xff] %vm37, %v184
  %248 = vst.msk [vmem:[#allocation2 + $0xa8] sm:$0xff] %vm37, %v185
  %249 = vst.msk [vmem:[#allocation2 + $0xb0] sm:$0xff] %vm37, %v186
  %250 = vst.msk [vmem:[#allocation2 + $0xb8] sm:$0xff] %vm37, %v187
  %251 = vst.msk [vmem:[#allocation2 + $0xc0] sm:$0xff] %vm37, %v188
  %252 = vst.msk [vmem:[#allocation2 + $0xc8] sm:$0xff] %vm37, %v189
  %253 = vst.msk [vmem:[#allocation2 + $0xd0] sm:$0xff] %vm37, %v190
  %254 = vst.msk [vmem:[#allocation2 + $0xd8] sm:$0xff] %vm37, %v191
  %255 = vst.msk [vmem:[#allocation2 + $0xe0] sm:$0xff] %vm37, %v192
  %256 = vst.msk [vmem:[#allocation2 + $0xe8] sm:$0xff] %vm37, %v193
  %257 = vst.msk [vmem:[#allocation2 + $0xf0] sm:$0xff] %vm37, %v194
  %258 = vst.msk [vmem:[#allocation2 + $0xf8] sm:$0xff] %vm37, %v195
  %259 = vst.msk [vmem:[#allocation2 + $0x100] sm:$0xff] %vm37, %v196
  %260 = vst.msk [vmem:[#allocation2 + $0x108] sm:$0xff] %vm37, %v197
  %261 = vst.msk [vmem:[#allocation2 + $0x110] sm:$0xff] %vm37, %v198
  %262 = vst.msk [vmem:[#allocation2 + $0x118] sm:$0xff] %vm37, %v199
  %263 = vst.msk [vmem:[#allocation2 + $0x120] sm:$0xff] %vm37, %v200
  %264 = vst.msk [vmem:[#allocation2 + $0x128] sm:$0xff] %vm37, %v201
  %265 = vst.msk [vmem:[#allocation2 + $0x130] sm:$0xff] %vm37, %v202
  %266 = vst.msk [vmem:[#allocation2 + $0x138] sm:$0xff] %vm37, %v203
  %267 = vst.msk [vmem:[#allocation2 + $0x140] sm:$0xff] %vm37, %v204
  %268 = vst.msk [vmem:[#allocation2 + $0x148] sm:$0xff] %vm37, %v205
  %269 = vst.msk [vmem:[#allocation2 + $0x150] sm:$0xff] %vm37, %v206
  %270 = vst.msk [vmem:[#allocation2 + $0x158] sm:$0xff] %vm37, %v207
  %271 = vst.msk [vmem:[#allocation2 + $0x160] sm:$0xff] %vm37, %v208
  %272 = vst.msk [vmem:[#allocation2 + $0x168] sm:$0xff] %vm37, %v209
  %273 = vst.msk [vmem:[#allocation2 + $0x170] sm:$0xff] %vm37, %v210
  %274 = vst.msk [vmem:[#allocation2 + $0x178] sm:$0xff] %vm37, %v211
  %275 = vst.msk [vmem:[#allocation2 + $0x180] sm:$0xff] %vm37, %v212
  %276 = vst.msk [vmem:[#allocation2 + $0x188] sm:$0xff] %vm37, %v213
  %277 = vst.msk [vmem:[#allocation2 + $0x190] sm:$0xff] %vm37, %v214
  %278 = vst.msk [vmem:[#allocation2 + $0x198] sm:$0xff] %vm37, %v215
  %279 = vst.msk [vmem:[#allocation2 + $0x1a0] sm:$0xff] %vm37, %v216
  %280 = vst.msk [vmem:[#allocation2 + $0x1a8] sm:$0xff] %vm37, %v217
  %281 = vst.msk [vmem:[#allocation2 + $0x1b0] sm:$0xff] %vm37, %v218
  %282 = vst.msk [vmem:[#allocation2 + $0x1b8] sm:$0xff] %vm37, %v219
  %283 = vst.msk [vmem:[#allocation2 + $0x1c0] sm:$0xff] %vm37, %v220
  %284 = vst.msk [vmem:[#allocation2 + $0x1c8] sm:$0xff] %vm37, %v221
  %285 = vst.msk [vmem:[#allocation2 + $0x1d0] sm:$0xff] %vm37, %v222
  %286 = vst.msk [vmem:[#allocation2 + $0x1d8] sm:$0xff] %vm37, %v223
  %287 = vst.msk [vmem:[#allocation2 + $0x1e0] sm:$0xff] %vm37, %v224
  %288 = vst.msk [vmem:[#allocation2 + $0x1e8] sm:$0xff] %vm37, %v225
  %289 = vst.msk [vmem:[#allocation2 + $0x1f0] sm:$0xff] %vm37, %v226
  %vm290 = vcmask 519168
  %291 = vst.msk [vmem:[#allocation2 + $0x1f8] sm:$0xf] %vm290, %v227
  %s292 = scalar_lea.vmem %s0, 504
  %v293 = vld [vmem:[%s292] sm:$0xff]
  %v294 = vld [vmem:[%s292 + $0x8] sm:$0xff]
  %v295 = vld [vmem:[%s292 + $0x10] sm:$0xff]
  %v296 = vld [vmem:[%s292 + $0x18] sm:$0xff]
  %v297 = vld [vmem:[%s292 + $0x20] sm:$0xff]
  %v298 = vld [vmem:[%s292 + $0x28] sm:$0xff]
  %v299 = vld [vmem:[%s292 + $0x30] sm:$0xff]
  %v300 = vld [vmem:[%s292 + $0x38] sm:$0xff]
  %v301 = vld [vmem:[%s292 + $0x40] sm:$0xff]
  %v302 = vld [vmem:[%s292 + $0x48] sm:$0xff]
  %v303 = vld [vmem:[%s292 + $0x50] sm:$0xff]
  %v304 = vld [vmem:[%s292 + $0x58] sm:$0xff]
  %v305 = vld [vmem:[%s292 + $0x60] sm:$0xff]
  %v306 = vld [vmem:[%s292 + $0x68] sm:$0xff]
  %v307 = vld [vmem:[%s292 + $0x70] sm:$0xff]
  %v308 = vld [vmem:[%s292 + $0x78] sm:$0xff]
  %v309 = vld [vmem:[%s292 + $0x80] sm:$0xff]
  %v310 = vld [vmem:[%s292 + $0x88] sm:$0xff]
  %v311 = vld [vmem:[%s292 + $0x90] sm:$0xff]
  %v312 = vld [vmem:[%s292 + $0x98] sm:$0xff]
  %v313 = vld [vmem:[%s292 + $0xa0] sm:$0xff]
  %v314 = vld [vmem:[%s292 + $0xa8] sm:$0xff]
  %v315 = vld [vmem:[%s292 + $0xb0] sm:$0xff]
  %v316 = vld [vmem:[%s292 + $0xb8] sm:$0xff]
  %v317 = vld [vmem:[%s292 + $0xc0] sm:$0xff]
  %v318 = vld [vmem:[%s292 + $0xc8] sm:$0xff]
  %v319 = vld [vmem:[%s292 + $0xd0] sm:$0xff]
  %v320 = vld [vmem:[%s292 + $0xd8] sm:$0xff]
  %v321 = vld [vmem:[%s292 + $0xe0] sm:$0xff]
  %v322 = vld [vmem:[%s292 + $0xe8] sm:$0xff]
  %v323 = vld [vmem:[%s292 + $0xf0] sm:$0xff]
  %v324 = vld [vmem:[%s292 + $0xf8] sm:$0xff]
  %v325 = vld [vmem:[%s292 + $0x100] sm:$0xff]
  %v326 = vld [vmem:[%s292 + $0x108] sm:$0xff]
  %v327 = vld [vmem:[%s292 + $0x110] sm:$0xff]
  %v328 = vld [vmem:[%s292 + $0x118] sm:$0xff]
  %v329 = vld [vmem:[%s292 + $0x120] sm:$0xff]
  %v330 = vld [vmem:[%s292 + $0x128] sm:$0xff]
  %v331 = vld [vmem:[%s292 + $0x130] sm:$0xff]
  %v332 = vld [vmem:[%s292 + $0x138] sm:$0xff]
  %v333 = vld [vmem:[%s292 + $0x140] sm:$0xff]
  %v334 = vld [vmem:[%s292 + $0x148] sm:$0xff]
  %v335 = vld [vmem:[%s292 + $0x150] sm:$0xff]
  %v336 = vld [vmem:[%s292 + $0x158] sm:$0xff]
  %v337 = vld [vmem:[%s292 + $0x160] sm:$0xff]
  %v338 = vld [vmem:[%s292 + $0x168] sm:$0xff]
  %v339 = vld [vmem:[%s292 + $0x170] sm:$0xff]
  %v340 = vld [vmem:[%s292 + $0x178] sm:$0xff]
  %v341 = vld [vmem:[%s292 + $0x180] sm:$0xff]
  %v342 = vld [vmem:[%s292 + $0x188] sm:$0xff]
  %v343 = vld [vmem:[%s292 + $0x190] sm:$0xff]
  %v344 = vld [vmem:[%s292 + $0x198] sm:$0xff]
  %v345 = vld [vmem:[%s292 + $0x1a0] sm:$0xff]
  %v346 = vld [vmem:[%s292 + $0x1a8] sm:$0xff]
  %v347 = vld [vmem:[%s292 + $0x1b0] sm:$0xff]
  %v348 = vld [vmem:[%s292 + $0x1b8] sm:$0xff]
  %v349 = vld [vmem:[%s292 + $0x1c0] sm:$0xff]
  %v350 = vld [vmem:[%s292 + $0x1c8] sm:$0xff]
  %v351 = vld [vmem:[%s292 + $0x1d0] sm:$0xff]
  %v352 = vld [vmem:[%s292 + $0x1d8] sm:$0xff]
  %v353 = vld [vmem:[%s292 + $0x1e0] sm:$0xff]
  %v354 = vld [vmem:[%s292 + $0x1e8] sm:$0xff]
  %v355 = vld [vmem:[%s292 + $0x1f0] sm:$0xf]
  %356 = vst.msk [vmem:[#allocation2 + $0x200] sm:$0xff] %vm37, %v293
  %357 = vst.msk [vmem:[#allocation2 + $0x208] sm:$0xff] %vm37, %v294
  %358 = vst.msk [vmem:[#allocation2 + $0x210] sm:$0xff] %vm37, %v295
  %359 = vst.msk [vmem:[#allocation2 + $0x218] sm:$0xff] %vm37, %v296
  %360 = vst.msk [vmem:[#allocation2 + $0x220] sm:$0xff] %vm37, %v297
  %361 = vst.msk [vmem:[#allocation2 + $0x228] sm:$0xff] %vm37, %v298
  %362 = vst.msk [vmem:[#allocation2 + $0x230] sm:$0xff] %vm37, %v299
  %363 = vst.msk [vmem:[#allocation2 + $0x238] sm:$0xff] %vm37, %v300
  %364 = vst.msk [vmem:[#allocation2 + $0x240] sm:$0xff] %vm37, %v301
  %365 = vst.msk [vmem:[#allocation2 + $0x248] sm:$0xff] %vm37, %v302
  %366 = vst.msk [vmem:[#allocation2 + $0x250] sm:$0xff] %vm37, %v303
  %367 = vst.msk [vmem:[#allocation2 + $0x258] sm:$0xff] %vm37, %v304
  %368 = vst.msk [vmem:[#allocation2 + $0x260] sm:$0xff] %vm37, %v305
  %369 = vst.msk [vmem:[#allocation2 + $0x268] sm:$0xff] %vm37, %v306
  %370 = vst.msk [vmem:[#allocation2 + $0x270] sm:$0xff] %vm37, %v307
  %371 = vst.msk [vmem:[#allocation2 + $0x278] sm:$0xff] %vm37, %v308
  %372 = vst.msk [vmem:[#allocation2 + $0x280] sm:$0xff] %vm37, %v309
  %373 = vst.msk [vmem:[#allocation2 + $0x288] sm:$0xff] %vm37, %v310
  %374 = vst.msk [vmem:[#allocation2 + $0x290] sm:$0xff] %vm37, %v311
  %375 = vst.msk [vmem:[#allocation2 + $0x298] sm:$0xff] %vm37, %v312
  %376 = vst.msk [vmem:[#allocation2 + $0x2a0] sm:$0xff] %vm37, %v313
  %377 = vst.msk [vmem:[#allocation2 + $0x2a8] sm:$0xff] %vm37, %v314
  %378 = vst.msk [vmem:[#allocation2 + $0x2b0] sm:$0xff] %vm37, %v315
  %379 = vst.msk [vmem:[#allocation2 + $0x2b8] sm:$0xff] %vm37, %v316
  %380 = vst.msk [vmem:[#allocation2 + $0x2c0] sm:$0xff] %vm37, %v317
  %381 = vst.msk [vmem:[#allocation2 + $0x2c8] sm:$0xff] %vm37, %v318
  %382 = vst.msk [vmem:[#allocation2 + $0x2d0] sm:$0xff] %vm37, %v319
  %383 = vst.msk [vmem:[#allocation2 + $0x2d8] sm:$0xff] %vm37, %v320
  %384 = vst.msk [vmem:[#allocation2 + $0x2e0] sm:$0xff] %vm37, %v321
  %385 = vst.msk [vmem:[#allocation2 + $0x2e8] sm:$0xff] %vm37, %v322
  %386 = vst.msk [vmem:[#allocation2 + $0x2f0] sm:$0xff] %vm37, %v323
  %387 = vst.msk [vmem:[#allocation2 + $0x2f8] sm:$0xff] %vm37, %v324
  %388 = vst.msk [vmem:[#allocation2 + $0x300] sm:$0xff] %vm37, %v325
  %389 = vst.msk [vmem:[#allocation2 + $0x308] sm:$0xff] %vm37, %v326
  %390 = vst.msk [vmem:[#allocation2 + $0x310] sm:$0xff] %vm37, %v327
  %391 = vst.msk [vmem:[#allocation2 + $0x318] sm:$0xff] %vm37, %v328
  %392 = vst.msk [vmem:[#allocation2 + $0x320] sm:$0xff] %vm37, %v329
  %393 = vst.msk [vmem:[#allocation2 + $0x328] sm:$0xff] %vm37, %v330
  %394 = vst.msk [vmem:[#allocation2 + $0x330] sm:$0xff] %vm37, %v331
  %395 = vst.msk [vmem:[#allocation2 + $0x338] sm:$0xff] %vm37, %v332
  %396 = vst.msk [vmem:[#allocation2 + $0x340] sm:$0xff] %vm37, %v333
  %397 = vst.msk [vmem:[#allocation2 + $0x348] sm:$0xff] %vm37, %v334
  %398 = vst.msk [vmem:[#allocation2 + $0x350] sm:$0xff] %vm37, %v335
  %399 = vst.msk [vmem:[#allocation2 + $0x358] sm:$0xff] %vm37, %v336
  %400 = vst.msk [vmem:[#allocation2 + $0x360] sm:$0xff] %vm37, %v337
  %401 = vst.msk [vmem:[#allocation2 + $0x368] sm:$0xff] %vm37, %v338
  %402 = vst.msk [vmem:[#allocation2 + $0x370] sm:$0xff] %vm37, %v339
  %403 = vst.msk [vmem:[#allocation2 + $0x378] sm:$0xff] %vm37, %v340
  %404 = vst.msk [vmem:[#allocation2 + $0x380] sm:$0xff] %vm37, %v341
  %405 = vst.msk [vmem:[#allocation2 + $0x388] sm:$0xff] %vm37, %v342
  %406 = vst.msk [vmem:[#allocation2 + $0x390] sm:$0xff] %vm37, %v343
  %407 = vst.msk [vmem:[#allocation2 + $0x398] sm:$0xff] %vm37, %v344
  %408 = vst.msk [vmem:[#allocation2 + $0x3a0] sm:$0xff] %vm37, %v345
  %409 = vst.msk [vmem:[#allocation2 + $0x3a8] sm:$0xff] %vm37, %v346
  %410 = vst.msk [vmem:[#allocation2 + $0x3b0] sm:$0xff] %vm37, %v347
  %411 = vst.msk [vmem:[#allocation2 + $0x3b8] sm:$0xff] %vm37, %v348
  %412 = vst.msk [vmem:[#allocation2 + $0x3c0] sm:$0xff] %vm37, %v349
  %413 = vst.msk [vmem:[#allocation2 + $0x3c8] sm:$0xff] %vm37, %v350
  %414 = vst.msk [vmem:[#allocation2 + $0x3d0] sm:$0xff] %vm37, %v351
  %415 = vst.msk [vmem:[#allocation2 + $0x3d8] sm:$0xff] %vm37, %v352
  %416 = vst.msk [vmem:[#allocation2 + $0x3e0] sm:$0xff] %vm37, %v353
  %417 = vst.msk [vmem:[#allocation2 + $0x3e8] sm:$0xff] %vm37, %v354
  %418 = vst.msk [vmem:[#allocation2 + $0x3f0] sm:$0xf] %vm290, %v355
  %v419 = vld [vmem:[%s2] sm:$0x1]
  %v421 = vlaneseq
  %v422 = vshrl.u32 %v421, 7
  %v423 = vsub.s32 0, %v422
  %v424 = vrot.slane %v419, %v423
  %v426 = vld [vmem:[#allocation2 + $0x7] sm:$0xff]
  %v427 = vld [vmem:[#allocation2 + $0xf] sm:$0xff]
  %v428 = vld [vmem:[#allocation2 + $0x17] sm:$0xff]
  %v429 = vld [vmem:[#allocation2 + $0x1f] sm:$0xff]
  %v430 = vld [vmem:[#allocation2 + $0x27] sm:$0xff]
  %v431 = vld [vmem:[#allocation2 + $0x2f] sm:$0xff]
  %v432 = vld [vmem:[#allocation2 + $0x37] sm:$0xff]
  %v433 = vld [vmem:[#allocation2 + $0x3f] sm:$0xff]
  %v434 = vld [vmem:[#allocation2 + $0x47] sm:$0xff]
  %v435 = vld [vmem:[#allocation2 + $0x4f] sm:$0xff]
  %v436 = vld [vmem:[#allocation2 + $0x57] sm:$0xff]
  %v437 = vld [vmem:[#allocation2 + $0x5f] sm:$0xff]
  %v438 = vld [vmem:[#allocation2 + $0x67] sm:$0xff]
  %v439 = vld [vmem:[#allocation2 + $0x6f] sm:$0xff]
  %v440 = vld [vmem:[#allocation2 + $0x77] sm:$0xff]
  %v441 = vld [vmem:[#allocation2 + $0x7f] sm:$0xff]
  %v442 = vld [vmem:[#allocation2 + $0x87] sm:$0xff]
  %v443 = vld [vmem:[#allocation2 + $0x8f] sm:$0xff]
  %v444 = vld [vmem:[#allocation2 + $0x97] sm:$0xff]
  %v445 = vld [vmem:[#allocation2 + $0x9f] sm:$0xff]
  %v446 = vld [vmem:[#allocation2 + $0xa7] sm:$0xff]
  %v447 = vld [vmem:[#allocation2 + $0xaf] sm:$0xff]
  %v448 = vld [vmem:[#allocation2 + $0xb7] sm:$0xff]
  %v449 = vld [vmem:[#allocation2 + $0xbf] sm:$0xff]
  %v450 = vld [vmem:[#allocation2 + $0xc7] sm:$0xff]
  %v451 = vld [vmem:[#allocation2 + $0xcf] sm:$0xff]
  %v452 = vld [vmem:[#allocation2 + $0xd7] sm:$0xff]
  %v453 = vld [vmem:[#allocation2 + $0xdf] sm:$0xff]
  %v454 = vld [vmem:[#allocation2 + $0xe7] sm:$0xff]
  %v455 = vld [vmem:[#allocation2 + $0xef] sm:$0xff]
  %v456 = vld [vmem:[#allocation2 + $0xf7] sm:$0xff]
  %v457 = vld [vmem:[#allocation2 + $0xff] sm:$0xff]
  %v458 = vld [vmem:[#allocation2 + $0x107] sm:$0xff]
  %v459 = vld [vmem:[#allocation2 + $0x10f] sm:$0xff]
  %v460 = vld [vmem:[#allocation2 + $0x117] sm:$0xff]
  %v461 = vld [vmem:[#allocation2 + $0x11f] sm:$0xff]
  %v462 = vld [vmem:[#allocation2 + $0x127] sm:$0xff]
  %v463 = vld [vmem:[#allocation2 + $0x12f] sm:$0xff]
  %v464 = vld [vmem:[#allocation2 + $0x137] sm:$0xff]
  %v465 = vld [vmem:[#allocation2 + $0x13f] sm:$0xff]
  %v466 = vld [vmem:[#allocation2 + $0x147] sm:$0xff]
  %v467 = vld [vmem:[#allocation2 + $0x14f] sm:$0xff]
  %v468 = vld [vmem:[#allocation2 + $0x157] sm:$0xff]
  %v469 = vld [vmem:[#allocation2 + $0x15f] sm:$0xff]
  %v470 = vld [vmem:[#allocation2 + $0x167] sm:$0xff]
  %v471 = vld [vmem:[#allocation2 + $0x16f] sm:$0xff]
  %v472 = vld [vmem:[#allocation2 + $0x177] sm:$0xff]
  %v473 = vld [vmem:[#allocation2 + $0x17f] sm:$0xff]
  %v474 = vld [vmem:[#allocation2 + $0x187] sm:$0xff]
  %v475 = vld [vmem:[#allocation2 + $0x18f] sm:$0xff]
  %v476 = vld [vmem:[#allocation2 + $0x197] sm:$0xff]
  %v477 = vld [vmem:[#allocation2 + $0x19f] sm:$0xff]
  %v478 = vld [vmem:[#allocation2 + $0x1a7] sm:$0xff]
  %v479 = vld [vmem:[#allocation2 + $0x1af] sm:$0xff]
  %v480 = vld [vmem:[#allocation2 + $0x1b7] sm:$0xff]
  %v481 = vld [vmem:[#allocation2 + $0x1bf] sm:$0xff]
  %v482 = vld [vmem:[#allocation2 + $0x1c7] sm:$0xff]
  %v483 = vld [vmem:[#allocation2 + $0x1cf] sm:$0xff]
  %v484 = vld [vmem:[#allocation2 + $0x1d7] sm:$0xff]
  %v485 = vld [vmem:[#allocation2 + $0x1df] sm:$0xff]
  %v486 = vld [vmem:[#allocation2 + $0x1e7] sm:$0xff]
  %v487 = vld [vmem:[#allocation2 + $0x1ef] sm:$0xff]
  %v488 = vld [vmem:[#allocation2 + $0x1f7] sm:$0xff]
  %v489 = vld [vmem:[#allocation2 + $0x1ff] sm:$0xff]
  %v490 = vld [vmem:[#allocation2 + $0x207] sm:$0xff]
  %v491 = vld [vmem:[#allocation2 + $0x20f] sm:$0xff]
  %v492 = vld [vmem:[#allocation2 + $0x217] sm:$0xff]
  %v493 = vld [vmem:[#allocation2 + $0x21f] sm:$0xff]
  %v494 = vld [vmem:[#allocation2 + $0x227] sm:$0xff]
  %v495 = vld [vmem:[#allocation2 + $0x22f] sm:$0xff]
  %v496 = vld [vmem:[#allocation2 + $0x237] sm:$0xff]
  %v497 = vld [vmem:[#allocation2 + $0x23f] sm:$0xff]
  %v498 = vld [vmem:[#allocation2 + $0x247] sm:$0xff]
  %v499 = vld [vmem:[#allocation2 + $0x24f] sm:$0xff]
  %v500 = vld [vmem:[#allocation2 + $0x257] sm:$0xff]
  %v501 = vld [vmem:[#allocation2 + $0x25f] sm:$0xff]
  %v502 = vld [vmem:[#allocation2 + $0x267] sm:$0xff]
  %v503 = vld [vmem:[#allocation2 + $0x26f] sm:$0xff]
  %v504 = vld [vmem:[#allocation2 + $0x277] sm:$0xff]
  %v505 = vld [vmem:[#allocation2 + $0x27f] sm:$0xff]
  %v506 = vld [vmem:[#allocation2 + $0x287] sm:$0xff]
  %v507 = vld [vmem:[#allocation2 + $0x28f] sm:$0xff]
  %v508 = vld [vmem:[#allocation2 + $0x297] sm:$0xff]
  %v509 = vld [vmem:[#allocation2 + $0x29f] sm:$0xff]
  %v510 = vld [vmem:[#allocation2 + $0x2a7] sm:$0xff]
  %v511 = vld [vmem:[#allocation2 + $0x2af] sm:$0xff]
  %v512 = vld [vmem:[#allocation2 + $0x2b7] sm:$0xff]
  %v513 = vld [vmem:[#allocation2 + $0x2bf] sm:$0xff]
  %v514 = vld [vmem:[#allocation2 + $0x2c7] sm:$0xff]
  %v515 = vld [vmem:[#allocation2 + $0x2cf] sm:$0xff]
  %v516 = vld [vmem:[#allocation2 + $0x2d7] sm:$0xff]
  %v517 = vld [vmem:[#allocation2 + $0x2df] sm:$0xff]
  %v518 = vld [vmem:[#allocation2 + $0x2e7] sm:$0xff]
  %v519 = vld [vmem:[#allocation2 + $0x2ef] sm:$0xff]
  %v520 = vld [vmem:[#allocation2 + $0x2f7] sm:$0xff]
  %v521 = vld [vmem:[#allocation2 + $0x2ff] sm:$0xff]
  %v522 = vld [vmem:[#allocation2 + $0x307] sm:$0xff]
  %v523 = vld [vmem:[#allocation2 + $0x30f] sm:$0xff]
  %v524 = vld [vmem:[#allocation2 + $0x317] sm:$0xff]
  %v525 = vld [vmem:[#allocation2 + $0x31f] sm:$0xff]
  %v526 = vld [vmem:[#allocation2 + $0x327] sm:$0xff]
  %v527 = vld [vmem:[#allocation2 + $0x32f] sm:$0xff]
  %v528 = vld [vmem:[#allocation2 + $0x337] sm:$0xff]
  %v529 = vld [vmem:[#allocation2 + $0x33f] sm:$0xff]
  %v530 = vld [vmem:[#allocation2 + $0x347] sm:$0xff]
  %v531 = vld [vmem:[#allocation2 + $0x34f] sm:$0xff]
  %v532 = vld [vmem:[#allocation2 + $0x357] sm:$0xff]
  %v533 = vld [vmem:[#allocation2 + $0x35f] sm:$0xff]
  %v534 = vld [vmem:[#allocation2 + $0x367] sm:$0xff]
  %v535 = vld [vmem:[#allocation2 + $0x36f] sm:$0xff]
  %v536 = vld [vmem:[#allocation2 + $0x377] sm:$0xff]
  %v537 = vld [vmem:[#allocation2 + $0x37f] sm:$0xff]
  %v538 = vld [vmem:[#allocation2 + $0x387] sm:$0xff]
  %v539 = vld [vmem:[#allocation2 + $0x38f] sm:$0xff]
  %v540 = vld [vmem:[#allocation2 + $0x397] sm:$0xff]
  %v541 = vld [vmem:[#allocation2 + $0x39f] sm:$0xff]
  %v542 = vld [vmem:[#allocation2 + $0x3a7] sm:$0xff]
  %v543 = vld [vmem:[#allocation2 + $0x3af] sm:$0xff]
  %v544 = vld [vmem:[#allocation2 + $0x3b7] sm:$0xff]
  %v545 = vld [vmem:[#allocation2 + $0x3bf] sm:$0xff]
  %v546 = vld [vmem:[#allocation2 + $0x3c7] sm:$0xff]
  %v547 = vld [vmem:[#allocation2 + $0x3cf] sm:$0xff]
  %v548 = vld [vmem:[#allocation2 + $0x3d7] sm:$0xff]
  %v549 = vld [vmem:[#allocation2 + $0x3df] sm:$0xff]
  %v550 = vld [vmem:[#allocation2 + $0x3e7] sm:$0xff]
  %v551 = vld [vmem:[#allocation2 + $0x3ef] sm:$0xf]
  %v552 = vld [vmem:[%s1] sm:$0xff]
  %v553 = vld [vmem:[%s1 + $0x8] sm:$0xff]
  %v554 = vld [vmem:[%s1 + $0x10] sm:$0xff]
  %v555 = vld [vmem:[%s1 + $0x18] sm:$0xff]
  %v556 = vld [vmem:[%s1 + $0x20] sm:$0xff]
  %v557 = vld [vmem:[%s1 + $0x28] sm:$0xff]
  %v558 = vld [vmem:[%s1 + $0x30] sm:$0xff]
  %v559 = vld [vmem:[%s1 + $0x38] sm:$0xff]
  %v561 = vsel %vm37, %v426, 0
  %v564 = vsel %vm37, %v427, 0
  %v567 = vsel %vm37, %v428, 0
  %v570 = vsel %vm37, %v429, 0
  %v573 = vsel %vm37, %v430, 0
  %v576 = vsel %vm37, %v431, 0
  %v579 = vsel %vm37, %v432, 0
  %v582 = vsel %vm37, %v433, 0
  %v585 = vsel %vm37, %v434, 0
  %v588 = vsel %vm37, %v435, 0
  %v591 = vsel %vm37, %v436, 0
  %v594 = vsel %vm37, %v437, 0
  %v597 = vsel %vm37, %v438, 0
  %v600 = vsel %vm37, %v439, 0
  %v603 = vsel %vm37, %v440, 0
  %v606 = vsel %vm37, %v441, 0
  %v609 = vsel %vm37, %v442, 0
  %v612 = vsel %vm37, %v443, 0
  %v615 = vsel %vm37, %v444, 0
  %v618 = vsel %vm37, %v445, 0
  %v621 = vsel %vm37, %v446, 0
  %v624 = vsel %vm37, %v447, 0
  %v627 = vsel %vm37, %v448, 0
  %v630 = vsel %vm37, %v449, 0
  %v633 = vsel %vm37, %v450, 0
  %v636 = vsel %vm37, %v451, 0
  %v639 = vsel %vm37, %v452, 0
  %v642 = vsel %vm37, %v453, 0
  %v645 = vsel %vm37, %v454, 0
  %v648 = vsel %vm37, %v455, 0
  %v651 = vsel %vm37, %v456, 0
  %v654 = vsel %vm37, %v457, 0
  %v657 = vsel %vm37, %v458, 0
  %v660 = vsel %vm37, %v459, 0
  %v663 = vsel %vm37, %v460, 0
  %v666 = vsel %vm37, %v461, 0
  %v669 = vsel %vm37, %v462, 0
  %v672 = vsel %vm37, %v463, 0
  %v675 = vsel %vm37, %v464, 0
  %v678 = vsel %vm37, %v465, 0
  %v681 = vsel %vm37, %v466, 0
  %v684 = vsel %vm37, %v467, 0
  %v687 = vsel %vm37, %v468, 0
  %v690 = vsel %vm37, %v469, 0
  %v693 = vsel %vm37, %v470, 0
  %v696 = vsel %vm37, %v471, 0
  %v699 = vsel %vm37, %v472, 0
  %v702 = vsel %vm37, %v473, 0
  %v705 = vsel %vm37, %v474, 0
  %v708 = vsel %vm37, %v475, 0
  %v711 = vsel %vm37, %v476, 0
  %v714 = vsel %vm37, %v477, 0
  %v717 = vsel %vm37, %v478, 0
  %v720 = vsel %vm37, %v479, 0
  %v723 = vsel %vm37, %v480, 0
  %v726 = vsel %vm37, %v481, 0
  %v729 = vsel %vm37, %v482, 0
  %v732 = vsel %vm37, %v483, 0
  %v735 = vsel %vm37, %v484, 0
  %v738 = vsel %vm37, %v485, 0
  %v741 = vsel %vm37, %v486, 0
  %v744 = vsel %vm37, %v487, 0
  %v747 = vsel %vm37, %v488, 0
  %v750 = vsel %vm37, %v489, 0
  %v753 = vsel %vm37, %v490, 0
  %v756 = vsel %vm37, %v491, 0
  %v759 = vsel %vm37, %v492, 0
  %v762 = vsel %vm37, %v493, 0
  %v765 = vsel %vm37, %v494, 0
  %v768 = vsel %vm37, %v495, 0
  %v771 = vsel %vm37, %v496, 0
  %v774 = vsel %vm37, %v497, 0
  %v777 = vsel %vm37, %v498, 0
  %v780 = vsel %vm37, %v499, 0
  %v783 = vsel %vm37, %v500, 0
  %v786 = vsel %vm37, %v501, 0
  %v789 = vsel %vm37, %v502, 0
  %v792 = vsel %vm37, %v503, 0
  %v795 = vsel %vm37, %v504, 0
  %v798 = vsel %vm37, %v505, 0
  %v801 = vsel %vm37, %v506, 0
  %v804 = vsel %vm37, %v507, 0
  %v807 = vsel %vm37, %v508, 0
  %v810 = vsel %vm37, %v509, 0
  %v813 = vsel %vm37, %v510, 0
  %v816 = vsel %vm37, %v511, 0
  %v819 = vsel %vm37, %v512, 0
  %v822 = vsel %vm37, %v513, 0
  %v825 = vsel %vm37, %v514, 0
  %v828 = vsel %vm37, %v515, 0
  %v831 = vsel %vm37, %v516, 0
  %v834 = vsel %vm37, %v517, 0
  %v837 = vsel %vm37, %v518, 0
  %v840 = vsel %vm37, %v519, 0
  %v843 = vsel %vm37, %v520, 0
  %v846 = vsel %vm37, %v521, 0
  %v849 = vsel %vm37, %v522, 0
  %v852 = vsel %vm37, %v523, 0
  %v855 = vsel %vm37, %v524, 0
  %v858 = vsel %vm37, %v525, 0
  %v861 = vsel %vm37, %v526, 0
  %v864 = vsel %vm37, %v527, 0
  %v867 = vsel %vm37, %v528, 0
  %v870 = vsel %vm37, %v529, 0
  %v873 = vsel %vm37, %v530, 0
  %v876 = vsel %vm37, %v531, 0
  %v879 = vsel %vm37, %v532, 0
  %v882 = vsel %vm37, %v533, 0
  %v885 = vsel %vm37, %v534, 0
  %v888 = vsel %vm37, %v535, 0
  %v891 = vsel %vm37, %v536, 0
  %v894 = vsel %vm37, %v537, 0
  %v897 = vsel %vm37, %v538, 0
  %v900 = vsel %vm37, %v539, 0
  %v903 = vsel %vm37, %v540, 0
  %v906 = vsel %vm37, %v541, 0
  %v909 = vsel %vm37, %v542, 0
  %v912 = vsel %vm37, %v543, 0
  %v915 = vsel %vm37, %v544, 0
  %v918 = vsel %vm37, %v545, 0
  %v921 = vsel %vm37, %v546, 0
  %v924 = vsel %vm37, %v547, 0
  %v927 = vsel %vm37, %v548, 0
  %v930 = vsel %vm37, %v549, 0
  %v933 = vsel %vm37, %v550, 0
  %v936 = vsel %vm37, %v551, 0
  %938 = vmatprep.subr.mxu0 0.0
  %939 = vmatpush1.msra.mxu0 0.0
  %940 = vmatprep.subr.mxu0 0.0
  %941 = vmatpush1.msra.mxu0 0.0
  %942 = vmatprep.subr.mxu0 0.0
  %943 = vmatpush1.msra.mxu0 0.0
  %944 = vmatprep.subr.mxu0 0.0
  %945 = vmatpush1.msra.mxu0 0.0
  %946 = vmatprep.subr.mxu0 0.0
  %947 = vmatpush1.msra.mxu0 0.0
  %948 = vmatprep.subr.mxu0 0.0
  %949 = vmatpush1.msra.mxu0 0.0
  %950 = vmatprep.subr.mxu0 0.0
  %951 = vmatpush1.msra.mxu0 0.0
  %952 = vmatprep.subr.mxu0 0.0
  %953 = vmatpush1.msra.mxu0 0.0
  %954 = vmatprep.subr.mxu0 0.0
  %955 = vmatpush1.msra.mxu0 %v559
  %956 = vmatprep.subr.mxu0 0.0
  %957 = vmatpush1.msra.mxu0 %v558
  %958 = vmatprep.subr.mxu0 0.0
  %959 = vmatpush1.msra.mxu0 %v557
  %960 = vmatprep.subr.mxu0 0.0
  %961 = vmatpush1.msra.mxu0 %v556
  %962 = vmatprep.subr.mxu0 0.0
  %963 = vmatpush1.msra.mxu0 %v555
  %964 = vmatprep.subr.mxu0 0.0
  %965 = vmatpush1.msra.mxu0 %v554
  %966 = vmatprep.subr.mxu0 0.0
  %967 = vmatpush1.msra.mxu0 %v553
  %968 = vmatprep.subr.mxu0 0.0
  %969 = vmatpush1.msra.mxu0 %v552
  %970 = vmatprep.subr.mxu0 0.0
  %971 = vmatpush2.msra.mxu0 0.0
  %972 = vmatprep.subr.mxu0 0.0
  %973 = vmatpush2.msra.mxu0 0.0
  %974 = vmatprep.subr.mxu0 0.0
  %975 = vmatpush2.msra.mxu0 0.0
  %976 = vmatprep.subr.mxu0 0.0
  %977 = vmatpush2.msra.mxu0 0.0
  %978 = vmatprep.subr.mxu0 0.0
  %979 = vmatpush2.msra.mxu0 0.0
  %980 = vmatprep.subr.mxu0 0.0
  %981 = vmatpush2.msra.mxu0 0.0
  %982 = vmatprep.subr.mxu0 0.0
  %983 = vmatpush2.msra.mxu0 0.0
  %984 = vmatprep.subr.mxu0 0.0
  %985 = vmatpush2.msra.mxu0 0.0
  %986 = vmatprep.subr.mxu0 0.0
  %987 = vmatpush2.msra.mxu0 0.0
  %988 = vmatprep.subr.mxu0 0.0
  %989 = vmatpush2.msra.mxu0 0.0
  %990 = vmatprep.subr.mxu0 0.0
  %991 = vmatpush2.msra.mxu0 0.0
  %992 = vmatprep.subr.mxu0 0.0
  %993 = vmatpush2.msra.mxu0 0.0
  %994 = vmatprep.subr.mxu0 0.0
  %995 = vmatpush2.msra.mxu0 0.0
  %996 = vmatprep.subr.mxu0 0.0
  %997 = vmatpush2.msra.mxu0 0.0
  %998 = vmatprep.subr.mxu0 0.0
  %999 = vmatpush2.msra.mxu0 0.0
  %1000 = vmatprep.subr.mxu0 0.0
  %1001 = vmatpush2.msra.mxu0 0.0
  %1002 = vmatprep.mubr.f32.mxu0 0.0
  %1003 = vmatmul.mubr.f32.gmra.mxu0 %v561
  %v1004 = vpop.f32.mrf.mxu0
  %v1005 = vadd.f32 0.0, %v1004
  %v1006 = vpop.f32.mrf.mxu0
  %1007 = vmatprep.mubr.f32.mxu0 0.0
  %1008 = vmatmul.mubr.f32.gmra.mxu0 %v564
  %v1009 = vpop.f32.mrf.mxu0
  %v1010 = vadd.f32 0.0, %v1009
  %v1011 = vpop.f32.mrf.mxu0
  %1012 = vmatprep.mubr.f32.mxu0 0.0
  %1013 = vmatmul.mubr.f32.gmra.mxu0 %v567
  %v1014 = vpop.f32.mrf.mxu0
  %v1015 = vadd.f32 0.0, %v1014
  %v1016 = vpop.f32.mrf.mxu0
  %1017 = vmatprep.mubr.f32.mxu0 0.0
  %1018 = vmatmul.mubr.f32.gmra.mxu0 %v570
  %v1019 = vpop.f32.mrf.mxu0
  %v1020 = vadd.f32 0.0, %v1019
  %v1021 = vpop.f32.mrf.mxu0
  %1022 = vmatprep.mubr.f32.mxu0 0.0
  %1023 = vmatmul.mubr.f32.gmra.mxu0 %v573
  %v1024 = vpop.f32.mrf.mxu0
  %v1025 = vadd.f32 0.0, %v1024
  %v1026 = vpop.f32.mrf.mxu0
  %1027 = vmatprep.mubr.f32.mxu0 0.0
  %1028 = vmatmul.mubr.f32.gmra.mxu0 %v576
  %v1029 = vpop.f32.mrf.mxu0
  %v1030 = vadd.f32 0.0, %v1029
  %v1031 = vpop.f32.mrf.mxu0
  %1032 = vmatprep.mubr.f32.mxu0 0.0
  %1033 = vmatmul.mubr.f32.gmra.mxu0 %v579
  %v1034 = vpop.f32.mrf.mxu0
  %v1035 = vadd.f32 0.0, %v1034
  %v1036 = vpop.f32.mrf.mxu0
  %1037 = vmatprep.mubr.f32.mxu0 0.0
  %1038 = vmatmul.mubr.f32.gmra.mxu0 %v582
  %v1039 = vpop.f32.mrf.mxu0
  %v1040 = vadd.f32 0.0, %v1039
  %v1041 = vpop.f32.mrf.mxu0
  %1042 = vmatprep.mubr.f32.mxu0 0.0
  %1043 = vmatmul.mubr.f32.gmra.mxu0 %v585
  %v1044 = vpop.f32.mrf.mxu0
  %v1045 = vadd.f32 0.0, %v1044
  %v1046 = vpop.f32.mrf.mxu0
  %1047 = vmatprep.mubr.f32.mxu0 0.0
  %1048 = vmatmul.mubr.f32.gmra.mxu0 %v588
  %v1049 = vpop.f32.mrf.mxu0
  %v1050 = vadd.f32 0.0, %v1049
  %v1051 = vpop.f32.mrf.mxu0
  %1052 = vmatprep.mubr.f32.mxu0 0.0
  %1053 = vmatmul.mubr.f32.gmra.mxu0 %v591
  %v1054 = vpop.f32.mrf.mxu0
  %v1055 = vadd.f32 0.0, %v1054
  %v1056 = vpop.f32.mrf.mxu0
  %1057 = vmatprep.mubr.f32.mxu0 0.0
  %1058 = vmatmul.mubr.f32.gmra.mxu0 %v594
  %v1059 = vpop.f32.mrf.mxu0
  %v1060 = vadd.f32 0.0, %v1059
  %v1061 = vpop.f32.mrf.mxu0
  %1062 = vmatprep.mubr.f32.mxu0 0.0
  %1063 = vmatmul.mubr.f32.gmra.mxu0 %v597
  %v1064 = vpop.f32.mrf.mxu0
  %v1065 = vadd.f32 0.0, %v1064
  %v1066 = vpop.f32.mrf.mxu0
  %1067 = vmatprep.mubr.f32.mxu0 0.0
  %1068 = vmatmul.mubr.f32.gmra.mxu0 %v600
  %v1069 = vpop.f32.mrf.mxu0
  %v1070 = vadd.f32 0.0, %v1069
  %v1071 = vpop.f32.mrf.mxu0
  %1072 = vmatprep.mubr.f32.mxu0 0.0
  %1073 = vmatmul.mubr.f32.gmra.mxu0 %v603
  %v1074 = vpop.f32.mrf.mxu0
  %v1075 = vadd.f32 0.0, %v1074
  %v1076 = vpop.f32.mrf.mxu0
  %1077 = vmatprep.mubr.f32.mxu0 0.0
  %1078 = vmatmul.mubr.f32.gmra.mxu0 %v606
  %v1079 = vpop.f32.mrf.mxu0
  %v1080 = vadd.f32 0.0, %v1079
  %v1081 = vpop.f32.mrf.mxu0
  %1082 = vmatprep.mubr.f32.mxu0 0.0
  %1083 = vmatmul.mubr.f32.gmra.mxu0 %v609
  %v1084 = vpop.f32.mrf.mxu0
  %v1085 = vadd.f32 0.0, %v1084
  %v1086 = vpop.f32.mrf.mxu0
  %1087 = vmatprep.mubr.f32.mxu0 0.0
  %1088 = vmatmul.mubr.f32.gmra.mxu0 %v612
  %v1089 = vpop.f32.mrf.mxu0
  %v1090 = vadd.f32 0.0, %v1089
  %v1091 = vpop.f32.mrf.mxu0
  %1092 = vmatprep.mubr.f32.mxu0 0.0
  %1093 = vmatmul.mubr.f32.gmra.mxu0 %v615
  %v1094 = vpop.f32.mrf.mxu0
  %v1095 = vadd.f32 0.0, %v1094
  %v1096 = vpop.f32.mrf.mxu0
  %1097 = vmatprep.mubr.f32.mxu0 0.0
  %1098 = vmatmul.mubr.f32.gmra.mxu0 %v618
  %v1099 = vpop.f32.mrf.mxu0
  %v1100 = vadd.f32 0.0, %v1099
  %v1101 = vpop.f32.mrf.mxu0
  %1102 = vmatprep.mubr.f32.mxu0 0.0
  %1103 = vmatmul.mubr.f32.gmra.mxu0 %v621
  %v1104 = vpop.f32.mrf.mxu0
  %v1105 = vadd.f32 0.0, %v1104
  %v1106 = vpop.f32.mrf.mxu0
  %1107 = vmatprep.mubr.f32.mxu0 0.0
  %1108 = vmatmul.mubr.f32.gmra.mxu0 %v624
  %v1109 = vpop.f32.mrf.mxu0
  %v1110 = vadd.f32 0.0, %v1109
  %v1111 = vpop.f32.mrf.mxu0
  %1112 = vmatprep.mubr.f32.mxu0 0.0
  %1113 = vmatmul.mubr.f32.gmra.mxu0 %v627
  %v1114 = vpop.f32.mrf.mxu0
  %v1115 = vadd.f32 0.0, %v1114
  %v1116 = vpop.f32.mrf.mxu0
  %1117 = vmatprep.mubr.f32.mxu0 0.0
  %1118 = vmatmul.mubr.f32.gmra.mxu0 %v630
  %v1119 = vpop.f32.mrf.mxu0
  %v1120 = vadd.f32 0.0, %v1119
  %v1121 = vpop.f32.mrf.mxu0
  %1122 = vmatprep.mubr.f32.mxu0 0.0
  %1123 = vmatmul.mubr.f32.gmra.mxu0 %v633
  %v1124 = vpop.f32.mrf.mxu0
  %v1125 = vadd.f32 0.0, %v1124
  %v1126 = vpop.f32.mrf.mxu0
  %1127 = vmatprep.mubr.f32.mxu0 0.0
  %1128 = vmatmul.mubr.f32.gmra.mxu0 %v636
  %v1129 = vpop.f32.mrf.mxu0
  %v1130 = vadd.f32 0.0, %v1129
  %v1131 = vpop.f32.mrf.mxu0
  %1132 = vmatprep.mubr.f32.mxu0 0.0
  %1133 = vmatmul.mubr.f32.gmra.mxu0 %v639
  %v1134 = vpop.f32.mrf.mxu0
  %v1135 = vadd.f32 0.0, %v1134
  %v1136 = vpop.f32.mrf.mxu0
  %1137 = vmatprep.mubr.f32.mxu0 0.0
  %1138 = vmatmul.mubr.f32.gmra.mxu0 %v642
  %v1139 = vpop.f32.mrf.mxu0
  %v1140 = vadd.f32 0.0, %v1139
  %v1141 = vpop.f32.mrf.mxu0
  %1142 = vmatprep.mubr.f32.mxu0 0.0
  %1143 = vmatmul.mubr.f32.gmra.mxu0 %v645
  %v1144 = vpop.f32.mrf.mxu0
  %v1145 = vadd.f32 0.0, %v1144
  %v1146 = vpop.f32.mrf.mxu0
  %1147 = vmatprep.mubr.f32.mxu0 0.0
  %1148 = vmatmul.mubr.f32.gmra.mxu0 %v648
  %v1149 = vpop.f32.mrf.mxu0
  %v1150 = vadd.f32 0.0, %v1149
  %v1151 = vpop.f32.mrf.mxu0
  %1152 = vmatprep.mubr.f32.mxu0 0.0
  %1153 = vmatmul.mubr.f32.gmra.mxu0 %v651
  %v1154 = vpop.f32.mrf.mxu0
  %v1155 = vadd.f32 0.0, %v1154
  %v1156 = vpop.f32.mrf.mxu0
  %1157 = vmatprep.mubr.f32.mxu0 0.0
  %1158 = vmatmul.mubr.f32.gmra.mxu0 %v654
  %v1159 = vpop.f32.mrf.mxu0
  %v1160 = vadd.f32 0.0, %v1159
  %v1161 = vpop.f32.mrf.mxu0
  %1162 = vmatprep.mubr.f32.mxu0 0.0
  %1163 = vmatmul.mubr.f32.gmra.mxu0 %v657
  %v1164 = vpop.f32.mrf.mxu0
  %v1165 = vadd.f32 0.0, %v1164
  %v1166 = vpop.f32.mrf.mxu0
  %1167 = vmatprep.mubr.f32.mxu0 0.0
  %1168 = vmatmul.mubr.f32.gmra.mxu0 %v660
  %v1169 = vpop.f32.mrf.mxu0
  %v1170 = vadd.f32 0.0, %v1169
  %v1171 = vpop.f32.mrf.mxu0
  %1172 = vmatprep.mubr.f32.mxu0 0.0
  %1173 = vmatmul.mubr.f32.gmra.mxu0 %v663
  %v1174 = vpop.f32.mrf.mxu0
  %v1175 = vadd.f32 0.0, %v1174
  %v1176 = vpop.f32.mrf.mxu0
  %1177 = vmatprep.mubr.f32.mxu0 0.0
  %1178 = vmatmul.mubr.f32.gmra.mxu0 %v666
  %v1179 = vpop.f32.mrf.mxu0
  %v1180 = vadd.f32 0.0, %v1179
  %v1181 = vpop.f32.mrf.mxu0
  %1182 = vmatprep.mubr.f32.mxu0 0.0
  %1183 = vmatmul.mubr.f32.gmra.mxu0 %v669
  %v1184 = vpop.f32.mrf.mxu0
  %v1185 = vadd.f32 0.0, %v1184
  %v1186 = vpop.f32.mrf.mxu0
  %1187 = vmatprep.mubr.f32.mxu0 0.0
  %1188 = vmatmul.mubr.f32.gmra.mxu0 %v672
  %v1189 = vpop.f32.mrf.mxu0
  %v1190 = vadd.f32 0.0, %v1189
  %v1191 = vpop.f32.mrf.mxu0
  %1192 = vmatprep.mubr.f32.mxu0 0.0
  %1193 = vmatmul.mubr.f32.gmra.mxu0 %v675
  %v1194 = vpop.f32.mrf.mxu0
  %v1195 = vadd.f32 0.0, %v1194
  %v1196 = vpop.f32.mrf.mxu0
  %1197 = vmatprep.mubr.f32.mxu0 0.0
  %1198 = vmatmul.mubr.f32.gmra.mxu0 %v678
  %v1199 = vpop.f32.mrf.mxu0
  %v1200 = vadd.f32 0.0, %v1199
  %v1201 = vpop.f32.mrf.mxu0
  %1202 = vmatprep.mubr.f32.mxu0 0.0
  %1203 = vmatmul.mubr.f32.gmra.mxu0 %v681
  %v1204 = vpop.f32.mrf.mxu0
  %v1205 = vadd.f32 0.0, %v1204
  %v1206 = vpop.f32.mrf.mxu0
  %1207 = vmatprep.mubr.f32.mxu0 0.0
  %1208 = vmatmul.mubr.f32.gmra.mxu0 %v684
  %v1209 = vpop.f32.mrf.mxu0
  %v1210 = vadd.f32 0.0, %v1209
  %v1211 = vpop.f32.mrf.mxu0
  %1212 = vmatprep.mubr.f32.mxu0 0.0
  %1213 = vmatmul.mubr.f32.gmra.mxu0 %v687
  %v1214 = vpop.f32.mrf.mxu0
  %v1215 = vadd.f32 0.0, %v1214
  %v1216 = vpop.f32.mrf.mxu0
  %1217 = vmatprep.mubr.f32.mxu0 0.0
  %1218 = vmatmul.mubr.f32.gmra.mxu0 %v690
  %v1219 = vpop.f32.mrf.mxu0
  %v1220 = vadd.f32 0.0, %v1219
  %v1221 = vpop.f32.mrf.mxu0
  %1222 = vmatprep.mubr.f32.mxu0 0.0
  %1223 = vmatmul.mubr.f32.gmra.mxu0 %v693
  %v1224 = vpop.f32.mrf.mxu0
  %v1225 = vadd.f32 0.0, %v1224
  %v1226 = vpop.f32.mrf.mxu0
  %1227 = vmatprep.mubr.f32.mxu0 0.0
  %1228 = vmatmul.mubr.f32.gmra.mxu0 %v696
  %v1229 = vpop.f32.mrf.mxu0
  %v1230 = vadd.f32 0.0, %v1229
  %v1231 = vpop.f32.mrf.mxu0
  %1232 = vmatprep.mubr.f32.mxu0 0.0
  %1233 = vmatmul.mubr.f32.gmra.mxu0 %v699
  %v1234 = vpop.f32.mrf.mxu0
  %v1235 = vadd.f32 0.0, %v1234
  %v1236 = vpop.f32.mrf.mxu0
  %1237 = vmatprep.mubr.f32.mxu0 0.0
  %1238 = vmatmul.mubr.f32.gmra.mxu0 %v702
  %v1239 = vpop.f32.mrf.mxu0
  %v1240 = vadd.f32 0.0, %v1239
  %v1241 = vpop.f32.mrf.mxu0
  %1242 = vmatprep.mubr.f32.mxu0 0.0
  %1243 = vmatmul.mubr.f32.gmra.mxu0 %v705
  %v1244 = vpop.f32.mrf.mxu0
  %v1245 = vadd.f32 0.0, %v1244
  %v1246 = vpop.f32.mrf.mxu0
  %1247 = vmatprep.mubr.f32.mxu0 0.0
  %1248 = vmatmul.mubr.f32.gmra.mxu0 %v708
  %v1249 = vpop.f32.mrf.mxu0
  %v1250 = vadd.f32 0.0, %v1249
  %v1251 = vpop.f32.mrf.mxu0
  %1252 = vmatprep.mubr.f32.mxu0 0.0
  %1253 = vmatmul.mubr.f32.gmra.mxu0 %v711
  %v1254 = vpop.f32.mrf.mxu0
  %v1255 = vadd.f32 0.0, %v1254
  %v1256 = vpop.f32.mrf.mxu0
  %1257 = vmatprep.mubr.f32.mxu0 0.0
  %1258 = vmatmul.mubr.f32.gmra.mxu0 %v714
  %v1259 = vpop.f32.mrf.mxu0
  %v1260 = vadd.f32 0.0, %v1259
  %v1261 = vpop.f32.mrf.mxu0
  %1262 = vmatprep.mubr.f32.mxu0 0.0
  %1263 = vmatmul.mubr.f32.gmra.mxu0 %v717
  %v1264 = vpop.f32.mrf.mxu0
  %v1265 = vadd.f32 0.0, %v1264
  %v1266 = vpop.f32.mrf.mxu0
  %1267 = vmatprep.mubr.f32.mxu0 0.0
  %1268 = vmatmul.mubr.f32.gmra.mxu0 %v720
  %v1269 = vpop.f32.mrf.mxu0
  %v1270 = vadd.f32 0.0, %v1269
  %v1271 = vpop.f32.mrf.mxu0
  %1272 = vmatprep.mubr.f32.mxu0 0.0
  %1273 = vmatmul.mubr.f32.gmra.mxu0 %v723
  %v1274 = vpop.f32.mrf.mxu0
  %v1275 = vadd.f32 0.0, %v1274
  %v1276 = vpop.f32.mrf.mxu0
  %1277 = vmatprep.mubr.f32.mxu0 0.0
  %1278 = vmatmul.mubr.f32.gmra.mxu0 %v726
  %v1279 = vpop.f32.mrf.mxu0
  %v1280 = vadd.f32 0.0, %v1279
  %v1281 = vpop.f32.mrf.mxu0
  %1282 = vmatprep.mubr.f32.mxu0 0.0
  %1283 = vmatmul.mubr.f32.gmra.mxu0 %v729
  %v1284 = vpop.f32.mrf.mxu0
  %v1285 = vadd.f32 0.0, %v1284
  %v1286 = vpop.f32.mrf.mxu0
  %1287 = vmatprep.mubr.f32.mxu0 0.0
  %1288 = vmatmul.mubr.f32.gmra.mxu0 %v732
  %v1289 = vpop.f32.mrf.mxu0
  %v1290 = vadd.f32 0.0, %v1289
  %v1291 = vpop.f32.mrf.mxu0
  %1292 = vmatprep.mubr.f32.mxu0 0.0
  %1293 = vmatmul.mubr.f32.gmra.mxu0 %v735
  %v1294 = vpop.f32.mrf.mxu0
  %v1295 = vadd.f32 0.0, %v1294
  %v1296 = vpop.f32.mrf.mxu0
  %1297 = vmatprep.mubr.f32.mxu0 0.0
  %1298 = vmatmul.mubr.f32.gmra.mxu0 %v738
  %v1299 = vpop.f32.mrf.mxu0
  %v1300 = vadd.f32 0.0, %v1299
  %v1301 = vpop.f32.mrf.mxu0
  %1302 = vmatprep.mubr.f32.mxu0 0.0
  %1303 = vmatmul.mubr.f32.gmra.mxu0 %v741
  %v1304 = vpop.f32.mrf.mxu0
  %v1305 = vadd.f32 0.0, %v1304
  %v1306 = vpop.f32.mrf.mxu0
  %1307 = vmatprep.mubr.f32.mxu0 0.0
  %1308 = vmatmul.mubr.f32.gmra.mxu0 %v744
  %v1309 = vpop.f32.mrf.mxu0
  %v1310 = vadd.f32 0.0, %v1309
  %v1311 = vpop.f32.mrf.mxu0
  %1312 = vmatprep.mubr.f32.mxu0 0.0
  %1313 = vmatmul.mubr.f32.gmra.mxu0 %v747
  %v1314 = vpop.f32.mrf.mxu0
  %v1315 = vadd.f32 0.0, %v1314
  %v1316 = vpop.f32.mrf.mxu0
  %1317 = vmatprep.mubr.f32.mxu0 0.0
  %1318 = vmatmul.mubr.f32.gmra.mxu0 %v750
  %v1319 = vpop.f32.mrf.mxu0
  %v1320 = vadd.f32 0.0, %v1319
  %v1321 = vpop.f32.mrf.mxu0
  %1322 = vmatprep.mubr.f32.mxu0 0.0
  %1323 = vmatmul.mubr.f32.gmra.mxu0 %v753
  %v1324 = vpop.f32.mrf.mxu0
  %v1325 = vadd.f32 0.0, %v1324
  %v1326 = vpop.f32.mrf.mxu0
  %1327 = vmatprep.mubr.f32.mxu0 0.0
  %1328 = vmatmul.mubr.f32.gmra.mxu0 %v756
  %v1329 = vpop.f32.mrf.mxu0
  %v1330 = vadd.f32 0.0, %v1329
  %v1331 = vpop.f32.mrf.mxu0
  %1332 = vmatprep.mubr.f32.mxu0 0.0
  %1333 = vmatmul.mubr.f32.gmra.mxu0 %v759
  %v1334 = vpop.f32.mrf.mxu0
  %v1335 = vadd.f32 0.0, %v1334
  %v1336 = vpop.f32.mrf.mxu0
  %1337 = vmatprep.mubr.f32.mxu0 0.0
  %1338 = vmatmul.mubr.f32.gmra.mxu0 %v762
  %v1339 = vpop.f32.mrf.mxu0
  %v1340 = vadd.f32 0.0, %v1339
  %v1341 = vpop.f32.mrf.mxu0
  %1342 = vmatprep.mubr.f32.mxu0 0.0
  %1343 = vmatmul.mubr.f32.gmra.mxu0 %v765
  %v1344 = vpop.f32.mrf.mxu0
  %v1345 = vadd.f32 0.0, %v1344
  %v1346 = vpop.f32.mrf.mxu0
  %1347 = vmatprep.mubr.f32.mxu0 0.0
  %1348 = vmatmul.mubr.f32.gmra.mxu0 %v768
  %v1349 = vpop.f32.mrf.mxu0
  %v1350 = vadd.f32 0.0, %v1349
  %v1351 = vpop.f32.mrf.mxu0
  %1352 = vmatprep.mubr.f32.mxu0 0.0
  %1353 = vmatmul.mubr.f32.gmra.mxu0 %v771
  %v1354 = vpop.f32.mrf.mxu0
  %v1355 = vadd.f32 0.0, %v1354
  %v1356 = vpop.f32.mrf.mxu0
  %1357 = vmatprep.mubr.f32.mxu0 0.0
  %1358 = vmatmul.mubr.f32.gmra.mxu0 %v774
  %v1359 = vpop.f32.mrf.mxu0
  %v1360 = vadd.f32 0.0, %v1359
  %v1361 = vpop.f32.mrf.mxu0
  %1362 = vmatprep.mubr.f32.mxu0 0.0
  %1363 = vmatmul.mubr.f32.gmra.mxu0 %v777
  %v1364 = vpop.f32.mrf.mxu0
  %v1365 = vadd.f32 0.0, %v1364
  %v1366 = vpop.f32.mrf.mxu0
  %1367 = vmatprep.mubr.f32.mxu0 0.0
  %1368 = vmatmul.mubr.f32.gmra.mxu0 %v780
  %v1369 = vpop.f32.mrf.mxu0
  %v1370 = vadd.f32 0.0, %v1369
  %v1371 = vpop.f32.mrf.mxu0
  %1372 = vmatprep.mubr.f32.mxu0 0.0
  %1373 = vmatmul.mubr.f32.gmra.mxu0 %v783
  %v1374 = vpop.f32.mrf.mxu0
  %v1375 = vadd.f32 0.0, %v1374
  %v1376 = vpop.f32.mrf.mxu0
  %1377 = vmatprep.mubr.f32.mxu0 0.0
  %1378 = vmatmul.mubr.f32.gmra.mxu0 %v786
  %v1379 = vpop.f32.mrf.mxu0
  %v1380 = vadd.f32 0.0, %v1379
  %v1381 = vpop.f32.mrf.mxu0
  %1382 = vmatprep.mubr.f32.mxu0 0.0
  %1383 = vmatmul.mubr.f32.gmra.mxu0 %v789
  %v1384 = vpop.f32.mrf.mxu0
  %v1385 = vadd.f32 0.0, %v1384
  %v1386 = vpop.f32.mrf.mxu0
  %1387 = vmatprep.mubr.f32.mxu0 0.0
  %1388 = vmatmul.mubr.f32.gmra.mxu0 %v792
  %v1389 = vpop.f32.mrf.mxu0
  %v1390 = vadd.f32 0.0, %v1389
  %v1391 = vpop.f32.mrf.mxu0
  %1392 = vmatprep.mubr.f32.mxu0 0.0
  %1393 = vmatmul.mubr.f32.gmra.mxu0 %v795
  %v1394 = vpop.f32.mrf.mxu0
  %v1395 = vadd.f32 0.0, %v1394
  %v1396 = vpop.f32.mrf.mxu0
  %1397 = vmatprep.mubr.f32.mxu0 0.0
  %1398 = vmatmul.mubr.f32.gmra.mxu0 %v798
  %v1399 = vpop.f32.mrf.mxu0
  %v1400 = vadd.f32 0.0, %v1399
  %v1401 = vpop.f32.mrf.mxu0
  %1402 = vmatprep.mubr.f32.mxu0 0.0
  %1403 = vmatmul.mubr.f32.gmra.mxu0 %v801
  %v1404 = vpop.f32.mrf.mxu0
  %v1405 = vadd.f32 0.0, %v1404
  %v1406 = vpop.f32.mrf.mxu0
  %1407 = vmatprep.mubr.f32.mxu0 0.0
  %1408 = vmatmul.mubr.f32.gmra.mxu0 %v804
  %v1409 = vpop.f32.mrf.mxu0
  %v1410 = vadd.f32 0.0, %v1409
  %v1411 = vpop.f32.mrf.mxu0
  %1412 = vmatprep.mubr.f32.mxu0 0.0
  %1413 = vmatmul.mubr.f32.gmra.mxu0 %v807
  %v1414 = vpop.f32.mrf.mxu0
  %v1415 = vadd.f32 0.0, %v1414
  %v1416 = vpop.f32.mrf.mxu0
  %1417 = vmatprep.mubr.f32.mxu0 0.0
  %1418 = vmatmul.mubr.f32.gmra.mxu0 %v810
  %v1419 = vpop.f32.mrf.mxu0
  %v1420 = vadd.f32 0.0, %v1419
  %v1421 = vpop.f32.mrf.mxu0
  %1422 = vmatprep.mubr.f32.mxu0 0.0
  %1423 = vmatmul.mubr.f32.gmra.mxu0 %v813
  %v1424 = vpop.f32.mrf.mxu0
  %v1425 = vadd.f32 0.0, %v1424
  %v1426 = vpop.f32.mrf.mxu0
  %1427 = vmatprep.mubr.f32.mxu0 0.0
  %1428 = vmatmul.mubr.f32.gmra.mxu0 %v816
  %v1429 = vpop.f32.mrf.mxu0
  %v1430 = vadd.f32 0.0, %v1429
  %v1431 = vpop.f32.mrf.mxu0
  %1432 = vmatprep.mubr.f32.mxu0 0.0
  %1433 = vmatmul.mubr.f32.gmra.mxu0 %v819
  %v1434 = vpop.f32.mrf.mxu0
  %v1435 = vadd.f32 0.0, %v1434
  %v1436 = vpop.f32.mrf.mxu0
  %1437 = vmatprep.mubr.f32.mxu0 0.0
  %1438 = vmatmul.mubr.f32.gmra.mxu0 %v822
  %v1439 = vpop.f32.mrf.mxu0
  %v1440 = vadd.f32 0.0, %v1439
  %v1441 = vpop.f32.mrf.mxu0
  %1442 = vmatprep.mubr.f32.mxu0 0.0
  %1443 = vmatmul.mubr.f32.gmra.mxu0 %v825
  %v1444 = vpop.f32.mrf.mxu0
  %v1445 = vadd.f32 0.0, %v1444
  %v1446 = vpop.f32.mrf.mxu0
  %1447 = vmatprep.mubr.f32.mxu0 0.0
  %1448 = vmatmul.mubr.f32.gmra.mxu0 %v828
  %v1449 = vpop.f32.mrf.mxu0
  %v1450 = vadd.f32 0.0, %v1449
  %v1451 = vpop.f32.mrf.mxu0
  %1452 = vmatprep.mubr.f32.mxu0 0.0
  %1453 = vmatmul.mubr.f32.gmra.mxu0 %v831
  %v1454 = vpop.f32.mrf.mxu0
  %v1455 = vadd.f32 0.0, %v1454
  %v1456 = vpop.f32.mrf.mxu0
  %1457 = vmatprep.mubr.f32.mxu0 0.0
  %1458 = vmatmul.mubr.f32.gmra.mxu0 %v834
  %v1459 = vpop.f32.mrf.mxu0
  %v1460 = vadd.f32 0.0, %v1459
  %v1461 = vpop.f32.mrf.mxu0
  %1462 = vmatprep.mubr.f32.mxu0 0.0
  %1463 = vmatmul.mubr.f32.gmra.mxu0 %v837
  %v1464 = vpop.f32.mrf.mxu0
  %v1465 = vadd.f32 0.0, %v1464
  %v1466 = vpop.f32.mrf.mxu0
  %1467 = vmatprep.mubr.f32.mxu0 0.0
  %1468 = vmatmul.mubr.f32.gmra.mxu0 %v840
  %v1469 = vpop.f32.mrf.mxu0
  %v1470 = vadd.f32 0.0, %v1469
  %v1471 = vpop.f32.mrf.mxu0
  %1472 = vmatprep.mubr.f32.mxu0 0.0
  %1473 = vmatmul.mubr.f32.gmra.mxu0 %v843
  %v1474 = vpop.f32.mrf.mxu0
  %v1475 = vadd.f32 0.0, %v1474
  %v1476 = vpop.f32.mrf.mxu0
  %1477 = vmatprep.mubr.f32.mxu0 0.0
  %1478 = vmatmul.mubr.f32.gmra.mxu0 %v846
  %v1479 = vpop.f32.mrf.mxu0
  %v1480 = vadd.f32 0.0, %v1479
  %v1481 = vpop.f32.mrf.mxu0
  %1482 = vmatprep.mubr.f32.mxu0 0.0
  %1483 = vmatmul.mubr.f32.gmra.mxu0 %v849
  %v1484 = vpop.f32.mrf.mxu0
  %v1485 = vadd.f32 0.0, %v1484
  %v1486 = vpop.f32.mrf.mxu0
  %1487 = vmatprep.mubr.f32.mxu0 0.0
  %1488 = vmatmul.mubr.f32.gmra.mxu0 %v852
  %v1489 = vpop.f32.mrf.mxu0
  %v1490 = vadd.f32 0.0, %v1489
  %v1491 = vpop.f32.mrf.mxu0
  %1492 = vmatprep.mubr.f32.mxu0 0.0
  %1493 = vmatmul.mubr.f32.gmra.mxu0 %v855
  %v1494 = vpop.f32.mrf.mxu0
  %v1495 = vadd.f32 0.0, %v1494
  %v1496 = vpop.f32.mrf.mxu0
  %1497 = vmatprep.mubr.f32.mxu0 0.0
  %1498 = vmatmul.mubr.f32.gmra.mxu0 %v858
  %v1499 = vpop.f32.mrf.mxu0
  %v1500 = vadd.f32 0.0, %v1499
  %v1501 = vpop.f32.mrf.mxu0
  %1502 = vmatprep.mubr.f32.mxu0 0.0
  %1503 = vmatmul.mubr.f32.gmra.mxu0 %v861
  %v1504 = vpop.f32.mrf.mxu0
  %v1505 = vadd.f32 0.0, %v1504
  %v1506 = vpop.f32.mrf.mxu0
  %1507 = vmatprep.mubr.f32.mxu0 0.0
  %1508 = vmatmul.mubr.f32.gmra.mxu0 %v864
  %v1509 = vpop.f32.mrf.mxu0
  %v1510 = vadd.f32 0.0, %v1509
  %v1511 = vpop.f32.mrf.mxu0
  %1512 = vmatprep.mubr.f32.mxu0 0.0
  %1513 = vmatmul.mubr.f32.gmra.mxu0 %v867
  %v1514 = vpop.f32.mrf.mxu0
  %v1515 = vadd.f32 0.0, %v1514
  %v1516 = vpop.f32.mrf.mxu0
  %1517 = vmatprep.mubr.f32.mxu0 0.0
  %1518 = vmatmul.mubr.f32.gmra.mxu0 %v870
  %v1519 = vpop.f32.mrf.mxu0
  %v1520 = vadd.f32 0.0, %v1519
  %v1521 = vpop.f32.mrf.mxu0
  %1522 = vmatprep.mubr.f32.mxu0 0.0
  %1523 = vmatmul.mubr.f32.gmra.mxu0 %v873
  %v1524 = vpop.f32.mrf.mxu0
  %v1525 = vadd.f32 0.0, %v1524
  %v1526 = vpop.f32.mrf.mxu0
  %1527 = vmatprep.mubr.f32.mxu0 0.0
  %1528 = vmatmul.mubr.f32.gmra.mxu0 %v876
  %v1529 = vpop.f32.mrf.mxu0
  %v1530 = vadd.f32 0.0, %v1529
  %v1531 = vpop.f32.mrf.mxu0
  %1532 = vmatprep.mubr.f32.mxu0 0.0
  %1533 = vmatmul.mubr.f32.gmra.mxu0 %v879
  %v1534 = vpop.f32.mrf.mxu0
  %v1535 = vadd.f32 0.0, %v1534
  %v1536 = vpop.f32.mrf.mxu0
  %1537 = vmatprep.mubr.f32.mxu0 0.0
  %1538 = vmatmul.mubr.f32.gmra.mxu0 %v882
  %v1539 = vpop.f32.mrf.mxu0
  %v1540 = vadd.f32 0.0, %v1539
  %v1541 = vpop.f32.mrf.mxu0
  %1542 = vmatprep.mubr.f32.mxu0 0.0
  %1543 = vmatmul.mubr.f32.gmra.mxu0 %v885
  %v1544 = vpop.f32.mrf.mxu0
  %v1545 = vadd.f32 0.0, %v1544
  %v1546 = vpop.f32.mrf.mxu0
  %1547 = vmatprep.mubr.f32.mxu0 0.0
  %1548 = vmatmul.mubr.f32.gmra.mxu0 %v888
  %v1549 = vpop.f32.mrf.mxu0
  %v1550 = vadd.f32 0.0, %v1549
  %v1551 = vpop.f32.mrf.mxu0
  %1552 = vmatprep.mubr.f32.mxu0 0.0
  %1553 = vmatmul.mubr.f32.gmra.mxu0 %v891
  %v1554 = vpop.f32.mrf.mxu0
  %v1555 = vadd.f32 0.0, %v1554
  %v1556 = vpop.f32.mrf.mxu0
  %1557 = vmatprep.mubr.f32.mxu0 0.0
  %1558 = vmatmul.mubr.f32.gmra.mxu0 %v894
  %v1559 = vpop.f32.mrf.mxu0
  %v1560 = vadd.f32 0.0, %v1559
  %v1561 = vpop.f32.mrf.mxu0
  %1562 = vmatprep.mubr.f32.mxu0 0.0
  %1563 = vmatmul.mubr.f32.gmra.mxu0 %v897
  %v1564 = vpop.f32.mrf.mxu0
  %v1565 = vadd.f32 0.0, %v1564
  %v1566 = vpop.f32.mrf.mxu0
  %1567 = vmatprep.mubr.f32.mxu0 0.0
  %1568 = vmatmul.mubr.f32.gmra.mxu0 %v900
  %v1569 = vpop.f32.mrf.mxu0
  %v1570 = vadd.f32 0.0, %v1569
  %v1571 = vpop.f32.mrf.mxu0
  %1572 = vmatprep.mubr.f32.mxu0 0.0
  %1573 = vmatmul.mubr.f32.gmra.mxu0 %v903
  %v1574 = vpop.f32.mrf.mxu0
  %v1575 = vadd.f32 0.0, %v1574
  %v1576 = vpop.f32.mrf.mxu0
  %1577 = vmatprep.mubr.f32.mxu0 0.0
  %1578 = vmatmul.mubr.f32.gmra.mxu0 %v906
  %v1579 = vpop.f32.mrf.mxu0
  %v1580 = vadd.f32 0.0, %v1579
  %v1581 = vpop.f32.mrf.mxu0
  %1582 = vmatprep.mubr.f32.mxu0 0.0
  %1583 = vmatmul.mubr.f32.gmra.mxu0 %v909
  %v1584 = vpop.f32.mrf.mxu0
  %v1585 = vadd.f32 0.0, %v1584
  %v1586 = vpop.f32.mrf.mxu0
  %1587 = vmatprep.mubr.f32.mxu0 0.0
  %1588 = vmatmul.mubr.f32.gmra.mxu0 %v912
  %v1589 = vpop.f32.mrf.mxu0
  %v1590 = vadd.f32 0.0, %v1589
  %v1591 = vpop.f32.mrf.mxu0
  %1592 = vmatprep.mubr.f32.mxu0 0.0
  %1593 = vmatmul.mubr.f32.gmra.mxu0 %v915
  %v1594 = vpop.f32.mrf.mxu0
  %v1595 = vadd.f32 0.0, %v1594
  %v1596 = vpop.f32.mrf.mxu0
  %1597 = vmatprep.mubr.f32.mxu0 0.0
  %1598 = vmatmul.mubr.f32.gmra.mxu0 %v918
  %v1599 = vpop.f32.mrf.mxu0
  %v1600 = vadd.f32 0.0, %v1599
  %v1601 = vpop.f32.mrf.mxu0
  %1602 = vmatprep.mubr.f32.mxu0 0.0
  %1603 = vmatmul.mubr.f32.gmra.mxu0 %v921
  %v1604 = vpop.f32.mrf.mxu0
  %v1605 = vadd.f32 0.0, %v1604
  %v1606 = vpop.f32.mrf.mxu0
  %1607 = vmatprep.mubr.f32.mxu0 0.0
  %1608 = vmatmul.mubr.f32.gmra.mxu0 %v924
  %v1609 = vpop.f32.mrf.mxu0
  %v1610 = vadd.f32 0.0, %v1609
  %v1611 = vpop.f32.mrf.mxu0
  %1612 = vmatprep.mubr.f32.mxu0 0.0
  %1613 = vmatmul.mubr.f32.gmra.mxu0 %v927
  %v1614 = vpop.f32.mrf.mxu0
  %v1615 = vadd.f32 0.0, %v1614
  %v1616 = vpop.f32.mrf.mxu0
  %1617 = vmatprep.mubr.f32.mxu0 0.0
  %1618 = vmatmul.mubr.f32.gmra.mxu0 %v930
  %v1619 = vpop.f32.mrf.mxu0
  %v1620 = vadd.f32 0.0, %v1619
  %v1621 = vpop.f32.mrf.mxu0
  %1622 = vmatprep.mubr.f32.mxu0 0.0
  %1623 = vmatmul.mubr.f32.gmra.mxu0 %v933
  %v1624 = vpop.f32.mrf.mxu0
  %v1625 = vadd.f32 0.0, %v1624
  %v1626 = vpop.f32.mrf.mxu0
  %1627 = vmatprep.mubr.f32.mxu0 0.0
  %1628 = vmatmul.mubr.f32.gmra.mxu0 %v936
  %v1629 = vpop.f32.mrf.mxu0
  %v1630 = vadd.f32 0.0, %v1629
  %v1631 = vpop.f32.mrf.mxu0
  %1632 = vdwg.mxu0
  %v1633 = vadd.f32 %v424, %v1005
  %v1634 = vadd.f32 %v424, %v1010
  %v1635 = vadd.f32 %v424, %v1015
  %v1636 = vadd.f32 %v424, %v1020
  %v1637 = vadd.f32 %v424, %v1025
  %v1638 = vadd.f32 %v424, %v1030
  %v1639 = vadd.f32 %v424, %v1035
  %v1640 = vadd.f32 %v424, %v1040
  %v1641 = vadd.f32 %v424, %v1045
  %v1642 = vadd.f32 %v424, %v1050
  %v1643 = vadd.f32 %v424, %v1055
  %v1644 = vadd.f32 %v424, %v1060
  %v1645 = vadd.f32 %v424, %v1065
  %v1646 = vadd.f32 %v424, %v1070
  %v1647 = vadd.f32 %v424, %v1075
  %v1648 = vadd.f32 %v424, %v1080
  %v1649 = vadd.f32 %v424, %v1085
  %v1650 = vadd.f32 %v424, %v1090
  %v1651 = vadd.f32 %v424, %v1095
  %v1652 = vadd.f32 %v424, %v1100
  %v1653 = vadd.f32 %v424, %v1105
  %v1654 = vadd.f32 %v424, %v1110
  %v1655 = vadd.f32 %v424, %v1115
  %v1656 = vadd.f32 %v424, %v1120
  %v1657 = vadd.f32 %v424, %v1125
  %v1658 = vadd.f32 %v424, %v1130
  %v1659 = vadd.f32 %v424, %v1135
  %v1660 = vadd.f32 %v424, %v1140
  %v1661 = vadd.f32 %v424, %v1145
  %v1662 = vadd.f32 %v424, %v1150
  %v1663 = vadd.f32 %v424, %v1155
  %v1664 = vadd.f32 %v424, %v1160
  %v1665 = vadd.f32 %v424, %v1165
  %v1666 = vadd.f32 %v424, %v1170
  %v1667 = vadd.f32 %v424, %v1175
  %v1668 = vadd.f32 %v424, %v1180
  %v1669 = vadd.f32 %v424, %v1185
  %v1670 = vadd.f32 %v424, %v1190
  %v1671 = vadd.f32 %v424, %v1195
  %v1672 = vadd.f32 %v424, %v1200
  %v1673 = vadd.f32 %v424, %v1205
  %v1674 = vadd.f32 %v424, %v1210
  %v1675 = vadd.f32 %v424, %v1215
  %v1676 = vadd.f32 %v424, %v1220
  %v1677 = vadd.f32 %v424, %v1225
  %v1678 = vadd.f32 %v424, %v1230
  %v1679 = vadd.f32 %v424, %v1235
  %v1680 = vadd.f32 %v424, %v1240
  %v1681 = vadd.f32 %v424, %v1245
  %v1682 = vadd.f32 %v424, %v1250
  %v1683 = vadd.f32 %v424, %v1255
  %v1684 = vadd.f32 %v424, %v1260
  %v1685 = vadd.f32 %v424, %v1265
  %v1686 = vadd.f32 %v424, %v1270
  %v1687 = vadd.f32 %v424, %v1275
  %v1688 = vadd.f32 %v424, %v1280
  %v1689 = vadd.f32 %v424, %v1285
  %v1690 = vadd.f32 %v424, %v1290
  %v1691 = vadd.f32 %v424, %v1295
  %v1692 = vadd.f32 %v424, %v1300
  %v1693 = vadd.f32 %v424, %v1305
  %v1694 = vadd.f32 %v424, %v1310
  %v1695 = vadd.f32 %v424, %v1315
  %v1696 = vadd.f32 %v424, %v1320
  %v1697 = vadd.f32 %v424, %v1325
  %v1698 = vadd.f32 %v424, %v1330
  %v1699 = vadd.f32 %v424, %v1335
  %v1700 = vadd.f32 %v424, %v1340
  %v1701 = vadd.f32 %v424, %v1345
  %v1702 = vadd.f32 %v424, %v1350
  %v1703 = vadd.f32 %v424, %v1355
  %v1704 = vadd.f32 %v424, %v1360
  %v1705 = vadd.f32 %v424, %v1365
  %v1706 = vadd.f32 %v424, %v1370
  %v1707 = vadd.f32 %v424, %v1375
  %v1708 = vadd.f32 %v424, %v1380
  %v1709 = vadd.f32 %v424, %v1385
  %v1710 = vadd.f32 %v424, %v1390
  %v1711 = vadd.f32 %v424, %v1395
  %v1712 = vadd.f32 %v424, %v1400
  %v1713 = vadd.f32 %v424, %v1405
  %v1714 = vadd.f32 %v424, %v1410
  %v1715 = vadd.f32 %v424, %v1415
  %v1716 = vadd.f32 %v424, %v1420
  %v1717 = vadd.f32 %v424, %v1425
  %v1718 = vadd.f32 %v424, %v1430
  %v1719 = vadd.f32 %v424, %v1435
  %v1720 = vadd.f32 %v424, %v1440
  %v1721 = vadd.f32 %v424, %v1445
  %v1722 = vadd.f32 %v424, %v1450
  %v1723 = vadd.f32 %v424, %v1455
  %v1724 = vadd.f32 %v424, %v1460
  %v1725 = vadd.f32 %v424, %v1465
  %v1726 = vadd.f32 %v424, %v1470
  %v1727 = vadd.f32 %v424, %v1475
  %v1728 = vadd.f32 %v424, %v1480
  %v1729 = vadd.f32 %v424, %v1485
  %v1730 = vadd.f32 %v424, %v1490
  %v1731 = vadd.f32 %v424, %v1495
  %v1732 = vadd.f32 %v424, %v1500
  %v1733 = vadd.f32 %v424, %v1505
  %v1734 = vadd.f32 %v424, %v1510
  %v1735 = vadd.f32 %v424, %v1515
  %v1736 = vadd.f32 %v424, %v1520
  %v1737 = vadd.f32 %v424, %v1525
  %v1738 = vadd.f32 %v424, %v1530
  %v1739 = vadd.f32 %v424, %v1535
  %v1740 = vadd.f32 %v424, %v1540
  %v1741 = vadd.f32 %v424, %v1545
  %v1742 = vadd.f32 %v424, %v1550
  %v1743 = vadd.f32 %v424, %v1555
  %v1744 = vadd.f32 %v424, %v1560
  %v1745 = vadd.f32 %v424, %v1565
  %v1746 = vadd.f32 %v424, %v1570
  %v1747 = vadd.f32 %v424, %v1575
  %v1748 = vadd.f32 %v424, %v1580
  %v1749 = vadd.f32 %v424, %v1585
  %v1750 = vadd.f32 %v424, %v1590
  %v1751 = vadd.f32 %v424, %v1595
  %v1752 = vadd.f32 %v424, %v1600
  %v1753 = vadd.f32 %v424, %v1605
  %v1754 = vadd.f32 %v424, %v1610
  %v1755 = vadd.f32 %v424, %v1615
  %v1756 = vadd.f32 %v424, %v1620
  %v1757 = vadd.f32 %v424, %v1625
  %v1758 = vadd.f32 %v424, %v1630
  %v1759 = vld [vmem:[#allocation2 + $0x8] sm:$0xff]
  %v1760 = vld [vmem:[#allocation2 + $0x10] sm:$0xff]
  %v1761 = vld [vmem:[#allocation2 + $0x18] sm:$0xff]
  %v1762 = vld [vmem:[#allocation2 + $0x20] sm:$0xff]
  %v1763 = vld [vmem:[#allocation2 + $0x28] sm:$0xff]
  %v1764 = vld [vmem:[#allocation2 + $0x30] sm:$0xff]
  %v1765 = vld [vmem:[#allocation2 + $0x38] sm:$0xff]
  %v1766 = vld [vmem:[#allocation2 + $0x40] sm:$0xff]
  %v1767 = vld [vmem:[#allocation2 + $0x48] sm:$0xff]
  %v1768 = vld [vmem:[#allocation2 + $0x50] sm:$0xff]
  %v1769 = vld [vmem:[#allocation2 + $0x58] sm:$0xff]
  %v1770 = vld [vmem:[#allocation2 + $0x60] sm:$0xff]
  %v1771 = vld [vmem:[#allocation2 + $0x68] sm:$0xff]
  %v1772 = vld [vmem:[#allocation2 + $0x70] sm:$0xff]
  %v1773 = vld [vmem:[#allocation2 + $0x78] sm:$0xff]
  %v1774 = vld [vmem:[#allocation2 + $0x80] sm:$0xff]
  %v1775 = vld [vmem:[#allocation2 + $0x88] sm:$0xff]
  %v1776 = vld [vmem:[#allocation2 + $0x90] sm:$0xff]
  %v1777 = vld [vmem:[#allocation2 + $0x98] sm:$0xff]
  %v1778 = vld [vmem:[#allocation2 + $0xa0] sm:$0xff]
  %v1779 = vld [vmem:[#allocation2 + $0xa8] sm:$0xff]
  %v1780 = vld [vmem:[#allocation2 + $0xb0] sm:$0xff]
  %v1781 = vld [vmem:[#allocation2 + $0xb8] sm:$0xff]
  %v1782 = vld [vmem:[#allocation2 + $0xc0] sm:$0xff]
  %v1783 = vld [vmem:[#allocation2 + $0xc8] sm:$0xff]
  %v1784 = vld [vmem:[#allocation2 + $0xd0] sm:$0xff]
  %v1785 = vld [vmem:[#allocation2 + $0xd8] sm:$0xff]
  %v1786 = vld [vmem:[#allocation2 + $0xe0] sm:$0xff]
  %v1787 = vld [vmem:[#allocation2 + $0xe8] sm:$0xff]
  %v1788 = vld [vmem:[#allocation2 + $0xf0] sm:$0xff]
  %v1789 = vld [vmem:[#allocation2 + $0xf8] sm:$0xff]
  %v1790 = vld [vmem:[#allocation2 + $0x100] sm:$0xff]
  %v1791 = vld [vmem:[#allocation2 + $0x108] sm:$0xff]
  %v1792 = vld [vmem:[#allocation2 + $0x110] sm:$0xff]
  %v1793 = vld [vmem:[#allocation2 + $0x118] sm:$0xff]
  %v1794 = vld [vmem:[#allocation2 + $0x120] sm:$0xff]
  %v1795 = vld [vmem:[#allocation2 + $0x128] sm:$0xff]
  %v1796 = vld [vmem:[#allocation2 + $0x130] sm:$0xff]
  %v1797 = vld [vmem:[#allocation2 + $0x138] sm:$0xff]
  %v1798 = vld [vmem:[#allocation2 + $0x140] sm:$0xff]
  %v1799 = vld [vmem:[#allocation2 + $0x148] sm:$0xff]
  %v1800 = vld [vmem:[#allocation2 + $0x150] sm:$0xff]
  %v1801 = vld [vmem:[#allocation2 + $0x158] sm:$0xff]
  %v1802 = vld [vmem:[#allocation2 + $0x160] sm:$0xff]
  %v1803 = vld [vmem:[#allocation2 + $0x168] sm:$0xff]
  %v1804 = vld [vmem:[#allocation2 + $0x170] sm:$0xff]
  %v1805 = vld [vmem:[#allocation2 + $0x178] sm:$0xff]
  %v1806 = vld [vmem:[#allocation2 + $0x180] sm:$0xff]
  %v1807 = vld [vmem:[#allocation2 + $0x188] sm:$0xff]
  %v1808 = vld [vmem:[#allocation2 + $0x190] sm:$0xff]
  %v1809 = vld [vmem:[#allocation2 + $0x198] sm:$0xff]
  %v1810 = vld [vmem:[#allocation2 + $0x1a0] sm:$0xff]
  %v1811 = vld [vmem:[#allocation2 + $0x1a8] sm:$0xff]
  %v1812 = vld [vmem:[#allocation2 + $0x1b0] sm:$0xff]
  %v1813 = vld [vmem:[#allocation2 + $0x1b8] sm:$0xff]
  %v1814 = vld [vmem:[#allocation2 + $0x1c0] sm:$0xff]
  %v1815 = vld [vmem:[#allocation2 + $0x1c8] sm:$0xff]
  %v1816 = vld [vmem:[#allocation2 + $0x1d0] sm:$0xff]
  %v1817 = vld [vmem:[#allocation2 + $0x1d8] sm:$0xff]
  %v1818 = vld [vmem:[#allocation2 + $0x1e0] sm:$0xff]
  %v1819 = vld [vmem:[#allocation2 + $0x1e8] sm:$0xff]
  %v1820 = vld [vmem:[#allocation2 + $0x1f0] sm:$0xff]
  %v1821 = vld [vmem:[#allocation2 + $0x1f8] sm:$0xff]
  %v1822 = vld [vmem:[#allocation2 + $0x200] sm:$0xff]
  %v1823 = vld [vmem:[#allocation2 + $0x208] sm:$0xff]
  %v1824 = vld [vmem:[#allocation2 + $0x210] sm:$0xff]
  %v1825 = vld [vmem:[#allocation2 + $0x218] sm:$0xff]
  %v1826 = vld [vmem:[#allocation2 + $0x220] sm:$0xff]
  %v1827 = vld [vmem:[#allocation2 + $0x228] sm:$0xff]
  %v1828 = vld [vmem:[#allocation2 + $0x230] sm:$0xff]
  %v1829 = vld [vmem:[#allocation2 + $0x238] sm:$0xff]
  %v1830 = vld [vmem:[#allocation2 + $0x240] sm:$0xff]
  %v1831 = vld [vmem:[#allocation2 + $0x248] sm:$0xff]
  %v1832 = vld [vmem:[#allocation2 + $0x250] sm:$0xff]
  %v1833 = vld [vmem:[#allocation2 + $0x258] sm:$0xff]
  %v1834 = vld [vmem:[#allocation2 + $0x260] sm:$0xff]
  %v1835 = vld [vmem:[#allocation2 + $0x268] sm:$0xff]
  %v1836 = vld [vmem:[#allocation2 + $0x270] sm:$0xff]
  %v1837 = vld [vmem:[#allocation2 + $0x278] sm:$0xff]
  %v1838 = vld [vmem:[#allocation2 + $0x280] sm:$0xff]
  %v1839 = vld [vmem:[#allocation2 + $0x288] sm:$0xff]
  %v1840 = vld [vmem:[#allocation2 + $0x290] sm:$0xff]
  %v1841 = vld [vmem:[#allocation2 + $0x298] sm:$0xff]
  %v1842 = vld [vmem:[#allocation2 + $0x2a0] sm:$0xff]
  %v1843 = vld [vmem:[#allocation2 + $0x2a8] sm:$0xff]
  %v1844 = vld [vmem:[#allocation2 + $0x2b0] sm:$0xff]
  %v1845 = vld [vmem:[#allocation2 + $0x2b8] sm:$0xff]
  %v1846 = vld [vmem:[#allocation2 + $0x2c0] sm:$0xff]
  %v1847 = vld [vmem:[#allocation2 + $0x2c8] sm:$0xff]
  %v1848 = vld [vmem:[#allocation2 + $0x2d0] sm:$0xff]
  %v1849 = vld [vmem:[#allocation2 + $0x2d8] sm:$0xff]
  %v1850 = vld [vmem:[#allocation2 + $0x2e0] sm:$0xff]
  %v1851 = vld [vmem:[#allocation2 + $0x2e8] sm:$0xff]
  %v1852 = vld [vmem:[#allocation2 + $0x2f0] sm:$0xff]
  %v1853 = vld [vmem:[#allocation2 + $0x2f8] sm:$0xff]
  %v1854 = vld [vmem:[#allocation2 + $0x300] sm:$0xff]
  %v1855 = vld [vmem:[#allocation2 + $0x308] sm:$0xff]
  %v1856 = vld [vmem:[#allocation2 + $0x310] sm:$0xff]
  %v1857 = vld [vmem:[#allocation2 + $0x318] sm:$0xff]
  %v1858 = vld [vmem:[#allocation2 + $0x320] sm:$0xff]
  %v1859 = vld [vmem:[#allocation2 + $0x328] sm:$0xff]
  %v1860 = vld [vmem:[#allocation2 + $0x330] sm:$0xff]
  %v1861 = vld [vmem:[#allocation2 + $0x338] sm:$0xff]
  %v1862 = vld [vmem:[#allocation2 + $0x340] sm:$0xff]
  %v1863 = vld [vmem:[#allocation2 + $0x348] sm:$0xff]
  %v1864 = vld [vmem:[#allocation2 + $0x350] sm:$0xff]
  %v1865 = vld [vmem:[#allocation2 + $0x358] sm:$0xff]
  %v1866 = vld [vmem:[#allocation2 + $0x360] sm:$0xff]
  %v1867 = vld [vmem:[#allocation2 + $0x368] sm:$0xff]
  %v1868 = vld [vmem:[#allocation2 + $0x370] sm:$0xff]
  %v1869 = vld [vmem:[#allocation2 + $0x378] sm:$0xff]
  %v1870 = vld [vmem:[#allocation2 + $0x380] sm:$0xff]
  %v1871 = vld [vmem:[#allocation2 + $0x388] sm:$0xff]
  %v1872 = vld [vmem:[#allocation2 + $0x390] sm:$0xff]
  %v1873 = vld [vmem:[#allocation2 + $0x398] sm:$0xff]
  %v1874 = vld [vmem:[#allocation2 + $0x3a0] sm:$0xff]
  %v1875 = vld [vmem:[#allocation2 + $0x3a8] sm:$0xff]
  %v1876 = vld [vmem:[#allocation2 + $0x3b0] sm:$0xff]
  %v1877 = vld [vmem:[#allocation2 + $0x3b8] sm:$0xff]
  %v1878 = vld [vmem:[#allocation2 + $0x3c0] sm:$0xff]
  %v1879 = vld [vmem:[#allocation2 + $0x3c8] sm:$0xff]
  %v1880 = vld [vmem:[#allocation2 + $0x3d0] sm:$0xff]
  %v1881 = vld [vmem:[#allocation2 + $0x3d8] sm:$0xff]
  %v1882 = vld [vmem:[#allocation2 + $0x3e0] sm:$0xff]
  %v1883 = vld [vmem:[#allocation2 + $0x3e8] sm:$0xff]
  %v1884 = vld [vmem:[#allocation2 + $0x3f0] sm:$0xf]
  %s1885 = scalar_lea.vmem %s1, 64
  %v1886 = vld [vmem:[%s1885] sm:$0xff]
  %v1887 = vld [vmem:[%s1885 + $0x8] sm:$0xff]
  %v1888 = vld [vmem:[%s1885 + $0x10] sm:$0xff]
  %v1889 = vld [vmem:[%s1885 + $0x18] sm:$0xff]
  %v1890 = vld [vmem:[%s1885 + $0x20] sm:$0xff]
  %v1891 = vld [vmem:[%s1885 + $0x28] sm:$0xff]
  %v1892 = vld [vmem:[%s1885 + $0x30] sm:$0xff]
  %v1893 = vld [vmem:[%s1885 + $0x38] sm:$0xff]
  %v1895 = vsel %vm37, %v1759, 0
  %v1898 = vsel %vm37, %v1760, 0
  %v1901 = vsel %vm37, %v1761, 0
  %v1904 = vsel %vm37, %v1762, 0
  %v1907 = vsel %vm37, %v1763, 0
  %v1910 = vsel %vm37, %v1764, 0
  %v1913 = vsel %vm37, %v1765, 0
  %v1916 = vsel %vm37, %v1766, 0
  %v1919 = vsel %vm37, %v1767, 0
  %v1922 = vsel %vm37, %v1768, 0
  %v1925 = vsel %vm37, %v1769, 0
  %v1928 = vsel %vm37, %v1770, 0
  %v1931 = vsel %vm37, %v1771, 0
  %v1934 = vsel %vm37, %v1772, 0
  %v1937 = vsel %vm37, %v1773, 0
  %v1940 = vsel %vm37, %v1774, 0
  %v1943 = vsel %vm37, %v1775, 0
  %v1946 = vsel %vm37, %v1776, 0
  %v1949 = vsel %vm37, %v1777, 0
  %v1952 = vsel %vm37, %v1778, 0
  %v1955 = vsel %vm37, %v1779, 0
  %v1958 = vsel %vm37, %v1780, 0
  %v1961 = vsel %vm37, %v1781, 0
  %v1964 = vsel %vm37, %v1782, 0
  %v1967 = vsel %vm37, %v1783, 0
  %v1970 = vsel %vm37, %v1784, 0
  %v1973 = vsel %vm37, %v1785, 0
  %v1976 = vsel %vm37, %v1786, 0
  %v1979 = vsel %vm37, %v1787, 0
  %v1982 = vsel %vm37, %v1788, 0
  %v1985 = vsel %vm37, %v1789, 0
  %v1988 = vsel %vm37, %v1790, 0
  %v1991 = vsel %vm37, %v1791, 0
  %v1994 = vsel %vm37, %v1792, 0
  %v1997 = vsel %vm37, %v1793, 0
  %v2000 = vsel %vm37, %v1794, 0
  %v2003 = vsel %vm37, %v1795, 0
  %v2006 = vsel %vm37, %v1796, 0
  %v2009 = vsel %vm37, %v1797, 0
  %v2012 = vsel %vm37, %v1798, 0
  %v2015 = vsel %vm37, %v1799, 0
  %v2018 = vsel %vm37, %v1800, 0
  %v2021 = vsel %vm37, %v1801, 0
  %v2024 = vsel %vm37, %v1802, 0
  %v2027 = vsel %vm37, %v1803, 0
  %v2030 = vsel %vm37, %v1804, 0
  %v2033 = vsel %vm37, %v1805, 0
  %v2036 = vsel %vm37, %v1806, 0
  %v2039 = vsel %vm37, %v1807, 0
  %v2042 = vsel %vm37, %v1808, 0
  %v2045 = vsel %vm37, %v1809, 0
  %v2048 = vsel %vm37, %v1810, 0
  %v2051 = vsel %vm37, %v1811, 0
  %v2054 = vsel %vm37, %v1812, 0
  %v2057 = vsel %vm37, %v1813, 0
  %v2060 = vsel %vm37, %v1814, 0
  %v2063 = vsel %vm37, %v1815, 0
  %v2066 = vsel %vm37, %v1816, 0
  %v2069 = vsel %vm37, %v1817, 0
  %v2072 = vsel %vm37, %v1818, 0
  %v2075 = vsel %vm37, %v1819, 0
  %v2078 = vsel %vm37, %v1820, 0
  %v2081 = vsel %vm37, %v1821, 0
  %v2084 = vsel %vm37, %v1822, 0
  %v2087 = vsel %vm37, %v1823, 0
  %v2090 = vsel %vm37, %v1824, 0
  %v2093 = vsel %vm37, %v1825, 0
  %v2096 = vsel %vm37, %v1826, 0
  %v2099 = vsel %vm37, %v1827, 0
  %v2102 = vsel %vm37, %v1828, 0
  %v2105 = vsel %vm37, %v1829, 0
  %v2108 = vsel %vm37, %v1830, 0
  %v2111 = vsel %vm37, %v1831, 0
  %v2114 = vsel %vm37, %v1832, 0
  %v2117 = vsel %vm37, %v1833, 0
  %v2120 = vsel %vm37, %v1834, 0
  %v2123 = vsel %vm37, %v1835, 0
  %v2126 = vsel %vm37, %v1836, 0
  %v2129 = vsel %vm37, %v1837, 0
  %v2132 = vsel %vm37, %v1838, 0
  %v2135 = vsel %vm37, %v1839, 0
  %v2138 = vsel %vm37, %v1840, 0
  %v2141 = vsel %vm37, %v1841, 0
  %v2144 = vsel %vm37, %v1842, 0
  %v2147 = vsel %vm37, %v1843, 0
  %v2150 = vsel %vm37, %v1844, 0
  %v2153 = vsel %vm37, %v1845, 0
  %v2156 = vsel %vm37, %v1846, 0
  %v2159 = vsel %vm37, %v1847, 0
  %v2162 = vsel %vm37, %v1848, 0
  %v2165 = vsel %vm37, %v1849, 0
  %v2168 = vsel %vm37, %v1850, 0
  %v2171 = vsel %vm37, %v1851, 0
  %v2174 = vsel %vm37, %v1852, 0
  %v2177 = vsel %vm37, %v1853, 0
  %v2180 = vsel %vm37, %v1854, 0
  %v2183 = vsel %vm37, %v1855, 0
  %v2186 = vsel %vm37, %v1856, 0
  %v2189 = vsel %vm37, %v1857, 0
  %v2192 = vsel %vm37, %v1858, 0
  %v2195 = vsel %vm37, %v1859, 0
  %v2198 = vsel %vm37, %v1860, 0
  %v2201 = vsel %vm37, %v1861, 0
  %v2204 = vsel %vm37, %v1862, 0
  %v2207 = vsel %vm37, %v1863, 0
  %v2210 = vsel %vm37, %v1864, 0
  %v2213 = vsel %vm37, %v1865, 0
  %v2216 = vsel %vm37, %v1866, 0
  %v2219 = vsel %vm37, %v1867, 0
  %v2222 = vsel %vm37, %v1868, 0
  %v2225 = vsel %vm37, %v1869, 0
  %v2228 = vsel %vm37, %v1870, 0
  %v2231 = vsel %vm37, %v1871, 0
  %v2234 = vsel %vm37, %v1872, 0
  %v2237 = vsel %vm37, %v1873, 0
  %v2240 = vsel %vm37, %v1874, 0
  %v2243 = vsel %vm37, %v1875, 0
  %v2246 = vsel %vm37, %v1876, 0
  %v2249 = vsel %vm37, %v1877, 0
  %v2252 = vsel %vm37, %v1878, 0
  %v2255 = vsel %vm37, %v1879, 0
  %v2258 = vsel %vm37, %v1880, 0
  %v2261 = vsel %vm37, %v1881, 0
  %v2264 = vsel %vm37, %v1882, 0
  %v2267 = vsel %vm37, %v1883, 0
  %v2270 = vsel %vm37, %v1884, 0
  %2272 = vmatprep.subr.mxu0 0.0
  %2273 = vmatpush1.msra.mxu0 0.0
  %2274 = vmatprep.subr.mxu0 0.0
  %2275 = vmatpush1.msra.mxu0 0.0
  %2276 = vmatprep.subr.mxu0 0.0
  %2277 = vmatpush1.msra.mxu0 0.0
  %2278 = vmatprep.subr.mxu0 0.0
  %2279 = vmatpush1.msra.mxu0 0.0
  %2280 = vmatprep.subr.mxu0 0.0
  %2281 = vmatpush1.msra.mxu0 0.0
  %2282 = vmatprep.subr.mxu0 0.0
  %2283 = vmatpush1.msra.mxu0 0.0
  %2284 = vmatprep.subr.mxu0 0.0
  %2285 = vmatpush1.msra.mxu0 0.0
  %2286 = vmatprep.subr.mxu0 0.0
  %2287 = vmatpush1.msra.mxu0 0.0
  %2288 = vmatprep.subr.mxu0 0.0
  %2289 = vmatpush1.msra.mxu0 %v1893
  %2290 = vmatprep.subr.mxu0 0.0
  %2291 = vmatpush1.msra.mxu0 %v1892
  %2292 = vmatprep.subr.mxu0 0.0
  %2293 = vmatpush1.msra.mxu0 %v1891
  %2294 = vmatprep.subr.mxu0 0.0
  %2295 = vmatpush1.msra.mxu0 %v1890
  %2296 = vmatprep.subr.mxu0 0.0
  %2297 = vmatpush1.msra.mxu0 %v1889
  %2298 = vmatprep.subr.mxu0 0.0
  %2299 = vmatpush1.msra.mxu0 %v1888
  %2300 = vmatprep.subr.mxu0 0.0
  %2301 = vmatpush1.msra.mxu0 %v1887
  %2302 = vmatprep.subr.mxu0 0.0
  %2303 = vmatpush1.msra.mxu0 %v1886
  %2304 = vmatprep.subr.mxu0 0.0
  %2305 = vmatpush2.msra.mxu0 0.0
  %2306 = vmatprep.subr.mxu0 0.0
  %2307 = vmatpush2.msra.mxu0 0.0
  %2308 = vmatprep.subr.mxu0 0.0
  %2309 = vmatpush2.msra.mxu0 0.0
  %2310 = vmatprep.subr.mxu0 0.0
  %2311 = vmatpush2.msra.mxu0 0.0
  %2312 = vmatprep.subr.mxu0 0.0
  %2313 = vmatpush2.msra.mxu0 0.0
  %2314 = vmatprep.subr.mxu0 0.0
  %2315 = vmatpush2.msra.mxu0 0.0
  %2316 = vmatprep.subr.mxu0 0.0
  %2317 = vmatpush2.msra.mxu0 0.0
  %2318 = vmatprep.subr.mxu0 0.0
  %2319 = vmatpush2.msra.mxu0 0.0
  %2320 = vmatprep.subr.mxu0 0.0
  %2321 = vmatpush2.msra.mxu0 0.0
  %2322 = vmatprep.subr.mxu0 0.0
  %2323 = vmatpush2.msra.mxu0 0.0
  %2324 = vmatprep.subr.mxu0 0.0
  %2325 = vmatpush2.msra.mxu0 0.0
  %2326 = vmatprep.subr.mxu0 0.0
  %2327 = vmatpush2.msra.mxu0 0.0
  %2328 = vmatprep.subr.mxu0 0.0
  %2329 = vmatpush2.msra.mxu0 0.0
  %2330 = vmatprep.subr.mxu0 0.0
  %2331 = vmatpush2.msra.mxu0 0.0
  %2332 = vmatprep.subr.mxu0 0.0
  %2333 = vmatpush2.msra.mxu0 0.0
  %2334 = vmatprep.subr.mxu0 0.0
  %2335 = vmatpush2.msra.mxu0 0.0
  %2336 = vmatprep.mubr.f32.mxu0 0.0
  %2337 = vmatmul.mubr.f32.gmra.mxu0 %v1895
  %v2338 = vpop.f32.mrf.mxu0
  %v2339 = vadd.f32 0.0, %v2338
  %v2340 = vpop.f32.mrf.mxu0
  %2341 = vmatprep.mubr.f32.mxu0 0.0
  %2342 = vmatmul.mubr.f32.gmra.mxu0 %v1898
  %v2343 = vpop.f32.mrf.mxu0
  %v2344 = vadd.f32 0.0, %v2343
  %v2345 = vpop.f32.mrf.mxu0
  %2346 = vmatprep.mubr.f32.mxu0 0.0
  %2347 = vmatmul.mubr.f32.gmra.mxu0 %v1901
  %v2348 = vpop.f32.mrf.mxu0
  %v2349 = vadd.f32 0.0, %v2348
  %v2350 = vpop.f32.mrf.mxu0
  %2351 = vmatprep.mubr.f32.mxu0 0.0
  %2352 = vmatmul.mubr.f32.gmra.mxu0 %v1904
  %v2353 = vpop.f32.mrf.mxu0
  %v2354 = vadd.f32 0.0, %v2353
  %v2355 = vpop.f32.mrf.mxu0
  %2356 = vmatprep.mubr.f32.mxu0 0.0
  %2357 = vmatmul.mubr.f32.gmra.mxu0 %v1907
  %v2358 = vpop.f32.mrf.mxu0
  %v2359 = vadd.f32 0.0, %v2358
  %v2360 = vpop.f32.mrf.mxu0
  %2361 = vmatprep.mubr.f32.mxu0 0.0
  %2362 = vmatmul.mubr.f32.gmra.mxu0 %v1910
  %v2363 = vpop.f32.mrf.mxu0
  %v2364 = vadd.f32 0.0, %v2363
  %v2365 = vpop.f32.mrf.mxu0
  %2366 = vmatprep.mubr.f32.mxu0 0.0
  %2367 = vmatmul.mubr.f32.gmra.mxu0 %v1913
  %v2368 = vpop.f32.mrf.mxu0
  %v2369 = vadd.f32 0.0, %v2368
  %v2370 = vpop.f32.mrf.mxu0
  %2371 = vmatprep.mubr.f32.mxu0 0.0
  %2372 = vmatmul.mubr.f32.gmra.mxu0 %v1916
  %v2373 = vpop.f32.mrf.mxu0
  %v2374 = vadd.f32 0.0, %v2373
  %v2375 = vpop.f32.mrf.mxu0
  %2376 = vmatprep.mubr.f32.mxu0 0.0
  %2377 = vmatmul.mubr.f32.gmra.mxu0 %v1919
  %v2378 = vpop.f32.mrf.mxu0
  %v2379 = vadd.f32 0.0, %v2378
  %v2380 = vpop.f32.mrf.mxu0
  %2381 = vmatprep.mubr.f32.mxu0 0.0
  %2382 = vmatmul.mubr.f32.gmra.mxu0 %v1922
  %v2383 = vpop.f32.mrf.mxu0
  %v2384 = vadd.f32 0.0, %v2383
  %v2385 = vpop.f32.mrf.mxu0
  %2386 = vmatprep.mubr.f32.mxu0 0.0
  %2387 = vmatmul.mubr.f32.gmra.mxu0 %v1925
  %v2388 = vpop.f32.mrf.mxu0
  %v2389 = vadd.f32 0.0, %v2388
  %v2390 = vpop.f32.mrf.mxu0
  %2391 = vmatprep.mubr.f32.mxu0 0.0
  %2392 = vmatmul.mubr.f32.gmra.mxu0 %v1928
  %v2393 = vpop.f32.mrf.mxu0
  %v2394 = vadd.f32 0.0, %v2393
  %v2395 = vpop.f32.mrf.mxu0
  %2396 = vmatprep.mubr.f32.mxu0 0.0
  %2397 = vmatmul.mubr.f32.gmra.mxu0 %v1931
  %v2398 = vpop.f32.mrf.mxu0
  %v2399 = vadd.f32 0.0, %v2398
  %v2400 = vpop.f32.mrf.mxu0
  %2401 = vmatprep.mubr.f32.mxu0 0.0
  %2402 = vmatmul.mubr.f32.gmra.mxu0 %v1934
  %v2403 = vpop.f32.mrf.mxu0
  %v2404 = vadd.f32 0.0, %v2403
  %v2405 = vpop.f32.mrf.mxu0
  %2406 = vmatprep.mubr.f32.mxu0 0.0
  %2407 = vmatmul.mubr.f32.gmra.mxu0 %v1937
  %v2408 = vpop.f32.mrf.mxu0
  %v2409 = vadd.f32 0.0, %v2408
  %v2410 = vpop.f32.mrf.mxu0
  %2411 = vmatprep.mubr.f32.mxu0 0.0
  %2412 = vmatmul.mubr.f32.gmra.mxu0 %v1940
  %v2413 = vpop.f32.mrf.mxu0
  %v2414 = vadd.f32 0.0, %v2413
  %v2415 = vpop.f32.mrf.mxu0
  %2416 = vmatprep.mubr.f32.mxu0 0.0
  %2417 = vmatmul.mubr.f32.gmra.mxu0 %v1943
  %v2418 = vpop.f32.mrf.mxu0
  %v2419 = vadd.f32 0.0, %v2418
  %v2420 = vpop.f32.mrf.mxu0
  %2421 = vmatprep.mubr.f32.mxu0 0.0
  %2422 = vmatmul.mubr.f32.gmra.mxu0 %v1946
  %v2423 = vpop.f32.mrf.mxu0
  %v2424 = vadd.f32 0.0, %v2423
  %v2425 = vpop.f32.mrf.mxu0
  %2426 = vmatprep.mubr.f32.mxu0 0.0
  %2427 = vmatmul.mubr.f32.gmra.mxu0 %v1949
  %v2428 = vpop.f32.mrf.mxu0
  %v2429 = vadd.f32 0.0, %v2428
  %v2430 = vpop.f32.mrf.mxu0
  %2431 = vmatprep.mubr.f32.mxu0 0.0
  %2432 = vmatmul.mubr.f32.gmra.mxu0 %v1952
  %v2433 = vpop.f32.mrf.mxu0
  %v2434 = vadd.f32 0.0, %v2433
  %v2435 = vpop.f32.mrf.mxu0
  %2436 = vmatprep.mubr.f32.mxu0 0.0
  %2437 = vmatmul.mubr.f32.gmra.mxu0 %v1955
  %v2438 = vpop.f32.mrf.mxu0
  %v2439 = vadd.f32 0.0, %v2438
  %v2440 = vpop.f32.mrf.mxu0
  %2441 = vmatprep.mubr.f32.mxu0 0.0
  %2442 = vmatmul.mubr.f32.gmra.mxu0 %v1958
  %v2443 = vpop.f32.mrf.mxu0
  %v2444 = vadd.f32 0.0, %v2443
  %v2445 = vpop.f32.mrf.mxu0
  %2446 = vmatprep.mubr.f32.mxu0 0.0
  %2447 = vmatmul.mubr.f32.gmra.mxu0 %v1961
  %v2448 = vpop.f32.mrf.mxu0
  %v2449 = vadd.f32 0.0, %v2448
  %v2450 = vpop.f32.mrf.mxu0
  %2451 = vmatprep.mubr.f32.mxu0 0.0
  %2452 = vmatmul.mubr.f32.gmra.mxu0 %v1964
  %v2453 = vpop.f32.mrf.mxu0
  %v2454 = vadd.f32 0.0, %v2453
  %v2455 = vpop.f32.mrf.mxu0
  %2456 = vmatprep.mubr.f32.mxu0 0.0
  %2457 = vmatmul.mubr.f32.gmra.mxu0 %v1967
  %v2458 = vpop.f32.mrf.mxu0
  %v2459 = vadd.f32 0.0, %v2458
  %v2460 = vpop.f32.mrf.mxu0
  %2461 = vmatprep.mubr.f32.mxu0 0.0
  %2462 = vmatmul.mubr.f32.gmra.mxu0 %v1970
  %v2463 = vpop.f32.mrf.mxu0
  %v2464 = vadd.f32 0.0, %v2463
  %v2465 = vpop.f32.mrf.mxu0
  %2466 = vmatprep.mubr.f32.mxu0 0.0
  %2467 = vmatmul.mubr.f32.gmra.mxu0 %v1973
  %v2468 = vpop.f32.mrf.mxu0
  %v2469 = vadd.f32 0.0, %v2468
  %v2470 = vpop.f32.mrf.mxu0
  %2471 = vmatprep.mubr.f32.mxu0 0.0
  %2472 = vmatmul.mubr.f32.gmra.mxu0 %v1976
  %v2473 = vpop.f32.mrf.mxu0
  %v2474 = vadd.f32 0.0, %v2473
  %v2475 = vpop.f32.mrf.mxu0
  %2476 = vmatprep.mubr.f32.mxu0 0.0
  %2477 = vmatmul.mubr.f32.gmra.mxu0 %v1979
  %v2478 = vpop.f32.mrf.mxu0
  %v2479 = vadd.f32 0.0, %v2478
  %v2480 = vpop.f32.mrf.mxu0
  %2481 = vmatprep.mubr.f32.mxu0 0.0
  %2482 = vmatmul.mubr.f32.gmra.mxu0 %v1982
  %v2483 = vpop.f32.mrf.mxu0
  %v2484 = vadd.f32 0.0, %v2483
  %v2485 = vpop.f32.mrf.mxu0
  %2486 = vmatprep.mubr.f32.mxu0 0.0
  %2487 = vmatmul.mubr.f32.gmra.mxu0 %v1985
  %v2488 = vpop.f32.mrf.mxu0
  %v2489 = vadd.f32 0.0, %v2488
  %v2490 = vpop.f32.mrf.mxu0
  %2491 = vmatprep.mubr.f32.mxu0 0.0
  %2492 = vmatmul.mubr.f32.gmra.mxu0 %v1988
  %v2493 = vpop.f32.mrf.mxu0
  %v2494 = vadd.f32 0.0, %v2493
  %v2495 = vpop.f32.mrf.mxu0
  %2496 = vmatprep.mubr.f32.mxu0 0.0
  %2497 = vmatmul.mubr.f32.gmra.mxu0 %v1991
  %v2498 = vpop.f32.mrf.mxu0
  %v2499 = vadd.f32 0.0, %v2498
  %v2500 = vpop.f32.mrf.mxu0
  %2501 = vmatprep.mubr.f32.mxu0 0.0
  %2502 = vmatmul.mubr.f32.gmra.mxu0 %v1994
  %v2503 = vpop.f32.mrf.mxu0
  %v2504 = vadd.f32 0.0, %v2503
  %v2505 = vpop.f32.mrf.mxu0
  %2506 = vmatprep.mubr.f32.mxu0 0.0
  %2507 = vmatmul.mubr.f32.gmra.mxu0 %v1997
  %v2508 = vpop.f32.mrf.mxu0
  %v2509 = vadd.f32 0.0, %v2508
  %v2510 = vpop.f32.mrf.mxu0
  %2511 = vmatprep.mubr.f32.mxu0 0.0
  %2512 = vmatmul.mubr.f32.gmra.mxu0 %v2000
  %v2513 = vpop.f32.mrf.mxu0
  %v2514 = vadd.f32 0.0, %v2513
  %v2515 = vpop.f32.mrf.mxu0
  %2516 = vmatprep.mubr.f32.mxu0 0.0
  %2517 = vmatmul.mubr.f32.gmra.mxu0 %v2003
  %v2518 = vpop.f32.mrf.mxu0
  %v2519 = vadd.f32 0.0, %v2518
  %v2520 = vpop.f32.mrf.mxu0
  %2521 = vmatprep.mubr.f32.mxu0 0.0
  %2522 = vmatmul.mubr.f32.gmra.mxu0 %v2006
  %v2523 = vpop.f32.mrf.mxu0
  %v2524 = vadd.f32 0.0, %v2523
  %v2525 = vpop.f32.mrf.mxu0
  %2526 = vmatprep.mubr.f32.mxu0 0.0
  %2527 = vmatmul.mubr.f32.gmra.mxu0 %v2009
  %v2528 = vpop.f32.mrf.mxu0
  %v2529 = vadd.f32 0.0, %v2528
  %v2530 = vpop.f32.mrf.mxu0
  %2531 = vmatprep.mubr.f32.mxu0 0.0
  %2532 = vmatmul.mubr.f32.gmra.mxu0 %v2012
  %v2533 = vpop.f32.mrf.mxu0
  %v2534 = vadd.f32 0.0, %v2533
  %v2535 = vpop.f32.mrf.mxu0
  %2536 = vmatprep.mubr.f32.mxu0 0.0
  %2537 = vmatmul.mubr.f32.gmra.mxu0 %v2015
  %v2538 = vpop.f32.mrf.mxu0
  %v2539 = vadd.f32 0.0, %v2538
  %v2540 = vpop.f32.mrf.mxu0
  %2541 = vmatprep.mubr.f32.mxu0 0.0
  %2542 = vmatmul.mubr.f32.gmra.mxu0 %v2018
  %v2543 = vpop.f32.mrf.mxu0
  %v2544 = vadd.f32 0.0, %v2543
  %v2545 = vpop.f32.mrf.mxu0
  %2546 = vmatprep.mubr.f32.mxu0 0.0
  %2547 = vmatmul.mubr.f32.gmra.mxu0 %v2021
  %v2548 = vpop.f32.mrf.mxu0
  %v2549 = vadd.f32 0.0, %v2548
  %v2550 = vpop.f32.mrf.mxu0
  %2551 = vmatprep.mubr.f32.mxu0 0.0
  %2552 = vmatmul.mubr.f32.gmra.mxu0 %v2024
  %v2553 = vpop.f32.mrf.mxu0
  %v2554 = vadd.f32 0.0, %v2553
  %v2555 = vpop.f32.mrf.mxu0
  %2556 = vmatprep.mubr.f32.mxu0 0.0
  %2557 = vmatmul.mubr.f32.gmra.mxu0 %v2027
  %v2558 = vpop.f32.mrf.mxu0
  %v2559 = vadd.f32 0.0, %v2558
  %v2560 = vpop.f32.mrf.mxu0
  %2561 = vmatprep.mubr.f32.mxu0 0.0
  %2562 = vmatmul.mubr.f32.gmra.mxu0 %v2030
  %v2563 = vpop.f32.mrf.mxu0
  %v2564 = vadd.f32 0.0, %v2563
  %v2565 = vpop.f32.mrf.mxu0
  %2566 = vmatprep.mubr.f32.mxu0 0.0
  %2567 = vmatmul.mubr.f32.gmra.mxu0 %v2033
  %v2568 = vpop.f32.mrf.mxu0
  %v2569 = vadd.f32 0.0, %v2568
  %v2570 = vpop.f32.mrf.mxu0
  %2571 = vmatprep.mubr.f32.mxu0 0.0
  %2572 = vmatmul.mubr.f32.gmra.mxu0 %v2036
  %v2573 = vpop.f32.mrf.mxu0
  %v2574 = vadd.f32 0.0, %v2573
  %v2575 = vpop.f32.mrf.mxu0
  %2576 = vmatprep.mubr.f32.mxu0 0.0
  %2577 = vmatmul.mubr.f32.gmra.mxu0 %v2039
  %v2578 = vpop.f32.mrf.mxu0
  %v2579 = vadd.f32 0.0, %v2578
  %v2580 = vpop.f32.mrf.mxu0
  %2581 = vmatprep.mubr.f32.mxu0 0.0
  %2582 = vmatmul.mubr.f32.gmra.mxu0 %v2042
  %v2583 = vpop.f32.mrf.mxu0
  %v2584 = vadd.f32 0.0, %v2583
  %v2585 = vpop.f32.mrf.mxu0
  %2586 = vmatprep.mubr.f32.mxu0 0.0
  %2587 = vmatmul.mubr.f32.gmra.mxu0 %v2045
  %v2588 = vpop.f32.mrf.mxu0
  %v2589 = vadd.f32 0.0, %v2588
  %v2590 = vpop.f32.mrf.mxu0
  %2591 = vmatprep.mubr.f32.mxu0 0.0
  %2592 = vmatmul.mubr.f32.gmra.mxu0 %v2048
  %v2593 = vpop.f32.mrf.mxu0
  %v2594 = vadd.f32 0.0, %v2593
  %v2595 = vpop.f32.mrf.mxu0
  %2596 = vmatprep.mubr.f32.mxu0 0.0
  %2597 = vmatmul.mubr.f32.gmra.mxu0 %v2051
  %v2598 = vpop.f32.mrf.mxu0
  %v2599 = vadd.f32 0.0, %v2598
  %v2600 = vpop.f32.mrf.mxu0
  %2601 = vmatprep.mubr.f32.mxu0 0.0
  %2602 = vmatmul.mubr.f32.gmra.mxu0 %v2054
  %v2603 = vpop.f32.mrf.mxu0
  %v2604 = vadd.f32 0.0, %v2603
  %v2605 = vpop.f32.mrf.mxu0
  %2606 = vmatprep.mubr.f32.mxu0 0.0
  %2607 = vmatmul.mubr.f32.gmra.mxu0 %v2057
  %v2608 = vpop.f32.mrf.mxu0
  %v2609 = vadd.f32 0.0, %v2608
  %v2610 = vpop.f32.mrf.mxu0
  %2611 = vmatprep.mubr.f32.mxu0 0.0
  %2612 = vmatmul.mubr.f32.gmra.mxu0 %v2060
  %v2613 = vpop.f32.mrf.mxu0
  %v2614 = vadd.f32 0.0, %v2613
  %v2615 = vpop.f32.mrf.mxu0
  %2616 = vmatprep.mubr.f32.mxu0 0.0
  %2617 = vmatmul.mubr.f32.gmra.mxu0 %v2063
  %v2618 = vpop.f32.mrf.mxu0
  %v2619 = vadd.f32 0.0, %v2618
  %v2620 = vpop.f32.mrf.mxu0
  %2621 = vmatprep.mubr.f32.mxu0 0.0
  %2622 = vmatmul.mubr.f32.gmra.mxu0 %v2066
  %v2623 = vpop.f32.mrf.mxu0
  %v2624 = vadd.f32 0.0, %v2623
  %v2625 = vpop.f32.mrf.mxu0
  %2626 = vmatprep.mubr.f32.mxu0 0.0
  %2627 = vmatmul.mubr.f32.gmra.mxu0 %v2069
  %v2628 = vpop.f32.mrf.mxu0
  %v2629 = vadd.f32 0.0, %v2628
  %v2630 = vpop.f32.mrf.mxu0
  %2631 = vmatprep.mubr.f32.mxu0 0.0
  %2632 = vmatmul.mubr.f32.gmra.mxu0 %v2072
  %v2633 = vpop.f32.mrf.mxu0
  %v2634 = vadd.f32 0.0, %v2633
  %v2635 = vpop.f32.mrf.mxu0
  %2636 = vmatprep.mubr.f32.mxu0 0.0
  %2637 = vmatmul.mubr.f32.gmra.mxu0 %v2075
  %v2638 = vpop.f32.mrf.mxu0
  %v2639 = vadd.f32 0.0, %v2638
  %v2640 = vpop.f32.mrf.mxu0
  %2641 = vmatprep.mubr.f32.mxu0 0.0
  %2642 = vmatmul.mubr.f32.gmra.mxu0 %v2078
  %v2643 = vpop.f32.mrf.mxu0
  %v2644 = vadd.f32 0.0, %v2643
  %v2645 = vpop.f32.mrf.mxu0
  %2646 = vmatprep.mubr.f32.mxu0 0.0
  %2647 = vmatmul.mubr.f32.gmra.mxu0 %v2081
  %v2648 = vpop.f32.mrf.mxu0
  %v2649 = vadd.f32 0.0, %v2648
  %v2650 = vpop.f32.mrf.mxu0
  %2651 = vmatprep.mubr.f32.mxu0 0.0
  %2652 = vmatmul.mubr.f32.gmra.mxu0 %v2084
  %v2653 = vpop.f32.mrf.mxu0
  %v2654 = vadd.f32 0.0, %v2653
  %v2655 = vpop.f32.mrf.mxu0
  %2656 = vmatprep.mubr.f32.mxu0 0.0
  %2657 = vmatmul.mubr.f32.gmra.mxu0 %v2087
  %v2658 = vpop.f32.mrf.mxu0
  %v2659 = vadd.f32 0.0, %v2658
  %v2660 = vpop.f32.mrf.mxu0
  %2661 = vmatprep.mubr.f32.mxu0 0.0
  %2662 = vmatmul.mubr.f32.gmra.mxu0 %v2090
  %v2663 = vpop.f32.mrf.mxu0
  %v2664 = vadd.f32 0.0, %v2663
  %v2665 = vpop.f32.mrf.mxu0
  %2666 = vmatprep.mubr.f32.mxu0 0.0
  %2667 = vmatmul.mubr.f32.gmra.mxu0 %v2093
  %v2668 = vpop.f32.mrf.mxu0
  %v2669 = vadd.f32 0.0, %v2668
  %v2670 = vpop.f32.mrf.mxu0
  %2671 = vmatprep.mubr.f32.mxu0 0.0
  %2672 = vmatmul.mubr.f32.gmra.mxu0 %v2096
  %v2673 = vpop.f32.mrf.mxu0
  %v2674 = vadd.f32 0.0, %v2673
  %v2675 = vpop.f32.mrf.mxu0
  %2676 = vmatprep.mubr.f32.mxu0 0.0
  %2677 = vmatmul.mubr.f32.gmra.mxu0 %v2099
  %v2678 = vpop.f32.mrf.mxu0
  %v2679 = vadd.f32 0.0, %v2678
  %v2680 = vpop.f32.mrf.mxu0
  %2681 = vmatprep.mubr.f32.mxu0 0.0
  %2682 = vmatmul.mubr.f32.gmra.mxu0 %v2102
  %v2683 = vpop.f32.mrf.mxu0
  %v2684 = vadd.f32 0.0, %v2683
  %v2685 = vpop.f32.mrf.mxu0
  %2686 = vmatprep.mubr.f32.mxu0 0.0
  %2687 = vmatmul.mubr.f32.gmra.mxu0 %v2105
  %v2688 = vpop.f32.mrf.mxu0
  %v2689 = vadd.f32 0.0, %v2688
  %v2690 = vpop.f32.mrf.mxu0
  %2691 = vmatprep.mubr.f32.mxu0 0.0
  %2692 = vmatmul.mubr.f32.gmra.mxu0 %v2108
  %v2693 = vpop.f32.mrf.mxu0
  %v2694 = vadd.f32 0.0, %v2693
  %v2695 = vpop.f32.mrf.mxu0
  %2696 = vmatprep.mubr.f32.mxu0 0.0
  %2697 = vmatmul.mubr.f32.gmra.mxu0 %v2111
  %v2698 = vpop.f32.mrf.mxu0
  %v2699 = vadd.f32 0.0, %v2698
  %v2700 = vpop.f32.mrf.mxu0
  %2701 = vmatprep.mubr.f32.mxu0 0.0
  %2702 = vmatmul.mubr.f32.gmra.mxu0 %v2114
  %v2703 = vpop.f32.mrf.mxu0
  %v2704 = vadd.f32 0.0, %v2703
  %v2705 = vpop.f32.mrf.mxu0
  %2706 = vmatprep.mubr.f32.mxu0 0.0
  %2707 = vmatmul.mubr.f32.gmra.mxu0 %v2117
  %v2708 = vpop.f32.mrf.mxu0
  %v2709 = vadd.f32 0.0, %v2708
  %v2710 = vpop.f32.mrf.mxu0
  %2711 = vmatprep.mubr.f32.mxu0 0.0
  %2712 = vmatmul.mubr.f32.gmra.mxu0 %v2120
  %v2713 = vpop.f32.mrf.mxu0
  %v2714 = vadd.f32 0.0, %v2713
  %v2715 = vpop.f32.mrf.mxu0
  %2716 = vmatprep.mubr.f32.mxu0 0.0
  %2717 = vmatmul.mubr.f32.gmra.mxu0 %v2123
  %v2718 = vpop.f32.mrf.mxu0
  %v2719 = vadd.f32 0.0, %v2718
  %v2720 = vpop.f32.mrf.mxu0
  %2721 = vmatprep.mubr.f32.mxu0 0.0
  %2722 = vmatmul.mubr.f32.gmra.mxu0 %v2126
  %v2723 = vpop.f32.mrf.mxu0
  %v2724 = vadd.f32 0.0, %v2723
  %v2725 = vpop.f32.mrf.mxu0
  %2726 = vmatprep.mubr.f32.mxu0 0.0
  %2727 = vmatmul.mubr.f32.gmra.mxu0 %v2129
  %v2728 = vpop.f32.mrf.mxu0
  %v2729 = vadd.f32 0.0, %v2728
  %v2730 = vpop.f32.mrf.mxu0
  %2731 = vmatprep.mubr.f32.mxu0 0.0
  %2732 = vmatmul.mubr.f32.gmra.mxu0 %v2132
  %v2733 = vpop.f32.mrf.mxu0
  %v2734 = vadd.f32 0.0, %v2733
  %v2735 = vpop.f32.mrf.mxu0
  %2736 = vmatprep.mubr.f32.mxu0 0.0
  %2737 = vmatmul.mubr.f32.gmra.mxu0 %v2135
  %v2738 = vpop.f32.mrf.mxu0
  %v2739 = vadd.f32 0.0, %v2738
  %v2740 = vpop.f32.mrf.mxu0
  %2741 = vmatprep.mubr.f32.mxu0 0.0
  %2742 = vmatmul.mubr.f32.gmra.mxu0 %v2138
  %v2743 = vpop.f32.mrf.mxu0
  %v2744 = vadd.f32 0.0, %v2743
  %v2745 = vpop.f32.mrf.mxu0
  %2746 = vmatprep.mubr.f32.mxu0 0.0
  %2747 = vmatmul.mubr.f32.gmra.mxu0 %v2141
  %v2748 = vpop.f32.mrf.mxu0
  %v2749 = vadd.f32 0.0, %v2748
  %v2750 = vpop.f32.mrf.mxu0
  %2751 = vmatprep.mubr.f32.mxu0 0.0
  %2752 = vmatmul.mubr.f32.gmra.mxu0 %v2144
  %v2753 = vpop.f32.mrf.mxu0
  %v2754 = vadd.f32 0.0, %v2753
  %v2755 = vpop.f32.mrf.mxu0
  %2756 = vmatprep.mubr.f32.mxu0 0.0
  %2757 = vmatmul.mubr.f32.gmra.mxu0 %v2147
  %v2758 = vpop.f32.mrf.mxu0
  %v2759 = vadd.f32 0.0, %v2758
  %v2760 = vpop.f32.mrf.mxu0
  %2761 = vmatprep.mubr.f32.mxu0 0.0
  %2762 = vmatmul.mubr.f32.gmra.mxu0 %v2150
  %v2763 = vpop.f32.mrf.mxu0
  %v2764 = vadd.f32 0.0, %v2763
  %v2765 = vpop.f32.mrf.mxu0
  %2766 = vmatprep.mubr.f32.mxu0 0.0
  %2767 = vmatmul.mubr.f32.gmra.mxu0 %v2153
  %v2768 = vpop.f32.mrf.mxu0
  %v2769 = vadd.f32 0.0, %v2768
  %v2770 = vpop.f32.mrf.mxu0
  %2771 = vmatprep.mubr.f32.mxu0 0.0
  %2772 = vmatmul.mubr.f32.gmra.mxu0 %v2156
  %v2773 = vpop.f32.mrf.mxu0
  %v2774 = vadd.f32 0.0, %v2773
  %v2775 = vpop.f32.mrf.mxu0
  %2776 = vmatprep.mubr.f32.mxu0 0.0
  %2777 = vmatmul.mubr.f32.gmra.mxu0 %v2159
  %v2778 = vpop.f32.mrf.mxu0
  %v2779 = vadd.f32 0.0, %v2778
  %v2780 = vpop.f32.mrf.mxu0
  %2781 = vmatprep.mubr.f32.mxu0 0.0
  %2782 = vmatmul.mubr.f32.gmra.mxu0 %v2162
  %v2783 = vpop.f32.mrf.mxu0
  %v2784 = vadd.f32 0.0, %v2783
  %v2785 = vpop.f32.mrf.mxu0
  %2786 = vmatprep.mubr.f32.mxu0 0.0
  %2787 = vmatmul.mubr.f32.gmra.mxu0 %v2165
  %v2788 = vpop.f32.mrf.mxu0
  %v2789 = vadd.f32 0.0, %v2788
  %v2790 = vpop.f32.mrf.mxu0
  %2791 = vmatprep.mubr.f32.mxu0 0.0
  %2792 = vmatmul.mubr.f32.gmra.mxu0 %v2168
  %v2793 = vpop.f32.mrf.mxu0
  %v2794 = vadd.f32 0.0, %v2793
  %v2795 = vpop.f32.mrf.mxu0
  %2796 = vmatprep.mubr.f32.mxu0 0.0
  %2797 = vmatmul.mubr.f32.gmra.mxu0 %v2171
  %v2798 = vpop.f32.mrf.mxu0
  %v2799 = vadd.f32 0.0, %v2798
  %v2800 = vpop.f32.mrf.mxu0
  %2801 = vmatprep.mubr.f32.mxu0 0.0
  %2802 = vmatmul.mubr.f32.gmra.mxu0 %v2174
  %v2803 = vpop.f32.mrf.mxu0
  %v2804 = vadd.f32 0.0, %v2803
  %v2805 = vpop.f32.mrf.mxu0
  %2806 = vmatprep.mubr.f32.mxu0 0.0
  %2807 = vmatmul.mubr.f32.gmra.mxu0 %v2177
  %v2808 = vpop.f32.mrf.mxu0
  %v2809 = vadd.f32 0.0, %v2808
  %v2810 = vpop.f32.mrf.mxu0
  %2811 = vmatprep.mubr.f32.mxu0 0.0
  %2812 = vmatmul.mubr.f32.gmra.mxu0 %v2180
  %v2813 = vpop.f32.mrf.mxu0
  %v2814 = vadd.f32 0.0, %v2813
  %v2815 = vpop.f32.mrf.mxu0
  %2816 = vmatprep.mubr.f32.mxu0 0.0
  %2817 = vmatmul.mubr.f32.gmra.mxu0 %v2183
  %v2818 = vpop.f32.mrf.mxu0
  %v2819 = vadd.f32 0.0, %v2818
  %v2820 = vpop.f32.mrf.mxu0
  %2821 = vmatprep.mubr.f32.mxu0 0.0
  %2822 = vmatmul.mubr.f32.gmra.mxu0 %v2186
  %v2823 = vpop.f32.mrf.mxu0
  %v2824 = vadd.f32 0.0, %v2823
  %v2825 = vpop.f32.mrf.mxu0
  %2826 = vmatprep.mubr.f32.mxu0 0.0
  %2827 = vmatmul.mubr.f32.gmra.mxu0 %v2189
  %v2828 = vpop.f32.mrf.mxu0
  %v2829 = vadd.f32 0.0, %v2828
  %v2830 = vpop.f32.mrf.mxu0
  %2831 = vmatprep.mubr.f32.mxu0 0.0
  %2832 = vmatmul.mubr.f32.gmra.mxu0 %v2192
  %v2833 = vpop.f32.mrf.mxu0
  %v2834 = vadd.f32 0.0, %v2833
  %v2835 = vpop.f32.mrf.mxu0
  %2836 = vmatprep.mubr.f32.mxu0 0.0
  %2837 = vmatmul.mubr.f32.gmra.mxu0 %v2195
  %v2838 = vpop.f32.mrf.mxu0
  %v2839 = vadd.f32 0.0, %v2838
  %v2840 = vpop.f32.mrf.mxu0
  %2841 = vmatprep.mubr.f32.mxu0 0.0
  %2842 = vmatmul.mubr.f32.gmra.mxu0 %v2198
  %v2843 = vpop.f32.mrf.mxu0
  %v2844 = vadd.f32 0.0, %v2843
  %v2845 = vpop.f32.mrf.mxu0
  %2846 = vmatprep.mubr.f32.mxu0 0.0
  %2847 = vmatmul.mubr.f32.gmra.mxu0 %v2201
  %v2848 = vpop.f32.mrf.mxu0
  %v2849 = vadd.f32 0.0, %v2848
  %v2850 = vpop.f32.mrf.mxu0
  %2851 = vmatprep.mubr.f32.mxu0 0.0
  %2852 = vmatmul.mubr.f32.gmra.mxu0 %v2204
  %v2853 = vpop.f32.mrf.mxu0
  %v2854 = vadd.f32 0.0, %v2853
  %v2855 = vpop.f32.mrf.mxu0
  %2856 = vmatprep.mubr.f32.mxu0 0.0
  %2857 = vmatmul.mubr.f32.gmra.mxu0 %v2207
  %v2858 = vpop.f32.mrf.mxu0
  %v2859 = vadd.f32 0.0, %v2858
  %v2860 = vpop.f32.mrf.mxu0
  %2861 = vmatprep.mubr.f32.mxu0 0.0
  %2862 = vmatmul.mubr.f32.gmra.mxu0 %v2210
  %v2863 = vpop.f32.mrf.mxu0
  %v2864 = vadd.f32 0.0, %v2863
  %v2865 = vpop.f32.mrf.mxu0
  %2866 = vmatprep.mubr.f32.mxu0 0.0
  %2867 = vmatmul.mubr.f32.gmra.mxu0 %v2213
  %v2868 = vpop.f32.mrf.mxu0
  %v2869 = vadd.f32 0.0, %v2868
  %v2870 = vpop.f32.mrf.mxu0
  %2871 = vmatprep.mubr.f32.mxu0 0.0
  %2872 = vmatmul.mubr.f32.gmra.mxu0 %v2216
  %v2873 = vpop.f32.mrf.mxu0
  %v2874 = vadd.f32 0.0, %v2873
  %v2875 = vpop.f32.mrf.mxu0
  %2876 = vmatprep.mubr.f32.mxu0 0.0
  %2877 = vmatmul.mubr.f32.gmra.mxu0 %v2219
  %v2878 = vpop.f32.mrf.mxu0
  %v2879 = vadd.f32 0.0, %v2878
  %v2880 = vpop.f32.mrf.mxu0
  %2881 = vmatprep.mubr.f32.mxu0 0.0
  %2882 = vmatmul.mubr.f32.gmra.mxu0 %v2222
  %v2883 = vpop.f32.mrf.mxu0
  %v2884 = vadd.f32 0.0, %v2883
  %v2885 = vpop.f32.mrf.mxu0
  %2886 = vmatprep.mubr.f32.mxu0 0.0
  %2887 = vmatmul.mubr.f32.gmra.mxu0 %v2225
  %v2888 = vpop.f32.mrf.mxu0
  %v2889 = vadd.f32 0.0, %v2888
  %v2890 = vpop.f32.mrf.mxu0
  %2891 = vmatprep.mubr.f32.mxu0 0.0
  %2892 = vmatmul.mubr.f32.gmra.mxu0 %v2228
  %v2893 = vpop.f32.mrf.mxu0
  %v2894 = vadd.f32 0.0, %v2893
  %v2895 = vpop.f32.mrf.mxu0
  %2896 = vmatprep.mubr.f32.mxu0 0.0
  %2897 = vmatmul.mubr.f32.gmra.mxu0 %v2231
  %v2898 = vpop.f32.mrf.mxu0
  %v2899 = vadd.f32 0.0, %v2898
  %v2900 = vpop.f32.mrf.mxu0
  %2901 = vmatprep.mubr.f32.mxu0 0.0
  %2902 = vmatmul.mubr.f32.gmra.mxu0 %v2234
  %v2903 = vpop.f32.mrf.mxu0
  %v2904 = vadd.f32 0.0, %v2903
  %v2905 = vpop.f32.mrf.mxu0
  %2906 = vmatprep.mubr.f32.mxu0 0.0
  %2907 = vmatmul.mubr.f32.gmra.mxu0 %v2237
  %v2908 = vpop.f32.mrf.mxu0
  %v2909 = vadd.f32 0.0, %v2908
  %v2910 = vpop.f32.mrf.mxu0
  %2911 = vmatprep.mubr.f32.mxu0 0.0
  %2912 = vmatmul.mubr.f32.gmra.mxu0 %v2240
  %v2913 = vpop.f32.mrf.mxu0
  %v2914 = vadd.f32 0.0, %v2913
  %v2915 = vpop.f32.mrf.mxu0
  %2916 = vmatprep.mubr.f32.mxu0 0.0
  %2917 = vmatmul.mubr.f32.gmra.mxu0 %v2243
  %v2918 = vpop.f32.mrf.mxu0
  %v2919 = vadd.f32 0.0, %v2918
  %v2920 = vpop.f32.mrf.mxu0
  %2921 = vmatprep.mubr.f32.mxu0 0.0
  %2922 = vmatmul.mubr.f32.gmra.mxu0 %v2246
  %v2923 = vpop.f32.mrf.mxu0
  %v2924 = vadd.f32 0.0, %v2923
  %v2925 = vpop.f32.mrf.mxu0
  %2926 = vmatprep.mubr.f32.mxu0 0.0
  %2927 = vmatmul.mubr.f32.gmra.mxu0 %v2249
  %v2928 = vpop.f32.mrf.mxu0
  %v2929 = vadd.f32 0.0, %v2928
  %v2930 = vpop.f32.mrf.mxu0
  %2931 = vmatprep.mubr.f32.mxu0 0.0
  %2932 = vmatmul.mubr.f32.gmra.mxu0 %v2252
  %v2933 = vpop.f32.mrf.mxu0
  %v2934 = vadd.f32 0.0, %v2933
  %v2935 = vpop.f32.mrf.mxu0
  %2936 = vmatprep.mubr.f32.mxu0 0.0
  %2937 = vmatmul.mubr.f32.gmra.mxu0 %v2255
  %v2938 = vpop.f32.mrf.mxu0
  %v2939 = vadd.f32 0.0, %v2938
  %v2940 = vpop.f32.mrf.mxu0
  %2941 = vmatprep.mubr.f32.mxu0 0.0
  %2942 = vmatmul.mubr.f32.gmra.mxu0 %v2258
  %v2943 = vpop.f32.mrf.mxu0
  %v2944 = vadd.f32 0.0, %v2943
  %v2945 = vpop.f32.mrf.mxu0
  %2946 = vmatprep.mubr.f32.mxu0 0.0
  %2947 = vmatmul.mubr.f32.gmra.mxu0 %v2261
  %v2948 = vpop.f32.mrf.mxu0
  %v2949 = vadd.f32 0.0, %v2948
  %v2950 = vpop.f32.mrf.mxu0
  %2951 = vmatprep.mubr.f32.mxu0 0.0
  %2952 = vmatmul.mubr.f32.gmra.mxu0 %v2264
  %v2953 = vpop.f32.mrf.mxu0
  %v2954 = vadd.f32 0.0, %v2953
  %v2955 = vpop.f32.mrf.mxu0
  %2956 = vmatprep.mubr.f32.mxu0 0.0
  %2957 = vmatmul.mubr.f32.gmra.mxu0 %v2267
  %v2958 = vpop.f32.mrf.mxu0
  %v2959 = vadd.f32 0.0, %v2958
  %v2960 = vpop.f32.mrf.mxu0
  %2961 = vmatprep.mubr.f32.mxu0 0.0
  %2962 = vmatmul.mubr.f32.gmra.mxu0 %v2270
  %v2963 = vpop.f32.mrf.mxu0
  %v2964 = vadd.f32 0.0, %v2963
  %v2965 = vpop.f32.mrf.mxu0
  %2966 = vdwg.mxu0
  %v2967 = vadd.f32 %v1633, %v2339
  %v2968 = vadd.f32 %v1634, %v2344
  %v2969 = vadd.f32 %v1635, %v2349
  %v2970 = vadd.f32 %v1636, %v2354
  %v2971 = vadd.f32 %v1637, %v2359
  %v2972 = vadd.f32 %v1638, %v2364
  %v2973 = vadd.f32 %v1639, %v2369
  %v2974 = vadd.f32 %v1640, %v2374
  %v2975 = vadd.f32 %v1641, %v2379
  %v2976 = vadd.f32 %v1642, %v2384
  %v2977 = vadd.f32 %v1643, %v2389
  %v2978 = vadd.f32 %v1644, %v2394
  %v2979 = vadd.f32 %v1645, %v2399
  %v2980 = vadd.f32 %v1646, %v2404
  %v2981 = vadd.f32 %v1647, %v2409
  %v2982 = vadd.f32 %v1648, %v2414
  %v2983 = vadd.f32 %v1649, %v2419
  %v2984 = vadd.f32 %v1650, %v2424
  %v2985 = vadd.f32 %v1651, %v2429
  %v2986 = vadd.f32 %v1652, %v2434
  %v2987 = vadd.f32 %v1653, %v2439
  %v2988 = vadd.f32 %v1654, %v2444
  %v2989 = vadd.f32 %v1655, %v2449
  %v2990 = vadd.f32 %v1656, %v2454
  %v2991 = vadd.f32 %v1657, %v2459
  %v2992 = vadd.f32 %v1658, %v2464
  %v2993 = vadd.f32 %v1659, %v2469
  %v2994 = vadd.f32 %v1660, %v2474
  %v2995 = vadd.f32 %v1661, %v2479
  %v2996 = vadd.f32 %v1662, %v2484
  %v2997 = vadd.f32 %v1663, %v2489
  %v2998 = vadd.f32 %v1664, %v2494
  %v2999 = vadd.f32 %v1665, %v2499
  %v3000 = vadd.f32 %v1666, %v2504
  %v3001 = vadd.f32 %v1667, %v2509
  %v3002 = vadd.f32 %v1668, %v2514
  %v3003 = vadd.f32 %v1669, %v2519
  %v3004 = vadd.f32 %v1670, %v2524
  %v3005 = vadd.f32 %v1671, %v2529
  %v3006 = vadd.f32 %v1672, %v2534
  %v3007 = vadd.f32 %v1673, %v2539
  %v3008 = vadd.f32 %v1674, %v2544
  %v3009 = vadd.f32 %v1675, %v2549
  %v3010 = vadd.f32 %v1676, %v2554
  %v3011 = vadd.f32 %v1677, %v2559
  %v3012 = vadd.f32 %v1678, %v2564
  %v3013 = vadd.f32 %v1679, %v2569
  %v3014 = vadd.f32 %v1680, %v2574
  %v3015 = vadd.f32 %v1681, %v2579
  %v3016 = vadd.f32 %v1682, %v2584
  %v3017 = vadd.f32 %v1683, %v2589
  %v3018 = vadd.f32 %v1684, %v2594
  %v3019 = vadd.f32 %v1685, %v2599
  %v3020 = vadd.f32 %v1686, %v2604
  %v3021 = vadd.f32 %v1687, %v2609
  %v3022 = vadd.f32 %v1688, %v2614
  %v3023 = vadd.f32 %v1689, %v2619
  %v3024 = vadd.f32 %v1690, %v2624
  %v3025 = vadd.f32 %v1691, %v2629
  %v3026 = vadd.f32 %v1692, %v2634
  %v3027 = vadd.f32 %v1693, %v2639
  %v3028 = vadd.f32 %v1694, %v2644
  %v3029 = vadd.f32 %v1695, %v2649
  %v3030 = vadd.f32 %v1696, %v2654
  %v3031 = vadd.f32 %v1697, %v2659
  %v3032 = vadd.f32 %v1698, %v2664
  %v3033 = vadd.f32 %v1699, %v2669
  %v3034 = vadd.f32 %v1700, %v2674
  %v3035 = vadd.f32 %v1701, %v2679
  %v3036 = vadd.f32 %v1702, %v2684
  %v3037 = vadd.f32 %v1703, %v2689
  %v3038 = vadd.f32 %v1704, %v2694
  %v3039 = vadd.f32 %v1705, %v2699
  %v3040 = vadd.f32 %v1706, %v2704
  %v3041 = vadd.f32 %v1707, %v2709
  %v3042 = vadd.f32 %v1708, %v2714
  %v3043 = vadd.f32 %v1709, %v2719
  %v3044 = vadd.f32 %v1710, %v2724
  %v3045 = vadd.f32 %v1711, %v2729
  %v3046 = vadd.f32 %v1712, %v2734
  %v3047 = vadd.f32 %v1713, %v2739
  %v3048 = vadd.f32 %v1714, %v2744
  %v3049 = vadd.f32 %v1715, %v2749
  %v3050 = vadd.f32 %v1716, %v2754
  %v3051 = vadd.f32 %v1717, %v2759
  %v3052 = vadd.f32 %v1718, %v2764
  %v3053 = vadd.f32 %v1719, %v2769
  %v3054 = vadd.f32 %v1720, %v2774
  %v3055 = vadd.f32 %v1721, %v2779
  %v3056 = vadd.f32 %v1722, %v2784
  %v3057 = vadd.f32 %v1723, %v2789
  %v3058 = vadd.f32 %v1724, %v2794
  %v3059 = vadd.f32 %v1725, %v2799
  %v3060 = vadd.f32 %v1726, %v2804
  %v3061 = vadd.f32 %v1727, %v2809
  %v3062 = vadd.f32 %v1728, %v2814
  %v3063 = vadd.f32 %v1729, %v2819
  %v3064 = vadd.f32 %v1730, %v2824
  %v3065 = vadd.f32 %v1731, %v2829
  %v3066 = vadd.f32 %v1732, %v2834
  %v3067 = vadd.f32 %v1733, %v2839
  %v3068 = vadd.f32 %v1734, %v2844
  %v3069 = vadd.f32 %v1735, %v2849
  %v3070 = vadd.f32 %v1736, %v2854
  %v3071 = vadd.f32 %v1737, %v2859
  %v3072 = vadd.f32 %v1738, %v2864
  %v3073 = vadd.f32 %v1739, %v2869
  %v3074 = vadd.f32 %v1740, %v2874
  %v3075 = vadd.f32 %v1741, %v2879
  %v3076 = vadd.f32 %v1742, %v2884
  %v3077 = vadd.f32 %v1743, %v2889
  %v3078 = vadd.f32 %v1744, %v2894
  %v3079 = vadd.f32 %v1745, %v2899
  %v3080 = vadd.f32 %v1746, %v2904
  %v3081 = vadd.f32 %v1747, %v2909
  %v3082 = vadd.f32 %v1748, %v2914
  %v3083 = vadd.f32 %v1749, %v2919
  %v3084 = vadd.f32 %v1750, %v2924
  %v3085 = vadd.f32 %v1751, %v2929
  %v3086 = vadd.f32 %v1752, %v2934
  %v3087 = vadd.f32 %v1753, %v2939
  %v3088 = vadd.f32 %v1754, %v2944
  %v3089 = vadd.f32 %v1755, %v2949
  %v3090 = vadd.f32 %v1756, %v2954
  %v3091 = vadd.f32 %v1757, %v2959
  %v3092 = vadd.f32 %v1758, %v2964
  %v3093 = vld [vmem:[#allocation2 + $0x9] sm:$0xff]
  %v3094 = vld [vmem:[#allocation2 + $0x11] sm:$0xff]
  %v3095 = vld [vmem:[#allocation2 + $0x19] sm:$0xff]
  %v3096 = vld [vmem:[#allocation2 + $0x21] sm:$0xff]
  %v3097 = vld [vmem:[#allocation2 + $0x29] sm:$0xff]
  %v3098 = vld [vmem:[#allocation2 + $0x31] sm:$0xff]
  %v3099 = vld [vmem:[#allocation2 + $0x39] sm:$0xff]
  %v3100 = vld [vmem:[#allocation2 + $0x41] sm:$0xff]
  %v3101 = vld [vmem:[#allocation2 + $0x49] sm:$0xff]
  %v3102 = vld [vmem:[#allocation2 + $0x51] sm:$0xff]
  %v3103 = vld [vmem:[#allocation2 + $0x59] sm:$0xff]
  %v3104 = vld [vmem:[#allocation2 + $0x61] sm:$0xff]
  %v3105 = vld [vmem:[#allocation2 + $0x69] sm:$0xff]
  %v3106 = vld [vmem:[#allocation2 + $0x71] sm:$0xff]
  %v3107 = vld [vmem:[#allocation2 + $0x79] sm:$0xff]
  %v3108 = vld [vmem:[#allocation2 + $0x81] sm:$0xff]
  %v3109 = vld [vmem:[#allocation2 + $0x89] sm:$0xff]
  %v3110 = vld [vmem:[#allocation2 + $0x91] sm:$0xff]
  %v3111 = vld [vmem:[#allocation2 + $0x99] sm:$0xff]
  %v3112 = vld [vmem:[#allocation2 + $0xa1] sm:$0xff]
  %v3113 = vld [vmem:[#allocation2 + $0xa9] sm:$0xff]
  %v3114 = vld [vmem:[#allocation2 + $0xb1] sm:$0xff]
  %v3115 = vld [vmem:[#allocation2 + $0xb9] sm:$0xff]
  %v3116 = vld [vmem:[#allocation2 + $0xc1] sm:$0xff]
  %v3117 = vld [vmem:[#allocation2 + $0xc9] sm:$0xff]
  %v3118 = vld [vmem:[#allocation2 + $0xd1] sm:$0xff]
  %v3119 = vld [vmem:[#allocation2 + $0xd9] sm:$0xff]
  %v3120 = vld [vmem:[#allocation2 + $0xe1] sm:$0xff]
  %v3121 = vld [vmem:[#allocation2 + $0xe9] sm:$0xff]
  %v3122 = vld [vmem:[#allocation2 + $0xf1] sm:$0xff]
  %v3123 = vld [vmem:[#allocation2 + $0xf9] sm:$0xff]
  %v3124 = vld [vmem:[#allocation2 + $0x101] sm:$0xff]
  %v3125 = vld [vmem:[#allocation2 + $0x109] sm:$0xff]
  %v3126 = vld [vmem:[#allocation2 + $0x111] sm:$0xff]
  %v3127 = vld [vmem:[#allocation2 + $0x119] sm:$0xff]
  %v3128 = vld [vmem:[#allocation2 + $0x121] sm:$0xff]
  %v3129 = vld [vmem:[#allocation2 + $0x129] sm:$0xff]
  %v3130 = vld [vmem:[#allocation2 + $0x131] sm:$0xff]
  %v3131 = vld [vmem:[#allocation2 + $0x139] sm:$0xff]
  %v3132 = vld [vmem:[#allocation2 + $0x141] sm:$0xff]
  %v3133 = vld [vmem:[#allocation2 + $0x149] sm:$0xff]
  %v3134 = vld [vmem:[#allocation2 + $0x151] sm:$0xff]
  %v3135 = vld [vmem:[#allocation2 + $0x159] sm:$0xff]
  %v3136 = vld [vmem:[#allocation2 + $0x161] sm:$0xff]
  %v3137 = vld [vmem:[#allocation2 + $0x169] sm:$0xff]
  %v3138 = vld [vmem:[#allocation2 + $0x171] sm:$0xff]
  %v3139 = vld [vmem:[#allocation2 + $0x179] sm:$0xff]
  %v3140 = vld [vmem:[#allocation2 + $0x181] sm:$0xff]
  %v3141 = vld [vmem:[#allocation2 + $0x189] sm:$0xff]
  %v3142 = vld [vmem:[#allocation2 + $0x191] sm:$0xff]
  %v3143 = vld [vmem:[#allocation2 + $0x199] sm:$0xff]
  %v3144 = vld [vmem:[#allocation2 + $0x1a1] sm:$0xff]
  %v3145 = vld [vmem:[#allocation2 + $0x1a9] sm:$0xff]
  %v3146 = vld [vmem:[#allocation2 + $0x1b1] sm:$0xff]
  %v3147 = vld [vmem:[#allocation2 + $0x1b9] sm:$0xff]
  %v3148 = vld [vmem:[#allocation2 + $0x1c1] sm:$0xff]
  %v3149 = vld [vmem:[#allocation2 + $0x1c9] sm:$0xff]
  %v3150 = vld [vmem:[#allocation2 + $0x1d1] sm:$0xff]
  %v3151 = vld [vmem:[#allocation2 + $0x1d9] sm:$0xff]
  %v3152 = vld [vmem:[#allocation2 + $0x1e1] sm:$0xff]
  %v3153 = vld [vmem:[#allocation2 + $0x1e9] sm:$0xff]
  %v3154 = vld [vmem:[#allocation2 + $0x1f1] sm:$0xff]
  %v3155 = vld [vmem:[#allocation2 + $0x1f9] sm:$0xff]
  %v3156 = vld [vmem:[#allocation2 + $0x201] sm:$0xff]
  %v3157 = vld [vmem:[#allocation2 + $0x209] sm:$0xff]
  %v3158 = vld [vmem:[#allocation2 + $0x211] sm:$0xff]
  %v3159 = vld [vmem:[#allocation2 + $0x219] sm:$0xff]
  %v3160 = vld [vmem:[#allocation2 + $0x221] sm:$0xff]
  %v3161 = vld [vmem:[#allocation2 + $0x229] sm:$0xff]
  %v3162 = vld [vmem:[#allocation2 + $0x231] sm:$0xff]
  %v3163 = vld [vmem:[#allocation2 + $0x239] sm:$0xff]
  %v3164 = vld [vmem:[#allocation2 + $0x241] sm:$0xff]
  %v3165 = vld [vmem:[#allocation2 + $0x249] sm:$0xff]
  %v3166 = vld [vmem:[#allocation2 + $0x251] sm:$0xff]
  %v3167 = vld [vmem:[#allocation2 + $0x259] sm:$0xff]
  %v3168 = vld [vmem:[#allocation2 + $0x261] sm:$0xff]
  %v3169 = vld [vmem:[#allocation2 + $0x269] sm:$0xff]
  %v3170 = vld [vmem:[#allocation2 + $0x271] sm:$0xff]
  %v3171 = vld [vmem:[#allocation2 + $0x279] sm:$0xff]
  %v3172 = vld [vmem:[#allocation2 + $0x281] sm:$0xff]
  %v3173 = vld [vmem:[#allocation2 + $0x289] sm:$0xff]
  %v3174 = vld [vmem:[#allocation2 + $0x291] sm:$0xff]
  %v3175 = vld [vmem:[#allocation2 + $0x299] sm:$0xff]
  %v3176 = vld [vmem:[#allocation2 + $0x2a1] sm:$0xff]
  %v3177 = vld [vmem:[#allocation2 + $0x2a9] sm:$0xff]
  %v3178 = vld [vmem:[#allocation2 + $0x2b1] sm:$0xff]
  %v3179 = vld [vmem:[#allocation2 + $0x2b9] sm:$0xff]
  %v3180 = vld [vmem:[#allocation2 + $0x2c1] sm:$0xff]
  %v3181 = vld [vmem:[#allocation2 + $0x2c9] sm:$0xff]
  %v3182 = vld [vmem:[#allocation2 + $0x2d1] sm:$0xff]
  %v3183 = vld [vmem:[#allocation2 + $0x2d9] sm:$0xff]
  %v3184 = vld [vmem:[#allocation2 + $0x2e1] sm:$0xff]
  %v3185 = vld [vmem:[#allocation2 + $0x2e9] sm:$0xff]
  %v3186 = vld [vmem:[#allocation2 + $0x2f1] sm:$0xff]
  %v3187 = vld [vmem:[#allocation2 + $0x2f9] sm:$0xff]
  %v3188 = vld [vmem:[#allocation2 + $0x301] sm:$0xff]
  %v3189 = vld [vmem:[#allocation2 + $0x309] sm:$0xff]
  %v3190 = vld [vmem:[#allocation2 + $0x311] sm:$0xff]
  %v3191 = vld [vmem:[#allocation2 + $0x319] sm:$0xff]
  %v3192 = vld [vmem:[#allocation2 + $0x321] sm:$0xff]
  %v3193 = vld [vmem:[#allocation2 + $0x329] sm:$0xff]
  %v3194 = vld [vmem:[#allocation2 + $0x331] sm:$0xff]
  %v3195 = vld [vmem:[#allocation2 + $0x339] sm:$0xff]
  %v3196 = vld [vmem:[#allocation2 + $0x341] sm:$0xff]
  %v3197 = vld [vmem:[#allocation2 + $0x349] sm:$0xff]
  %v3198 = vld [vmem:[#allocation2 + $0x351] sm:$0xff]
  %v3199 = vld [vmem:[#allocation2 + $0x359] sm:$0xff]
  %v3200 = vld [vmem:[#allocation2 + $0x361] sm:$0xff]
  %v3201 = vld [vmem:[#allocation2 + $0x369] sm:$0xff]
  %v3202 = vld [vmem:[#allocation2 + $0x371] sm:$0xff]
  %v3203 = vld [vmem:[#allocation2 + $0x379] sm:$0xff]
  %v3204 = vld [vmem:[#allocation2 + $0x381] sm:$0xff]
  %v3205 = vld [vmem:[#allocation2 + $0x389] sm:$0xff]
  %v3206 = vld [vmem:[#allocation2 + $0x391] sm:$0xff]
  %v3207 = vld [vmem:[#allocation2 + $0x399] sm:$0xff]
  %v3208 = vld [vmem:[#allocation2 + $0x3a1] sm:$0xff]
  %v3209 = vld [vmem:[#allocation2 + $0x3a9] sm:$0xff]
  %v3210 = vld [vmem:[#allocation2 + $0x3b1] sm:$0xff]
  %v3211 = vld [vmem:[#allocation2 + $0x3b9] sm:$0xff]
  %v3212 = vld [vmem:[#allocation2 + $0x3c1] sm:$0xff]
  %v3213 = vld [vmem:[#allocation2 + $0x3c9] sm:$0xff]
  %v3214 = vld [vmem:[#allocation2 + $0x3d1] sm:$0xff]
  %v3215 = vld [vmem:[#allocation2 + $0x3d9] sm:$0xff]
  %v3216 = vld [vmem:[#allocation2 + $0x3e1] sm:$0xff]
  %v3217 = vld [vmem:[#allocation2 + $0x3e9] sm:$0xff]
  %v3218 = vld [vmem:[#allocation2 + $0x3f1] sm:$0xf]
  %s3219 = scalar_lea.vmem %s1, 128
  %v3220 = vld [vmem:[%s3219] sm:$0xff]
  %v3221 = vld [vmem:[%s3219 + $0x8] sm:$0xff]
  %v3222 = vld [vmem:[%s3219 + $0x10] sm:$0xff]
  %v3223 = vld [vmem:[%s3219 + $0x18] sm:$0xff]
  %v3224 = vld [vmem:[%s3219 + $0x20] sm:$0xff]
  %v3225 = vld [vmem:[%s3219 + $0x28] sm:$0xff]
  %v3226 = vld [vmem:[%s3219 + $0x30] sm:$0xff]
  %v3227 = vld [vmem:[%s3219 + $0x38] sm:$0xff]
  %v3229 = vsel %vm37, %v3093, 0
  %v3232 = vsel %vm37, %v3094, 0
  %v3235 = vsel %vm37, %v3095, 0
  %v3238 = vsel %vm37, %v3096, 0
  %v3241 = vsel %vm37, %v3097, 0
  %v3244 = vsel %vm37, %v3098, 0
  %v3247 = vsel %vm37, %v3099, 0
  %v3250 = vsel %vm37, %v3100, 0
  %v3253 = vsel %vm37, %v3101, 0
  %v3256 = vsel %vm37, %v3102, 0
  %v3259 = vsel %vm37, %v3103, 0
  %v3262 = vsel %vm37, %v3104, 0
  %v3265 = vsel %vm37, %v3105, 0
  %v3268 = vsel %vm37, %v3106, 0
  %v3271 = vsel %vm37, %v3107, 0
  %v3274 = vsel %vm37, %v3108, 0
  %v3277 = vsel %vm37, %v3109, 0
  %v3280 = vsel %vm37, %v3110, 0
  %v3283 = vsel %vm37, %v3111, 0
  %v3286 = vsel %vm37, %v3112, 0
  %v3289 = vsel %vm37, %v3113, 0
  %v3292 = vsel %vm37, %v3114, 0
  %v3295 = vsel %vm37, %v3115, 0
  %v3298 = vsel %vm37, %v3116, 0
  %v3301 = vsel %vm37, %v3117, 0
  %v3304 = vsel %vm37, %v3118, 0
  %v3307 = vsel %vm37, %v3119, 0
  %v3310 = vsel %vm37, %v3120, 0
  %v3313 = vsel %vm37, %v3121, 0
  %v3316 = vsel %vm37, %v3122, 0
  %v3319 = vsel %vm37, %v3123, 0
  %v3322 = vsel %vm37, %v3124, 0
  %v3325 = vsel %vm37, %v3125, 0
  %v3328 = vsel %vm37, %v3126, 0
  %v3331 = vsel %vm37, %v3127, 0
  %v3334 = vsel %vm37, %v3128, 0
  %v3337 = vsel %vm37, %v3129, 0
  %v3340 = vsel %vm37, %v3130, 0
  %v3343 = vsel %vm37, %v3131, 0
  %v3346 = vsel %vm37, %v3132, 0
  %v3349 = vsel %vm37, %v3133, 0
  %v3352 = vsel %vm37, %v3134, 0
  %v3355 = vsel %vm37, %v3135, 0
  %v3358 = vsel %vm37, %v3136, 0
  %v3361 = vsel %vm37, %v3137, 0
  %v3364 = vsel %vm37, %v3138, 0
  %v3367 = vsel %vm37, %v3139, 0
  %v3370 = vsel %vm37, %v3140, 0
  %v3373 = vsel %vm37, %v3141, 0
  %v3376 = vsel %vm37, %v3142, 0
  %v3379 = vsel %vm37, %v3143, 0
  %v3382 = vsel %vm37, %v3144, 0
  %v3385 = vsel %vm37, %v3145, 0
  %v3388 = vsel %vm37, %v3146, 0
  %v3391 = vsel %vm37, %v3147, 0
  %v3394 = vsel %vm37, %v3148, 0
  %v3397 = vsel %vm37, %v3149, 0
  %v3400 = vsel %vm37, %v3150, 0
  %v3403 = vsel %vm37, %v3151, 0
  %v3406 = vsel %vm37, %v3152, 0
  %v3409 = vsel %vm37, %v3153, 0
  %v3412 = vsel %vm37, %v3154, 0
  %v3415 = vsel %vm37, %v3155, 0
  %v3418 = vsel %vm37, %v3156, 0
  %v3421 = vsel %vm37, %v3157, 0
  %v3424 = vsel %vm37, %v3158, 0
  %v3427 = vsel %vm37, %v3159, 0
  %v3430 = vsel %vm37, %v3160, 0
  %v3433 = vsel %vm37, %v3161, 0
  %v3436 = vsel %vm37, %v3162, 0
  %v3439 = vsel %vm37, %v3163, 0
  %v3442 = vsel %vm37, %v3164, 0
  %v3445 = vsel %vm37, %v3165, 0
  %v3448 = vsel %vm37, %v3166, 0
  %v3451 = vsel %vm37, %v3167, 0
  %v3454 = vsel %vm37, %v3168, 0
  %v3457 = vsel %vm37, %v3169, 0
  %v3460 = vsel %vm37, %v3170, 0
  %v3463 = vsel %vm37, %v3171, 0
  %v3466 = vsel %vm37, %v3172, 0
  %v3469 = vsel %vm37, %v3173, 0
  %v3472 = vsel %vm37, %v3174, 0
  %v3475 = vsel %vm37, %v3175, 0
  %v3478 = vsel %vm37, %v3176, 0
  %v3481 = vsel %vm37, %v3177, 0
  %v3484 = vsel %vm37, %v3178, 0
  %v3487 = vsel %vm37, %v3179, 0
  %v3490 = vsel %vm37, %v3180, 0
  %v3493 = vsel %vm37, %v3181, 0
  %v3496 = vsel %vm37, %v3182, 0
  %v3499 = vsel %vm37, %v3183, 0
  %v3502 = vsel %vm37, %v3184, 0
  %v3505 = vsel %vm37, %v3185, 0
  %v3508 = vsel %vm37, %v3186, 0
  %v3511 = vsel %vm37, %v3187, 0
  %v3514 = vsel %vm37, %v3188, 0
  %v3517 = vsel %vm37, %v3189, 0
  %v3520 = vsel %vm37, %v3190, 0
  %v3523 = vsel %vm37, %v3191, 0
  %v3526 = vsel %vm37, %v3192, 0
  %v3529 = vsel %vm37, %v3193, 0
  %v3532 = vsel %vm37, %v3194, 0
  %v3535 = vsel %vm37, %v3195, 0
  %v3538 = vsel %vm37, %v3196, 0
  %v3541 = vsel %vm37, %v3197, 0
  %v3544 = vsel %vm37, %v3198, 0
  %v3547 = vsel %vm37, %v3199, 0
  %v3550 = vsel %vm37, %v3200, 0
  %v3553 = vsel %vm37, %v3201, 0
  %v3556 = vsel %vm37, %v3202, 0
  %v3559 = vsel %vm37, %v3203, 0
  %v3562 = vsel %vm37, %v3204, 0
  %v3565 = vsel %vm37, %v3205, 0
  %v3568 = vsel %vm37, %v3206, 0
  %v3571 = vsel %vm37, %v3207, 0
  %v3574 = vsel %vm37, %v3208, 0
  %v3577 = vsel %vm37, %v3209, 0
  %v3580 = vsel %vm37, %v3210, 0
  %v3583 = vsel %vm37, %v3211, 0
  %v3586 = vsel %vm37, %v3212, 0
  %v3589 = vsel %vm37, %v3213, 0
  %v3592 = vsel %vm37, %v3214, 0
  %v3595 = vsel %vm37, %v3215, 0
  %v3598 = vsel %vm37, %v3216, 0
  %v3601 = vsel %vm37, %v3217, 0
  %v3604 = vsel %vm37, %v3218, 0
  %3606 = vmatprep.subr.mxu0 0.0
  %3607 = vmatpush1.msra.mxu0 0.0
  %3608 = vmatprep.subr.mxu0 0.0
  %3609 = vmatpush1.msra.mxu0 0.0
  %3610 = vmatprep.subr.mxu0 0.0
  %3611 = vmatpush1.msra.mxu0 0.0
  %3612 = vmatprep.subr.mxu0 0.0
  %3613 = vmatpush1.msra.mxu0 0.0
  %3614 = vmatprep.subr.mxu0 0.0
  %3615 = vmatpush1.msra.mxu0 0.0
  %3616 = vmatprep.subr.mxu0 0.0
  %3617 = vmatpush1.msra.mxu0 0.0
  %3618 = vmatprep.subr.mxu0 0.0
  %3619 = vmatpush1.msra.mxu0 0.0
  %3620 = vmatprep.subr.mxu0 0.0
  %3621 = vmatpush1.msra.mxu0 0.0
  %3622 = vmatprep.subr.mxu0 0.0
  %3623 = vmatpush1.msra.mxu0 %v3227
  %3624 = vmatprep.subr.mxu0 0.0
  %3625 = vmatpush1.msra.mxu0 %v3226
  %3626 = vmatprep.subr.mxu0 0.0
  %3627 = vmatpush1.msra.mxu0 %v3225
  %3628 = vmatprep.subr.mxu0 0.0
  %3629 = vmatpush1.msra.mxu0 %v3224
  %3630 = vmatprep.subr.mxu0 0.0
  %3631 = vmatpush1.msra.mxu0 %v3223
  %3632 = vmatprep.subr.mxu0 0.0
  %3633 = vmatpush1.msra.mxu0 %v3222
  %3634 = vmatprep.subr.mxu0 0.0
  %3635 = vmatpush1.msra.mxu0 %v3221
  %3636 = vmatprep.subr.mxu0 0.0
  %3637 = vmatpush1.msra.mxu0 %v3220
  %3638 = vmatprep.subr.mxu0 0.0
  %3639 = vmatpush2.msra.mxu0 0.0
  %3640 = vmatprep.subr.mxu0 0.0
  %3641 = vmatpush2.msra.mxu0 0.0
  %3642 = vmatprep.subr.mxu0 0.0
  %3643 = vmatpush2.msra.mxu0 0.0
  %3644 = vmatprep.subr.mxu0 0.0
  %3645 = vmatpush2.msra.mxu0 0.0
  %3646 = vmatprep.subr.mxu0 0.0
  %3647 = vmatpush2.msra.mxu0 0.0
  %3648 = vmatprep.subr.mxu0 0.0
  %3649 = vmatpush2.msra.mxu0 0.0
  %3650 = vmatprep.subr.mxu0 0.0
  %3651 = vmatpush2.msra.mxu0 0.0
  %3652 = vmatprep.subr.mxu0 0.0
  %3653 = vmatpush2.msra.mxu0 0.0
  %3654 = vmatprep.subr.mxu0 0.0
  %3655 = vmatpush2.msra.mxu0 0.0
  %3656 = vmatprep.subr.mxu0 0.0
  %3657 = vmatpush2.msra.mxu0 0.0
  %3658 = vmatprep.subr.mxu0 0.0
  %3659 = vmatpush2.msra.mxu0 0.0
  %3660 = vmatprep.subr.mxu0 0.0
  %3661 = vmatpush2.msra.mxu0 0.0
  %3662 = vmatprep.subr.mxu0 0.0
  %3663 = vmatpush2.msra.mxu0 0.0
  %3664 = vmatprep.subr.mxu0 0.0
  %3665 = vmatpush2.msra.mxu0 0.0
  %3666 = vmatprep.subr.mxu0 0.0
  %3667 = vmatpush2.msra.mxu0 0.0
  %3668 = vmatprep.subr.mxu0 0.0
  %3669 = vmatpush2.msra.mxu0 0.0
  %3670 = vmatprep.mubr.f32.mxu0 0.0
  %3671 = vmatmul.mubr.f32.gmra.mxu0 %v3229
  %v3672 = vpop.f32.mrf.mxu0
  %v3673 = vadd.f32 0.0, %v3672
  %v3674 = vpop.f32.mrf.mxu0
  %3675 = vmatprep.mubr.f32.mxu0 0.0
  %3676 = vmatmul.mubr.f32.gmra.mxu0 %v3232
  %v3677 = vpop.f32.mrf.mxu0
  %v3678 = vadd.f32 0.0, %v3677
  %v3679 = vpop.f32.mrf.mxu0
  %3680 = vmatprep.mubr.f32.mxu0 0.0
  %3681 = vmatmul.mubr.f32.gmra.mxu0 %v3235
  %v3682 = vpop.f32.mrf.mxu0
  %v3683 = vadd.f32 0.0, %v3682
  %v3684 = vpop.f32.mrf.mxu0
  %3685 = vmatprep.mubr.f32.mxu0 0.0
  %3686 = vmatmul.mubr.f32.gmra.mxu0 %v3238
  %v3687 = vpop.f32.mrf.mxu0
  %v3688 = vadd.f32 0.0, %v3687
  %v3689 = vpop.f32.mrf.mxu0
  %3690 = vmatprep.mubr.f32.mxu0 0.0
  %3691 = vmatmul.mubr.f32.gmra.mxu0 %v3241
  %v3692 = vpop.f32.mrf.mxu0
  %v3693 = vadd.f32 0.0, %v3692
  %v3694 = vpop.f32.mrf.mxu0
  %3695 = vmatprep.mubr.f32.mxu0 0.0
  %3696 = vmatmul.mubr.f32.gmra.mxu0 %v3244
  %v3697 = vpop.f32.mrf.mxu0
  %v3698 = vadd.f32 0.0, %v3697
  %v3699 = vpop.f32.mrf.mxu0
  %3700 = vmatprep.mubr.f32.mxu0 0.0
  %3701 = vmatmul.mubr.f32.gmra.mxu0 %v3247
  %v3702 = vpop.f32.mrf.mxu0
  %v3703 = vadd.f32 0.0, %v3702
  %v3704 = vpop.f32.mrf.mxu0
  %3705 = vmatprep.mubr.f32.mxu0 0.0
  %3706 = vmatmul.mubr.f32.gmra.mxu0 %v3250
  %v3707 = vpop.f32.mrf.mxu0
  %v3708 = vadd.f32 0.0, %v3707
  %v3709 = vpop.f32.mrf.mxu0
  %3710 = vmatprep.mubr.f32.mxu0 0.0
  %3711 = vmatmul.mubr.f32.gmra.mxu0 %v3253
  %v3712 = vpop.f32.mrf.mxu0
  %v3713 = vadd.f32 0.0, %v3712
  %v3714 = vpop.f32.mrf.mxu0
  %3715 = vmatprep.mubr.f32.mxu0 0.0
  %3716 = vmatmul.mubr.f32.gmra.mxu0 %v3256
  %v3717 = vpop.f32.mrf.mxu0
  %v3718 = vadd.f32 0.0, %v3717
  %v3719 = vpop.f32.mrf.mxu0
  %3720 = vmatprep.mubr.f32.mxu0 0.0
  %3721 = vmatmul.mubr.f32.gmra.mxu0 %v3259
  %v3722 = vpop.f32.mrf.mxu0
  %v3723 = vadd.f32 0.0, %v3722
  %v3724 = vpop.f32.mrf.mxu0
  %3725 = vmatprep.mubr.f32.mxu0 0.0
  %3726 = vmatmul.mubr.f32.gmra.mxu0 %v3262
  %v3727 = vpop.f32.mrf.mxu0
  %v3728 = vadd.f32 0.0, %v3727
  %v3729 = vpop.f32.mrf.mxu0
  %3730 = vmatprep.mubr.f32.mxu0 0.0
  %3731 = vmatmul.mubr.f32.gmra.mxu0 %v3265
  %v3732 = vpop.f32.mrf.mxu0
  %v3733 = vadd.f32 0.0, %v3732
  %v3734 = vpop.f32.mrf.mxu0
  %3735 = vmatprep.mubr.f32.mxu0 0.0
  %3736 = vmatmul.mubr.f32.gmra.mxu0 %v3268
  %v3737 = vpop.f32.mrf.mxu0
  %v3738 = vadd.f32 0.0, %v3737
  %v3739 = vpop.f32.mrf.mxu0
  %3740 = vmatprep.mubr.f32.mxu0 0.0
  %3741 = vmatmul.mubr.f32.gmra.mxu0 %v3271
  %v3742 = vpop.f32.mrf.mxu0
  %v3743 = vadd.f32 0.0, %v3742
  %v3744 = vpop.f32.mrf.mxu0
  %3745 = vmatprep.mubr.f32.mxu0 0.0
  %3746 = vmatmul.mubr.f32.gmra.mxu0 %v3274
  %v3747 = vpop.f32.mrf.mxu0
  %v3748 = vadd.f32 0.0, %v3747
  %v3749 = vpop.f32.mrf.mxu0
  %3750 = vmatprep.mubr.f32.mxu0 0.0
  %3751 = vmatmul.mubr.f32.gmra.mxu0 %v3277
  %v3752 = vpop.f32.mrf.mxu0
  %v3753 = vadd.f32 0.0, %v3752
  %v3754 = vpop.f32.mrf.mxu0
  %3755 = vmatprep.mubr.f32.mxu0 0.0
  %3756 = vmatmul.mubr.f32.gmra.mxu0 %v3280
  %v3757 = vpop.f32.mrf.mxu0
  %v3758 = vadd.f32 0.0, %v3757
  %v3759 = vpop.f32.mrf.mxu0
  %3760 = vmatprep.mubr.f32.mxu0 0.0
  %3761 = vmatmul.mubr.f32.gmra.mxu0 %v3283
  %v3762 = vpop.f32.mrf.mxu0
  %v3763 = vadd.f32 0.0, %v3762
  %v3764 = vpop.f32.mrf.mxu0
  %3765 = vmatprep.mubr.f32.mxu0 0.0
  %3766 = vmatmul.mubr.f32.gmra.mxu0 %v3286
  %v3767 = vpop.f32.mrf.mxu0
  %v3768 = vadd.f32 0.0, %v3767
  %v3769 = vpop.f32.mrf.mxu0
  %3770 = vmatprep.mubr.f32.mxu0 0.0
  %3771 = vmatmul.mubr.f32.gmra.mxu0 %v3289
  %v3772 = vpop.f32.mrf.mxu0
  %v3773 = vadd.f32 0.0, %v3772
  %v3774 = vpop.f32.mrf.mxu0
  %3775 = vmatprep.mubr.f32.mxu0 0.0
  %3776 = vmatmul.mubr.f32.gmra.mxu0 %v3292
  %v3777 = vpop.f32.mrf.mxu0
  %v3778 = vadd.f32 0.0, %v3777
  %v3779 = vpop.f32.mrf.mxu0
  %3780 = vmatprep.mubr.f32.mxu0 0.0
  %3781 = vmatmul.mubr.f32.gmra.mxu0 %v3295
  %v3782 = vpop.f32.mrf.mxu0
  %v3783 = vadd.f32 0.0, %v3782
  %v3784 = vpop.f32.mrf.mxu0
  %3785 = vmatprep.mubr.f32.mxu0 0.0
  %3786 = vmatmul.mubr.f32.gmra.mxu0 %v3298
  %v3787 = vpop.f32.mrf.mxu0
  %v3788 = vadd.f32 0.0, %v3787
  %v3789 = vpop.f32.mrf.mxu0
  %3790 = vmatprep.mubr.f32.mxu0 0.0
  %3791 = vmatmul.mubr.f32.gmra.mxu0 %v3301
  %v3792 = vpop.f32.mrf.mxu0
  %v3793 = vadd.f32 0.0, %v3792
  %v3794 = vpop.f32.mrf.mxu0
  %3795 = vmatprep.mubr.f32.mxu0 0.0
  %3796 = vmatmul.mubr.f32.gmra.mxu0 %v3304
  %v3797 = vpop.f32.mrf.mxu0
  %v3798 = vadd.f32 0.0, %v3797
  %v3799 = vpop.f32.mrf.mxu0
  %3800 = vmatprep.mubr.f32.mxu0 0.0
  %3801 = vmatmul.mubr.f32.gmra.mxu0 %v3307
  %v3802 = vpop.f32.mrf.mxu0
  %v3803 = vadd.f32 0.0, %v3802
  %v3804 = vpop.f32.mrf.mxu0
  %3805 = vmatprep.mubr.f32.mxu0 0.0
  %3806 = vmatmul.mubr.f32.gmra.mxu0 %v3310
  %v3807 = vpop.f32.mrf.mxu0
  %v3808 = vadd.f32 0.0, %v3807
  %v3809 = vpop.f32.mrf.mxu0
  %3810 = vmatprep.mubr.f32.mxu0 0.0
  %3811 = vmatmul.mubr.f32.gmra.mxu0 %v3313
  %v3812 = vpop.f32.mrf.mxu0
  %v3813 = vadd.f32 0.0, %v3812
  %v3814 = vpop.f32.mrf.mxu0
  %3815 = vmatprep.mubr.f32.mxu0 0.0
  %3816 = vmatmul.mubr.f32.gmra.mxu0 %v3316
  %v3817 = vpop.f32.mrf.mxu0
  %v3818 = vadd.f32 0.0, %v3817
  %v3819 = vpop.f32.mrf.mxu0
  %3820 = vmatprep.mubr.f32.mxu0 0.0
  %3821 = vmatmul.mubr.f32.gmra.mxu0 %v3319
  %v3822 = vpop.f32.mrf.mxu0
  %v3823 = vadd.f32 0.0, %v3822
  %v3824 = vpop.f32.mrf.mxu0
  %3825 = vmatprep.mubr.f32.mxu0 0.0
  %3826 = vmatmul.mubr.f32.gmra.mxu0 %v3322
  %v3827 = vpop.f32.mrf.mxu0
  %v3828 = vadd.f32 0.0, %v3827
  %v3829 = vpop.f32.mrf.mxu0
  %3830 = vmatprep.mubr.f32.mxu0 0.0
  %3831 = vmatmul.mubr.f32.gmra.mxu0 %v3325
  %v3832 = vpop.f32.mrf.mxu0
  %v3833 = vadd.f32 0.0, %v3832
  %v3834 = vpop.f32.mrf.mxu0
  %3835 = vmatprep.mubr.f32.mxu0 0.0
  %3836 = vmatmul.mubr.f32.gmra.mxu0 %v3328
  %v3837 = vpop.f32.mrf.mxu0
  %v3838 = vadd.f32 0.0, %v3837
  %v3839 = vpop.f32.mrf.mxu0
  %3840 = vmatprep.mubr.f32.mxu0 0.0
  %3841 = vmatmul.mubr.f32.gmra.mxu0 %v3331
  %v3842 = vpop.f32.mrf.mxu0
  %v3843 = vadd.f32 0.0, %v3842
  %v3844 = vpop.f32.mrf.mxu0
  %3845 = vmatprep.mubr.f32.mxu0 0.0
  %3846 = vmatmul.mubr.f32.gmra.mxu0 %v3334
  %v3847 = vpop.f32.mrf.mxu0
  %v3848 = vadd.f32 0.0, %v3847
  %v3849 = vpop.f32.mrf.mxu0
  %3850 = vmatprep.mubr.f32.mxu0 0.0
  %3851 = vmatmul.mubr.f32.gmra.mxu0 %v3337
  %v3852 = vpop.f32.mrf.mxu0
  %v3853 = vadd.f32 0.0, %v3852
  %v3854 = vpop.f32.mrf.mxu0
  %3855 = vmatprep.mubr.f32.mxu0 0.0
  %3856 = vmatmul.mubr.f32.gmra.mxu0 %v3340
  %v3857 = vpop.f32.mrf.mxu0
  %v3858 = vadd.f32 0.0, %v3857
  %v3859 = vpop.f32.mrf.mxu0
  %3860 = vmatprep.mubr.f32.mxu0 0.0
  %3861 = vmatmul.mubr.f32.gmra.mxu0 %v3343
  %v3862 = vpop.f32.mrf.mxu0
  %v3863 = vadd.f32 0.0, %v3862
  %v3864 = vpop.f32.mrf.mxu0
  %3865 = vmatprep.mubr.f32.mxu0 0.0
  %3866 = vmatmul.mubr.f32.gmra.mxu0 %v3346
  %v3867 = vpop.f32.mrf.mxu0
  %v3868 = vadd.f32 0.0, %v3867
  %v3869 = vpop.f32.mrf.mxu0
  %3870 = vmatprep.mubr.f32.mxu0 0.0
  %3871 = vmatmul.mubr.f32.gmra.mxu0 %v3349
  %v3872 = vpop.f32.mrf.mxu0
  %v3873 = vadd.f32 0.0, %v3872
  %v3874 = vpop.f32.mrf.mxu0
  %3875 = vmatprep.mubr.f32.mxu0 0.0
  %3876 = vmatmul.mubr.f32.gmra.mxu0 %v3352
  %v3877 = vpop.f32.mrf.mxu0
  %v3878 = vadd.f32 0.0, %v3877
  %v3879 = vpop.f32.mrf.mxu0
  %3880 = vmatprep.mubr.f32.mxu0 0.0
  %3881 = vmatmul.mubr.f32.gmra.mxu0 %v3355
  %v3882 = vpop.f32.mrf.mxu0
  %v3883 = vadd.f32 0.0, %v3882
  %v3884 = vpop.f32.mrf.mxu0
  %3885 = vmatprep.mubr.f32.mxu0 0.0
  %3886 = vmatmul.mubr.f32.gmra.mxu0 %v3358
  %v3887 = vpop.f32.mrf.mxu0
  %v3888 = vadd.f32 0.0, %v3887
  %v3889 = vpop.f32.mrf.mxu0
  %3890 = vmatprep.mubr.f32.mxu0 0.0
  %3891 = vmatmul.mubr.f32.gmra.mxu0 %v3361
  %v3892 = vpop.f32.mrf.mxu0
  %v3893 = vadd.f32 0.0, %v3892
  %v3894 = vpop.f32.mrf.mxu0
  %3895 = vmatprep.mubr.f32.mxu0 0.0
  %3896 = vmatmul.mubr.f32.gmra.mxu0 %v3364
  %v3897 = vpop.f32.mrf.mxu0
  %v3898 = vadd.f32 0.0, %v3897
  %v3899 = vpop.f32.mrf.mxu0
  %3900 = vmatprep.mubr.f32.mxu0 0.0
  %3901 = vmatmul.mubr.f32.gmra.mxu0 %v3367
  %v3902 = vpop.f32.mrf.mxu0
  %v3903 = vadd.f32 0.0, %v3902
  %v3904 = vpop.f32.mrf.mxu0
  %3905 = vmatprep.mubr.f32.mxu0 0.0
  %3906 = vmatmul.mubr.f32.gmra.mxu0 %v3370
  %v3907 = vpop.f32.mrf.mxu0
  %v3908 = vadd.f32 0.0, %v3907
  %v3909 = vpop.f32.mrf.mxu0
  %3910 = vmatprep.mubr.f32.mxu0 0.0
  %3911 = vmatmul.mubr.f32.gmra.mxu0 %v3373
  %v3912 = vpop.f32.mrf.mxu0
  %v3913 = vadd.f32 0.0, %v3912
  %v3914 = vpop.f32.mrf.mxu0
  %3915 = vmatprep.mubr.f32.mxu0 0.0
  %3916 = vmatmul.mubr.f32.gmra.mxu0 %v3376
  %v3917 = vpop.f32.mrf.mxu0
  %v3918 = vadd.f32 0.0, %v3917
  %v3919 = vpop.f32.mrf.mxu0
  %3920 = vmatprep.mubr.f32.mxu0 0.0
  %3921 = vmatmul.mubr.f32.gmra.mxu0 %v3379
  %v3922 = vpop.f32.mrf.mxu0
  %v3923 = vadd.f32 0.0, %v3922
  %v3924 = vpop.f32.mrf.mxu0
  %3925 = vmatprep.mubr.f32.mxu0 0.0
  %3926 = vmatmul.mubr.f32.gmra.mxu0 %v3382
  %v3927 = vpop.f32.mrf.mxu0
  %v3928 = vadd.f32 0.0, %v3927
  %v3929 = vpop.f32.mrf.mxu0
  %3930 = vmatprep.mubr.f32.mxu0 0.0
  %3931 = vmatmul.mubr.f32.gmra.mxu0 %v3385
  %v3932 = vpop.f32.mrf.mxu0
  %v3933 = vadd.f32 0.0, %v3932
  %v3934 = vpop.f32.mrf.mxu0
  %3935 = vmatprep.mubr.f32.mxu0 0.0
  %3936 = vmatmul.mubr.f32.gmra.mxu0 %v3388
  %v3937 = vpop.f32.mrf.mxu0
  %v3938 = vadd.f32 0.0, %v3937
  %v3939 = vpop.f32.mrf.mxu0
  %3940 = vmatprep.mubr.f32.mxu0 0.0
  %3941 = vmatmul.mubr.f32.gmra.mxu0 %v3391
  %v3942 = vpop.f32.mrf.mxu0
  %v3943 = vadd.f32 0.0, %v3942
  %v3944 = vpop.f32.mrf.mxu0
  %3945 = vmatprep.mubr.f32.mxu0 0.0
  %3946 = vmatmul.mubr.f32.gmra.mxu0 %v3394
  %v3947 = vpop.f32.mrf.mxu0
  %v3948 = vadd.f32 0.0, %v3947
  %v3949 = vpop.f32.mrf.mxu0
  %3950 = vmatprep.mubr.f32.mxu0 0.0
  %3951 = vmatmul.mubr.f32.gmra.mxu0 %v3397
  %v3952 = vpop.f32.mrf.mxu0
  %v3953 = vadd.f32 0.0, %v3952
  %v3954 = vpop.f32.mrf.mxu0
  %3955 = vmatprep.mubr.f32.mxu0 0.0
  %3956 = vmatmul.mubr.f32.gmra.mxu0 %v3400
  %v3957 = vpop.f32.mrf.mxu0
  %v3958 = vadd.f32 0.0, %v3957
  %v3959 = vpop.f32.mrf.mxu0
  %3960 = vmatprep.mubr.f32.mxu0 0.0
  %3961 = vmatmul.mubr.f32.gmra.mxu0 %v3403
  %v3962 = vpop.f32.mrf.mxu0
  %v3963 = vadd.f32 0.0, %v3962
  %v3964 = vpop.f32.mrf.mxu0
  %3965 = vmatprep.mubr.f32.mxu0 0.0
  %3966 = vmatmul.mubr.f32.gmra.mxu0 %v3406
  %v3967 = vpop.f32.mrf.mxu0
  %v3968 = vadd.f32 0.0, %v3967
  %v3969 = vpop.f32.mrf.mxu0
  %3970 = vmatprep.mubr.f32.mxu0 0.0
  %3971 = vmatmul.mubr.f32.gmra.mxu0 %v3409
  %v3972 = vpop.f32.mrf.mxu0
  %v3973 = vadd.f32 0.0, %v3972
  %v3974 = vpop.f32.mrf.mxu0
  %3975 = vmatprep.mubr.f32.mxu0 0.0
  %3976 = vmatmul.mubr.f32.gmra.mxu0 %v3412
  %v3977 = vpop.f32.mrf.mxu0
  %v3978 = vadd.f32 0.0, %v3977
  %v3979 = vpop.f32.mrf.mxu0
  %3980 = vmatprep.mubr.f32.mxu0 0.0
  %3981 = vmatmul.mubr.f32.gmra.mxu0 %v3415
  %v3982 = vpop.f32.mrf.mxu0
  %v3983 = vadd.f32 0.0, %v3982
  %v3984 = vpop.f32.mrf.mxu0
  %3985 = vmatprep.mubr.f32.mxu0 0.0
  %3986 = vmatmul.mubr.f32.gmra.mxu0 %v3418
  %v3987 = vpop.f32.mrf.mxu0
  %v3988 = vadd.f32 0.0, %v3987
  %v3989 = vpop.f32.mrf.mxu0
  %3990 = vmatprep.mubr.f32.mxu0 0.0
  %3991 = vmatmul.mubr.f32.gmra.mxu0 %v3421
  %v3992 = vpop.f32.mrf.mxu0
  %v3993 = vadd.f32 0.0, %v3992
  %v3994 = vpop.f32.mrf.mxu0
  %3995 = vmatprep.mubr.f32.mxu0 0.0
  %3996 = vmatmul.mubr.f32.gmra.mxu0 %v3424
  %v3997 = vpop.f32.mrf.mxu0
  %v3998 = vadd.f32 0.0, %v3997
  %v3999 = vpop.f32.mrf.mxu0
  %4000 = vmatprep.mubr.f32.mxu0 0.0
  %4001 = vmatmul.mubr.f32.gmra.mxu0 %v3427
  %v4002 = vpop.f32.mrf.mxu0
  %v4003 = vadd.f32 0.0, %v4002
  %v4004 = vpop.f32.mrf.mxu0
  %4005 = vmatprep.mubr.f32.mxu0 0.0
  %4006 = vmatmul.mubr.f32.gmra.mxu0 %v3430
  %v4007 = vpop.f32.mrf.mxu0
  %v4008 = vadd.f32 0.0, %v4007
  %v4009 = vpop.f32.mrf.mxu0
  %4010 = vmatprep.mubr.f32.mxu0 0.0
  %4011 = vmatmul.mubr.f32.gmra.mxu0 %v3433
  %v4012 = vpop.f32.mrf.mxu0
  %v4013 = vadd.f32 0.0, %v4012
  %v4014 = vpop.f32.mrf.mxu0
  %4015 = vmatprep.mubr.f32.mxu0 0.0
  %4016 = vmatmul.mubr.f32.gmra.mxu0 %v3436
  %v4017 = vpop.f32.mrf.mxu0
  %v4018 = vadd.f32 0.0, %v4017
  %v4019 = vpop.f32.mrf.mxu0
  %4020 = vmatprep.mubr.f32.mxu0 0.0
  %4021 = vmatmul.mubr.f32.gmra.mxu0 %v3439
  %v4022 = vpop.f32.mrf.mxu0
  %v4023 = vadd.f32 0.0, %v4022
  %v4024 = vpop.f32.mrf.mxu0
  %4025 = vmatprep.mubr.f32.mxu0 0.0
  %4026 = vmatmul.mubr.f32.gmra.mxu0 %v3442
  %v4027 = vpop.f32.mrf.mxu0
  %v4028 = vadd.f32 0.0, %v4027
  %v4029 = vpop.f32.mrf.mxu0
  %4030 = vmatprep.mubr.f32.mxu0 0.0
  %4031 = vmatmul.mubr.f32.gmra.mxu0 %v3445
  %v4032 = vpop.f32.mrf.mxu0
  %v4033 = vadd.f32 0.0, %v4032
  %v4034 = vpop.f32.mrf.mxu0
  %4035 = vmatprep.mubr.f32.mxu0 0.0
  %4036 = vmatmul.mubr.f32.gmra.mxu0 %v3448
  %v4037 = vpop.f32.mrf.mxu0
  %v4038 = vadd.f32 0.0, %v4037
  %v4039 = vpop.f32.mrf.mxu0
  %4040 = vmatprep.mubr.f32.mxu0 0.0
  %4041 = vmatmul.mubr.f32.gmra.mxu0 %v3451
  %v4042 = vpop.f32.mrf.mxu0
  %v4043 = vadd.f32 0.0, %v4042
  %v4044 = vpop.f32.mrf.mxu0
  %4045 = vmatprep.mubr.f32.mxu0 0.0
  %4046 = vmatmul.mubr.f32.gmra.mxu0 %v3454
  %v4047 = vpop.f32.mrf.mxu0
  %v4048 = vadd.f32 0.0, %v4047
  %v4049 = vpop.f32.mrf.mxu0
  %4050 = vmatprep.mubr.f32.mxu0 0.0
  %4051 = vmatmul.mubr.f32.gmra.mxu0 %v3457
  %v4052 = vpop.f32.mrf.mxu0
  %v4053 = vadd.f32 0.0, %v4052
  %v4054 = vpop.f32.mrf.mxu0
  %4055 = vmatprep.mubr.f32.mxu0 0.0
  %4056 = vmatmul.mubr.f32.gmra.mxu0 %v3460
  %v4057 = vpop.f32.mrf.mxu0
  %v4058 = vadd.f32 0.0, %v4057
  %v4059 = vpop.f32.mrf.mxu0
  %4060 = vmatprep.mubr.f32.mxu0 0.0
  %4061 = vmatmul.mubr.f32.gmra.mxu0 %v3463
  %v4062 = vpop.f32.mrf.mxu0
  %v4063 = vadd.f32 0.0, %v4062
  %v4064 = vpop.f32.mrf.mxu0
  %4065 = vmatprep.mubr.f32.mxu0 0.0
  %4066 = vmatmul.mubr.f32.gmra.mxu0 %v3466
  %v4067 = vpop.f32.mrf.mxu0
  %v4068 = vadd.f32 0.0, %v4067
  %v4069 = vpop.f32.mrf.mxu0
  %4070 = vmatprep.mubr.f32.mxu0 0.0
  %4071 = vmatmul.mubr.f32.gmra.mxu0 %v3469
  %v4072 = vpop.f32.mrf.mxu0
  %v4073 = vadd.f32 0.0, %v4072
  %v4074 = vpop.f32.mrf.mxu0
  %4075 = vmatprep.mubr.f32.mxu0 0.0
  %4076 = vmatmul.mubr.f32.gmra.mxu0 %v3472
  %v4077 = vpop.f32.mrf.mxu0
  %v4078 = vadd.f32 0.0, %v4077
  %v4079 = vpop.f32.mrf.mxu0
  %4080 = vmatprep.mubr.f32.mxu0 0.0
  %4081 = vmatmul.mubr.f32.gmra.mxu0 %v3475
  %v4082 = vpop.f32.mrf.mxu0
  %v4083 = vadd.f32 0.0, %v4082
  %v4084 = vpop.f32.mrf.mxu0
  %4085 = vmatprep.mubr.f32.mxu0 0.0
  %4086 = vmatmul.mubr.f32.gmra.mxu0 %v3478
  %v4087 = vpop.f32.mrf.mxu0
  %v4088 = vadd.f32 0.0, %v4087
  %v4089 = vpop.f32.mrf.mxu0
  %4090 = vmatprep.mubr.f32.mxu0 0.0
  %4091 = vmatmul.mubr.f32.gmra.mxu0 %v3481
  %v4092 = vpop.f32.mrf.mxu0
  %v4093 = vadd.f32 0.0, %v4092
  %v4094 = vpop.f32.mrf.mxu0
  %4095 = vmatprep.mubr.f32.mxu0 0.0
  %4096 = vmatmul.mubr.f32.gmra.mxu0 %v3484
  %v4097 = vpop.f32.mrf.mxu0
  %v4098 = vadd.f32 0.0, %v4097
  %v4099 = vpop.f32.mrf.mxu0
  %4100 = vmatprep.mubr.f32.mxu0 0.0
  %4101 = vmatmul.mubr.f32.gmra.mxu0 %v3487
  %v4102 = vpop.f32.mrf.mxu0
  %v4103 = vadd.f32 0.0, %v4102
  %v4104 = vpop.f32.mrf.mxu0
  %4105 = vmatprep.mubr.f32.mxu0 0.0
  %4106 = vmatmul.mubr.f32.gmra.mxu0 %v3490
  %v4107 = vpop.f32.mrf.mxu0
  %v4108 = vadd.f32 0.0, %v4107
  %v4109 = vpop.f32.mrf.mxu0
  %4110 = vmatprep.mubr.f32.mxu0 0.0
  %4111 = vmatmul.mubr.f32.gmra.mxu0 %v3493
  %v4112 = vpop.f32.mrf.mxu0
  %v4113 = vadd.f32 0.0, %v4112
  %v4114 = vpop.f32.mrf.mxu0
  %4115 = vmatprep.mubr.f32.mxu0 0.0
  %4116 = vmatmul.mubr.f32.gmra.mxu0 %v3496
  %v4117 = vpop.f32.mrf.mxu0
  %v4118 = vadd.f32 0.0, %v4117
  %v4119 = vpop.f32.mrf.mxu0
  %4120 = vmatprep.mubr.f32.mxu0 0.0
  %4121 = vmatmul.mubr.f32.gmra.mxu0 %v3499
  %v4122 = vpop.f32.mrf.mxu0
  %v4123 = vadd.f32 0.0, %v4122
  %v4124 = vpop.f32.mrf.mxu0
  %4125 = vmatprep.mubr.f32.mxu0 0.0
  %4126 = vmatmul.mubr.f32.gmra.mxu0 %v3502
  %v4127 = vpop.f32.mrf.mxu0
  %v4128 = vadd.f32 0.0, %v4127
  %v4129 = vpop.f32.mrf.mxu0
  %4130 = vmatprep.mubr.f32.mxu0 0.0
  %4131 = vmatmul.mubr.f32.gmra.mxu0 %v3505
  %v4132 = vpop.f32.mrf.mxu0
  %v4133 = vadd.f32 0.0, %v4132
  %v4134 = vpop.f32.mrf.mxu0
  %4135 = vmatprep.mubr.f32.mxu0 0.0
  %4136 = vmatmul.mubr.f32.gmra.mxu0 %v3508
  %v4137 = vpop.f32.mrf.mxu0
  %v4138 = vadd.f32 0.0, %v4137
  %v4139 = vpop.f32.mrf.mxu0
  %4140 = vmatprep.mubr.f32.mxu0 0.0
  %4141 = vmatmul.mubr.f32.gmra.mxu0 %v3511
  %v4142 = vpop.f32.mrf.mxu0
  %v4143 = vadd.f32 0.0, %v4142
  %v4144 = vpop.f32.mrf.mxu0
  %4145 = vmatprep.mubr.f32.mxu0 0.0
  %4146 = vmatmul.mubr.f32.gmra.mxu0 %v3514
  %v4147 = vpop.f32.mrf.mxu0
  %v4148 = vadd.f32 0.0, %v4147
  %v4149 = vpop.f32.mrf.mxu0
  %4150 = vmatprep.mubr.f32.mxu0 0.0
  %4151 = vmatmul.mubr.f32.gmra.mxu0 %v3517
  %v4152 = vpop.f32.mrf.mxu0
  %v4153 = vadd.f32 0.0, %v4152
  %v4154 = vpop.f32.mrf.mxu0
  %4155 = vmatprep.mubr.f32.mxu0 0.0
  %4156 = vmatmul.mubr.f32.gmra.mxu0 %v3520
  %v4157 = vpop.f32.mrf.mxu0
  %v4158 = vadd.f32 0.0, %v4157
  %v4159 = vpop.f32.mrf.mxu0
  %4160 = vmatprep.mubr.f32.mxu0 0.0
  %4161 = vmatmul.mubr.f32.gmra.mxu0 %v3523
  %v4162 = vpop.f32.mrf.mxu0
  %v4163 = vadd.f32 0.0, %v4162
  %v4164 = vpop.f32.mrf.mxu0
  %4165 = vmatprep.mubr.f32.mxu0 0.0
  %4166 = vmatmul.mubr.f32.gmra.mxu0 %v3526
  %v4167 = vpop.f32.mrf.mxu0
  %v4168 = vadd.f32 0.0, %v4167
  %v4169 = vpop.f32.mrf.mxu0
  %4170 = vmatprep.mubr.f32.mxu0 0.0
  %4171 = vmatmul.mubr.f32.gmra.mxu0 %v3529
  %v4172 = vpop.f32.mrf.mxu0
  %v4173 = vadd.f32 0.0, %v4172
  %v4174 = vpop.f32.mrf.mxu0
  %4175 = vmatprep.mubr.f32.mxu0 0.0
  %4176 = vmatmul.mubr.f32.gmra.mxu0 %v3532
  %v4177 = vpop.f32.mrf.mxu0
  %v4178 = vadd.f32 0.0, %v4177
  %v4179 = vpop.f32.mrf.mxu0
  %4180 = vmatprep.mubr.f32.mxu0 0.0
  %4181 = vmatmul.mubr.f32.gmra.mxu0 %v3535
  %v4182 = vpop.f32.mrf.mxu0
  %v4183 = vadd.f32 0.0, %v4182
  %v4184 = vpop.f32.mrf.mxu0
  %4185 = vmatprep.mubr.f32.mxu0 0.0
  %4186 = vmatmul.mubr.f32.gmra.mxu0 %v3538
  %v4187 = vpop.f32.mrf.mxu0
  %v4188 = vadd.f32 0.0, %v4187
  %v4189 = vpop.f32.mrf.mxu0
  %4190 = vmatprep.mubr.f32.mxu0 0.0
  %4191 = vmatmul.mubr.f32.gmra.mxu0 %v3541
  %v4192 = vpop.f32.mrf.mxu0
  %v4193 = vadd.f32 0.0, %v4192
  %v4194 = vpop.f32.mrf.mxu0
  %4195 = vmatprep.mubr.f32.mxu0 0.0
  %4196 = vmatmul.mubr.f32.gmra.mxu0 %v3544
  %v4197 = vpop.f32.mrf.mxu0
  %v4198 = vadd.f32 0.0, %v4197
  %v4199 = vpop.f32.mrf.mxu0
  %4200 = vmatprep.mubr.f32.mxu0 0.0
  %4201 = vmatmul.mubr.f32.gmra.mxu0 %v3547
  %v4202 = vpop.f32.mrf.mxu0
  %v4203 = vadd.f32 0.0, %v4202
  %v4204 = vpop.f32.mrf.mxu0
  %4205 = vmatprep.mubr.f32.mxu0 0.0
  %4206 = vmatmul.mubr.f32.gmra.mxu0 %v3550
  %v4207 = vpop.f32.mrf.mxu0
  %v4208 = vadd.f32 0.0, %v4207
  %v4209 = vpop.f32.mrf.mxu0
  %4210 = vmatprep.mubr.f32.mxu0 0.0
  %4211 = vmatmul.mubr.f32.gmra.mxu0 %v3553
  %v4212 = vpop.f32.mrf.mxu0
  %v4213 = vadd.f32 0.0, %v4212
  %v4214 = vpop.f32.mrf.mxu0
  %4215 = vmatprep.mubr.f32.mxu0 0.0
  %4216 = vmatmul.mubr.f32.gmra.mxu0 %v3556
  %v4217 = vpop.f32.mrf.mxu0
  %v4218 = vadd.f32 0.0, %v4217
  %v4219 = vpop.f32.mrf.mxu0
  %4220 = vmatprep.mubr.f32.mxu0 0.0
  %4221 = vmatmul.mubr.f32.gmra.mxu0 %v3559
  %v4222 = vpop.f32.mrf.mxu0
  %v4223 = vadd.f32 0.0, %v4222
  %v4224 = vpop.f32.mrf.mxu0
  %4225 = vmatprep.mubr.f32.mxu0 0.0
  %4226 = vmatmul.mubr.f32.gmra.mxu0 %v3562
  %v4227 = vpop.f32.mrf.mxu0
  %v4228 = vadd.f32 0.0, %v4227
  %v4229 = vpop.f32.mrf.mxu0
  %4230 = vmatprep.mubr.f32.mxu0 0.0
  %4231 = vmatmul.mubr.f32.gmra.mxu0 %v3565
  %v4232 = vpop.f32.mrf.mxu0
  %v4233 = vadd.f32 0.0, %v4232
  %v4234 = vpop.f32.mrf.mxu0
  %4235 = vmatprep.mubr.f32.mxu0 0.0
  %4236 = vmatmul.mubr.f32.gmra.mxu0 %v3568
  %v4237 = vpop.f32.mrf.mxu0
  %v4238 = vadd.f32 0.0, %v4237
  %v4239 = vpop.f32.mrf.mxu0
  %4240 = vmatprep.mubr.f32.mxu0 0.0
  %4241 = vmatmul.mubr.f32.gmra.mxu0 %v3571
  %v4242 = vpop.f32.mrf.mxu0
  %v4243 = vadd.f32 0.0, %v4242
  %v4244 = vpop.f32.mrf.mxu0
  %4245 = vmatprep.mubr.f32.mxu0 0.0
  %4246 = vmatmul.mubr.f32.gmra.mxu0 %v3574
  %v4247 = vpop.f32.mrf.mxu0
  %v4248 = vadd.f32 0.0, %v4247
  %v4249 = vpop.f32.mrf.mxu0
  %4250 = vmatprep.mubr.f32.mxu0 0.0
  %4251 = vmatmul.mubr.f32.gmra.mxu0 %v3577
  %v4252 = vpop.f32.mrf.mxu0
  %v4253 = vadd.f32 0.0, %v4252
  %v4254 = vpop.f32.mrf.mxu0
  %4255 = vmatprep.mubr.f32.mxu0 0.0
  %4256 = vmatmul.mubr.f32.gmra.mxu0 %v3580
  %v4257 = vpop.f32.mrf.mxu0
  %v4258 = vadd.f32 0.0, %v4257
  %v4259 = vpop.f32.mrf.mxu0
  %4260 = vmatprep.mubr.f32.mxu0 0.0
  %4261 = vmatmul.mubr.f32.gmra.mxu0 %v3583
  %v4262 = vpop.f32.mrf.mxu0
  %v4263 = vadd.f32 0.0, %v4262
  %v4264 = vpop.f32.mrf.mxu0
  %4265 = vmatprep.mubr.f32.mxu0 0.0
  %4266 = vmatmul.mubr.f32.gmra.mxu0 %v3586
  %v4267 = vpop.f32.mrf.mxu0
  %v4268 = vadd.f32 0.0, %v4267
  %v4269 = vpop.f32.mrf.mxu0
  %4270 = vmatprep.mubr.f32.mxu0 0.0
  %4271 = vmatmul.mubr.f32.gmra.mxu0 %v3589
  %v4272 = vpop.f32.mrf.mxu0
  %v4273 = vadd.f32 0.0, %v4272
  %v4274 = vpop.f32.mrf.mxu0
  %4275 = vmatprep.mubr.f32.mxu0 0.0
  %4276 = vmatmul.mubr.f32.gmra.mxu0 %v3592
  %v4277 = vpop.f32.mrf.mxu0
  %v4278 = vadd.f32 0.0, %v4277
  %v4279 = vpop.f32.mrf.mxu0
  %4280 = vmatprep.mubr.f32.mxu0 0.0
  %4281 = vmatmul.mubr.f32.gmra.mxu0 %v3595
  %v4282 = vpop.f32.mrf.mxu0
  %v4283 = vadd.f32 0.0, %v4282
  %v4284 = vpop.f32.mrf.mxu0
  %4285 = vmatprep.mubr.f32.mxu0 0.0
  %4286 = vmatmul.mubr.f32.gmra.mxu0 %v3598
  %v4287 = vpop.f32.mrf.mxu0
  %v4288 = vadd.f32 0.0, %v4287
  %v4289 = vpop.f32.mrf.mxu0
  %4290 = vmatprep.mubr.f32.mxu0 0.0
  %4291 = vmatmul.mubr.f32.gmra.mxu0 %v3601
  %v4292 = vpop.f32.mrf.mxu0
  %v4293 = vadd.f32 0.0, %v4292
  %v4294 = vpop.f32.mrf.mxu0
  %4295 = vmatprep.mubr.f32.mxu0 0.0
  %4296 = vmatmul.mubr.f32.gmra.mxu0 %v3604
  %v4297 = vpop.f32.mrf.mxu0
  %v4298 = vadd.f32 0.0, %v4297
  %v4299 = vpop.f32.mrf.mxu0
  %4300 = vdwg.mxu0
  %v4301 = vadd.f32 %v2967, %v3673
  %v4302 = vadd.f32 %v2968, %v3678
  %v4303 = vadd.f32 %v2969, %v3683
  %v4304 = vadd.f32 %v2970, %v3688
  %v4305 = vadd.f32 %v2971, %v3693
  %v4306 = vadd.f32 %v2972, %v3698
  %v4307 = vadd.f32 %v2973, %v3703
  %v4308 = vadd.f32 %v2974, %v3708
  %v4309 = vadd.f32 %v2975, %v3713
  %v4310 = vadd.f32 %v2976, %v3718
  %v4311 = vadd.f32 %v2977, %v3723
  %v4312 = vadd.f32 %v2978, %v3728
  %v4313 = vadd.f32 %v2979, %v3733
  %v4314 = vadd.f32 %v2980, %v3738
  %v4315 = vadd.f32 %v2981, %v3743
  %v4316 = vadd.f32 %v2982, %v3748
  %v4317 = vadd.f32 %v2983, %v3753
  %v4318 = vadd.f32 %v2984, %v3758
  %v4319 = vadd.f32 %v2985, %v3763
  %v4320 = vadd.f32 %v2986, %v3768
  %v4321 = vadd.f32 %v2987, %v3773
  %v4322 = vadd.f32 %v2988, %v3778
  %v4323 = vadd.f32 %v2989, %v3783
  %v4324 = vadd.f32 %v2990, %v3788
  %v4325 = vadd.f32 %v2991, %v3793
  %v4326 = vadd.f32 %v2992, %v3798
  %v4327 = vadd.f32 %v2993, %v3803
  %v4328 = vadd.f32 %v2994, %v3808
  %v4329 = vadd.f32 %v2995, %v3813
  %v4330 = vadd.f32 %v2996, %v3818
  %v4331 = vadd.f32 %v2997, %v3823
  %v4332 = vadd.f32 %v2998, %v3828
  %v4333 = vadd.f32 %v2999, %v3833
  %v4334 = vadd.f32 %v3000, %v3838
  %v4335 = vadd.f32 %v3001, %v3843
  %v4336 = vadd.f32 %v3002, %v3848
  %v4337 = vadd.f32 %v3003, %v3853
  %v4338 = vadd.f32 %v3004, %v3858
  %v4339 = vadd.f32 %v3005, %v3863
  %v4340 = vadd.f32 %v3006, %v3868
  %v4341 = vadd.f32 %v3007, %v3873
  %v4342 = vadd.f32 %v3008, %v3878
  %v4343 = vadd.f32 %v3009, %v3883
  %v4344 = vadd.f32 %v3010, %v3888
  %v4345 = vadd.f32 %v3011, %v3893
  %v4346 = vadd.f32 %v3012, %v3898
  %v4347 = vadd.f32 %v3013, %v3903
  %v4348 = vadd.f32 %v3014, %v3908
  %v4349 = vadd.f32 %v3015, %v3913
  %v4350 = vadd.f32 %v3016, %v3918
  %v4351 = vadd.f32 %v3017, %v3923
  %v4352 = vadd.f32 %v3018, %v3928
  %v4353 = vadd.f32 %v3019, %v3933
  %v4354 = vadd.f32 %v3020, %v3938
  %v4355 = vadd.f32 %v3021, %v3943
  %v4356 = vadd.f32 %v3022, %v3948
  %v4357 = vadd.f32 %v3023, %v3953
  %v4358 = vadd.f32 %v3024, %v3958
  %v4359 = vadd.f32 %v3025, %v3963
  %v4360 = vadd.f32 %v3026, %v3968
  %v4361 = vadd.f32 %v3027, %v3973
  %v4362 = vadd.f32 %v3028, %v3978
  %v4363 = vadd.f32 %v3029, %v3983
  %v4364 = vadd.f32 %v3030, %v3988
  %v4365 = vadd.f32 %v3031, %v3993
  %v4366 = vadd.f32 %v3032, %v3998
  %v4367 = vadd.f32 %v3033, %v4003
  %v4368 = vadd.f32 %v3034, %v4008
  %v4369 = vadd.f32 %v3035, %v4013
  %v4370 = vadd.f32 %v3036, %v4018
  %v4371 = vadd.f32 %v3037, %v4023
  %v4372 = vadd.f32 %v3038, %v4028
  %v4373 = vadd.f32 %v3039, %v4033
  %v4374 = vadd.f32 %v3040, %v4038
  %v4375 = vadd.f32 %v3041, %v4043
  %v4376 = vadd.f32 %v3042, %v4048
  %v4377 = vadd.f32 %v3043, %v4053
  %v4378 = vadd.f32 %v3044, %v4058
  %v4379 = vadd.f32 %v3045, %v4063
  %v4380 = vadd.f32 %v3046, %v4068
  %v4381 = vadd.f32 %v3047, %v4073
  %v4382 = vadd.f32 %v3048, %v4078
  %v4383 = vadd.f32 %v3049, %v4083
  %v4384 = vadd.f32 %v3050, %v4088
  %v4385 = vadd.f32 %v3051, %v4093
  %v4386 = vadd.f32 %v3052, %v4098
  %v4387 = vadd.f32 %v3053, %v4103
  %v4388 = vadd.f32 %v3054, %v4108
  %v4389 = vadd.f32 %v3055, %v4113
  %v4390 = vadd.f32 %v3056, %v4118
  %v4391 = vadd.f32 %v3057, %v4123
  %v4392 = vadd.f32 %v3058, %v4128
  %v4393 = vadd.f32 %v3059, %v4133
  %v4394 = vadd.f32 %v3060, %v4138
  %v4395 = vadd.f32 %v3061, %v4143
  %v4396 = vadd.f32 %v3062, %v4148
  %v4397 = vadd.f32 %v3063, %v4153
  %v4398 = vadd.f32 %v3064, %v4158
  %v4399 = vadd.f32 %v3065, %v4163
  %v4400 = vadd.f32 %v3066, %v4168
  %v4401 = vadd.f32 %v3067, %v4173
  %v4402 = vadd.f32 %v3068, %v4178
  %v4403 = vadd.f32 %v3069, %v4183
  %v4404 = vadd.f32 %v3070, %v4188
  %v4405 = vadd.f32 %v3071, %v4193
  %v4406 = vadd.f32 %v3072, %v4198
  %v4407 = vadd.f32 %v3073, %v4203
  %v4408 = vadd.f32 %v3074, %v4208
  %v4409 = vadd.f32 %v3075, %v4213
  %v4410 = vadd.f32 %v3076, %v4218
  %v4411 = vadd.f32 %v3077, %v4223
  %v4412 = vadd.f32 %v3078, %v4228
  %v4413 = vadd.f32 %v3079, %v4233
  %v4414 = vadd.f32 %v3080, %v4238
  %v4415 = vadd.f32 %v3081, %v4243
  %v4416 = vadd.f32 %v3082, %v4248
  %v4417 = vadd.f32 %v3083, %v4253
  %v4418 = vadd.f32 %v3084, %v4258
  %v4419 = vadd.f32 %v3085, %v4263
  %v4420 = vadd.f32 %v3086, %v4268
  %v4421 = vadd.f32 %v3087, %v4273
  %v4422 = vadd.f32 %v3088, %v4278
  %v4423 = vadd.f32 %v3089, %v4283
  %v4424 = vadd.f32 %v3090, %v4288
  %v4425 = vadd.f32 %v3091, %v4293
  %v4426 = vadd.f32 %v3092, %v4298
  %v4427 = vmax.f32 %v4301, 0.0
  %v4428 = vmax.f32 %v4302, 0.0
  %v4429 = vmax.f32 %v4303, 0.0
  %v4430 = vmax.f32 %v4304, 0.0
  %v4431 = vmax.f32 %v4305, 0.0
  %v4432 = vmax.f32 %v4306, 0.0
  %v4433 = vmax.f32 %v4307, 0.0
  %v4434 = vmax.f32 %v4308, 0.0
  %v4435 = vmax.f32 %v4309, 0.0
  %v4436 = vmax.f32 %v4310, 0.0
  %v4437 = vmax.f32 %v4311, 0.0
  %v4438 = vmax.f32 %v4312, 0.0
  %v4439 = vmax.f32 %v4313, 0.0
  %v4440 = vmax.f32 %v4314, 0.0
  %v4441 = vmax.f32 %v4315, 0.0
  %v4442 = vmax.f32 %v4316, 0.0
  %v4443 = vmax.f32 %v4317, 0.0
  %v4444 = vmax.f32 %v4318, 0.0
  %v4445 = vmax.f32 %v4319, 0.0
  %v4446 = vmax.f32 %v4320, 0.0
  %v4447 = vmax.f32 %v4321, 0.0
  %v4448 = vmax.f32 %v4322, 0.0
  %v4449 = vmax.f32 %v4323, 0.0
  %v4450 = vmax.f32 %v4324, 0.0
  %v4451 = vmax.f32 %v4325, 0.0
  %v4452 = vmax.f32 %v4326, 0.0
  %v4453 = vmax.f32 %v4327, 0.0
  %v4454 = vmax.f32 %v4328, 0.0
  %v4455 = vmax.f32 %v4329, 0.0
  %v4456 = vmax.f32 %v4330, 0.0
  %v4457 = vmax.f32 %v4331, 0.0
  %v4458 = vmax.f32 %v4332, 0.0
  %v4459 = vmax.f32 %v4333, 0.0
  %v4460 = vmax.f32 %v4334, 0.0
  %v4461 = vmax.f32 %v4335, 0.0
  %v4462 = vmax.f32 %v4336, 0.0
  %v4463 = vmax.f32 %v4337, 0.0
  %v4464 = vmax.f32 %v4338, 0.0
  %v4465 = vmax.f32 %v4339, 0.0
  %v4466 = vmax.f32 %v4340, 0.0
  %v4467 = vmax.f32 %v4341, 0.0
  %v4468 = vmax.f32 %v4342, 0.0
  %v4469 = vmax.f32 %v4343, 0.0
  %v4470 = vmax.f32 %v4344, 0.0
  %v4471 = vmax.f32 %v4345, 0.0
  %v4472 = vmax.f32 %v4346, 0.0
  %v4473 = vmax.f32 %v4347, 0.0
  %v4474 = vmax.f32 %v4348, 0.0
  %v4475 = vmax.f32 %v4349, 0.0
  %v4476 = vmax.f32 %v4350, 0.0
  %v4477 = vmax.f32 %v4351, 0.0
  %v4478 = vmax.f32 %v4352, 0.0
  %v4479 = vmax.f32 %v4353, 0.0
  %v4480 = vmax.f32 %v4354, 0.0
  %v4481 = vmax.f32 %v4355, 0.0
  %v4482 = vmax.f32 %v4356, 0.0
  %v4483 = vmax.f32 %v4357, 0.0
  %v4484 = vmax.f32 %v4358, 0.0
  %v4485 = vmax.f32 %v4359, 0.0
  %v4486 = vmax.f32 %v4360, 0.0
  %v4487 = vmax.f32 %v4361, 0.0
  %v4488 = vmax.f32 %v4362, 0.0
  %v4489 = vmax.f32 %v4363, 0.0
  %v4490 = vmax.f32 %v4364, 0.0
  %v4491 = vmax.f32 %v4365, 0.0
  %v4492 = vmax.f32 %v4366, 0.0
  %v4493 = vmax.f32 %v4367, 0.0
  %v4494 = vmax.f32 %v4368, 0.0
  %v4495 = vmax.f32 %v4369, 0.0
  %v4496 = vmax.f32 %v4370, 0.0
  %v4497 = vmax.f32 %v4371, 0.0
  %v4498 = vmax.f32 %v4372, 0.0
  %v4499 = vmax.f32 %v4373, 0.0
  %v4500 = vmax.f32 %v4374, 0.0
  %v4501 = vmax.f32 %v4375, 0.0
  %v4502 = vmax.f32 %v4376, 0.0
  %v4503 = vmax.f32 %v4377, 0.0
  %v4504 = vmax.f32 %v4378, 0.0
  %v4505 = vmax.f32 %v4379, 0.0
  %v4506 = vmax.f32 %v4380, 0.0
  %v4507 = vmax.f32 %v4381, 0.0
  %v4508 = vmax.f32 %v4382, 0.0
  %v4509 = vmax.f32 %v4383, 0.0
  %v4510 = vmax.f32 %v4384, 0.0
  %v4511 = vmax.f32 %v4385, 0.0
  %v4512 = vmax.f32 %v4386, 0.0
  %v4513 = vmax.f32 %v4387, 0.0
  %v4514 = vmax.f32 %v4388, 0.0
  %v4515 = vmax.f32 %v4389, 0.0
  %v4516 = vmax.f32 %v4390, 0.0
  %v4517 = vmax.f32 %v4391, 0.0
  %v4518 = vmax.f32 %v4392, 0.0
  %v4519 = vmax.f32 %v4393, 0.0
  %v4520 = vmax.f32 %v4394, 0.0
  %v4521 = vmax.f32 %v4395, 0.0
  %v4522 = vmax.f32 %v4396, 0.0
  %v4523 = vmax.f32 %v4397, 0.0
  %v4524 = vmax.f32 %v4398, 0.0
  %v4525 = vmax.f32 %v4399, 0.0
  %v4526 = vmax.f32 %v4400, 0.0
  %v4527 = vmax.f32 %v4401, 0.0
  %v4528 = vmax.f32 %v4402, 0.0
  %v4529 = vmax.f32 %v4403, 0.0
  %v4530 = vmax.f32 %v4404, 0.0
  %v4531 = vmax.f32 %v4405, 0.0
  %v4532 = vmax.f32 %v4406, 0.0
  %v4533 = vmax.f32 %v4407, 0.0
  %v4534 = vmax.f32 %v4408, 0.0
  %v4535 = vmax.f32 %v4409, 0.0
  %v4536 = vmax.f32 %v4410, 0.0
  %v4537 = vmax.f32 %v4411, 0.0
  %v4538 = vmax.f32 %v4412, 0.0
  %v4539 = vmax.f32 %v4413, 0.0
  %v4540 = vmax.f32 %v4414, 0.0
  %v4541 = vmax.f32 %v4415, 0.0
  %v4542 = vmax.f32 %v4416, 0.0
  %v4543 = vmax.f32 %v4417, 0.0
  %v4544 = vmax.f32 %v4418, 0.0
  %v4545 = vmax.f32 %v4419, 0.0
  %v4546 = vmax.f32 %v4420, 0.0
  %v4547 = vmax.f32 %v4421, 0.0
  %v4548 = vmax.f32 %v4422, 0.0
  %v4549 = vmax.f32 %v4423, 0.0
  %v4550 = vmax.f32 %v4424, 0.0
  %v4551 = vmax.f32 %v4425, 0.0
  %v4552 = vmax.f32 %v4426, 0.0
  %vm4553 = vcmask 261120
  %4554 = vst.msk [vmem:[#allocation3] sm:$0xff] %vm4553, %v4427
  %4555 = vst.msk [vmem:[#allocation3 + $0x8] sm:$0xff] %vm4553, %v4428
  %4556 = vst.msk [vmem:[#allocation3 + $0x10] sm:$0xff] %vm4553, %v4429
  %4557 = vst.msk [vmem:[#allocation3 + $0x18] sm:$0xff] %vm4553, %v4430
  %4558 = vst.msk [vmem:[#allocation3 + $0x20] sm:$0xff] %vm4553, %v4431
  %4559 = vst.msk [vmem:[#allocation3 + $0x28] sm:$0xff] %vm4553, %v4432
  %4560 = vst.msk [vmem:[#allocation3 + $0x30] sm:$0xff] %vm4553, %v4433
  %4561 = vst.msk [vmem:[#allocation3 + $0x38] sm:$0xff] %vm4553, %v4434
  %4562 = vst.msk [vmem:[#allocation3 + $0x40] sm:$0xff] %vm4553, %v4435
  %4563 = vst.msk [vmem:[#allocation3 + $0x48] sm:$0xff] %vm4553, %v4436
  %4564 = vst.msk [vmem:[#allocation3 + $0x50] sm:$0xff] %vm4553, %v4437
  %4565 = vst.msk [vmem:[#allocation3 + $0x58] sm:$0xff] %vm4553, %v4438
  %4566 = vst.msk [vmem:[#allocation3 + $0x60] sm:$0xff] %vm4553, %v4439
  %4567 = vst.msk [vmem:[#allocation3 + $0x68] sm:$0xff] %vm4553, %v4440
  %4568 = vst.msk [vmem:[#allocation3 + $0x70] sm:$0xff] %vm4553, %v4441
  %4569 = vst.msk [vmem:[#allocation3 + $0x78] sm:$0xff] %vm4553, %v4442
  %4570 = vst.msk [vmem:[#allocation3 + $0x80] sm:$0xff] %vm4553, %v4443
  %4571 = vst.msk [vmem:[#allocation3 + $0x88] sm:$0xff] %vm4553, %v4444
  %4572 = vst.msk [vmem:[#allocation3 + $0x90] sm:$0xff] %vm4553, %v4445
  %4573 = vst.msk [vmem:[#allocation3 + $0x98] sm:$0xff] %vm4553, %v4446
  %4574 = vst.msk [vmem:[#allocation3 + $0xa0] sm:$0xff] %vm4553, %v4447
  %4575 = vst.msk [vmem:[#allocation3 + $0xa8] sm:$0xff] %vm4553, %v4448
  %4576 = vst.msk [vmem:[#allocation3 + $0xb0] sm:$0xff] %vm4553, %v4449
  %4577 = vst.msk [vmem:[#allocation3 + $0xb8] sm:$0xff] %vm4553, %v4450
  %4578 = vst.msk [vmem:[#allocation3 + $0xc0] sm:$0xff] %vm4553, %v4451
  %4579 = vst.msk [vmem:[#allocation3 + $0xc8] sm:$0xff] %vm4553, %v4452
  %4580 = vst.msk [vmem:[#allocation3 + $0xd0] sm:$0xff] %vm4553, %v4453
  %4581 = vst.msk [vmem:[#allocation3 + $0xd8] sm:$0xff] %vm4553, %v4454
  %4582 = vst.msk [vmem:[#allocation3 + $0xe0] sm:$0xff] %vm4553, %v4455
  %4583 = vst.msk [vmem:[#allocation3 + $0xe8] sm:$0xff] %vm4553, %v4456
  %4584 = vst.msk [vmem:[#allocation3 + $0xf0] sm:$0xff] %vm4553, %v4457
  %4585 = vst.msk [vmem:[#allocation3 + $0xf8] sm:$0xff] %vm4553, %v4458
  %4586 = vst.msk [vmem:[#allocation3 + $0x100] sm:$0xff] %vm4553, %v4459
  %4587 = vst.msk [vmem:[#allocation3 + $0x108] sm:$0xff] %vm4553, %v4460
  %4588 = vst.msk [vmem:[#allocation3 + $0x110] sm:$0xff] %vm4553, %v4461
  %4589 = vst.msk [vmem:[#allocation3 + $0x118] sm:$0xff] %vm4553, %v4462
  %4590 = vst.msk [vmem:[#allocation3 + $0x120] sm:$0xff] %vm4553, %v4463
  %4591 = vst.msk [vmem:[#allocation3 + $0x128] sm:$0xff] %vm4553, %v4464
  %4592 = vst.msk [vmem:[#allocation3 + $0x130] sm:$0xff] %vm4553, %v4465
  %4593 = vst.msk [vmem:[#allocation3 + $0x138] sm:$0xff] %vm4553, %v4466
  %4594 = vst.msk [vmem:[#allocation3 + $0x140] sm:$0xff] %vm4553, %v4467
  %4595 = vst.msk [vmem:[#allocation3 + $0x148] sm:$0xff] %vm4553, %v4468
  %4596 = vst.msk [vmem:[#allocation3 + $0x150] sm:$0xff] %vm4553, %v4469
  %4597 = vst.msk [vmem:[#allocation3 + $0x158] sm:$0xff] %vm4553, %v4470
  %4598 = vst.msk [vmem:[#allocation3 + $0x160] sm:$0xff] %vm4553, %v4471
  %4599 = vst.msk [vmem:[#allocation3 + $0x168] sm:$0xff] %vm4553, %v4472
  %4600 = vst.msk [vmem:[#allocation3 + $0x170] sm:$0xff] %vm4553, %v4473
  %4601 = vst.msk [vmem:[#allocation3 + $0x178] sm:$0xff] %vm4553, %v4474
  %4602 = vst.msk [vmem:[#allocation3 + $0x180] sm:$0xff] %vm4553, %v4475
  %4603 = vst.msk [vmem:[#allocation3 + $0x188] sm:$0xff] %vm4553, %v4476
  %4604 = vst.msk [vmem:[#allocation3 + $0x190] sm:$0xff] %vm4553, %v4477
  %4605 = vst.msk [vmem:[#allocation3 + $0x198] sm:$0xff] %vm4553, %v4478
  %4606 = vst.msk [vmem:[#allocation3 + $0x1a0] sm:$0xff] %vm4553, %v4479
  %4607 = vst.msk [vmem:[#allocation3 + $0x1a8] sm:$0xff] %vm4553, %v4480
  %4608 = vst.msk [vmem:[#allocation3 + $0x1b0] sm:$0xff] %vm4553, %v4481
  %4609 = vst.msk [vmem:[#allocation3 + $0x1b8] sm:$0xff] %vm4553, %v4482
  %4610 = vst.msk [vmem:[#allocation3 + $0x1c0] sm:$0xff] %vm4553, %v4483
  %4611 = vst.msk [vmem:[#allocation3 + $0x1c8] sm:$0xff] %vm4553, %v4484
  %4612 = vst.msk [vmem:[#allocation3 + $0x1d0] sm:$0xff] %vm4553, %v4485
  %4613 = vst.msk [vmem:[#allocation3 + $0x1d8] sm:$0xff] %vm4553, %v4486
  %4614 = vst.msk [vmem:[#allocation3 + $0x1e0] sm:$0xff] %vm4553, %v4487
  %4615 = vst.msk [vmem:[#allocation3 + $0x1e8] sm:$0xff] %vm4553, %v4488
  %4616 = vst.msk [vmem:[#allocation3 + $0x1f0] sm:$0xff] %vm4553, %v4489
  %4617 = vst.msk [vmem:[#allocation3 + $0x1f8] sm:$0xff] %vm4553, %v4490
  %4618 = vst.msk [vmem:[#allocation3 + $0x200] sm:$0xff] %vm4553, %v4491
  %4619 = vst.msk [vmem:[#allocation3 + $0x208] sm:$0xff] %vm4553, %v4492
  %4620 = vst.msk [vmem:[#allocation3 + $0x210] sm:$0xff] %vm4553, %v4493
  %4621 = vst.msk [vmem:[#allocation3 + $0x218] sm:$0xff] %vm4553, %v4494
  %4622 = vst.msk [vmem:[#allocation3 + $0x220] sm:$0xff] %vm4553, %v4495
  %4623 = vst.msk [vmem:[#allocation3 + $0x228] sm:$0xff] %vm4553, %v4496
  %4624 = vst.msk [vmem:[#allocation3 + $0x230] sm:$0xff] %vm4553, %v4497
  %4625 = vst.msk [vmem:[#allocation3 + $0x238] sm:$0xff] %vm4553, %v4498
  %4626 = vst.msk [vmem:[#allocation3 + $0x240] sm:$0xff] %vm4553, %v4499
  %4627 = vst.msk [vmem:[#allocation3 + $0x248] sm:$0xff] %vm4553, %v4500
  %4628 = vst.msk [vmem:[#allocation3 + $0x250] sm:$0xff] %vm4553, %v4501
  %4629 = vst.msk [vmem:[#allocation3 + $0x258] sm:$0xff] %vm4553, %v4502
  %4630 = vst.msk [vmem:[#allocation3 + $0x260] sm:$0xff] %vm4553, %v4503
  %4631 = vst.msk [vmem:[#allocation3 + $0x268] sm:$0xff] %vm4553, %v4504
  %4632 = vst.msk [vmem:[#allocation3 + $0x270] sm:$0xff] %vm4553, %v4505
  %4633 = vst.msk [vmem:[#allocation3 + $0x278] sm:$0xff] %vm4553, %v4506
  %4634 = vst.msk [vmem:[#allocation3 + $0x280] sm:$0xff] %vm4553, %v4507
  %4635 = vst.msk [vmem:[#allocation3 + $0x288] sm:$0xff] %vm4553, %v4508
  %4636 = vst.msk [vmem:[#allocation3 + $0x290] sm:$0xff] %vm4553, %v4509
  %4637 = vst.msk [vmem:[#allocation3 + $0x298] sm:$0xff] %vm4553, %v4510
  %4638 = vst.msk [vmem:[#allocation3 + $0x2a0] sm:$0xff] %vm4553, %v4511
  %4639 = vst.msk [vmem:[#allocation3 + $0x2a8] sm:$0xff] %vm4553, %v4512
  %4640 = vst.msk [vmem:[#allocation3 + $0x2b0] sm:$0xff] %vm4553, %v4513
  %4641 = vst.msk [vmem:[#allocation3 + $0x2b8] sm:$0xff] %vm4553, %v4514
  %4642 = vst.msk [vmem:[#allocation3 + $0x2c0] sm:$0xff] %vm4553, %v4515
  %4643 = vst.msk [vmem:[#allocation3 + $0x2c8] sm:$0xff] %vm4553, %v4516
  %4644 = vst.msk [vmem:[#allocation3 + $0x2d0] sm:$0xff] %vm4553, %v4517
  %4645 = vst.msk [vmem:[#allocation3 + $0x2d8] sm:$0xff] %vm4553, %v4518
  %4646 = vst.msk [vmem:[#allocation3 + $0x2e0] sm:$0xff] %vm4553, %v4519
  %4647 = vst.msk [vmem:[#allocation3 + $0x2e8] sm:$0xff] %vm4553, %v4520
  %4648 = vst.msk [vmem:[#allocation3 + $0x2f0] sm:$0xff] %vm4553, %v4521
  %4649 = vst.msk [vmem:[#allocation3 + $0x2f8] sm:$0xff] %vm4553, %v4522
  %4650 = vst.msk [vmem:[#allocation3 + $0x300] sm:$0xff] %vm4553, %v4523
  %4651 = vst.msk [vmem:[#allocation3 + $0x308] sm:$0xff] %vm4553, %v4524
  %4652 = vst.msk [vmem:[#allocation3 + $0x310] sm:$0xff] %vm4553, %v4525
  %4653 = vst.msk [vmem:[#allocation3 + $0x318] sm:$0xff] %vm4553, %v4526
  %4654 = vst.msk [vmem:[#allocation3 + $0x320] sm:$0xff] %vm4553, %v4527
  %4655 = vst.msk [vmem:[#allocation3 + $0x328] sm:$0xff] %vm4553, %v4528
  %4656 = vst.msk [vmem:[#allocation3 + $0x330] sm:$0xff] %vm4553, %v4529
  %4657 = vst.msk [vmem:[#allocation3 + $0x338] sm:$0xff] %vm4553, %v4530
  %4658 = vst.msk [vmem:[#allocation3 + $0x340] sm:$0xff] %vm4553, %v4531
  %4659 = vst.msk [vmem:[#allocation3 + $0x348] sm:$0xff] %vm4553, %v4532
  %4660 = vst.msk [vmem:[#allocation3 + $0x350] sm:$0xff] %vm4553, %v4533
  %4661 = vst.msk [vmem:[#allocation3 + $0x358] sm:$0xff] %vm4553, %v4534
  %4662 = vst.msk [vmem:[#allocation3 + $0x360] sm:$0xff] %vm4553, %v4535
  %4663 = vst.msk [vmem:[#allocation3 + $0x368] sm:$0xff] %vm4553, %v4536
  %4664 = vst.msk [vmem:[#allocation3 + $0x370] sm:$0xff] %vm4553, %v4537
  %4665 = vst.msk [vmem:[#allocation3 + $0x378] sm:$0xff] %vm4553, %v4538
  %4666 = vst.msk [vmem:[#allocation3 + $0x380] sm:$0xff] %vm4553, %v4539
  %4667 = vst.msk [vmem:[#allocation3 + $0x388] sm:$0xff] %vm4553, %v4540
  %4668 = vst.msk [vmem:[#allocation3 + $0x390] sm:$0xff] %vm4553, %v4541
  %4669 = vst.msk [vmem:[#allocation3 + $0x398] sm:$0xff] %vm4553, %v4542
  %4670 = vst.msk [vmem:[#allocation3 + $0x3a0] sm:$0xff] %vm4553, %v4543
  %4671 = vst.msk [vmem:[#allocation3 + $0x3a8] sm:$0xff] %vm4553, %v4544
  %4672 = vst.msk [vmem:[#allocation3 + $0x3b0] sm:$0xff] %vm4553, %v4545
  %4673 = vst.msk [vmem:[#allocation3 + $0x3b8] sm:$0xff] %vm4553, %v4546
  %4674 = vst.msk [vmem:[#allocation3 + $0x3c0] sm:$0xff] %vm4553, %v4547
  %4675 = vst.msk [vmem:[#allocation3 + $0x3c8] sm:$0xff] %vm4553, %v4548
  %4676 = vst.msk [vmem:[#allocation3 + $0x3d0] sm:$0xff] %vm4553, %v4549
  %4677 = vst.msk [vmem:[#allocation3 + $0x3d8] sm:$0xff] %vm4553, %v4550
  %4678 = vst.msk [vmem:[#allocation3 + $0x3e0] sm:$0xff] %vm4553, %v4551
  %vm4679 = vcmask 257024
  %4680 = vst.msk [vmem:[#allocation3 + $0x3e8] sm:$0xf] %vm4679, %v4552
  %v4681 = vld [vmem:[#allocation3] ss:$4 sm:$0xff]
  %s4682 = scalar_lea.vmem [#allocation3], 32
  %v4683 = vld [vmem:[%s4682] ss:$4 sm:$0xff]
  %s4684 = scalar_lea.vmem [#allocation3], 64
  %v4685 = vld [vmem:[%s4684] ss:$4 sm:$0xff]
  %s4686 = scalar_lea.vmem [#allocation3], 96
  %v4687 = vld [vmem:[%s4686] ss:$4 sm:$0xff]
  %s4688 = scalar_lea.vmem [#allocation3], 128
  %v4689 = vld [vmem:[%s4688] ss:$4 sm:$0xff]
  %s4690 = scalar_lea.vmem [#allocation3], 160
  %v4691 = vld [vmem:[%s4690] ss:$4 sm:$0xff]
  %s4692 = scalar_lea.vmem [#allocation3], 192
  %v4693 = vld [vmem:[%s4692] ss:$4 sm:$0xff]
  %s4694 = scalar_lea.vmem [#allocation3], 224
  %v4695 = vld [vmem:[%s4694] ss:$4 sm:$0xff]
  %s4696 = scalar_lea.vmem [#allocation3], 256
  %v4697 = vld [vmem:[%s4696] ss:$4 sm:$0xff]
  %s4698 = scalar_lea.vmem [#allocation3], 288
  %v4699 = vld [vmem:[%s4698] ss:$4 sm:$0xff]
  %s4700 = scalar_lea.vmem [#allocation3], 320
  %v4701 = vld [vmem:[%s4700] ss:$4 sm:$0xff]
  %s4702 = scalar_lea.vmem [#allocation3], 352
  %v4703 = vld [vmem:[%s4702] ss:$4 sm:$0xff]
  %s4704 = scalar_lea.vmem [#allocation3], 384
  %v4705 = vld [vmem:[%s4704] ss:$4 sm:$0xff]
  %s4706 = scalar_lea.vmem [#allocation3], 416
  %v4707 = vld [vmem:[%s4706] ss:$4 sm:$0xff]
  %s4708 = scalar_lea.vmem [#allocation3], 448
  %v4709 = vld [vmem:[%s4708] ss:$4 sm:$0xff]
  %s4710 = scalar_lea.vmem [#allocation3], 480
  %v4711 = vld [vmem:[%s4710] ss:$4 sm:$0x1f]
  %s4712 = scalar_lea.vmem [#allocation3], 1
  %v4713 = vld [vmem:[%s4712] ss:$4 sm:$0xff]
  %s4714 = scalar_lea.vmem [#allocation3], 33
  %v4715 = vld [vmem:[%s4714] ss:$4 sm:$0xff]
  %s4716 = scalar_lea.vmem [#allocation3], 65
  %v4717 = vld [vmem:[%s4716] ss:$4 sm:$0xff]
  %s4718 = scalar_lea.vmem [#allocation3], 97
  %v4719 = vld [vmem:[%s4718] ss:$4 sm:$0xff]
  %s4720 = scalar_lea.vmem [#allocation3], 129
  %v4721 = vld [vmem:[%s4720] ss:$4 sm:$0xff]
  %s4722 = scalar_lea.vmem [#allocation3], 161
  %v4723 = vld [vmem:[%s4722] ss:$4 sm:$0xff]
  %s4724 = scalar_lea.vmem [#allocation3], 193
  %v4725 = vld [vmem:[%s4724] ss:$4 sm:$0xff]
  %s4726 = scalar_lea.vmem [#allocation3], 225
  %v4727 = vld [vmem:[%s4726] ss:$4 sm:$0xff]
  %s4728 = scalar_lea.vmem [#allocation3], 257
  %v4729 = vld [vmem:[%s4728] ss:$4 sm:$0xff]
  %s4730 = scalar_lea.vmem [#allocation3], 289
  %v4731 = vld [vmem:[%s4730] ss:$4 sm:$0xff]
  %s4732 = scalar_lea.vmem [#allocation3], 321
  %v4733 = vld [vmem:[%s4732] ss:$4 sm:$0xff]
  %s4734 = scalar_lea.vmem [#allocation3], 353
  %v4735 = vld [vmem:[%s4734] ss:$4 sm:$0xff]
  %s4736 = scalar_lea.vmem [#allocation3], 385
  %v4737 = vld [vmem:[%s4736] ss:$4 sm:$0xff]
  %s4738 = scalar_lea.vmem [#allocation3], 417
  %v4739 = vld [vmem:[%s4738] ss:$4 sm:$0xff]
  %s4740 = scalar_lea.vmem [#allocation3], 449
  %v4741 = vld [vmem:[%s4740] ss:$4 sm:$0xff]
  %s4742 = scalar_lea.vmem [#allocation3], 481
  %v4743 = vld [vmem:[%s4742] ss:$4 sm:$0x1f]
  %v4744 = vmax.f32 %v4681, %v4713
  %v4745 = vmax.f32 %v4683, %v4715
  %v4746 = vmax.f32 %v4685, %v4717
  %v4747 = vmax.f32 %v4687, %v4719
  %v4748 = vmax.f32 %v4689, %v4721
  %v4749 = vmax.f32 %v4691, %v4723
  %v4750 = vmax.f32 %v4693, %v4725
  %v4751 = vmax.f32 %v4695, %v4727
  %v4752 = vmax.f32 %v4697, %v4729
  %v4753 = vmax.f32 %v4699, %v4731
  %v4754 = vmax.f32 %v4701, %v4733
  %v4755 = vmax.f32 %v4703, %v4735
  %v4756 = vmax.f32 %v4705, %v4737
  %v4757 = vmax.f32 %v4707, %v4739
  %v4758 = vmax.f32 %v4709, %v4741
  %v4759 = vmax.f32 %v4711, %v4743
  %s4760 = scalar_lea.vmem [#allocation3], 2
  %v4761 = vld [vmem:[%s4760] ss:$4 sm:$0xff]
  %s4762 = scalar_lea.vmem [#allocation3], 34
  %v4763 = vld [vmem:[%s4762] ss:$4 sm:$0xff]
  %s4764 = scalar_lea.vmem [#allocation3], 66
  %v4765 = vld [vmem:[%s4764] ss:$4 sm:$0xff]
  %s4766 = scalar_lea.vmem [#allocation3], 98
  %v4767 = vld [vmem:[%s4766] ss:$4 sm:$0xff]
  %s4768 = scalar_lea.vmem [#allocation3], 130
  %v4769 = vld [vmem:[%s4768] ss:$4 sm:$0xff]
  %s4770 = scalar_lea.vmem [#allocation3], 162
  %v4771 = vld [vmem:[%s4770] ss:$4 sm:$0xff]
  %s4772 = scalar_lea.vmem [#allocation3], 194
  %v4773 = vld [vmem:[%s4772] ss:$4 sm:$0xff]
  %s4774 = scalar_lea.vmem [#allocation3], 226
  %v4775 = vld [vmem:[%s4774] ss:$4 sm:$0xff]
  %s4776 = scalar_lea.vmem [#allocation3], 258
  %v4777 = vld [vmem:[%s4776] ss:$4 sm:$0xff]
  %s4778 = scalar_lea.vmem [#allocation3], 290
  %v4779 = vld [vmem:[%s4778] ss:$4 sm:$0xff]
  %s4780 = scalar_lea.vmem [#allocation3], 322
  %v4781 = vld [vmem:[%s4780] ss:$4 sm:$0xff]
  %s4782 = scalar_lea.vmem [#allocation3], 354
  %v4783 = vld [vmem:[%s4782] ss:$4 sm:$0xff]
  %s4784 = scalar_lea.vmem [#allocation3], 386
  %v4785 = vld [vmem:[%s4784] ss:$4 sm:$0xff]
  %s4786 = scalar_lea.vmem [#allocation3], 418
  %v4787 = vld [vmem:[%s4786] ss:$4 sm:$0xff]
  %s4788 = scalar_lea.vmem [#allocation3], 450
  %v4789 = vld [vmem:[%s4788] ss:$4 sm:$0xff]
  %s4790 = scalar_lea.vmem [#allocation3], 482
  %v4791 = vld [vmem:[%s4790] ss:$4 sm:$0x1f]
  %v4792 = vmax.f32 %v4744, %v4761
  %v4793 = vmax.f32 %v4745, %v4763
  %v4794 = vmax.f32 %v4746, %v4765
  %v4795 = vmax.f32 %v4747, %v4767
  %v4796 = vmax.f32 %v4748, %v4769
  %v4797 = vmax.f32 %v4749, %v4771
  %v4798 = vmax.f32 %v4750, %v4773
  %v4799 = vmax.f32 %v4751, %v4775
  %v4800 = vmax.f32 %v4752, %v4777
  %v4801 = vmax.f32 %v4753, %v4779
  %v4802 = vmax.f32 %v4754, %v4781
  %v4803 = vmax.f32 %v4755, %v4783
  %v4804 = vmax.f32 %v4756, %v4785
  %v4805 = vmax.f32 %v4757, %v4787
  %v4806 = vmax.f32 %v4758, %v4789
  %v4807 = vmax.f32 %v4759, %v4791
  %s4808 = scalar_lea.vmem [#allocation3], 3
  %v4809 = vld [vmem:[%s4808] ss:$4 sm:$0xff]
  %s4810 = scalar_lea.vmem [#allocation3], 35
  %v4811 = vld [vmem:[%s4810] ss:$4 sm:$0xff]
  %s4812 = scalar_lea.vmem [#allocation3], 67
  %v4813 = vld [vmem:[%s4812] ss:$4 sm:$0xff]
  %s4814 = scalar_lea.vmem [#allocation3], 99
  %v4815 = vld [vmem:[%s4814] ss:$4 sm:$0xff]
  %s4816 = scalar_lea.vmem [#allocation3], 131
  %v4817 = vld [vmem:[%s4816] ss:$4 sm:$0xff]
  %s4818 = scalar_lea.vmem [#allocation3], 163
  %v4819 = vld [vmem:[%s4818] ss:$4 sm:$0xff]
  %s4820 = scalar_lea.vmem [#allocation3], 195
  %v4821 = vld [vmem:[%s4820] ss:$4 sm:$0xff]
  %s4822 = scalar_lea.vmem [#allocation3], 227
  %v4823 = vld [vmem:[%s4822] ss:$4 sm:$0xff]
  %s4824 = scalar_lea.vmem [#allocation3], 259
  %v4825 = vld [vmem:[%s4824] ss:$4 sm:$0xff]
  %s4826 = scalar_lea.vmem [#allocation3], 291
  %v4827 = vld [vmem:[%s4826] ss:$4 sm:$0xff]
  %s4828 = scalar_lea.vmem [#allocation3], 323
  %v4829 = vld [vmem:[%s4828] ss:$4 sm:$0xff]
  %s4830 = scalar_lea.vmem [#allocation3], 355
  %v4831 = vld [vmem:[%s4830] ss:$4 sm:$0xff]
  %s4832 = scalar_lea.vmem [#allocation3], 387
  %v4833 = vld [vmem:[%s4832] ss:$4 sm:$0xff]
  %s4834 = scalar_lea.vmem [#allocation3], 419
  %v4835 = vld [vmem:[%s4834] ss:$4 sm:$0xff]
  %s4836 = scalar_lea.vmem [#allocation3], 451
  %v4837 = vld [vmem:[%s4836] ss:$4 sm:$0xff]
  %s4838 = scalar_lea.vmem [#allocation3], 483
  %v4839 = vld [vmem:[%s4838] ss:$4 sm:$0x1f]
  %v4840 = vmax.f32 %v4792, %v4809
  %v4841 = vmax.f32 %v4793, %v4811
  %v4842 = vmax.f32 %v4794, %v4813
  %v4843 = vmax.f32 %v4795, %v4815
  %v4844 = vmax.f32 %v4796, %v4817
  %v4845 = vmax.f32 %v4797, %v4819
  %v4846 = vmax.f32 %v4798, %v4821
  %v4847 = vmax.f32 %v4799, %v4823
  %v4848 = vmax.f32 %v4800, %v4825
  %v4849 = vmax.f32 %v4801, %v4827
  %v4850 = vmax.f32 %v4802, %v4829
  %v4851 = vmax.f32 %v4803, %v4831
  %v4852 = vmax.f32 %v4804, %v4833
  %v4853 = vmax.f32 %v4805, %v4835
  %v4854 = vmax.f32 %v4806, %v4837
  %v4855 = vmax.f32 %v4807, %v4839
  %v4856 = vld [vmem:[%s3] sm:$0xff]
  %v4857 = vld [vmem:[%s3 + $0x8] sm:$0xff]
  %v4858 = vld [vmem:[%s3 + $0x10] sm:$0xff]
  %v4859 = vld [vmem:[%s3 + $0x18] sm:$0xff]
  %v4860 = vld [vmem:[%s3 + $0x20] sm:$0xff]
  %v4861 = vld [vmem:[%s3 + $0x28] sm:$0xff]
  %v4862 = vld [vmem:[%s3 + $0x30] sm:$0xff]
  %v4863 = vld [vmem:[%s3 + $0x38] sm:$0xff]
  %v4864 = vld [vmem:[%s3 + $0x40] sm:$0xff]
  %v4865 = vld [vmem:[%s3 + $0x48] sm:$0xff]
  %v4866 = vld [vmem:[%s3 + $0x50] sm:$0xff]
  %v4867 = vld [vmem:[%s3 + $0x58] sm:$0xff]
  %v4868 = vld [vmem:[%s3 + $0x60] sm:$0xff]
  %v4869 = vld [vmem:[%s3 + $0x68] sm:$0xff]
  %v4870 = vld [vmem:[%s3 + $0x70] sm:$0xff]
  %v4871 = vld [vmem:[%s3 + $0x78] sm:$0xff]
  %v4872 = vld [vmem:[%s3 + $0x80] sm:$0xff]
  %v4873 = vld [vmem:[%s3 + $0x88] sm:$0xff]
  %v4874 = vld [vmem:[%s3 + $0x90] sm:$0xff]
  %v4875 = vld [vmem:[%s3 + $0x98] sm:$0xff]
  %v4876 = vld [vmem:[%s3 + $0xa0] sm:$0xff]
  %v4877 = vld [vmem:[%s3 + $0xa8] sm:$0xff]
  %v4878 = vld [vmem:[%s3 + $0xb0] sm:$0xff]
  %v4879 = vld [vmem:[%s3 + $0xb8] sm:$0xff]
  %v4880 = vld [vmem:[%s3 + $0xc0] sm:$0xff]
  %v4881 = vld [vmem:[%s3 + $0xc8] sm:$0xff]
  %v4882 = vld [vmem:[%s3 + $0xd0] sm:$0xff]
  %v4883 = vld [vmem:[%s3 + $0xd8] sm:$0xff]
  %v4884 = vld [vmem:[%s3 + $0xe0] sm:$0xff]
  %v4885 = vld [vmem:[%s3 + $0xe8] sm:$0xff]
  %v4886 = vld [vmem:[%s3 + $0xf0] sm:$0xff]
  %v4887 = vld [vmem:[%s3 + $0xf8] sm:$0xff]
  %v4888 = vld [vmem:[%s5] sm:$0xff]
  %v4889 = vld [vmem:[%s5 + $0x8] sm:$0xff]
  %v4890 = vld [vmem:[%s5 + $0x10] sm:$0xff]
  %v4891 = vld [vmem:[%s5 + $0x18] sm:$0xff]
  %v4892 = vld [vmem:[%s5 + $0x20] sm:$0xff]
  %v4893 = vld [vmem:[%s5 + $0x28] sm:$0xff]
  %v4894 = vld [vmem:[%s5 + $0x30] sm:$0xff]
  %v4895 = vld [vmem:[%s5 + $0x38] sm:$0xff]
  %v4896 = vld [vmem:[%s5 + $0x40] sm:$0xff]
  %v4897 = vld [vmem:[%s5 + $0x48] sm:$0xff]
  %v4898 = vld [vmem:[%s5 + $0x50] sm:$0xff]
  %v4899 = vld [vmem:[%s5 + $0x58] sm:$0xff]
  %v4900 = vld [vmem:[%s5 + $0x60] sm:$0xff]
  %v4901 = vld [vmem:[%s5 + $0x68] sm:$0xff]
  %v4902 = vld [vmem:[%s5 + $0x70] sm:$0xff]
  %v4903 = vld [vmem:[%s5 + $0x78] sm:$0xff]
  %v4904 = vld [vmem:[%s5 + $0x80] sm:$0xff]
  %v4905 = vld [vmem:[%s5 + $0x88] sm:$0xff]
  %v4906 = vld [vmem:[%s5 + $0x90] sm:$0xff]
  %v4907 = vld [vmem:[%s5 + $0x98] sm:$0xff]
  %v4908 = vld [vmem:[%s5 + $0xa0] sm:$0xff]
  %v4909 = vld [vmem:[%s5 + $0xa8] sm:$0xff]
  %v4910 = vld [vmem:[%s5 + $0xb0] sm:$0xff]
  %v4911 = vld [vmem:[%s5 + $0xb8] sm:$0xff]
  %v4912 = vld [vmem:[%s5 + $0xc0] sm:$0xff]
  %v4913 = vld [vmem:[%s5 + $0xc8] sm:$0xff]
  %v4914 = vld [vmem:[%s5 + $0xd0] sm:$0xff]
  %v4915 = vld [vmem:[%s5 + $0xd8] sm:$0xff]
  %v4916 = vld [vmem:[%s5 + $0xe0] sm:$0xff]
  %v4917 = vld [vmem:[%s5 + $0xe8] sm:$0xff]
  %v4918 = vld [vmem:[%s5 + $0xf0] sm:$0xff]
  %v4919 = vld [vmem:[%s5 + $0xf8] sm:$0xff]
  %4921 = vset.pattern.permute.xlu0 0
  %4922 = vperm.xlu0 %4921, %v4888
  %v4923 = vpop.permute.xlu0 %4922
  %4926 = vset.pattern.permute.xlu0 0
  %4927 = vperm.xlu0 %4926, %v4889
  %v4928 = vpop.permute.xlu0 %4927
  %4931 = vset.pattern.permute.xlu0 0
  %4932 = vperm.xlu0 %4931, %v4890
  %v4933 = vpop.permute.xlu0 %4932
  %4936 = vset.pattern.permute.xlu0 0
  %4937 = vperm.xlu0 %4936, %v4891
  %v4938 = vpop.permute.xlu0 %4937
  %4941 = vset.pattern.permute.xlu0 0
  %4942 = vperm.xlu0 %4941, %v4892
  %v4943 = vpop.permute.xlu0 %4942
  %4946 = vset.pattern.permute.xlu0 0
  %4947 = vperm.xlu0 %4946, %v4893
  %v4948 = vpop.permute.xlu0 %4947
  %4951 = vset.pattern.permute.xlu0 0
  %4952 = vperm.xlu0 %4951, %v4894
  %v4953 = vpop.permute.xlu0 %4952
  %4956 = vset.pattern.permute.xlu0 0
  %4957 = vperm.xlu0 %4956, %v4895
  %v4958 = vpop.permute.xlu0 %4957
  %4961 = vset.pattern.permute.xlu0 0
  %4962 = vperm.xlu0 %4961, %v4896
  %v4963 = vpop.permute.xlu0 %4962
  %4966 = vset.pattern.permute.xlu0 0
  %4967 = vperm.xlu0 %4966, %v4897
  %v4968 = vpop.permute.xlu0 %4967
  %4971 = vset.pattern.permute.xlu0 0
  %4972 = vperm.xlu0 %4971, %v4898
  %v4973 = vpop.permute.xlu0 %4972
  %4976 = vset.pattern.permute.xlu0 0
  %4977 = vperm.xlu0 %4976, %v4899
  %v4978 = vpop.permute.xlu0 %4977
  %4981 = vset.pattern.permute.xlu0 0
  %4982 = vperm.xlu0 %4981, %v4900
  %v4983 = vpop.permute.xlu0 %4982
  %4986 = vset.pattern.permute.xlu0 0
  %4987 = vperm.xlu0 %4986, %v4901
  %v4988 = vpop.permute.xlu0 %4987
  %4991 = vset.pattern.permute.xlu0 0
  %4992 = vperm.xlu0 %4991, %v4902
  %v4993 = vpop.permute.xlu0 %4992
  %4996 = vset.pattern.permute.xlu0 0
  %4997 = vperm.xlu0 %4996, %v4903
  %v4998 = vpop.permute.xlu0 %4997
  %5001 = vset.pattern.permute.xlu0 0
  %5002 = vperm.xlu0 %5001, %v4904
  %v5003 = vpop.permute.xlu0 %5002
  %5006 = vset.pattern.permute.xlu0 0
  %5007 = vperm.xlu0 %5006, %v4905
  %v5008 = vpop.permute.xlu0 %5007
  %5011 = vset.pattern.permute.xlu0 0
  %5012 = vperm.xlu0 %5011, %v4906
  %v5013 = vpop.permute.xlu0 %5012
  %5016 = vset.pattern.permute.xlu0 0
  %5017 = vperm.xlu0 %5016, %v4907
  %v5018 = vpop.permute.xlu0 %5017
  %5021 = vset.pattern.permute.xlu0 0
  %5022 = vperm.xlu0 %5021, %v4908
  %v5023 = vpop.permute.xlu0 %5022
  %5026 = vset.pattern.permute.xlu0 0
  %5027 = vperm.xlu0 %5026, %v4909
  %v5028 = vpop.permute.xlu0 %5027
  %5031 = vset.pattern.permute.xlu0 0
  %5032 = vperm.xlu0 %5031, %v4910
  %v5033 = vpop.permute.xlu0 %5032
  %5036 = vset.pattern.permute.xlu0 0
  %5037 = vperm.xlu0 %5036, %v4911
  %v5038 = vpop.permute.xlu0 %5037
  %5041 = vset.pattern.permute.xlu0 0
  %5042 = vperm.xlu0 %5041, %v4912
  %v5043 = vpop.permute.xlu0 %5042
  %5046 = vset.pattern.permute.xlu0 0
  %5047 = vperm.xlu0 %5046, %v4913
  %v5048 = vpop.permute.xlu0 %5047
  %5051 = vset.pattern.permute.xlu0 0
  %5052 = vperm.xlu0 %5051, %v4914
  %v5053 = vpop.permute.xlu0 %5052
  %5056 = vset.pattern.permute.xlu0 0
  %5057 = vperm.xlu0 %5056, %v4915
  %v5058 = vpop.permute.xlu0 %5057
  %5061 = vset.pattern.permute.xlu0 0
  %5062 = vperm.xlu0 %5061, %v4916
  %v5063 = vpop.permute.xlu0 %5062
  %5066 = vset.pattern.permute.xlu0 0
  %5067 = vperm.xlu0 %5066, %v4917
  %v5068 = vpop.permute.xlu0 %5067
  %5071 = vset.pattern.permute.xlu0 0
  %5072 = vperm.xlu0 %5071, %v4918
  %v5073 = vpop.permute.xlu0 %5072
  %5076 = vset.pattern.permute.xlu0 0
  %5077 = vperm.xlu0 %5076, %v4919
  %v5078 = vpop.permute.xlu0 %5077
  %vm5080 = vcmask 1022976
  %v5082 = vsel %vm5080, %v4856, 0
  %v5085 = vsel %vm5080, %v4857, 0
  %v5088 = vsel %vm5080, %v4858, 0
  %v5091 = vsel %vm5080, %v4859, 0
  %v5094 = vsel %vm5080, %v4860, 0
  %v5097 = vsel %vm5080, %v4861, 0
  %v5100 = vsel %vm5080, %v4862, 0
  %v5103 = vsel %vm5080, %v4863, 0
  %v5106 = vsel %vm5080, %v4864, 0
  %v5109 = vsel %vm5080, %v4865, 0
  %v5112 = vsel %vm5080, %v4866, 0
  %v5115 = vsel %vm5080, %v4867, 0
  %v5118 = vsel %vm5080, %v4868, 0
  %v5121 = vsel %vm5080, %v4869, 0
  %v5124 = vsel %vm5080, %v4870, 0
  %v5127 = vsel %vm5080, %v4871, 0
  %v5130 = vsel %vm5080, %v4872, 0
  %v5133 = vsel %vm5080, %v4873, 0
  %v5136 = vsel %vm5080, %v4874, 0
  %v5139 = vsel %vm5080, %v4875, 0
  %v5142 = vsel %vm5080, %v4876, 0
  %v5145 = vsel %vm5080, %v4877, 0
  %v5148 = vsel %vm5080, %v4878, 0
  %v5151 = vsel %vm5080, %v4879, 0
  %v5154 = vsel %vm5080, %v4880, 0
  %v5157 = vsel %vm5080, %v4881, 0
  %v5160 = vsel %vm5080, %v4882, 0
  %v5163 = vsel %vm5080, %v4883, 0
  %v5166 = vsel %vm5080, %v4884, 0
  %v5169 = vsel %vm5080, %v4885, 0
  %v5172 = vsel %vm5080, %v4886, 0
  %v5175 = vsel %vm5080, %v4887, 0
  %vm5177 = vcmask 1044480
  %v5179 = vsel %vm5177, %v4855, 0
  %5181 = vmatprep.subr.mxu0 0.0
  %5182 = vmatpush1.msra.mxu0 %v5179
  %5183 = vmatprep.subr.mxu0 0.0
  %5184 = vmatpush1.msra.mxu0 %v4854
  %5185 = vmatprep.subr.mxu0 0.0
  %5186 = vmatpush1.msra.mxu0 %v4853
  %5187 = vmatprep.subr.mxu0 0.0
  %5188 = vmatpush1.msra.mxu0 %v4852
  %5189 = vmatprep.subr.mxu0 0.0
  %5190 = vmatpush1.msra.mxu0 %v4851
  %5191 = vmatprep.subr.mxu0 0.0
  %5192 = vmatpush1.msra.mxu0 %v4850
  %5193 = vmatprep.subr.mxu0 0.0
  %5194 = vmatpush1.msra.mxu0 %v4849
  %5195 = vmatprep.subr.mxu0 0.0
  %5196 = vmatpush1.msra.mxu0 %v4848
  %5197 = vmatprep.subr.mxu0 0.0
  %5198 = vmatpush1.msra.mxu0 %v4847
  %5199 = vmatprep.subr.mxu0 0.0
  %5200 = vmatpush1.msra.mxu0 %v4846
  %5201 = vmatprep.subr.mxu0 0.0
  %5202 = vmatpush1.msra.mxu0 %v4845
  %5203 = vmatprep.subr.mxu0 0.0
  %5204 = vmatpush1.msra.mxu0 %v4844
  %5205 = vmatprep.subr.mxu0 0.0
  %5206 = vmatpush1.msra.mxu0 %v4843
  %5207 = vmatprep.subr.mxu0 0.0
  %5208 = vmatpush1.msra.mxu0 %v4842
  %5209 = vmatprep.subr.mxu0 0.0
  %5210 = vmatpush1.msra.mxu0 %v4841
  %5211 = vmatprep.subr.mxu0 0.0
  %5212 = vmatpush1.msra.mxu0 %v4840
  %5213 = vmatprep.subr.mxu0 0.0
  %5214 = vmatpush2.msra.mxu0 0.0
  %5215 = vmatprep.subr.mxu0 0.0
  %5216 = vmatpush2.msra.mxu0 0.0
  %5217 = vmatprep.subr.mxu0 0.0
  %5218 = vmatpush2.msra.mxu0 0.0
  %5219 = vmatprep.subr.mxu0 0.0
  %5220 = vmatpush2.msra.mxu0 0.0
  %5221 = vmatprep.subr.mxu0 0.0
  %5222 = vmatpush2.msra.mxu0 0.0
  %5223 = vmatprep.subr.mxu0 0.0
  %5224 = vmatpush2.msra.mxu0 0.0
  %5225 = vmatprep.subr.mxu0 0.0
  %5226 = vmatpush2.msra.mxu0 0.0
  %5227 = vmatprep.subr.mxu0 0.0
  %5228 = vmatpush2.msra.mxu0 0.0
  %5229 = vmatprep.subr.mxu0 0.0
  %5230 = vmatpush2.msra.mxu0 0.0
  %5231 = vmatprep.subr.mxu0 0.0
  %5232 = vmatpush2.msra.mxu0 0.0
  %5233 = vmatprep.subr.mxu0 0.0
  %5234 = vmatpush2.msra.mxu0 0.0
  %5235 = vmatprep.subr.mxu0 0.0
  %5236 = vmatpush2.msra.mxu0 0.0
  %5237 = vmatprep.subr.mxu0 0.0
  %5238 = vmatpush2.msra.mxu0 0.0
  %5239 = vmatprep.subr.mxu0 0.0
  %5240 = vmatpush2.msra.mxu0 0.0
  %5241 = vmatprep.subr.mxu0 0.0
  %5242 = vmatpush2.msra.mxu0 0.0
  %5243 = vmatprep.subr.mxu0 0.0
  %5244 = vmatpush2.msra.mxu0 0.0
  %5245 = vmatprep.mubr.f32.mxu0 0.0
  %5246 = vmatmul.mubr.f32.gmra.mxu0 %v5082
  %v5247 = vpop.f32.mrf.mxu0
  %v5248 = vadd.f32 %v4923, %v5247
  %v5249 = vpop.f32.mrf.mxu0
  %5250 = vmatprep.mubr.f32.mxu0 0.0
  %5251 = vmatmul.mubr.f32.gmra.mxu0 %v5085
  %v5252 = vpop.f32.mrf.mxu0
  %v5253 = vadd.f32 %v4928, %v5252
  %v5254 = vpop.f32.mrf.mxu0
  %5255 = vmatprep.mubr.f32.mxu0 0.0
  %5256 = vmatmul.mubr.f32.gmra.mxu0 %v5088
  %v5257 = vpop.f32.mrf.mxu0
  %v5258 = vadd.f32 %v4933, %v5257
  %v5259 = vpop.f32.mrf.mxu0
  %5260 = vmatprep.mubr.f32.mxu0 0.0
  %5261 = vmatmul.mubr.f32.gmra.mxu0 %v5091
  %v5262 = vpop.f32.mrf.mxu0
  %v5263 = vadd.f32 %v4938, %v5262
  %v5264 = vpop.f32.mrf.mxu0
  %5265 = vmatprep.mubr.f32.mxu0 0.0
  %5266 = vmatmul.mubr.f32.gmra.mxu0 %v5094
  %v5267 = vpop.f32.mrf.mxu0
  %v5268 = vadd.f32 %v4943, %v5267
  %v5269 = vpop.f32.mrf.mxu0
  %5270 = vmatprep.mubr.f32.mxu0 0.0
  %5271 = vmatmul.mubr.f32.gmra.mxu0 %v5097
  %v5272 = vpop.f32.mrf.mxu0
  %v5273 = vadd.f32 %v4948, %v5272
  %v5274 = vpop.f32.mrf.mxu0
  %5275 = vmatprep.mubr.f32.mxu0 0.0
  %5276 = vmatmul.mubr.f32.gmra.mxu0 %v5100
  %v5277 = vpop.f32.mrf.mxu0
  %v5278 = vadd.f32 %v4953, %v5277
  %v5279 = vpop.f32.mrf.mxu0
  %5280 = vmatprep.mubr.f32.mxu0 0.0
  %5281 = vmatmul.mubr.f32.gmra.mxu0 %v5103
  %v5282 = vpop.f32.mrf.mxu0
  %v5283 = vadd.f32 %v4958, %v5282
  %v5284 = vpop.f32.mrf.mxu0
  %5285 = vmatprep.mubr.f32.mxu0 0.0
  %5286 = vmatmul.mubr.f32.gmra.mxu0 %v5106
  %v5287 = vpop.f32.mrf.mxu0
  %v5288 = vadd.f32 %v4963, %v5287
  %v5289 = vpop.f32.mrf.mxu0
  %5290 = vmatprep.mubr.f32.mxu0 0.0
  %5291 = vmatmul.mubr.f32.gmra.mxu0 %v5109
  %v5292 = vpop.f32.mrf.mxu0
  %v5293 = vadd.f32 %v4968, %v5292
  %v5294 = vpop.f32.mrf.mxu0
  %5295 = vmatprep.mubr.f32.mxu0 0.0
  %5296 = vmatmul.mubr.f32.gmra.mxu0 %v5112
  %v5297 = vpop.f32.mrf.mxu0
  %v5298 = vadd.f32 %v4973, %v5297
  %v5299 = vpop.f32.mrf.mxu0
  %5300 = vmatprep.mubr.f32.mxu0 0.0
  %5301 = vmatmul.mubr.f32.gmra.mxu0 %v5115
  %v5302 = vpop.f32.mrf.mxu0
  %v5303 = vadd.f32 %v4978, %v5302
  %v5304 = vpop.f32.mrf.mxu0
  %5305 = vmatprep.mubr.f32.mxu0 0.0
  %5306 = vmatmul.mubr.f32.gmra.mxu0 %v5118
  %v5307 = vpop.f32.mrf.mxu0
  %v5308 = vadd.f32 %v4983, %v5307
  %v5309 = vpop.f32.mrf.mxu0
  %5310 = vmatprep.mubr.f32.mxu0 0.0
  %5311 = vmatmul.mubr.f32.gmra.mxu0 %v5121
  %v5312 = vpop.f32.mrf.mxu0
  %v5313 = vadd.f32 %v4988, %v5312
  %v5314 = vpop.f32.mrf.mxu0
  %5315 = vmatprep.mubr.f32.mxu0 0.0
  %5316 = vmatmul.mubr.f32.gmra.mxu0 %v5124
  %v5317 = vpop.f32.mrf.mxu0
  %v5318 = vadd.f32 %v4993, %v5317
  %v5319 = vpop.f32.mrf.mxu0
  %5320 = vmatprep.mubr.f32.mxu0 0.0
  %5321 = vmatmul.mubr.f32.gmra.mxu0 %v5127
  %v5322 = vpop.f32.mrf.mxu0
  %v5323 = vadd.f32 %v4998, %v5322
  %v5324 = vpop.f32.mrf.mxu0
  %5325 = vmatprep.mubr.f32.mxu0 0.0
  %5326 = vmatmul.mubr.f32.gmra.mxu0 %v5130
  %v5327 = vpop.f32.mrf.mxu0
  %v5328 = vadd.f32 %v5003, %v5327
  %v5329 = vpop.f32.mrf.mxu0
  %5330 = vmatprep.mubr.f32.mxu0 0.0
  %5331 = vmatmul.mubr.f32.gmra.mxu0 %v5133
  %v5332 = vpop.f32.mrf.mxu0
  %v5333 = vadd.f32 %v5008, %v5332
  %v5334 = vpop.f32.mrf.mxu0
  %5335 = vmatprep.mubr.f32.mxu0 0.0
  %5336 = vmatmul.mubr.f32.gmra.mxu0 %v5136
  %v5337 = vpop.f32.mrf.mxu0
  %v5338 = vadd.f32 %v5013, %v5337
  %v5339 = vpop.f32.mrf.mxu0
  %5340 = vmatprep.mubr.f32.mxu0 0.0
  %5341 = vmatmul.mubr.f32.gmra.mxu0 %v5139
  %v5342 = vpop.f32.mrf.mxu0
  %v5343 = vadd.f32 %v5018, %v5342
  %v5344 = vpop.f32.mrf.mxu0
  %5345 = vmatprep.mubr.f32.mxu0 0.0
  %5346 = vmatmul.mubr.f32.gmra.mxu0 %v5142
  %v5347 = vpop.f32.mrf.mxu0
  %v5348 = vadd.f32 %v5023, %v5347
  %v5349 = vpop.f32.mrf.mxu0
  %5350 = vmatprep.mubr.f32.mxu0 0.0
  %5351 = vmatmul.mubr.f32.gmra.mxu0 %v5145
  %v5352 = vpop.f32.mrf.mxu0
  %v5353 = vadd.f32 %v5028, %v5352
  %v5354 = vpop.f32.mrf.mxu0
  %5355 = vmatprep.mubr.f32.mxu0 0.0
  %5356 = vmatmul.mubr.f32.gmra.mxu0 %v5148
  %v5357 = vpop.f32.mrf.mxu0
  %v5358 = vadd.f32 %v5033, %v5357
  %v5359 = vpop.f32.mrf.mxu0
  %5360 = vmatprep.mubr.f32.mxu0 0.0
  %5361 = vmatmul.mubr.f32.gmra.mxu0 %v5151
  %v5362 = vpop.f32.mrf.mxu0
  %v5363 = vadd.f32 %v5038, %v5362
  %v5364 = vpop.f32.mrf.mxu0
  %5365 = vmatprep.mubr.f32.mxu0 0.0
  %5366 = vmatmul.mubr.f32.gmra.mxu0 %v5154
  %v5367 = vpop.f32.mrf.mxu0
  %v5368 = vadd.f32 %v5043, %v5367
  %v5369 = vpop.f32.mrf.mxu0
  %5370 = vmatprep.mubr.f32.mxu0 0.0
  %5371 = vmatmul.mubr.f32.gmra.mxu0 %v5157
  %v5372 = vpop.f32.mrf.mxu0
  %v5373 = vadd.f32 %v5048, %v5372
  %v5374 = vpop.f32.mrf.mxu0
  %5375 = vmatprep.mubr.f32.mxu0 0.0
  %5376 = vmatmul.mubr.f32.gmra.mxu0 %v5160
  %v5377 = vpop.f32.mrf.mxu0
  %v5378 = vadd.f32 %v5053, %v5377
  %v5379 = vpop.f32.mrf.mxu0
  %5380 = vmatprep.mubr.f32.mxu0 0.0
  %5381 = vmatmul.mubr.f32.gmra.mxu0 %v5163
  %v5382 = vpop.f32.mrf.mxu0
  %v5383 = vadd.f32 %v5058, %v5382
  %v5384 = vpop.f32.mrf.mxu0
  %5385 = vmatprep.mubr.f32.mxu0 0.0
  %5386 = vmatmul.mubr.f32.gmra.mxu0 %v5166
  %v5387 = vpop.f32.mrf.mxu0
  %v5388 = vadd.f32 %v5063, %v5387
  %v5389 = vpop.f32.mrf.mxu0
  %5390 = vmatprep.mubr.f32.mxu0 0.0
  %5391 = vmatmul.mubr.f32.gmra.mxu0 %v5169
  %v5392 = vpop.f32.mrf.mxu0
  %v5393 = vadd.f32 %v5068, %v5392
  %v5394 = vpop.f32.mrf.mxu0
  %5395 = vmatprep.mubr.f32.mxu0 0.0
  %5396 = vmatmul.mubr.f32.gmra.mxu0 %v5172
  %v5397 = vpop.f32.mrf.mxu0
  %v5398 = vadd.f32 %v5073, %v5397
  %v5399 = vpop.f32.mrf.mxu0
  %5400 = vmatprep.mubr.f32.mxu0 0.0
  %5401 = vmatmul.mubr.f32.gmra.mxu0 %v5175
  %v5402 = vpop.f32.mrf.mxu0
  %v5403 = vadd.f32 %v5078, %v5402
  %v5404 = vpop.f32.mrf.mxu0
  %5405 = vdwg.mxu0
  %5406 = vst.msk [vmem:[#allocation4] sm:$0xff] %vm4553, %v5248
  %5407 = vst.msk [vmem:[#allocation4 + $0x8] sm:$0xff] %vm4553, %v5253
  %5408 = vst.msk [vmem:[#allocation4 + $0x10] sm:$0xff] %vm4553, %v5258
  %5409 = vst.msk [vmem:[#allocation4 + $0x18] sm:$0xff] %vm4553, %v5263
  %5410 = vst.msk [vmem:[#allocation4 + $0x20] sm:$0xff] %vm4553, %v5268
  %5411 = vst.msk [vmem:[#allocation4 + $0x28] sm:$0xff] %vm4553, %v5273
  %5412 = vst.msk [vmem:[#allocation4 + $0x30] sm:$0xff] %vm4553, %v5278
  %5413 = vst.msk [vmem:[#allocation4 + $0x38] sm:$0xff] %vm4553, %v5283
  %5414 = vst.msk [vmem:[#allocation4 + $0x40] sm:$0xff] %vm4553, %v5288
  %5415 = vst.msk [vmem:[#allocation4 + $0x48] sm:$0xff] %vm4553, %v5293
  %5416 = vst.msk [vmem:[#allocation4 + $0x50] sm:$0xff] %vm4553, %v5298
  %5417 = vst.msk [vmem:[#allocation4 + $0x58] sm:$0xff] %vm4553, %v5303
  %5418 = vst.msk [vmem:[#allocation4 + $0x60] sm:$0xff] %vm4553, %v5308
  %5419 = vst.msk [vmem:[#allocation4 + $0x68] sm:$0xff] %vm4553, %v5313
  %5420 = vst.msk [vmem:[#allocation4 + $0x70] sm:$0xff] %vm4553, %v5318
  %5421 = vst.msk [vmem:[#allocation4 + $0x78] sm:$0xff] %vm4553, %v5323
  %5422 = vst.msk [vmem:[#allocation4 + $0x80] sm:$0xff] %vm4553, %v5328
  %5423 = vst.msk [vmem:[#allocation4 + $0x88] sm:$0xff] %vm4553, %v5333
  %5424 = vst.msk [vmem:[#allocation4 + $0x90] sm:$0xff] %vm4553, %v5338
  %5425 = vst.msk [vmem:[#allocation4 + $0x98] sm:$0xff] %vm4553, %v5343
  %5426 = vst.msk [vmem:[#allocation4 + $0xa0] sm:$0xff] %vm4553, %v5348
  %5427 = vst.msk [vmem:[#allocation4 + $0xa8] sm:$0xff] %vm4553, %v5353
  %5428 = vst.msk [vmem:[#allocation4 + $0xb0] sm:$0xff] %vm4553, %v5358
  %5429 = vst.msk [vmem:[#allocation4 + $0xb8] sm:$0xff] %vm4553, %v5363
  %5430 = vst.msk [vmem:[#allocation4 + $0xc0] sm:$0xff] %vm4553, %v5368
  %5431 = vst.msk [vmem:[#allocation4 + $0xc8] sm:$0xff] %vm4553, %v5373
  %5432 = vst.msk [vmem:[#allocation4 + $0xd0] sm:$0xff] %vm4553, %v5378
  %5433 = vst.msk [vmem:[#allocation4 + $0xd8] sm:$0xff] %vm4553, %v5383
  %5434 = vst.msk [vmem:[#allocation4 + $0xe0] sm:$0xff] %vm4553, %v5388
  %5435 = vst.msk [vmem:[#allocation4 + $0xe8] sm:$0xff] %vm4553, %v5393
  %5436 = vst.msk [vmem:[#allocation4 + $0xf0] sm:$0xff] %vm4553, %v5398
  %5437 = vst.msk [vmem:[#allocation4 + $0xf8] sm:$0xff] %vm4553, %v5403
  %s5438 = scalar_lea.vmem [#allocation3], 504
  %v5439 = vld [vmem:[%s5438] ss:$4 sm:$0xff]
  %s5440 = scalar_lea.vmem [#allocation3], 536
  %v5441 = vld [vmem:[%s5440] ss:$4 sm:$0xff]
  %s5442 = scalar_lea.vmem [#allocation3], 568
  %v5443 = vld [vmem:[%s5442] ss:$4 sm:$0xff]
  %s5444 = scalar_lea.vmem [#allocation3], 600
  %v5445 = vld [vmem:[%s5444] ss:$4 sm:$0xff]
  %s5446 = scalar_lea.vmem [#allocation3], 632
  %v5447 = vld [vmem:[%s5446] ss:$4 sm:$0xff]
  %s5448 = scalar_lea.vmem [#allocation3], 664
  %v5449 = vld [vmem:[%s5448] ss:$4 sm:$0xff]
  %s5450 = scalar_lea.vmem [#allocation3], 696
  %v5451 = vld [vmem:[%s5450] ss:$4 sm:$0xff]
  %s5452 = scalar_lea.vmem [#allocation3], 728
  %v5453 = vld [vmem:[%s5452] ss:$4 sm:$0xff]
  %s5454 = scalar_lea.vmem [#allocation3], 760
  %v5455 = vld [vmem:[%s5454] ss:$4 sm:$0xff]
  %s5456 = scalar_lea.vmem [#allocation3], 792
  %v5457 = vld [vmem:[%s5456] ss:$4 sm:$0xff]
  %s5458 = scalar_lea.vmem [#allocation3], 824
  %v5459 = vld [vmem:[%s5458] ss:$4 sm:$0xff]
  %s5460 = scalar_lea.vmem [#allocation3], 856
  %v5461 = vld [vmem:[%s5460] ss:$4 sm:$0xff]
  %s5462 = scalar_lea.vmem [#allocation3], 888
  %v5463 = vld [vmem:[%s5462] ss:$4 sm:$0xff]
  %s5464 = scalar_lea.vmem [#allocation3], 920
  %v5465 = vld [vmem:[%s5464] ss:$4 sm:$0xff]
  %s5466 = scalar_lea.vmem [#allocation3], 952
  %v5467 = vld [vmem:[%s5466] ss:$4 sm:$0xff]
  %s5468 = scalar_lea.vmem [#allocation3], 984
  %v5469 = vld [vmem:[%s5468] ss:$4 sm:$0x1f]
  %s5470 = scalar_lea.vmem [#allocation3], 505
  %v5471 = vld [vmem:[%s5470] ss:$4 sm:$0xff]
  %s5472 = scalar_lea.vmem [#allocation3], 537
  %v5473 = vld [vmem:[%s5472] ss:$4 sm:$0xff]
  %s5474 = scalar_lea.vmem [#allocation3], 569
  %v5475 = vld [vmem:[%s5474] ss:$4 sm:$0xff]
  %s5476 = scalar_lea.vmem [#allocation3], 601
  %v5477 = vld [vmem:[%s5476] ss:$4 sm:$0xff]
  %s5478 = scalar_lea.vmem [#allocation3], 633
  %v5479 = vld [vmem:[%s5478] ss:$4 sm:$0xff]
  %s5480 = scalar_lea.vmem [#allocation3], 665
  %v5481 = vld [vmem:[%s5480] ss:$4 sm:$0xff]
  %s5482 = scalar_lea.vmem [#allocation3], 697
  %v5483 = vld [vmem:[%s5482] ss:$4 sm:$0xff]
  %s5484 = scalar_lea.vmem [#allocation3], 729
  %v5485 = vld [vmem:[%s5484] ss:$4 sm:$0xff]
  %s5486 = scalar_lea.vmem [#allocation3], 761
  %v5487 = vld [vmem:[%s5486] ss:$4 sm:$0xff]
  %s5488 = scalar_lea.vmem [#allocation3], 793
  %v5489 = vld [vmem:[%s5488] ss:$4 sm:$0xff]
  %s5490 = scalar_lea.vmem [#allocation3], 825
  %v5491 = vld [vmem:[%s5490] ss:$4 sm:$0xff]
  %s5492 = scalar_lea.vmem [#allocation3], 857
  %v5493 = vld [vmem:[%s5492] ss:$4 sm:$0xff]
  %s5494 = scalar_lea.vmem [#allocation3], 889
  %v5495 = vld [vmem:[%s5494] ss:$4 sm:$0xff]
  %s5496 = scalar_lea.vmem [#allocation3], 921
  %v5497 = vld [vmem:[%s5496] ss:$4 sm:$0xff]
  %s5498 = scalar_lea.vmem [#allocation3], 953
  %v5499 = vld [vmem:[%s5498] ss:$4 sm:$0xff]
  %s5500 = scalar_lea.vmem [#allocation3], 985
  %v5501 = vld [vmem:[%s5500] ss:$4 sm:$0x1f]
  %v5502 = vmax.f32 %v5439, %v5471
  %v5503 = vmax.f32 %v5441, %v5473
  %v5504 = vmax.f32 %v5443, %v5475
  %v5505 = vmax.f32 %v5445, %v5477
  %v5506 = vmax.f32 %v5447, %v5479
  %v5507 = vmax.f32 %v5449, %v5481
  %v5508 = vmax.f32 %v5451, %v5483
  %v5509 = vmax.f32 %v5453, %v5485
  %v5510 = vmax.f32 %v5455, %v5487
  %v5511 = vmax.f32 %v5457, %v5489
  %v5512 = vmax.f32 %v5459, %v5491
  %v5513 = vmax.f32 %v5461, %v5493
  %v5514 = vmax.f32 %v5463, %v5495
  %v5515 = vmax.f32 %v5465, %v5497
  %v5516 = vmax.f32 %v5467, %v5499
  %v5517 = vmax.f32 %v5469, %v5501
  %s5518 = scalar_lea.vmem [#allocation3], 506
  %v5519 = vld [vmem:[%s5518] ss:$4 sm:$0xff]
  %s5520 = scalar_lea.vmem [#allocation3], 538
  %v5521 = vld [vmem:[%s5520] ss:$4 sm:$0xff]
  %s5522 = scalar_lea.vmem [#allocation3], 570
  %v5523 = vld [vmem:[%s5522] ss:$4 sm:$0xff]
  %s5524 = scalar_lea.vmem [#allocation3], 602
  %v5525 = vld [vmem:[%s5524] ss:$4 sm:$0xff]
  %s5526 = scalar_lea.vmem [#allocation3], 634
  %v5527 = vld [vmem:[%s5526] ss:$4 sm:$0xff]
  %s5528 = scalar_lea.vmem [#allocation3], 666
  %v5529 = vld [vmem:[%s5528] ss:$4 sm:$0xff]
  %s5530 = scalar_lea.vmem [#allocation3], 698
  %v5531 = vld [vmem:[%s5530] ss:$4 sm:$0xff]
  %s5532 = scalar_lea.vmem [#allocation3], 730
  %v5533 = vld [vmem:[%s5532] ss:$4 sm:$0xff]
  %s5534 = scalar_lea.vmem [#allocation3], 762
  %v5535 = vld [vmem:[%s5534] ss:$4 sm:$0xff]
  %s5536 = scalar_lea.vmem [#allocation3], 794
  %v5537 = vld [vmem:[%s5536] ss:$4 sm:$0xff]
  %s5538 = scalar_lea.vmem [#allocation3], 826
  %v5539 = vld [vmem:[%s5538] ss:$4 sm:$0xff]
  %s5540 = scalar_lea.vmem [#allocation3], 858
  %v5541 = vld [vmem:[%s5540] ss:$4 sm:$0xff]
  %s5542 = scalar_lea.vmem [#allocation3], 890
  %v5543 = vld [vmem:[%s5542] ss:$4 sm:$0xff]
  %s5544 = scalar_lea.vmem [#allocation3], 922
  %v5545 = vld [vmem:[%s5544] ss:$4 sm:$0xff]
  %s5546 = scalar_lea.vmem [#allocation3], 954
  %v5547 = vld [vmem:[%s5546] ss:$4 sm:$0xff]
  %s5548 = scalar_lea.vmem [#allocation3], 986
  %v5549 = vld [vmem:[%s5548] ss:$4 sm:$0x1f]
  %v5550 = vmax.f32 %v5502, %v5519
  %v5551 = vmax.f32 %v5503, %v5521
  %v5552 = vmax.f32 %v5504, %v5523
  %v5553 = vmax.f32 %v5505, %v5525
  %v5554 = vmax.f32 %v5506, %v5527
  %v5555 = vmax.f32 %v5507, %v5529
  %v5556 = vmax.f32 %v5508, %v5531
  %v5557 = vmax.f32 %v5509, %v5533
  %v5558 = vmax.f32 %v5510, %v5535
  %v5559 = vmax.f32 %v5511, %v5537
  %v5560 = vmax.f32 %v5512, %v5539
  %v5561 = vmax.f32 %v5513, %v5541
  %v5562 = vmax.f32 %v5514, %v5543
  %v5563 = vmax.f32 %v5515, %v5545
  %v5564 = vmax.f32 %v5516, %v5547
  %v5565 = vmax.f32 %v5517, %v5549
  %s5566 = scalar_lea.vmem [#allocation3], 507
  %v5567 = vld [vmem:[%s5566] ss:$4 sm:$0xff]
  %s5568 = scalar_lea.vmem [#allocation3], 539
  %v5569 = vld [vmem:[%s5568] ss:$4 sm:$0xff]
  %s5570 = scalar_lea.vmem [#allocation3], 571
  %v5571 = vld [vmem:[%s5570] ss:$4 sm:$0xff]
  %s5572 = scalar_lea.vmem [#allocation3], 603
  %v5573 = vld [vmem:[%s5572] ss:$4 sm:$0xff]
  %s5574 = scalar_lea.vmem [#allocation3], 635
  %v5575 = vld [vmem:[%s5574] ss:$4 sm:$0xff]
  %s5576 = scalar_lea.vmem [#allocation3], 667
  %v5577 = vld [vmem:[%s5576] ss:$4 sm:$0xff]
  %s5578 = scalar_lea.vmem [#allocation3], 699
  %v5579 = vld [vmem:[%s5578] ss:$4 sm:$0xff]
  %s5580 = scalar_lea.vmem [#allocation3], 731
  %v5581 = vld [vmem:[%s5580] ss:$4 sm:$0xff]
  %s5582 = scalar_lea.vmem [#allocation3], 763
  %v5583 = vld [vmem:[%s5582] ss:$4 sm:$0xff]
  %s5584 = scalar_lea.vmem [#allocation3], 795
  %v5585 = vld [vmem:[%s5584] ss:$4 sm:$0xff]
  %s5586 = scalar_lea.vmem [#allocation3], 827
  %v5587 = vld [vmem:[%s5586] ss:$4 sm:$0xff]
  %s5588 = scalar_lea.vmem [#allocation3], 859
  %v5589 = vld [vmem:[%s5588] ss:$4 sm:$0xff]
  %s5590 = scalar_lea.vmem [#allocation3], 891
  %v5591 = vld [vmem:[%s5590] ss:$4 sm:$0xff]
  %s5592 = scalar_lea.vmem [#allocation3], 923
  %v5593 = vld [vmem:[%s5592] ss:$4 sm:$0xff]
  %s5594 = scalar_lea.vmem [#allocation3], 955
  %v5595 = vld [vmem:[%s5594] ss:$4 sm:$0xff]
  %s5596 = scalar_lea.vmem [#allocation3], 987
  %v5597 = vld [vmem:[%s5596] ss:$4 sm:$0x1f]
  %v5598 = vmax.f32 %v5550, %v5567
  %v5599 = vmax.f32 %v5551, %v5569
  %v5600 = vmax.f32 %v5552, %v5571
  %v5601 = vmax.f32 %v5553, %v5573
  %v5602 = vmax.f32 %v5554, %v5575
  %v5603 = vmax.f32 %v5555, %v5577
  %v5604 = vmax.f32 %v5556, %v5579
  %v5605 = vmax.f32 %v5557, %v5581
  %v5606 = vmax.f32 %v5558, %v5583
  %v5607 = vmax.f32 %v5559, %v5585
  %v5608 = vmax.f32 %v5560, %v5587
  %v5609 = vmax.f32 %v5561, %v5589
  %v5610 = vmax.f32 %v5562, %v5591
  %v5611 = vmax.f32 %v5563, %v5593
  %v5612 = vmax.f32 %v5564, %v5595
  %v5613 = vmax.f32 %v5565, %v5597
  %v5614 = vld [vmem:[%s3] sm:$0xff]
  %v5615 = vld [vmem:[%s3 + $0x8] sm:$0xff]
  %v5616 = vld [vmem:[%s3 + $0x10] sm:$0xff]
  %v5617 = vld [vmem:[%s3 + $0x18] sm:$0xff]
  %v5618 = vld [vmem:[%s3 + $0x20] sm:$0xff]
  %v5619 = vld [vmem:[%s3 + $0x28] sm:$0xff]
  %v5620 = vld [vmem:[%s3 + $0x30] sm:$0xff]
  %v5621 = vld [vmem:[%s3 + $0x38] sm:$0xff]
  %v5622 = vld [vmem:[%s3 + $0x40] sm:$0xff]
  %v5623 = vld [vmem:[%s3 + $0x48] sm:$0xff]
  %v5624 = vld [vmem:[%s3 + $0x50] sm:$0xff]
  %v5625 = vld [vmem:[%s3 + $0x58] sm:$0xff]
  %v5626 = vld [vmem:[%s3 + $0x60] sm:$0xff]
  %v5627 = vld [vmem:[%s3 + $0x68] sm:$0xff]
  %v5628 = vld [vmem:[%s3 + $0x70] sm:$0xff]
  %v5629 = vld [vmem:[%s3 + $0x78] sm:$0xff]
  %v5630 = vld [vmem:[%s3 + $0x80] sm:$0xff]
  %v5631 = vld [vmem:[%s3 + $0x88] sm:$0xff]
  %v5632 = vld [vmem:[%s3 + $0x90] sm:$0xff]
  %v5633 = vld [vmem:[%s3 + $0x98] sm:$0xff]
  %v5634 = vld [vmem:[%s3 + $0xa0] sm:$0xff]
  %v5635 = vld [vmem:[%s3 + $0xa8] sm:$0xff]
  %v5636 = vld [vmem:[%s3 + $0xb0] sm:$0xff]
  %v5637 = vld [vmem:[%s3 + $0xb8] sm:$0xff]
  %v5638 = vld [vmem:[%s3 + $0xc0] sm:$0xff]
  %v5639 = vld [vmem:[%s3 + $0xc8] sm:$0xff]
  %v5640 = vld [vmem:[%s3 + $0xd0] sm:$0xff]
  %v5641 = vld [vmem:[%s3 + $0xd8] sm:$0xff]
  %v5642 = vld [vmem:[%s3 + $0xe0] sm:$0xff]
  %v5643 = vld [vmem:[%s3 + $0xe8] sm:$0xff]
  %v5644 = vld [vmem:[%s3 + $0xf0] sm:$0xff]
  %v5645 = vld [vmem:[%s3 + $0xf8] sm:$0xff]
  %v5646 = vld [vmem:[%s5] sm:$0xff]
  %v5647 = vld [vmem:[%s5 + $0x8] sm:$0xff]
  %v5648 = vld [vmem:[%s5 + $0x10] sm:$0xff]
  %v5649 = vld [vmem:[%s5 + $0x18] sm:$0xff]
  %v5650 = vld [vmem:[%s5 + $0x20] sm:$0xff]
  %v5651 = vld [vmem:[%s5 + $0x28] sm:$0xff]
  %v5652 = vld [vmem:[%s5 + $0x30] sm:$0xff]
  %v5653 = vld [vmem:[%s5 + $0x38] sm:$0xff]
  %v5654 = vld [vmem:[%s5 + $0x40] sm:$0xff]
  %v5655 = vld [vmem:[%s5 + $0x48] sm:$0xff]
  %v5656 = vld [vmem:[%s5 + $0x50] sm:$0xff]
  %v5657 = vld [vmem:[%s5 + $0x58] sm:$0xff]
  %v5658 = vld [vmem:[%s5 + $0x60] sm:$0xff]
  %v5659 = vld [vmem:[%s5 + $0x68] sm:$0xff]
  %v5660 = vld [vmem:[%s5 + $0x70] sm:$0xff]
  %v5661 = vld [vmem:[%s5 + $0x78] sm:$0xff]
  %v5662 = vld [vmem:[%s5 + $0x80] sm:$0xff]
  %v5663 = vld [vmem:[%s5 + $0x88] sm:$0xff]
  %v5664 = vld [vmem:[%s5 + $0x90] sm:$0xff]
  %v5665 = vld [vmem:[%s5 + $0x98] sm:$0xff]
  %v5666 = vld [vmem:[%s5 + $0xa0] sm:$0xff]
  %v5667 = vld [vmem:[%s5 + $0xa8] sm:$0xff]
  %v5668 = vld [vmem:[%s5 + $0xb0] sm:$0xff]
  %v5669 = vld [vmem:[%s5 + $0xb8] sm:$0xff]
  %v5670 = vld [vmem:[%s5 + $0xc0] sm:$0xff]
  %v5671 = vld [vmem:[%s5 + $0xc8] sm:$0xff]
  %v5672 = vld [vmem:[%s5 + $0xd0] sm:$0xff]
  %v5673 = vld [vmem:[%s5 + $0xd8] sm:$0xff]
  %v5674 = vld [vmem:[%s5 + $0xe0] sm:$0xff]
  %v5675 = vld [vmem:[%s5 + $0xe8] sm:$0xff]
  %v5676 = vld [vmem:[%s5 + $0xf0] sm:$0xff]
  %v5677 = vld [vmem:[%s5 + $0xf8] sm:$0xff]
  %5679 = vset.pattern.permute.xlu0 0
  %5680 = vperm.xlu0 %5679, %v5646
  %v5681 = vpop.permute.xlu0 %5680
  %5684 = vset.pattern.permute.xlu0 0
  %5685 = vperm.xlu0 %5684, %v5647
  %v5686 = vpop.permute.xlu0 %5685
  %5689 = vset.pattern.permute.xlu0 0
  %5690 = vperm.xlu0 %5689, %v5648
  %v5691 = vpop.permute.xlu0 %5690
  %5694 = vset.pattern.permute.xlu0 0
  %5695 = vperm.xlu0 %5694, %v5649
  %v5696 = vpop.permute.xlu0 %5695
  %5699 = vset.pattern.permute.xlu0 0
  %5700 = vperm.xlu0 %5699, %v5650
  %v5701 = vpop.permute.xlu0 %5700
  %5704 = vset.pattern.permute.xlu0 0
  %5705 = vperm.xlu0 %5704, %v5651
  %v5706 = vpop.permute.xlu0 %5705
  %5709 = vset.pattern.permute.xlu0 0
  %5710 = vperm.xlu0 %5709, %v5652
  %v5711 = vpop.permute.xlu0 %5710
  %5714 = vset.pattern.permute.xlu0 0
  %5715 = vperm.xlu0 %5714, %v5653
  %v5716 = vpop.permute.xlu0 %5715
  %5719 = vset.pattern.permute.xlu0 0
  %5720 = vperm.xlu0 %5719, %v5654
  %v5721 = vpop.permute.xlu0 %5720
  %5724 = vset.pattern.permute.xlu0 0
  %5725 = vperm.xlu0 %5724, %v5655
  %v5726 = vpop.permute.xlu0 %5725
  %5729 = vset.pattern.permute.xlu0 0
  %5730 = vperm.xlu0 %5729, %v5656
  %v5731 = vpop.permute.xlu0 %5730
  %5734 = vset.pattern.permute.xlu0 0
  %5735 = vperm.xlu0 %5734, %v5657
  %v5736 = vpop.permute.xlu0 %5735
  %5739 = vset.pattern.permute.xlu0 0
  %5740 = vperm.xlu0 %5739, %v5658
  %v5741 = vpop.permute.xlu0 %5740
  %5744 = vset.pattern.permute.xlu0 0
  %5745 = vperm.xlu0 %5744, %v5659
  %v5746 = vpop.permute.xlu0 %5745
  %5749 = vset.pattern.permute.xlu0 0
  %5750 = vperm.xlu0 %5749, %v5660
  %v5751 = vpop.permute.xlu0 %5750
  %5754 = vset.pattern.permute.xlu0 0
  %5755 = vperm.xlu0 %5754, %v5661
  %v5756 = vpop.permute.xlu0 %5755
  %5759 = vset.pattern.permute.xlu0 0
  %5760 = vperm.xlu0 %5759, %v5662
  %v5761 = vpop.permute.xlu0 %5760
  %5764 = vset.pattern.permute.xlu0 0
  %5765 = vperm.xlu0 %5764, %v5663
  %v5766 = vpop.permute.xlu0 %5765
  %5769 = vset.pattern.permute.xlu0 0
  %5770 = vperm.xlu0 %5769, %v5664
  %v5771 = vpop.permute.xlu0 %5770
  %5774 = vset.pattern.permute.xlu0 0
  %5775 = vperm.xlu0 %5774, %v5665
  %v5776 = vpop.permute.xlu0 %5775
  %5779 = vset.pattern.permute.xlu0 0
  %5780 = vperm.xlu0 %5779, %v5666
  %v5781 = vpop.permute.xlu0 %5780
  %5784 = vset.pattern.permute.xlu0 0
  %5785 = vperm.xlu0 %5784, %v5667
  %v5786 = vpop.permute.xlu0 %5785
  %5789 = vset.pattern.permute.xlu0 0
  %5790 = vperm.xlu0 %5789, %v5668
  %v5791 = vpop.permute.xlu0 %5790
  %5794 = vset.pattern.permute.xlu0 0
  %5795 = vperm.xlu0 %5794, %v5669
  %v5796 = vpop.permute.xlu0 %5795
  %5799 = vset.pattern.permute.xlu0 0
  %5800 = vperm.xlu0 %5799, %v5670
  %v5801 = vpop.permute.xlu0 %5800
  %5804 = vset.pattern.permute.xlu0 0
  %5805 = vperm.xlu0 %5804, %v5671
  %v5806 = vpop.permute.xlu0 %5805
  %5809 = vset.pattern.permute.xlu0 0
  %5810 = vperm.xlu0 %5809, %v5672
  %v5811 = vpop.permute.xlu0 %5810
  %5814 = vset.pattern.permute.xlu0 0
  %5815 = vperm.xlu0 %5814, %v5673
  %v5816 = vpop.permute.xlu0 %5815
  %5819 = vset.pattern.permute.xlu0 0
  %5820 = vperm.xlu0 %5819, %v5674
  %v5821 = vpop.permute.xlu0 %5820
  %5824 = vset.pattern.permute.xlu0 0
  %5825 = vperm.xlu0 %5824, %v5675
  %v5826 = vpop.permute.xlu0 %5825
  %5829 = vset.pattern.permute.xlu0 0
  %5830 = vperm.xlu0 %5829, %v5676
  %v5831 = vpop.permute.xlu0 %5830
  %5834 = vset.pattern.permute.xlu0 0
  %5835 = vperm.xlu0 %5834, %v5677
  %v5836 = vpop.permute.xlu0 %5835
  %v5839 = vsel %vm5080, %v5614, 0
  %v5842 = vsel %vm5080, %v5615, 0
  %v5845 = vsel %vm5080, %v5616, 0
  %v5848 = vsel %vm5080, %v5617, 0
  %v5851 = vsel %vm5080, %v5618, 0
  %v5854 = vsel %vm5080, %v5619, 0
  %v5857 = vsel %vm5080, %v5620, 0
  %v5860 = vsel %vm5080, %v5621, 0
  %v5863 = vsel %vm5080, %v5622, 0
  %v5866 = vsel %vm5080, %v5623, 0
  %v5869 = vsel %vm5080, %v5624, 0
  %v5872 = vsel %vm5080, %v5625, 0
  %v5875 = vsel %vm5080, %v5626, 0
  %v5878 = vsel %vm5080, %v5627, 0
  %v5881 = vsel %vm5080, %v5628, 0
  %v5884 = vsel %vm5080, %v5629, 0
  %v5887 = vsel %vm5080, %v5630, 0
  %v5890 = vsel %vm5080, %v5631, 0
  %v5893 = vsel %vm5080, %v5632, 0
  %v5896 = vsel %vm5080, %v5633, 0
  %v5899 = vsel %vm5080, %v5634, 0
  %v5902 = vsel %vm5080, %v5635, 0
  %v5905 = vsel %vm5080, %v5636, 0
  %v5908 = vsel %vm5080, %v5637, 0
  %v5911 = vsel %vm5080, %v5638, 0
  %v5914 = vsel %vm5080, %v5639, 0
  %v5917 = vsel %vm5080, %v5640, 0
  %v5920 = vsel %vm5080, %v5641, 0
  %v5923 = vsel %vm5080, %v5642, 0
  %v5926 = vsel %vm5080, %v5643, 0
  %v5929 = vsel %vm5080, %v5644, 0
  %v5932 = vsel %vm5080, %v5645, 0
  %v5935 = vsel %vm5177, %v5613, 0
  %5937 = vmatprep.subr.mxu0 0.0
  %5938 = vmatpush1.msra.mxu0 %v5935
  %5939 = vmatprep.subr.mxu0 0.0
  %5940 = vmatpush1.msra.mxu0 %v5612
  %5941 = vmatprep.subr.mxu0 0.0
  %5942 = vmatpush1.msra.mxu0 %v5611
  %5943 = vmatprep.subr.mxu0 0.0
  %5944 = vmatpush1.msra.mxu0 %v5610
  %5945 = vmatprep.subr.mxu0 0.0
  %5946 = vmatpush1.msra.mxu0 %v5609
  %5947 = vmatprep.subr.mxu0 0.0
  %5948 = vmatpush1.msra.mxu0 %v5608
  %5949 = vmatprep.subr.mxu0 0.0
  %5950 = vmatpush1.msra.mxu0 %v5607
  %5951 = vmatprep.subr.mxu0 0.0
  %5952 = vmatpush1.msra.mxu0 %v5606
  %5953 = vmatprep.subr.mxu0 0.0
  %5954 = vmatpush1.msra.mxu0 %v5605
  %5955 = vmatprep.subr.mxu0 0.0
  %5956 = vmatpush1.msra.mxu0 %v5604
  %5957 = vmatprep.subr.mxu0 0.0
  %5958 = vmatpush1.msra.mxu0 %v5603
  %5959 = vmatprep.subr.mxu0 0.0
  %5960 = vmatpush1.msra.mxu0 %v5602
  %5961 = vmatprep.subr.mxu0 0.0
  %5962 = vmatpush1.msra.mxu0 %v5601
  %5963 = vmatprep.subr.mxu0 0.0
  %5964 = vmatpush1.msra.mxu0 %v5600
  %5965 = vmatprep.subr.mxu0 0.0
  %5966 = vmatpush1.msra.mxu0 %v5599
  %5967 = vmatprep.subr.mxu0 0.0
  %5968 = vmatpush1.msra.mxu0 %v5598
  %5969 = vmatprep.subr.mxu0 0.0
  %5970 = vmatpush2.msra.mxu0 0.0
  %5971 = vmatprep.subr.mxu0 0.0
  %5972 = vmatpush2.msra.mxu0 0.0
  %5973 = vmatprep.subr.mxu0 0.0
  %5974 = vmatpush2.msra.mxu0 0.0
  %5975 = vmatprep.subr.mxu0 0.0
  %5976 = vmatpush2.msra.mxu0 0.0
  %5977 = vmatprep.subr.mxu0 0.0
  %5978 = vmatpush2.msra.mxu0 0.0
  %5979 = vmatprep.subr.mxu0 0.0
  %5980 = vmatpush2.msra.mxu0 0.0
  %5981 = vmatprep.subr.mxu0 0.0
  %5982 = vmatpush2.msra.mxu0 0.0
  %5983 = vmatprep.subr.mxu0 0.0
  %5984 = vmatpush2.msra.mxu0 0.0
  %5985 = vmatprep.subr.mxu0 0.0
  %5986 = vmatpush2.msra.mxu0 0.0
  %5987 = vmatprep.subr.mxu0 0.0
  %5988 = vmatpush2.msra.mxu0 0.0
  %5989 = vmatprep.subr.mxu0 0.0
  %5990 = vmatpush2.msra.mxu0 0.0
  %5991 = vmatprep.subr.mxu0 0.0
  %5992 = vmatpush2.msra.mxu0 0.0
  %5993 = vmatprep.subr.mxu0 0.0
  %5994 = vmatpush2.msra.mxu0 0.0
  %5995 = vmatprep.subr.mxu0 0.0
  %5996 = vmatpush2.msra.mxu0 0.0
  %5997 = vmatprep.subr.mxu0 0.0
  %5998 = vmatpush2.msra.mxu0 0.0
  %5999 = vmatprep.subr.mxu0 0.0
  %6000 = vmatpush2.msra.mxu0 0.0
  %6001 = vmatprep.mubr.f32.mxu0 0.0
  %6002 = vmatmul.mubr.f32.gmra.mxu0 %v5839
  %v6003 = vpop.f32.mrf.mxu0
  %v6004 = vadd.f32 %v5681, %v6003
  %v6005 = vpop.f32.mrf.mxu0
  %6006 = vmatprep.mubr.f32.mxu0 0.0
  %6007 = vmatmul.mubr.f32.gmra.mxu0 %v5842
  %v6008 = vpop.f32.mrf.mxu0
  %v6009 = vadd.f32 %v5686, %v6008
  %v6010 = vpop.f32.mrf.mxu0
  %6011 = vmatprep.mubr.f32.mxu0 0.0
  %6012 = vmatmul.mubr.f32.gmra.mxu0 %v5845
  %v6013 = vpop.f32.mrf.mxu0
  %v6014 = vadd.f32 %v5691, %v6013
  %v6015 = vpop.f32.mrf.mxu0
  %6016 = vmatprep.mubr.f32.mxu0 0.0
  %6017 = vmatmul.mubr.f32.gmra.mxu0 %v5848
  %v6018 = vpop.f32.mrf.mxu0
  %v6019 = vadd.f32 %v5696, %v6018
  %v6020 = vpop.f32.mrf.mxu0
  %6021 = vmatprep.mubr.f32.mxu0 0.0
  %6022 = vmatmul.mubr.f32.gmra.mxu0 %v5851
  %v6023 = vpop.f32.mrf.mxu0
  %v6024 = vadd.f32 %v5701, %v6023
  %v6025 = vpop.f32.mrf.mxu0
  %6026 = vmatprep.mubr.f32.mxu0 0.0
  %6027 = vmatmul.mubr.f32.gmra.mxu0 %v5854
  %v6028 = vpop.f32.mrf.mxu0
  %v6029 = vadd.f32 %v5706, %v6028
  %v6030 = vpop.f32.mrf.mxu0
  %6031 = vmatprep.mubr.f32.mxu0 0.0
  %6032 = vmatmul.mubr.f32.gmra.mxu0 %v5857
  %v6033 = vpop.f32.mrf.mxu0
  %v6034 = vadd.f32 %v5711, %v6033
  %v6035 = vpop.f32.mrf.mxu0
  %6036 = vmatprep.mubr.f32.mxu0 0.0
  %6037 = vmatmul.mubr.f32.gmra.mxu0 %v5860
  %v6038 = vpop.f32.mrf.mxu0
  %v6039 = vadd.f32 %v5716, %v6038
  %v6040 = vpop.f32.mrf.mxu0
  %6041 = vmatprep.mubr.f32.mxu0 0.0
  %6042 = vmatmul.mubr.f32.gmra.mxu0 %v5863
  %v6043 = vpop.f32.mrf.mxu0
  %v6044 = vadd.f32 %v5721, %v6043
  %v6045 = vpop.f32.mrf.mxu0
  %6046 = vmatprep.mubr.f32.mxu0 0.0
  %6047 = vmatmul.mubr.f32.gmra.mxu0 %v5866
  %v6048 = vpop.f32.mrf.mxu0
  %v6049 = vadd.f32 %v5726, %v6048
  %v6050 = vpop.f32.mrf.mxu0
  %6051 = vmatprep.mubr.f32.mxu0 0.0
  %6052 = vmatmul.mubr.f32.gmra.mxu0 %v5869
  %v6053 = vpop.f32.mrf.mxu0
  %v6054 = vadd.f32 %v5731, %v6053
  %v6055 = vpop.f32.mrf.mxu0
  %6056 = vmatprep.mubr.f32.mxu0 0.0
  %6057 = vmatmul.mubr.f32.gmra.mxu0 %v5872
  %v6058 = vpop.f32.mrf.mxu0
  %v6059 = vadd.f32 %v5736, %v6058
  %v6060 = vpop.f32.mrf.mxu0
  %6061 = vmatprep.mubr.f32.mxu0 0.0
  %6062 = vmatmul.mubr.f32.gmra.mxu0 %v5875
  %v6063 = vpop.f32.mrf.mxu0
  %v6064 = vadd.f32 %v5741, %v6063
  %v6065 = vpop.f32.mrf.mxu0
  %6066 = vmatprep.mubr.f32.mxu0 0.0
  %6067 = vmatmul.mubr.f32.gmra.mxu0 %v5878
  %v6068 = vpop.f32.mrf.mxu0
  %v6069 = vadd.f32 %v5746, %v6068
  %v6070 = vpop.f32.mrf.mxu0
  %6071 = vmatprep.mubr.f32.mxu0 0.0
  %6072 = vmatmul.mubr.f32.gmra.mxu0 %v5881
  %v6073 = vpop.f32.mrf.mxu0
  %v6074 = vadd.f32 %v5751, %v6073
  %v6075 = vpop.f32.mrf.mxu0
  %6076 = vmatprep.mubr.f32.mxu0 0.0
  %6077 = vmatmul.mubr.f32.gmra.mxu0 %v5884
  %v6078 = vpop.f32.mrf.mxu0
  %v6079 = vadd.f32 %v5756, %v6078
  %v6080 = vpop.f32.mrf.mxu0
  %6081 = vmatprep.mubr.f32.mxu0 0.0
  %6082 = vmatmul.mubr.f32.gmra.mxu0 %v5887
  %v6083 = vpop.f32.mrf.mxu0
  %v6084 = vadd.f32 %v5761, %v6083
  %v6085 = vpop.f32.mrf.mxu0
  %6086 = vmatprep.mubr.f32.mxu0 0.0
  %6087 = vmatmul.mubr.f32.gmra.mxu0 %v5890
  %v6088 = vpop.f32.mrf.mxu0
  %v6089 = vadd.f32 %v5766, %v6088
  %v6090 = vpop.f32.mrf.mxu0
  %6091 = vmatprep.mubr.f32.mxu0 0.0
  %6092 = vmatmul.mubr.f32.gmra.mxu0 %v5893
  %v6093 = vpop.f32.mrf.mxu0
  %v6094 = vadd.f32 %v5771, %v6093
  %v6095 = vpop.f32.mrf.mxu0
  %6096 = vmatprep.mubr.f32.mxu0 0.0
  %6097 = vmatmul.mubr.f32.gmra.mxu0 %v5896
  %v6098 = vpop.f32.mrf.mxu0
  %v6099 = vadd.f32 %v5776, %v6098
  %v6100 = vpop.f32.mrf.mxu0
  %6101 = vmatprep.mubr.f32.mxu0 0.0
  %6102 = vmatmul.mubr.f32.gmra.mxu0 %v5899
  %v6103 = vpop.f32.mrf.mxu0
  %v6104 = vadd.f32 %v5781, %v6103
  %v6105 = vpop.f32.mrf.mxu0
  %6106 = vmatprep.mubr.f32.mxu0 0.0
  %6107 = vmatmul.mubr.f32.gmra.mxu0 %v5902
  %v6108 = vpop.f32.mrf.mxu0
  %v6109 = vadd.f32 %v5786, %v6108
  %v6110 = vpop.f32.mrf.mxu0
  %6111 = vmatprep.mubr.f32.mxu0 0.0
  %6112 = vmatmul.mubr.f32.gmra.mxu0 %v5905
  %v6113 = vpop.f32.mrf.mxu0
  %v6114 = vadd.f32 %v5791, %v6113
  %v6115 = vpop.f32.mrf.mxu0
  %6116 = vmatprep.mubr.f32.mxu0 0.0
  %6117 = vmatmul.mubr.f32.gmra.mxu0 %v5908
  %v6118 = vpop.f32.mrf.mxu0
  %v6119 = vadd.f32 %v5796, %v6118
  %v6120 = vpop.f32.mrf.mxu0
  %6121 = vmatprep.mubr.f32.mxu0 0.0
  %6122 = vmatmul.mubr.f32.gmra.mxu0 %v5911
  %v6123 = vpop.f32.mrf.mxu0
  %v6124 = vadd.f32 %v5801, %v6123
  %v6125 = vpop.f32.mrf.mxu0
  %6126 = vmatprep.mubr.f32.mxu0 0.0
  %6127 = vmatmul.mubr.f32.gmra.mxu0 %v5914
  %v6128 = vpop.f32.mrf.mxu0
  %v6129 = vadd.f32 %v5806, %v6128
  %v6130 = vpop.f32.mrf.mxu0
  %6131 = vmatprep.mubr.f32.mxu0 0.0
  %6132 = vmatmul.mubr.f32.gmra.mxu0 %v5917
  %v6133 = vpop.f32.mrf.mxu0
  %v6134 = vadd.f32 %v5811, %v6133
  %v6135 = vpop.f32.mrf.mxu0
  %6136 = vmatprep.mubr.f32.mxu0 0.0
  %6137 = vmatmul.mubr.f32.gmra.mxu0 %v5920
  %v6138 = vpop.f32.mrf.mxu0
  %v6139 = vadd.f32 %v5816, %v6138
  %v6140 = vpop.f32.mrf.mxu0
  %6141 = vmatprep.mubr.f32.mxu0 0.0
  %6142 = vmatmul.mubr.f32.gmra.mxu0 %v5923
  %v6143 = vpop.f32.mrf.mxu0
  %v6144 = vadd.f32 %v5821, %v6143
  %v6145 = vpop.f32.mrf.mxu0
  %6146 = vmatprep.mubr.f32.mxu0 0.0
  %6147 = vmatmul.mubr.f32.gmra.mxu0 %v5926
  %v6148 = vpop.f32.mrf.mxu0
  %v6149 = vadd.f32 %v5826, %v6148
  %v6150 = vpop.f32.mrf.mxu0
  %6151 = vmatprep.mubr.f32.mxu0 0.0
  %6152 = vmatmul.mubr.f32.gmra.mxu0 %v5929
  %v6153 = vpop.f32.mrf.mxu0
  %v6154 = vadd.f32 %v5831, %v6153
  %v6155 = vpop.f32.mrf.mxu0
  %6156 = vmatprep.mubr.f32.mxu0 0.0
  %6157 = vmatmul.mubr.f32.gmra.mxu0 %v5932
  %v6158 = vpop.f32.mrf.mxu0
  %v6159 = vadd.f32 %v5836, %v6158
  %v6160 = vpop.f32.mrf.mxu0
  %6161 = vdwg.mxu0
  %s6162 = scalar_lea.vmem [#allocation4], 256
  %6163 = vst.msk [vmem:[%s6162] sm:$0xff] %vm4553, %v6004
  %6164 = vst.msk [vmem:[%s6162 + $0x8] sm:$0xff] %vm4553, %v6009
  %6165 = vst.msk [vmem:[%s6162 + $0x10] sm:$0xff] %vm4553, %v6014
  %6166 = vst.msk [vmem:[%s6162 + $0x18] sm:$0xff] %vm4553, %v6019
  %6167 = vst.msk [vmem:[%s6162 + $0x20] sm:$0xff] %vm4553, %v6024
  %6168 = vst.msk [vmem:[%s6162 + $0x28] sm:$0xff] %vm4553, %v6029
  %6169 = vst.msk [vmem:[%s6162 + $0x30] sm:$0xff] %vm4553, %v6034
  %6170 = vst.msk [vmem:[%s6162 + $0x38] sm:$0xff] %vm4553, %v6039
  %6171 = vst.msk [vmem:[%s6162 + $0x40] sm:$0xff] %vm4553, %v6044
  %6172 = vst.msk [vmem:[%s6162 + $0x48] sm:$0xff] %vm4553, %v6049
  %6173 = vst.msk [vmem:[%s6162 + $0x50] sm:$0xff] %vm4553, %v6054
  %6174 = vst.msk [vmem:[%s6162 + $0x58] sm:$0xff] %vm4553, %v6059
  %6175 = vst.msk [vmem:[%s6162 + $0x60] sm:$0xff] %vm4553, %v6064
  %6176 = vst.msk [vmem:[%s6162 + $0x68] sm:$0xff] %vm4553, %v6069
  %6177 = vst.msk [vmem:[%s6162 + $0x70] sm:$0xff] %vm4553, %v6074
  %6178 = vst.msk [vmem:[%s6162 + $0x78] sm:$0xff] %vm4553, %v6079
  %6179 = vst.msk [vmem:[%s6162 + $0x80] sm:$0xff] %vm4553, %v6084
  %6180 = vst.msk [vmem:[%s6162 + $0x88] sm:$0xff] %vm4553, %v6089
  %6181 = vst.msk [vmem:[%s6162 + $0x90] sm:$0xff] %vm4553, %v6094
  %6182 = vst.msk [vmem:[%s6162 + $0x98] sm:$0xff] %vm4553, %v6099
  %6183 = vst.msk [vmem:[%s6162 + $0xa0] sm:$0xff] %vm4553, %v6104
  %6184 = vst.msk [vmem:[%s6162 + $0xa8] sm:$0xff] %vm4553, %v6109
  %6185 = vst.msk [vmem:[%s6162 + $0xb0] sm:$0xff] %vm4553, %v6114
  %6186 = vst.msk [vmem:[%s6162 + $0xb8] sm:$0xff] %vm4553, %v6119
  %6187 = vst.msk [vmem:[%s6162 + $0xc0] sm:$0xff] %vm4553, %v6124
  %6188 = vst.msk [vmem:[%s6162 + $0xc8] sm:$0xff] %vm4553, %v6129
  %6189 = vst.msk [vmem:[%s6162 + $0xd0] sm:$0xff] %vm4553, %v6134
  %6190 = vst.msk [vmem:[%s6162 + $0xd8] sm:$0xff] %vm4553, %v6139
  %6191 = vst.msk [vmem:[%s6162 + $0xe0] sm:$0xff] %vm4553, %v6144
  %6192 = vst.msk [vmem:[%s6162 + $0xe8] sm:$0xff] %vm4553, %v6149
  %6193 = vst.msk [vmem:[%s6162 + $0xf0] sm:$0xff] %vm4553, %v6154
  %6194 = vst.msk [vmem:[%s6162 + $0xf8] sm:$0xff] %vm4553, %v6159
  %v6195 = vlaneseq
  %v6196 = vand.u32 %v6195, 127
  %vm6197 = vcmp.eq.s32.totalorder %v6196, 31
  %v6198 = vsel %vm6197, 1, 0
  %v6199 = vcvt.s32.f32 %v6198
  %v6200 = vld [vmem:[#allocation4] sm:$0xff]
  %v6201 = vld [vmem:[#allocation4 + $0x8] sm:$0xff]
  %v6202 = vld [vmem:[#allocation4 + $0x10] sm:$0xff]
  %v6203 = vld [vmem:[#allocation4 + $0x18] sm:$0xff]
  %v6204 = vld [vmem:[#allocation4 + $0x20] sm:$0xff]
  %v6205 = vld [vmem:[#allocation4 + $0x28] sm:$0xff]
  %v6206 = vld [vmem:[#allocation4 + $0x30] sm:$0xff]
  %v6207 = vld [vmem:[#allocation4 + $0x38] sm:$0xff]
  %v6208 = vld [vmem:[#allocation4 + $0x40] sm:$0xff]
  %v6209 = vld [vmem:[#allocation4 + $0x48] sm:$0xff]
  %v6210 = vld [vmem:[#allocation4 + $0x50] sm:$0xff]
  %v6211 = vld [vmem:[#allocation4 + $0x58] sm:$0xff]
  %v6212 = vld [vmem:[#allocation4 + $0x60] sm:$0xff]
  %v6213 = vld [vmem:[#allocation4 + $0x68] sm:$0xff]
  %v6214 = vld [vmem:[#allocation4 + $0x70] sm:$0xff]
  %v6215 = vld [vmem:[#allocation4 + $0x78] sm:$0xff]
  %v6216 = vld [vmem:[#allocation4 + $0x80] sm:$0xff]
  %v6217 = vld [vmem:[#allocation4 + $0x88] sm:$0xff]
  %v6218 = vld [vmem:[#allocation4 + $0x90] sm:$0xff]
  %v6219 = vld [vmem:[#allocation4 + $0x98] sm:$0xff]
  %v6220 = vld [vmem:[#allocation4 + $0xa0] sm:$0xff]
  %v6221 = vld [vmem:[#allocation4 + $0xa8] sm:$0xff]
  %v6222 = vld [vmem:[#allocation4 + $0xb0] sm:$0xff]
  %v6223 = vld [vmem:[#allocation4 + $0xb8] sm:$0xff]
  %v6224 = vld [vmem:[#allocation4 + $0xc0] sm:$0xff]
  %v6225 = vld [vmem:[#allocation4 + $0xc8] sm:$0xff]
  %v6226 = vld [vmem:[#allocation4 + $0xd0] sm:$0xff]
  %v6227 = vld [vmem:[#allocation4 + $0xd8] sm:$0xff]
  %v6228 = vld [vmem:[#allocation4 + $0xe0] sm:$0xff]
  %v6229 = vld [vmem:[#allocation4 + $0xe8] sm:$0xff]
  %v6230 = vld [vmem:[#allocation4 + $0xf0] sm:$0xff]
  %v6231 = vld [vmem:[#allocation4 + $0xf8] sm:$0xff]
  %v6232 = vld [vmem:[%s4] sm:$0xff]
  %v6233 = vld [vmem:[%s4 + $0x8] sm:$0xff]
  %v6234 = vld [vmem:[%s4 + $0x10] sm:$0xff]
  %v6235 = vld [vmem:[%s4 + $0x18] sm:$0xff]
  %v6236 = vld [vmem:[%s4 + $0x20] sm:$0xff]
  %v6237 = vld [vmem:[%s4 + $0x28] sm:$0xff]
  %v6238 = vld [vmem:[%s4 + $0x30] sm:$0xff]
  %v6239 = vld [vmem:[%s4 + $0x38] sm:$0xff]
  %v6240 = vld [vmem:[%s4 + $0x40] sm:$0xff]
  %v6241 = vld [vmem:[%s4 + $0x48] sm:$0xff]
  %v6242 = vld [vmem:[%s4 + $0x50] sm:$0xff]
  %v6243 = vld [vmem:[%s4 + $0x58] sm:$0xff]
  %v6244 = vld [vmem:[%s4 + $0x60] sm:$0xff]
  %v6245 = vld [vmem:[%s4 + $0x68] sm:$0xff]
  %v6246 = vld [vmem:[%s4 + $0x70] sm:$0xff]
  %v6247 = vld [vmem:[%s4 + $0x78] sm:$0xff]
  %v6248 = vld [vmem:[%s4 + $0x80] sm:$0xff]
  %v6249 = vld [vmem:[%s4 + $0x88] sm:$0xff]
  %v6250 = vld [vmem:[%s4 + $0x90] sm:$0xff]
  %v6251 = vld [vmem:[%s4 + $0x98] sm:$0xff]
  %v6252 = vld [vmem:[%s4 + $0xa0] sm:$0xff]
  %v6253 = vld [vmem:[%s4 + $0xa8] sm:$0xff]
  %v6254 = vld [vmem:[%s4 + $0xb0] sm:$0xff]
  %v6255 = vld [vmem:[%s4 + $0xb8] sm:$0xff]
  %v6256 = vld [vmem:[%s4 + $0xc0] sm:$0xff]
  %v6257 = vld [vmem:[%s4 + $0xc8] sm:$0xff]
  %v6258 = vld [vmem:[%s4 + $0xd0] sm:$0xff]
  %v6259 = vld [vmem:[%s4 + $0xd8] sm:$0xff]
  %v6260 = vld [vmem:[%s4 + $0xe0] sm:$0xff]
  %v6261 = vld [vmem:[%s4 + $0xe8] sm:$0xff]
  %v6262 = vld [vmem:[%s4 + $0xf0] sm:$0xff]
  %v6263 = vld [vmem:[%s4 + $0xf8] sm:$0xff]
  %v6265 = vsel %vm37, %v6232, 0
  %v6268 = vsel %vm37, %v6233, 0
  %v6271 = vsel %vm37, %v6234, 0
  %v6274 = vsel %vm37, %v6235, 0
  %v6277 = vsel %vm37, %v6236, 0
  %v6280 = vsel %vm37, %v6237, 0
  %v6283 = vsel %vm37, %v6238, 0
  %v6286 = vsel %vm37, %v6239, 0
  %v6289 = vsel %vm37, %v6240, 0
  %v6292 = vsel %vm37, %v6241, 0
  %v6295 = vsel %vm37, %v6242, 0
  %v6298 = vsel %vm37, %v6243, 0
  %v6301 = vsel %vm37, %v6244, 0
  %v6304 = vsel %vm37, %v6245, 0
  %v6307 = vsel %vm37, %v6246, 0
  %v6310 = vsel %vm37, %v6247, 0
  %v6313 = vsel %vm37, %v6248, 0
  %v6316 = vsel %vm37, %v6249, 0
  %v6319 = vsel %vm37, %v6250, 0
  %v6322 = vsel %vm37, %v6251, 0
  %v6325 = vsel %vm37, %v6252, 0
  %v6328 = vsel %vm37, %v6253, 0
  %v6331 = vsel %vm37, %v6254, 0
  %v6334 = vsel %vm37, %v6255, 0
  %v6337 = vsel %vm37, %v6256, 0
  %v6340 = vsel %vm37, %v6257, 0
  %v6343 = vsel %vm37, %v6258, 0
  %v6346 = vsel %vm37, %v6259, 0
  %v6349 = vsel %vm37, %v6260, 0
  %v6352 = vsel %vm37, %v6261, 0
  %v6355 = vsel %vm37, %v6262, 0
  %v6358 = vsel %vm37, %v6263, 0
  %6360 = vmatprep.subr.mxu0 0.0
  %6361 = vmatpush1.msra.mxu0 0.0
  %6362 = vmatprep.subr.mxu0 0.0
  %6363 = vmatpush1.msra.mxu0 0.0
  %6364 = vmatprep.subr.mxu0 0.0
  %6365 = vmatpush1.msra.mxu0 0.0
  %6366 = vmatprep.subr.mxu0 0.0
  %6367 = vmatpush1.msra.mxu0 0.0
  %6368 = vmatprep.subr.mxu0 0.0
  %6369 = vmatpush1.msra.mxu0 0.0
  %6370 = vmatprep.subr.mxu0 0.0
  %6371 = vmatpush1.msra.mxu0 0.0
  %6372 = vmatprep.subr.mxu0 0.0
  %6373 = vmatpush1.msra.mxu0 0.0
  %6374 = vmatprep.subr.mxu0 0.0
  %6375 = vmatpush1.msra.mxu0 0.0
  %6376 = vmatprep.subr.mxu0 0.0
  %6377 = vmatpush1.msra.mxu0 0.0
  %6378 = vmatprep.subr.mxu0 0.0
  %6379 = vmatpush1.msra.mxu0 0.0
  %6380 = vmatprep.subr.mxu0 0.0
  %6381 = vmatpush1.msra.mxu0 0.0
  %6382 = vmatprep.subr.mxu0 0.0
  %6383 = vmatpush1.msra.mxu0 0.0
  %6384 = vmatprep.subr.mxu0 0.0
  %6385 = vmatpush1.msra.mxu0 0.0
  %6386 = vmatprep.subr.mxu0 0.0
  %6387 = vmatpush1.msra.mxu0 0.0
  %6388 = vmatprep.subr.mxu0 0.0
  %6389 = vmatpush1.msra.mxu0 0.0
  %6390 = vmatprep.subr.mxu0 0.0
  %6391 = vmatpush1.msra.mxu0 0.0
  %6392 = vmatprep.subr.mxu0 0.0
  %6393 = vmatpush2.msra.mxu0 0.0
  %6394 = vmatprep.subr.mxu0 0.0
  %6395 = vmatpush2.msra.mxu0 0.0
  %6396 = vmatprep.subr.mxu0 0.0
  %6397 = vmatpush2.msra.mxu0 0.0
  %6398 = vmatprep.subr.mxu0 0.0
  %6399 = vmatpush2.msra.mxu0 0.0
  %6400 = vmatprep.subr.mxu0 0.0
  %6401 = vmatpush2.msra.mxu0 0.0
  %6402 = vmatprep.subr.mxu0 0.0
  %6403 = vmatpush2.msra.mxu0 0.0
  %6404 = vmatprep.subr.mxu0 0.0
  %6405 = vmatpush2.msra.mxu0 0.0
  %6406 = vmatprep.subr.mxu0 0.0
  %6407 = vmatpush2.msra.mxu0 0.0
  %6408 = vmatprep.subr.mxu0 0.0
  %6409 = vmatpush2.msra.mxu0 0.0
  %6410 = vmatprep.subr.mxu0 0.0
  %6411 = vmatpush2.msra.mxu0 0.0
  %6412 = vmatprep.subr.mxu0 0.0
  %6413 = vmatpush2.msra.mxu0 0.0
  %6414 = vmatprep.subr.mxu0 0.0
  %6415 = vmatpush2.msra.mxu0 0.0
  %6416 = vmatprep.subr.mxu0 0.0
  %6417 = vmatpush2.msra.mxu0 0.0
  %6418 = vmatprep.subr.mxu0 0.0
  %6419 = vmatpush2.msra.mxu0 0.0
  %6420 = vmatprep.subr.mxu0 0.0
  %6421 = vmatpush2.msra.mxu0 0.0
  %6422 = vmatprep.subr.mxu0 0.0
  %6423 = vmatpush2.msra.mxu0 0.0
  %6424 = vmatprep.mubr.f32.mxu0 0.0
  %6425 = vmatmul.mubr.f32.gmra.mxu0 %v6265
  %v6426 = vpop.f32.mrf.mxu0
  %v6427 = vadd.f32 0.0, %v6426
  %v6428 = vpop.f32.mrf.mxu0
  %6429 = vmatprep.mubr.f32.mxu0 0.0
  %6430 = vmatmul.mubr.f32.gmra.mxu0 %v6268
  %v6431 = vpop.f32.mrf.mxu0
  %v6432 = vadd.f32 0.0, %v6431
  %v6433 = vpop.f32.mrf.mxu0
  %6434 = vmatprep.mubr.f32.mxu0 0.0
  %6435 = vmatmul.mubr.f32.gmra.mxu0 %v6271
  %v6436 = vpop.f32.mrf.mxu0
  %v6437 = vadd.f32 0.0, %v6436
  %v6438 = vpop.f32.mrf.mxu0
  %6439 = vmatprep.mubr.f32.mxu0 0.0
  %6440 = vmatmul.mubr.f32.gmra.mxu0 %v6274
  %v6441 = vpop.f32.mrf.mxu0
  %v6442 = vadd.f32 0.0, %v6441
  %v6443 = vpop.f32.mrf.mxu0
  %6444 = vmatprep.mubr.f32.mxu0 0.0
  %6445 = vmatmul.mubr.f32.gmra.mxu0 %v6277
  %v6446 = vpop.f32.mrf.mxu0
  %v6447 = vadd.f32 0.0, %v6446
  %v6448 = vpop.f32.mrf.mxu0
  %6449 = vmatprep.mubr.f32.mxu0 0.0
  %6450 = vmatmul.mubr.f32.gmra.mxu0 %v6280
  %v6451 = vpop.f32.mrf.mxu0
  %v6452 = vadd.f32 0.0, %v6451
  %v6453 = vpop.f32.mrf.mxu0
  %6454 = vmatprep.mubr.f32.mxu0 0.0
  %6455 = vmatmul.mubr.f32.gmra.mxu0 %v6283
  %v6456 = vpop.f32.mrf.mxu0
  %v6457 = vadd.f32 0.0, %v6456
  %v6458 = vpop.f32.mrf.mxu0
  %6459 = vmatprep.mubr.f32.mxu0 0.0
  %6460 = vmatmul.mubr.f32.gmra.mxu0 %v6286
  %v6461 = vpop.f32.mrf.mxu0
  %v6462 = vadd.f32 0.0, %v6461
  %v6463 = vpop.f32.mrf.mxu0
  %6464 = vmatprep.mubr.f32.mxu0 0.0
  %6465 = vmatmul.mubr.f32.gmra.mxu0 %v6289
  %v6466 = vpop.f32.mrf.mxu0
  %v6467 = vadd.f32 0.0, %v6466
  %v6468 = vpop.f32.mrf.mxu0
  %6469 = vmatprep.mubr.f32.mxu0 0.0
  %6470 = vmatmul.mubr.f32.gmra.mxu0 %v6292
  %v6471 = vpop.f32.mrf.mxu0
  %v6472 = vadd.f32 0.0, %v6471
  %v6473 = vpop.f32.mrf.mxu0
  %6474 = vmatprep.mubr.f32.mxu0 0.0
  %6475 = vmatmul.mubr.f32.gmra.mxu0 %v6295
  %v6476 = vpop.f32.mrf.mxu0
  %v6477 = vadd.f32 0.0, %v6476
  %v6478 = vpop.f32.mrf.mxu0
  %6479 = vmatprep.mubr.f32.mxu0 0.0
  %6480 = vmatmul.mubr.f32.gmra.mxu0 %v6298
  %v6481 = vpop.f32.mrf.mxu0
  %v6482 = vadd.f32 0.0, %v6481
  %v6483 = vpop.f32.mrf.mxu0
  %6484 = vmatprep.mubr.f32.mxu0 0.0
  %6485 = vmatmul.mubr.f32.gmra.mxu0 %v6301
  %v6486 = vpop.f32.mrf.mxu0
  %v6487 = vadd.f32 0.0, %v6486
  %v6488 = vpop.f32.mrf.mxu0
  %6489 = vmatprep.mubr.f32.mxu0 0.0
  %6490 = vmatmul.mubr.f32.gmra.mxu0 %v6304
  %v6491 = vpop.f32.mrf.mxu0
  %v6492 = vadd.f32 0.0, %v6491
  %v6493 = vpop.f32.mrf.mxu0
  %6494 = vmatprep.mubr.f32.mxu0 0.0
  %6495 = vmatmul.mubr.f32.gmra.mxu0 %v6307
  %v6496 = vpop.f32.mrf.mxu0
  %v6497 = vadd.f32 0.0, %v6496
  %v6498 = vpop.f32.mrf.mxu0
  %6499 = vmatprep.mubr.f32.mxu0 0.0
  %6500 = vmatmul.mubr.f32.gmra.mxu0 %v6310
  %v6501 = vpop.f32.mrf.mxu0
  %v6502 = vadd.f32 0.0, %v6501
  %v6503 = vpop.f32.mrf.mxu0
  %6504 = vmatprep.mubr.f32.mxu0 0.0
  %6505 = vmatmul.mubr.f32.gmra.mxu0 %v6313
  %v6506 = vpop.f32.mrf.mxu0
  %v6507 = vadd.f32 0.0, %v6506
  %v6508 = vpop.f32.mrf.mxu0
  %6509 = vmatprep.mubr.f32.mxu0 0.0
  %6510 = vmatmul.mubr.f32.gmra.mxu0 %v6316
  %v6511 = vpop.f32.mrf.mxu0
  %v6512 = vadd.f32 0.0, %v6511
  %v6513 = vpop.f32.mrf.mxu0
  %6514 = vmatprep.mubr.f32.mxu0 0.0
  %6515 = vmatmul.mubr.f32.gmra.mxu0 %v6319
  %v6516 = vpop.f32.mrf.mxu0
  %v6517 = vadd.f32 0.0, %v6516
  %v6518 = vpop.f32.mrf.mxu0
  %6519 = vmatprep.mubr.f32.mxu0 0.0
  %6520 = vmatmul.mubr.f32.gmra.mxu0 %v6322
  %v6521 = vpop.f32.mrf.mxu0
  %v6522 = vadd.f32 0.0, %v6521
  %v6523 = vpop.f32.mrf.mxu0
  %6524 = vmatprep.mubr.f32.mxu0 0.0
  %6525 = vmatmul.mubr.f32.gmra.mxu0 %v6325
  %v6526 = vpop.f32.mrf.mxu0
  %v6527 = vadd.f32 0.0, %v6526
  %v6528 = vpop.f32.mrf.mxu0
  %6529 = vmatprep.mubr.f32.mxu0 0.0
  %6530 = vmatmul.mubr.f32.gmra.mxu0 %v6328
  %v6531 = vpop.f32.mrf.mxu0
  %v6532 = vadd.f32 0.0, %v6531
  %v6533 = vpop.f32.mrf.mxu0
  %6534 = vmatprep.mubr.f32.mxu0 0.0
  %6535 = vmatmul.mubr.f32.gmra.mxu0 %v6331
  %v6536 = vpop.f32.mrf.mxu0
  %v6537 = vadd.f32 0.0, %v6536
  %v6538 = vpop.f32.mrf.mxu0
  %6539 = vmatprep.mubr.f32.mxu0 0.0
  %6540 = vmatmul.mubr.f32.gmra.mxu0 %v6334
  %v6541 = vpop.f32.mrf.mxu0
  %v6542 = vadd.f32 0.0, %v6541
  %v6543 = vpop.f32.mrf.mxu0
  %6544 = vmatprep.mubr.f32.mxu0 0.0
  %6545 = vmatmul.mubr.f32.gmra.mxu0 %v6337
  %v6546 = vpop.f32.mrf.mxu0
  %v6547 = vadd.f32 0.0, %v6546
  %v6548 = vpop.f32.mrf.mxu0
  %6549 = vmatprep.mubr.f32.mxu0 0.0
  %6550 = vmatmul.mubr.f32.gmra.mxu0 %v6340
  %v6551 = vpop.f32.mrf.mxu0
  %v6552 = vadd.f32 0.0, %v6551
  %v6553 = vpop.f32.mrf.mxu0
  %6554 = vmatprep.mubr.f32.mxu0 0.0
  %6555 = vmatmul.mubr.f32.gmra.mxu0 %v6343
  %v6556 = vpop.f32.mrf.mxu0
  %v6557 = vadd.f32 0.0, %v6556
  %v6558 = vpop.f32.mrf.mxu0
  %6559 = vmatprep.mubr.f32.mxu0 0.0
  %6560 = vmatmul.mubr.f32.gmra.mxu0 %v6346
  %v6561 = vpop.f32.mrf.mxu0
  %v6562 = vadd.f32 0.0, %v6561
  %v6563 = vpop.f32.mrf.mxu0
  %6564 = vmatprep.mubr.f32.mxu0 0.0
  %6565 = vmatmul.mubr.f32.gmra.mxu0 %v6349
  %v6566 = vpop.f32.mrf.mxu0
  %v6567 = vadd.f32 0.0, %v6566
  %v6568 = vpop.f32.mrf.mxu0
  %6569 = vmatprep.mubr.f32.mxu0 0.0
  %6570 = vmatmul.mubr.f32.gmra.mxu0 %v6352
  %v6571 = vpop.f32.mrf.mxu0
  %v6572 = vadd.f32 0.0, %v6571
  %v6573 = vpop.f32.mrf.mxu0
  %6574 = vmatprep.mubr.f32.mxu0 0.0
  %6575 = vmatmul.mubr.f32.gmra.mxu0 %v6355
  %v6576 = vpop.f32.mrf.mxu0
  %v6577 = vadd.f32 0.0, %v6576
  %v6578 = vpop.f32.mrf.mxu0
  %6579 = vmatprep.mubr.f32.mxu0 0.0
  %6580 = vmatmul.mubr.f32.gmra.mxu0 %v6358
  %v6581 = vpop.f32.mrf.mxu0
  %v6582 = vadd.f32 0.0, %v6581
  %v6583 = vpop.f32.mrf.mxu0
  %6584 = vdwg.mxu0
  %v6585 = vadd.f32 %v6200, %v6427
  %v6586 = vadd.f32 %v6201, %v6432
  %v6587 = vadd.f32 %v6202, %v6437
  %v6588 = vadd.f32 %v6203, %v6442
  %v6589 = vadd.f32 %v6204, %v6447
  %v6590 = vadd.f32 %v6205, %v6452
  %v6591 = vadd.f32 %v6206, %v6457
  %v6592 = vadd.f32 %v6207, %v6462
  %v6593 = vadd.f32 %v6208, %v6467
  %v6594 = vadd.f32 %v6209, %v6472
  %v6595 = vadd.f32 %v6210, %v6477
  %v6596 = vadd.f32 %v6211, %v6482
  %v6597 = vadd.f32 %v6212, %v6487
  %v6598 = vadd.f32 %v6213, %v6492
  %v6599 = vadd.f32 %v6214, %v6497
  %v6600 = vadd.f32 %v6215, %v6502
  %v6601 = vadd.f32 %v6216, %v6507
  %v6602 = vadd.f32 %v6217, %v6512
  %v6603 = vadd.f32 %v6218, %v6517
  %v6604 = vadd.f32 %v6219, %v6522
  %v6605 = vadd.f32 %v6220, %v6527
  %v6606 = vadd.f32 %v6221, %v6532
  %v6607 = vadd.f32 %v6222, %v6537
  %v6608 = vadd.f32 %v6223, %v6542
  %v6609 = vadd.f32 %v6224, %v6547
  %v6610 = vadd.f32 %v6225, %v6552
  %v6611 = vadd.f32 %v6226, %v6557
  %v6612 = vadd.f32 %v6227, %v6562
  %v6613 = vadd.f32 %v6228, %v6567
  %v6614 = vadd.f32 %v6229, %v6572
  %v6615 = vadd.f32 %v6230, %v6577
  %v6616 = vadd.f32 %v6231, %v6582
  %v6617 = vxor.u32 %v6585, 2147483648
  %v6618 = vxor.u32 %v6586, 2147483648
  %v6619 = vxor.u32 %v6587, 2147483648
  %v6620 = vxor.u32 %v6588, 2147483648
  %v6621 = vxor.u32 %v6589, 2147483648
  %v6622 = vxor.u32 %v6590, 2147483648
  %v6623 = vxor.u32 %v6591, 2147483648
  %v6624 = vxor.u32 %v6592, 2147483648
  %v6625 = vmul.f32 %v6617, 1.442695
  %v6626 = vpow.pop %v6625
  %v6627 = vmul.f32 %v6618, 1.442695
  %v6628 = vpow.pop %v6627
  %v6629 = vmul.f32 %v6619, 1.442695
  %v6630 = vpow.pop %v6629
  %v6631 = vmul.f32 %v6620, 1.442695
  %v6632 = vpow.pop %v6631
  %v6633 = vmul.f32 %v6621, 1.442695
  %v6634 = vpow.pop %v6633
  %v6635 = vmul.f32 %v6622, 1.442695
  %v6636 = vpow.pop %v6635
  %v6637 = vmul.f32 %v6623, 1.442695
  %v6638 = vpow.pop %v6637
  %v6639 = vmul.f32 %v6624, 1.442695
  %v6640 = vpow.pop %v6639
  %v6641 = vadd.f32 %v6626, 1.0
  %v6642 = vadd.f32 %v6628, 1.0
  %v6643 = vadd.f32 %v6630, 1.0
  %v6644 = vadd.f32 %v6632, 1.0
  %v6645 = vadd.f32 %v6634, 1.0
  %v6646 = vadd.f32 %v6636, 1.0
  %v6647 = vadd.f32 %v6638, 1.0
  %v6648 = vadd.f32 %v6640, 1.0
  %v6649 = vrcp.pop %v6641
  %v6650 = vmul.f32 1.0, %v6649
  %v6651 = vrcp.pop %v6642
  %v6652 = vmul.f32 1.0, %v6651
  %v6653 = vrcp.pop %v6643
  %v6654 = vmul.f32 1.0, %v6653
  %v6655 = vrcp.pop %v6644
  %v6656 = vmul.f32 1.0, %v6655
  %v6657 = vrcp.pop %v6645
  %v6658 = vmul.f32 1.0, %v6657
  %v6659 = vrcp.pop %v6646
  %v6660 = vmul.f32 1.0, %v6659
  %v6661 = vrcp.pop %v6647
  %v6662 = vmul.f32 1.0, %v6661
  %v6663 = vrcp.pop %v6648
  %v6664 = vmul.f32 1.0, %v6663
  %v6665 = vxor.u32 %v6593, 2147483648
  %v6666 = vxor.u32 %v6594, 2147483648
  %v6667 = vxor.u32 %v6595, 2147483648
  %v6668 = vxor.u32 %v6596, 2147483648
  %v6669 = vxor.u32 %v6597, 2147483648
  %v6670 = vxor.u32 %v6598, 2147483648
  %v6671 = vxor.u32 %v6599, 2147483648
  %v6672 = vxor.u32 %v6600, 2147483648
  %v6673 = vmul.f32 %v6665, 1.442695
  %v6674 = vpow.pop %v6673
  %v6675 = vmul.f32 %v6666, 1.442695
  %v6676 = vpow.pop %v6675
  %v6677 = vmul.f32 %v6667, 1.442695
  %v6678 = vpow.pop %v6677
  %v6679 = vmul.f32 %v6668, 1.442695
  %v6680 = vpow.pop %v6679
  %v6681 = vmul.f32 %v6669, 1.442695
  %v6682 = vpow.pop %v6681
  %v6683 = vmul.f32 %v6670, 1.442695
  %v6684 = vpow.pop %v6683
  %v6685 = vmul.f32 %v6671, 1.442695
  %v6686 = vpow.pop %v6685
  %v6687 = vmul.f32 %v6672, 1.442695
  %v6688 = vpow.pop %v6687
  %v6689 = vadd.f32 %v6674, 1.0
  %v6690 = vadd.f32 %v6676, 1.0
  %v6691 = vadd.f32 %v6678, 1.0
  %v6692 = vadd.f32 %v6680, 1.0
  %v6693 = vadd.f32 %v6682, 1.0
  %v6694 = vadd.f32 %v6684, 1.0
  %v6695 = vadd.f32 %v6686, 1.0
  %v6696 = vadd.f32 %v6688, 1.0
  %v6697 = vrcp.pop %v6689
  %v6698 = vmul.f32 1.0, %v6697
  %v6699 = vrcp.pop %v6690
  %v6700 = vmul.f32 1.0, %v6699
  %v6701 = vrcp.pop %v6691
  %v6702 = vmul.f32 1.0, %v6701
  %v6703 = vrcp.pop %v6692
  %v6704 = vmul.f32 1.0, %v6703
  %v6705 = vrcp.pop %v6693
  %v6706 = vmul.f32 1.0, %v6705
  %v6707 = vrcp.pop %v6694
  %v6708 = vmul.f32 1.0, %v6707
  %v6709 = vrcp.pop %v6695
  %v6710 = vmul.f32 1.0, %v6709
  %v6711 = vrcp.pop %v6696
  %v6712 = vmul.f32 1.0, %v6711
  %v6713 = vtanh.pop %v6601
  %v6714 = vtanh.pop %v6602
  %v6715 = vtanh.pop %v6603
  %v6716 = vtanh.pop %v6604
  %v6717 = vtanh.pop %v6605
  %v6718 = vtanh.pop %v6606
  %v6719 = vtanh.pop %v6607
  %v6720 = vtanh.pop %v6608
  %v6721 = vxor.u32 %v6609, 2147483648
  %v6722 = vxor.u32 %v6610, 2147483648
  %v6723 = vxor.u32 %v6611, 2147483648
  %v6724 = vxor.u32 %v6612, 2147483648
  %v6725 = vxor.u32 %v6613, 2147483648
  %v6726 = vxor.u32 %v6614, 2147483648
  %v6727 = vxor.u32 %v6615, 2147483648
  %v6728 = vxor.u32 %v6616, 2147483648
  %v6729 = vmul.f32 %v6721, 1.442695
  %v6730 = vpow.pop %v6729
  %v6731 = vmul.f32 %v6722, 1.442695
  %v6732 = vpow.pop %v6731
  %v6733 = vmul.f32 %v6723, 1.442695
  %v6734 = vpow.pop %v6733
  %v6735 = vmul.f32 %v6724, 1.442695
  %v6736 = vpow.pop %v6735
  %v6737 = vmul.f32 %v6725, 1.442695
  %v6738 = vpow.pop %v6737
  %v6739 = vmul.f32 %v6726, 1.442695
  %v6740 = vpow.pop %v6739
  %v6741 = vmul.f32 %v6727, 1.442695
  %v6742 = vpow.pop %v6741
  %v6743 = vmul.f32 %v6728, 1.442695
  %v6744 = vpow.pop %v6743
  %v6745 = vadd.f32 %v6730, 1.0
  %v6746 = vadd.f32 %v6732, 1.0
  %v6747 = vadd.f32 %v6734, 1.0
  %v6748 = vadd.f32 %v6736, 1.0
  %v6749 = vadd.f32 %v6738, 1.0
  %v6750 = vadd.f32 %v6740, 1.0
  %v6751 = vadd.f32 %v6742, 1.0
  %v6752 = vadd.f32 %v6744, 1.0
  %v6753 = vrcp.pop %v6745
  %v6754 = vmul.f32 1.0, %v6753
  %v6755 = vrcp.pop %v6746
  %v6756 = vmul.f32 1.0, %v6755
  %v6757 = vrcp.pop %v6747
  %v6758 = vmul.f32 1.0, %v6757
  %v6759 = vrcp.pop %v6748
  %v6760 = vmul.f32 1.0, %v6759
  %v6761 = vrcp.pop %v6749
  %v6762 = vmul.f32 1.0, %v6761
  %v6763 = vrcp.pop %v6750
  %v6764 = vmul.f32 1.0, %v6763
  %v6765 = vrcp.pop %v6751
  %v6766 = vmul.f32 1.0, %v6765
  %v6767 = vrcp.pop %v6752
  %v6768 = vmul.f32 1.0, %v6767
  %v6769 = vmul.f32 %v6698, 0.0
  %v6770 = vmul.f32 %v6700, 0.0
  %v6771 = vmul.f32 %v6702, 0.0
  %v6772 = vmul.f32 %v6704, 0.0
  %v6773 = vmul.f32 %v6706, 0.0
  %v6774 = vmul.f32 %v6708, 0.0
  %v6775 = vmul.f32 %v6710, 0.0
  %v6776 = vmul.f32 %v6712, 0.0
  %v6777 = vmul.f32 %v6650, %v6713
  %v6778 = vmul.f32 %v6652, %v6714
  %v6779 = vmul.f32 %v6654, %v6715
  %v6780 = vmul.f32 %v6656, %v6716
  %v6781 = vmul.f32 %v6658, %v6717
  %v6782 = vmul.f32 %v6660, %v6718
  %v6783 = vmul.f32 %v6662, %v6719
  %v6784 = vmul.f32 %v6664, %v6720
  %v6785 = vadd.f32 %v6769, %v6777
  %v6786 = vadd.f32 %v6770, %v6778
  %v6787 = vadd.f32 %v6771, %v6779
  %v6788 = vadd.f32 %v6772, %v6780
  %v6789 = vadd.f32 %v6773, %v6781
  %v6790 = vadd.f32 %v6774, %v6782
  %v6791 = vadd.f32 %v6775, %v6783
  %v6792 = vadd.f32 %v6776, %v6784
  %v6793 = vtanh.pop %v6785
  %v6794 = vtanh.pop %v6786
  %v6795 = vtanh.pop %v6787
  %v6796 = vtanh.pop %v6788
  %v6797 = vtanh.pop %v6789
  %v6798 = vtanh.pop %v6790
  %v6799 = vtanh.pop %v6791
  %v6800 = vtanh.pop %v6792
  %v6801 = vmul.f32 %v6754, %v6793
  %v6802 = vmul.f32 %v6756, %v6794
  %v6803 = vmul.f32 %v6758, %v6795
  %v6804 = vmul.f32 %v6760, %v6796
  %v6805 = vmul.f32 %v6762, %v6797
  %v6806 = vmul.f32 %v6764, %v6798
  %v6807 = vmul.f32 %v6766, %v6799
  %v6808 = vmul.f32 %v6768, %v6800
  %v6809 = vmul.f32 %v6801, %v6199
  %v6810 = vmul.f32 %v6802, %v6199
  %v6811 = vmul.f32 %v6803, %v6199
  %v6812 = vmul.f32 %v6804, %v6199
  %v6813 = vmul.f32 %v6805, %v6199
  %v6814 = vmul.f32 %v6806, %v6199
  %v6815 = vmul.f32 %v6807, %v6199
  %v6816 = vmul.f32 %v6808, %v6199
  %v6817 = vsel %vm4553, %v6809, 0.0
  %6818 = vadd.xlane.f32.xlu0 %v6817
  %v6819 = vpop.xlane.xlu0 %6818
  %v6820 = vsel %vm4553, %v6810, 0.0
  %6821 = vadd.xlane.f32.xlu0 %v6820
  %v6822 = vpop.xlane.xlu0 %6821
  %v6823 = vsel %vm4553, %v6811, 0.0
  %6824 = vadd.xlane.f32.xlu0 %v6823
  %v6825 = vpop.xlane.xlu0 %6824
  %v6826 = vsel %vm4553, %v6812, 0.0
  %6827 = vadd.xlane.f32.xlu0 %v6826
  %v6828 = vpop.xlane.xlu0 %6827
  %v6829 = vsel %vm4553, %v6813, 0.0
  %6830 = vadd.xlane.f32.xlu0 %v6829
  %v6831 = vpop.xlane.xlu0 %6830
  %v6832 = vsel %vm4553, %v6814, 0.0
  %6833 = vadd.xlane.f32.xlu0 %v6832
  %v6834 = vpop.xlane.xlu0 %6833
  %v6835 = vsel %vm4553, %v6815, 0.0
  %6836 = vadd.xlane.f32.xlu0 %v6835
  %v6837 = vpop.xlane.xlu0 %6836
  %v6838 = vsel %vm4553, %v6816, 0.0
  %6839 = vadd.xlane.f32.xlu0 %v6838
  %v6840 = vpop.xlane.xlu0 %6839
  %v6841 = vtanh.pop %v6819
  %v6842 = vtanh.pop %v6822
  %v6843 = vtanh.pop %v6825
  %v6844 = vtanh.pop %v6828
  %v6845 = vtanh.pop %v6831
  %v6846 = vtanh.pop %v6834
  %v6847 = vtanh.pop %v6837
  %v6848 = vtanh.pop %v6840
  %v6849 = vld [vmem:[%s6] sm:$0xff]
  %v6850 = vld [vmem:[%s6 + $0x8] sm:$0xff]
  %v6851 = vld [vmem:[%s6 + $0x10] sm:$0xff]
  %v6852 = vld [vmem:[%s6 + $0x18] sm:$0xff]
  %v6853 = vld [vmem:[%s6 + $0x20] sm:$0xff]
  %v6854 = vld [vmem:[%s6 + $0x28] sm:$0xff]
  %v6855 = vld [vmem:[%s6 + $0x30] sm:$0xff]
  %v6856 = vld [vmem:[%s6 + $0x38] sm:$0xff]
  %v6857 = vld [vmem:[%s6 + $0x40] sm:$0xff]
  %v6858 = vld [vmem:[%s6 + $0x48] sm:$0xff]
  %v6859 = vld [vmem:[%s6 + $0x50] sm:$0xff]
  %v6860 = vld [vmem:[%s6 + $0x58] sm:$0xff]
  %v6861 = vld [vmem:[%s6 + $0x60] sm:$0xff]
  %v6862 = vld [vmem:[%s6 + $0x68] sm:$0xff]
  %v6863 = vld [vmem:[%s6 + $0x70] sm:$0xff]
  %v6864 = vld [vmem:[%s6 + $0x78] sm:$0xff]
  %v6865 = vld [vmem:[%s6 + $0x80] sm:$0xff]
  %v6866 = vld [vmem:[%s6 + $0x88] sm:$0xff]
  %v6867 = vld [vmem:[%s6 + $0x90] sm:$0xff]
  %v6868 = vld [vmem:[%s6 + $0x98] sm:$0xff]
  %v6869 = vld [vmem:[%s6 + $0xa0] sm:$0xff]
  %v6870 = vld [vmem:[%s6 + $0xa8] sm:$0xff]
  %v6871 = vld [vmem:[%s6 + $0xb0] sm:$0xff]
  %v6872 = vld [vmem:[%s6 + $0xb8] sm:$0xff]
  %v6873 = vld [vmem:[%s6 + $0xc0] sm:$0xff]
  %v6874 = vld [vmem:[%s6 + $0xc8] sm:$0xff]
  %v6875 = vld [vmem:[%s6 + $0xd0] sm:$0xff]
  %v6876 = vld [vmem:[%s6 + $0xd8] sm:$0xff]
  %v6877 = vld [vmem:[%s6 + $0xe0] sm:$0xff]
  %v6878 = vld [vmem:[%s6 + $0xe8] sm:$0xff]
  %v6879 = vld [vmem:[%s6 + $0xf0] sm:$0xff]
  %v6880 = vld [vmem:[%s6 + $0xf8] sm:$0x3]
  %v6881 = vld [vmem:[%s7] sm:$0xff]
  %v6882 = vld [vmem:[%s7 + $0x8] sm:$0xff]
  %v6883 = vld [vmem:[%s7 + $0x10] sm:$0xff]
  %v6884 = vld [vmem:[%s7 + $0x18] sm:$0xff]
  %v6885 = vld [vmem:[%s7 + $0x20] sm:$0xff]
  %v6886 = vld [vmem:[%s7 + $0x28] sm:$0xff]
  %v6887 = vld [vmem:[%s7 + $0x30] sm:$0xff]
  %v6888 = vld [vmem:[%s7 + $0x38] sm:$0xff]
  %v6889 = vld [vmem:[%s7 + $0x40] sm:$0xff]
  %v6890 = vld [vmem:[%s7 + $0x48] sm:$0xff]
  %v6891 = vld [vmem:[%s7 + $0x50] sm:$0xff]
  %v6892 = vld [vmem:[%s7 + $0x58] sm:$0xff]
  %v6893 = vld [vmem:[%s7 + $0x60] sm:$0xff]
  %v6894 = vld [vmem:[%s7 + $0x68] sm:$0xff]
  %v6895 = vld [vmem:[%s7 + $0x70] sm:$0xff]
  %v6896 = vld [vmem:[%s7 + $0x78] sm:$0xff]
  %v6897 = vld [vmem:[%s7 + $0x80] sm:$0xff]
  %v6898 = vld [vmem:[%s7 + $0x88] sm:$0xff]
  %v6899 = vld [vmem:[%s7 + $0x90] sm:$0xff]
  %v6900 = vld [vmem:[%s7 + $0x98] sm:$0xff]
  %v6901 = vld [vmem:[%s7 + $0xa0] sm:$0xff]
  %v6902 = vld [vmem:[%s7 + $0xa8] sm:$0xff]
  %v6903 = vld [vmem:[%s7 + $0xb0] sm:$0xff]
  %v6904 = vld [vmem:[%s7 + $0xb8] sm:$0xff]
  %v6905 = vld [vmem:[%s7 + $0xc0] sm:$0xff]
  %v6906 = vld [vmem:[%s7 + $0xc8] sm:$0xff]
  %v6907 = vld [vmem:[%s7 + $0xd0] sm:$0xff]
  %v6908 = vld [vmem:[%s7 + $0xd8] sm:$0xff]
  %v6909 = vld [vmem:[%s7 + $0xe0] sm:$0xff]
  %v6910 = vld [vmem:[%s7 + $0xe8] sm:$0xff]
  %v6911 = vld [vmem:[%s7 + $0xf0] sm:$0xff]
  %v6912 = vld [vmem:[%s7 + $0xf8] sm:$0x3]
  %v6914 = vsel %vm37, %v6849, 0
  %v6917 = vsel %vm37, %v6850, 0
  %v6920 = vsel %vm37, %v6851, 0
  %v6923 = vsel %vm37, %v6852, 0
  %v6926 = vsel %vm37, %v6853, 0
  %v6929 = vsel %vm37, %v6854, 0
  %v6932 = vsel %vm37, %v6855, 0
  %v6935 = vsel %vm37, %v6856, 0
  %v6938 = vsel %vm37, %v6857, 0
  %v6941 = vsel %vm37, %v6858, 0
  %v6944 = vsel %vm37, %v6859, 0
  %v6947 = vsel %vm37, %v6860, 0
  %v6950 = vsel %vm37, %v6861, 0
  %v6953 = vsel %vm37, %v6862, 0
  %v6956 = vsel %vm37, %v6863, 0
  %v6959 = vsel %vm37, %v6864, 0
  %v6962 = vsel %vm37, %v6865, 0
  %v6965 = vsel %vm37, %v6866, 0
  %v6968 = vsel %vm37, %v6867, 0
  %v6971 = vsel %vm37, %v6868, 0
  %v6974 = vsel %vm37, %v6869, 0
  %v6977 = vsel %vm37, %v6870, 0
  %v6980 = vsel %vm37, %v6871, 0
  %v6983 = vsel %vm37, %v6872, 0
  %v6986 = vsel %vm37, %v6873, 0
  %v6989 = vsel %vm37, %v6874, 0
  %v6992 = vsel %vm37, %v6875, 0
  %v6995 = vsel %vm37, %v6876, 0
  %v6998 = vsel %vm37, %v6877, 0
  %v7001 = vsel %vm37, %v6878, 0
  %v7004 = vsel %vm37, %v6879, 0
  %v7007 = vsel %vm37, %v6880, 0
  %7009 = vmatprep.subr.mxu0 0.0
  %7010 = vmatpush1.msra.mxu0 0.0
  %7011 = vmatprep.subr.mxu0 0.0
  %7012 = vmatpush1.msra.mxu0 0.0
  %7013 = vmatprep.subr.mxu0 0.0
  %7014 = vmatpush1.msra.mxu0 0.0
  %7015 = vmatprep.subr.mxu0 0.0
  %7016 = vmatpush1.msra.mxu0 0.0
  %7017 = vmatprep.subr.mxu0 0.0
  %7018 = vmatpush1.msra.mxu0 0.0
  %7019 = vmatprep.subr.mxu0 0.0
  %7020 = vmatpush1.msra.mxu0 0.0
  %7021 = vmatprep.subr.mxu0 0.0
  %7022 = vmatpush1.msra.mxu0 0.0
  %7023 = vmatprep.subr.mxu0 0.0
  %7024 = vmatpush1.msra.mxu0 0.0
  %7025 = vmatprep.subr.mxu0 0.0
  %7026 = vmatpush1.msra.mxu0 %v6848
  %7027 = vmatprep.subr.mxu0 0.0
  %7028 = vmatpush1.msra.mxu0 %v6847
  %7029 = vmatprep.subr.mxu0 0.0
  %7030 = vmatpush1.msra.mxu0 %v6846
  %7031 = vmatprep.subr.mxu0 0.0
  %7032 = vmatpush1.msra.mxu0 %v6845
  %7033 = vmatprep.subr.mxu0 0.0
  %7034 = vmatpush1.msra.mxu0 %v6844
  %7035 = vmatprep.subr.mxu0 0.0
  %7036 = vmatpush1.msra.mxu0 %v6843
  %7037 = vmatprep.subr.mxu0 0.0
  %7038 = vmatpush1.msra.mxu0 %v6842
  %7039 = vmatprep.subr.mxu0 0.0
  %7040 = vmatpush1.msra.mxu0 %v6841
  %7041 = vmatprep.subr.mxu0 0.0
  %7042 = vmatpush2.msra.mxu0 0.0
  %7043 = vmatprep.subr.mxu0 0.0
  %7044 = vmatpush2.msra.mxu0 0.0
  %7045 = vmatprep.subr.mxu0 0.0
  %7046 = vmatpush2.msra.mxu0 0.0
  %7047 = vmatprep.subr.mxu0 0.0
  %7048 = vmatpush2.msra.mxu0 0.0
  %7049 = vmatprep.subr.mxu0 0.0
  %7050 = vmatpush2.msra.mxu0 0.0
  %7051 = vmatprep.subr.mxu0 0.0
  %7052 = vmatpush2.msra.mxu0 0.0
  %7053 = vmatprep.subr.mxu0 0.0
  %7054 = vmatpush2.msra.mxu0 0.0
  %7055 = vmatprep.subr.mxu0 0.0
  %7056 = vmatpush2.msra.mxu0 0.0
  %7057 = vmatprep.subr.mxu0 0.0
  %7058 = vmatpush2.msra.mxu0 0.0
  %7059 = vmatprep.subr.mxu0 0.0
  %7060 = vmatpush2.msra.mxu0 0.0
  %7061 = vmatprep.subr.mxu0 0.0
  %7062 = vmatpush2.msra.mxu0 0.0
  %7063 = vmatprep.subr.mxu0 0.0
  %7064 = vmatpush2.msra.mxu0 0.0
  %7065 = vmatprep.subr.mxu0 0.0
  %7066 = vmatpush2.msra.mxu0 0.0
  %7067 = vmatprep.subr.mxu0 0.0
  %7068 = vmatpush2.msra.mxu0 0.0
  %7069 = vmatprep.subr.mxu0 0.0
  %7070 = vmatpush2.msra.mxu0 0.0
  %7071 = vmatprep.subr.mxu0 0.0
  %7072 = vmatpush2.msra.mxu0 0.0
  %7073 = vmatprep.mubr.f32.mxu0 0.0
  %7074 = vmatmul.mubr.f32.gmra.mxu0 %v6914
  %v7075 = vpop.f32.mrf.mxu0
  %v7076 = vadd.f32 %v6881, %v7075
  %v7077 = vpop.f32.mrf.mxu0
  %7078 = vmatprep.mubr.f32.mxu0 0.0
  %7079 = vmatmul.mubr.f32.gmra.mxu0 %v6917
  %v7080 = vpop.f32.mrf.mxu0
  %v7081 = vadd.f32 %v6882, %v7080
  %v7082 = vpop.f32.mrf.mxu0
  %7083 = vmatprep.mubr.f32.mxu0 0.0
  %7084 = vmatmul.mubr.f32.gmra.mxu0 %v6920
  %v7085 = vpop.f32.mrf.mxu0
  %v7086 = vadd.f32 %v6883, %v7085
  %v7087 = vpop.f32.mrf.mxu0
  %7088 = vmatprep.mubr.f32.mxu0 0.0
  %7089 = vmatmul.mubr.f32.gmra.mxu0 %v6923
  %v7090 = vpop.f32.mrf.mxu0
  %v7091 = vadd.f32 %v6884, %v7090
  %v7092 = vpop.f32.mrf.mxu0
  %7093 = vmatprep.mubr.f32.mxu0 0.0
  %7094 = vmatmul.mubr.f32.gmra.mxu0 %v6926
  %v7095 = vpop.f32.mrf.mxu0
  %v7096 = vadd.f32 %v6885, %v7095
  %v7097 = vpop.f32.mrf.mxu0
  %7098 = vmatprep.mubr.f32.mxu0 0.0
  %7099 = vmatmul.mubr.f32.gmra.mxu0 %v6929
  %v7100 = vpop.f32.mrf.mxu0
  %v7101 = vadd.f32 %v6886, %v7100
  %v7102 = vpop.f32.mrf.mxu0
  %7103 = vmatprep.mubr.f32.mxu0 0.0
  %7104 = vmatmul.mubr.f32.gmra.mxu0 %v6932
  %v7105 = vpop.f32.mrf.mxu0
  %v7106 = vadd.f32 %v6887, %v7105
  %v7107 = vpop.f32.mrf.mxu0
  %7108 = vmatprep.mubr.f32.mxu0 0.0
  %7109 = vmatmul.mubr.f32.gmra.mxu0 %v6935
  %v7110 = vpop.f32.mrf.mxu0
  %v7111 = vadd.f32 %v6888, %v7110
  %v7112 = vpop.f32.mrf.mxu0
  %7113 = vmatprep.mubr.f32.mxu0 0.0
  %7114 = vmatmul.mubr.f32.gmra.mxu0 %v6938
  %v7115 = vpop.f32.mrf.mxu0
  %v7116 = vadd.f32 %v6889, %v7115
  %v7117 = vpop.f32.mrf.mxu0
  %7118 = vmatprep.mubr.f32.mxu0 0.0
  %7119 = vmatmul.mubr.f32.gmra.mxu0 %v6941
  %v7120 = vpop.f32.mrf.mxu0
  %v7121 = vadd.f32 %v6890, %v7120
  %v7122 = vpop.f32.mrf.mxu0
  %7123 = vmatprep.mubr.f32.mxu0 0.0
  %7124 = vmatmul.mubr.f32.gmra.mxu0 %v6944
  %v7125 = vpop.f32.mrf.mxu0
  %v7126 = vadd.f32 %v6891, %v7125
  %v7127 = vpop.f32.mrf.mxu0
  %7128 = vmatprep.mubr.f32.mxu0 0.0
  %7129 = vmatmul.mubr.f32.gmra.mxu0 %v6947
  %v7130 = vpop.f32.mrf.mxu0
  %v7131 = vadd.f32 %v6892, %v7130
  %v7132 = vpop.f32.mrf.mxu0
  %7133 = vmatprep.mubr.f32.mxu0 0.0
  %7134 = vmatmul.mubr.f32.gmra.mxu0 %v6950
  %v7135 = vpop.f32.mrf.mxu0
  %v7136 = vadd.f32 %v6893, %v7135
  %v7137 = vpop.f32.mrf.mxu0
  %7138 = vmatprep.mubr.f32.mxu0 0.0
  %7139 = vmatmul.mubr.f32.gmra.mxu0 %v6953
  %v7140 = vpop.f32.mrf.mxu0
  %v7141 = vadd.f32 %v6894, %v7140
  %v7142 = vpop.f32.mrf.mxu0
  %7143 = vmatprep.mubr.f32.mxu0 0.0
  %7144 = vmatmul.mubr.f32.gmra.mxu0 %v6956
  %v7145 = vpop.f32.mrf.mxu0
  %v7146 = vadd.f32 %v6895, %v7145
  %v7147 = vpop.f32.mrf.mxu0
  %7148 = vmatprep.mubr.f32.mxu0 0.0
  %7149 = vmatmul.mubr.f32.gmra.mxu0 %v6959
  %v7150 = vpop.f32.mrf.mxu0
  %v7151 = vadd.f32 %v6896, %v7150
  %v7152 = vpop.f32.mrf.mxu0
  %7153 = vmatprep.mubr.f32.mxu0 0.0
  %7154 = vmatmul.mubr.f32.gmra.mxu0 %v6962
  %v7155 = vpop.f32.mrf.mxu0
  %v7156 = vadd.f32 %v6897, %v7155
  %v7157 = vpop.f32.mrf.mxu0
  %7158 = vmatprep.mubr.f32.mxu0 0.0
  %7159 = vmatmul.mubr.f32.gmra.mxu0 %v6965
  %v7160 = vpop.f32.mrf.mxu0
  %v7161 = vadd.f32 %v6898, %v7160
  %v7162 = vpop.f32.mrf.mxu0
  %7163 = vmatprep.mubr.f32.mxu0 0.0
  %7164 = vmatmul.mubr.f32.gmra.mxu0 %v6968
  %v7165 = vpop.f32.mrf.mxu0
  %v7166 = vadd.f32 %v6899, %v7165
  %v7167 = vpop.f32.mrf.mxu0
  %7168 = vmatprep.mubr.f32.mxu0 0.0
  %7169 = vmatmul.mubr.f32.gmra.mxu0 %v6971
  %v7170 = vpop.f32.mrf.mxu0
  %v7171 = vadd.f32 %v6900, %v7170
  %v7172 = vpop.f32.mrf.mxu0
  %7173 = vmatprep.mubr.f32.mxu0 0.0
  %7174 = vmatmul.mubr.f32.gmra.mxu0 %v6974
  %v7175 = vpop.f32.mrf.mxu0
  %v7176 = vadd.f32 %v6901, %v7175
  %v7177 = vpop.f32.mrf.mxu0
  %7178 = vmatprep.mubr.f32.mxu0 0.0
  %7179 = vmatmul.mubr.f32.gmra.mxu0 %v6977
  %v7180 = vpop.f32.mrf.mxu0
  %v7181 = vadd.f32 %v6902, %v7180
  %v7182 = vpop.f32.mrf.mxu0
  %7183 = vmatprep.mubr.f32.mxu0 0.0
  %7184 = vmatmul.mubr.f32.gmra.mxu0 %v6980
  %v7185 = vpop.f32.mrf.mxu0
  %v7186 = vadd.f32 %v6903, %v7185
  %v7187 = vpop.f32.mrf.mxu0
  %7188 = vmatprep.mubr.f32.mxu0 0.0
  %7189 = vmatmul.mubr.f32.gmra.mxu0 %v6983
  %v7190 = vpop.f32.mrf.mxu0
  %v7191 = vadd.f32 %v6904, %v7190
  %v7192 = vpop.f32.mrf.mxu0
  %7193 = vmatprep.mubr.f32.mxu0 0.0
  %7194 = vmatmul.mubr.f32.gmra.mxu0 %v6986
  %v7195 = vpop.f32.mrf.mxu0
  %v7196 = vadd.f32 %v6905, %v7195
  %v7197 = vpop.f32.mrf.mxu0
  %7198 = vmatprep.mubr.f32.mxu0 0.0
  %7199 = vmatmul.mubr.f32.gmra.mxu0 %v6989
  %v7200 = vpop.f32.mrf.mxu0
  %v7201 = vadd.f32 %v6906, %v7200
  %v7202 = vpop.f32.mrf.mxu0
  %7203 = vmatprep.mubr.f32.mxu0 0.0
  %7204 = vmatmul.mubr.f32.gmra.mxu0 %v6992
  %v7205 = vpop.f32.mrf.mxu0
  %v7206 = vadd.f32 %v6907, %v7205
  %v7207 = vpop.f32.mrf.mxu0
  %7208 = vmatprep.mubr.f32.mxu0 0.0
  %7209 = vmatmul.mubr.f32.gmra.mxu0 %v6995
  %v7210 = vpop.f32.mrf.mxu0
  %v7211 = vadd.f32 %v6908, %v7210
  %v7212 = vpop.f32.mrf.mxu0
  %7213 = vmatprep.mubr.f32.mxu0 0.0
  %7214 = vmatmul.mubr.f32.gmra.mxu0 %v6998
  %v7215 = vpop.f32.mrf.mxu0
  %v7216 = vadd.f32 %v6909, %v7215
  %v7217 = vpop.f32.mrf.mxu0
  %7218 = vmatprep.mubr.f32.mxu0 0.0
  %7219 = vmatmul.mubr.f32.gmra.mxu0 %v7001
  %v7220 = vpop.f32.mrf.mxu0
  %v7221 = vadd.f32 %v6910, %v7220
  %v7222 = vpop.f32.mrf.mxu0
  %7223 = vmatprep.mubr.f32.mxu0 0.0
  %7224 = vmatmul.mubr.f32.gmra.mxu0 %v7004
  %v7225 = vpop.f32.mrf.mxu0
  %v7226 = vadd.f32 %v6911, %v7225
  %v7227 = vpop.f32.mrf.mxu0
  %7228 = vmatprep.mubr.f32.mxu0 0.0
  %7229 = vmatmul.mubr.f32.gmra.mxu0 %v7007
  %v7230 = vpop.f32.mrf.mxu0
  %v7231 = vadd.f32 %v6912, %v7230
  %v7232 = vpop.f32.mrf.mxu0
  %7233 = vdwg.mxu0
  %v7234 = vmax.f32 %v7076, 0.0
  %v7235 = vmax.f32 %v7081, 0.0
  %v7236 = vmax.f32 %v7086, 0.0
  %v7237 = vmax.f32 %v7091, 0.0
  %v7238 = vmax.f32 %v7096, 0.0
  %v7239 = vmax.f32 %v7101, 0.0
  %v7240 = vmax.f32 %v7106, 0.0
  %v7241 = vmax.f32 %v7111, 0.0
  %v7242 = vmax.f32 %v7116, 0.0
  %v7243 = vmax.f32 %v7121, 0.0
  %v7244 = vmax.f32 %v7126, 0.0
  %v7245 = vmax.f32 %v7131, 0.0
  %v7246 = vmax.f32 %v7136, 0.0
  %v7247 = vmax.f32 %v7141, 0.0
  %v7248 = vmax.f32 %v7146, 0.0
  %v7249 = vmax.f32 %v7151, 0.0
  %v7250 = vmax.f32 %v7156, 0.0
  %v7251 = vmax.f32 %v7161, 0.0
  %v7252 = vmax.f32 %v7166, 0.0
  %v7253 = vmax.f32 %v7171, 0.0
  %v7254 = vmax.f32 %v7176, 0.0
  %v7255 = vmax.f32 %v7181, 0.0
  %v7256 = vmax.f32 %v7186, 0.0
  %v7257 = vmax.f32 %v7191, 0.0
  %v7258 = vmax.f32 %v7196, 0.0
  %v7259 = vmax.f32 %v7201, 0.0
  %v7260 = vmax.f32 %v7206, 0.0
  %v7261 = vmax.f32 %v7211, 0.0
  %v7262 = vmax.f32 %v7216, 0.0
  %v7263 = vmax.f32 %v7221, 0.0
  %v7264 = vmax.f32 %v7226, 0.0
  %v7265 = vmax.f32 %v7231, 0.0
  %v7266 = vld [vmem:[%s8] sm:$0xff]
  %v7267 = vld [vmem:[%s8 + $0x8] sm:$0xff]
  %v7268 = vld [vmem:[%s8 + $0x10] sm:$0xff]
  %v7269 = vld [vmem:[%s8 + $0x18] sm:$0xff]
  %v7270 = vld [vmem:[%s8 + $0x20] sm:$0xff]
  %v7271 = vld [vmem:[%s8 + $0x28] sm:$0xff]
  %v7272 = vld [vmem:[%s8 + $0x30] sm:$0xff]
  %v7273 = vld [vmem:[%s8 + $0x38] sm:$0xff]
  %v7274 = vld [vmem:[%s8 + $0x40] sm:$0xff]
  %v7275 = vld [vmem:[%s8 + $0x48] sm:$0xff]
  %v7276 = vld [vmem:[%s8 + $0x50] sm:$0xff]
  %v7277 = vld [vmem:[%s8 + $0x58] sm:$0xff]
  %v7278 = vld [vmem:[%s8 + $0x60] sm:$0xff]
  %v7279 = vld [vmem:[%s8 + $0x68] sm:$0xff]
  %v7280 = vld [vmem:[%s8 + $0x70] sm:$0xff]
  %v7281 = vld [vmem:[%s8 + $0x78] sm:$0xff]
  %v7282 = vld [vmem:[%s8 + $0x80] sm:$0xff]
  %v7283 = vld [vmem:[%s8 + $0x88] sm:$0xff]
  %v7284 = vld [vmem:[%s8 + $0x90] sm:$0xff]
  %v7285 = vld [vmem:[%s8 + $0x98] sm:$0xff]
  %v7286 = vld [vmem:[%s8 + $0xa0] sm:$0xff]
  %v7287 = vld [vmem:[%s8 + $0xa8] sm:$0xff]
  %v7288 = vld [vmem:[%s8 + $0xb0] sm:$0xff]
  %v7289 = vld [vmem:[%s8 + $0xb8] sm:$0xff]
  %v7290 = vld [vmem:[%s8 + $0xc0] sm:$0xff]
  %v7291 = vld [vmem:[%s8 + $0xc8] sm:$0xff]
  %v7292 = vld [vmem:[%s8 + $0xd0] sm:$0xff]
  %v7293 = vld [vmem:[%s8 + $0xd8] sm:$0xff]
  %v7294 = vld [vmem:[%s8 + $0xe0] sm:$0xff]
  %v7295 = vld [vmem:[%s8 + $0xe8] sm:$0xff]
  %v7296 = vld [vmem:[%s8 + $0xf0] sm:$0xff]
  %v7297 = vld [vmem:[%s8 + $0xf8] sm:$0x3]
  %v7298 = vmul.f32 %v7266, %v7234
  %v7299 = vmul.f32 %v7267, %v7235
  %v7300 = vmul.f32 %v7268, %v7236
  %v7301 = vmul.f32 %v7269, %v7237
  %v7302 = vmul.f32 %v7270, %v7238
  %v7303 = vmul.f32 %v7271, %v7239
  %v7304 = vmul.f32 %v7272, %v7240
  %v7305 = vmul.f32 %v7273, %v7241
  %v7306 = vmul.f32 %v7274, %v7242
  %v7307 = vmul.f32 %v7275, %v7243
  %v7308 = vmul.f32 %v7276, %v7244
  %v7309 = vmul.f32 %v7277, %v7245
  %v7310 = vmul.f32 %v7278, %v7246
  %v7311 = vmul.f32 %v7279, %v7247
  %v7312 = vmul.f32 %v7280, %v7248
  %v7313 = vmul.f32 %v7281, %v7249
  %v7314 = vmul.f32 %v7282, %v7250
  %v7315 = vmul.f32 %v7283, %v7251
  %v7316 = vmul.f32 %v7284, %v7252
  %v7317 = vmul.f32 %v7285, %v7253
  %v7318 = vmul.f32 %v7286, %v7254
  %v7319 = vmul.f32 %v7287, %v7255
  %v7320 = vmul.f32 %v7288, %v7256
  %v7321 = vmul.f32 %v7289, %v7257
  %v7322 = vmul.f32 %v7290, %v7258
  %v7323 = vmul.f32 %v7291, %v7259
  %v7324 = vmul.f32 %v7292, %v7260
  %v7325 = vmul.f32 %v7293, %v7261
  %v7326 = vmul.f32 %v7294, %v7262
  %v7327 = vmul.f32 %v7295, %v7263
  %v7328 = vmul.f32 %v7296, %v7264
  %v7329 = vmul.f32 %v7297, %v7265
  %vm7330 = vcmask 7168
  %v7331 = vsel %vm7330, %v7298, 0.0
  %v7332 = vsel %vm7330, %v7299, 0.0
  %v7333 = vadd.f32 %v7331, %v7332
  %v7334 = vsel %vm7330, %v7300, 0.0
  %v7335 = vadd.f32 %v7333, %v7334
  %v7336 = vsel %vm7330, %v7301, 0.0
  %v7337 = vadd.f32 %v7335, %v7336
  %v7338 = vsel %vm7330, %v7302, 0.0
  %v7339 = vadd.f32 %v7337, %v7338
  %v7340 = vsel %vm7330, %v7303, 0.0
  %v7341 = vadd.f32 %v7339, %v7340
  %v7342 = vsel %vm7330, %v7304, 0.0
  %v7343 = vadd.f32 %v7341, %v7342
  %v7344 = vsel %vm7330, %v7305, 0.0
  %v7345 = vadd.f32 %v7343, %v7344
  %v7346 = vsel %vm7330, %v7306, 0.0
  %v7347 = vadd.f32 %v7345, %v7346
  %v7348 = vsel %vm7330, %v7307, 0.0
  %v7349 = vadd.f32 %v7347, %v7348
  %v7350 = vsel %vm7330, %v7308, 0.0
  %v7351 = vadd.f32 %v7349, %v7350
  %v7352 = vsel %vm7330, %v7309, 0.0
  %v7353 = vadd.f32 %v7351, %v7352
  %v7354 = vsel %vm7330, %v7310, 0.0
  %v7355 = vadd.f32 %v7353, %v7354
  %v7356 = vsel %vm7330, %v7311, 0.0
  %v7357 = vadd.f32 %v7355, %v7356
  %v7358 = vsel %vm7330, %v7312, 0.0
  %v7359 = vadd.f32 %v7357, %v7358
  %v7360 = vsel %vm7330, %v7313, 0.0
  %v7361 = vadd.f32 %v7359, %v7360
  %v7362 = vsel %vm7330, %v7314, 0.0
  %v7363 = vadd.f32 %v7361, %v7362
  %v7364 = vsel %vm7330, %v7315, 0.0
  %v7365 = vadd.f32 %v7363, %v7364
  %v7366 = vsel %vm7330, %v7316, 0.0
  %v7367 = vadd.f32 %v7365, %v7366
  %v7368 = vsel %vm7330, %v7317, 0.0
  %v7369 = vadd.f32 %v7367, %v7368
  %v7370 = vsel %vm7330, %v7318, 0.0
  %v7371 = vadd.f32 %v7369, %v7370
  %v7372 = vsel %vm7330, %v7319, 0.0
  %v7373 = vadd.f32 %v7371, %v7372
  %v7374 = vsel %vm7330, %v7320, 0.0
  %v7375 = vadd.f32 %v7373, %v7374
  %v7376 = vsel %vm7330, %v7321, 0.0
  %v7377 = vadd.f32 %v7375, %v7376
  %v7378 = vsel %vm7330, %v7322, 0.0
  %v7379 = vadd.f32 %v7377, %v7378
  %v7380 = vsel %vm7330, %v7323, 0.0
  %v7381 = vadd.f32 %v7379, %v7380
  %v7382 = vsel %vm7330, %v7324, 0.0
  %v7383 = vadd.f32 %v7381, %v7382
  %v7384 = vsel %vm7330, %v7325, 0.0
  %v7385 = vadd.f32 %v7383, %v7384
  %v7386 = vsel %vm7330, %v7326, 0.0
  %v7387 = vadd.f32 %v7385, %v7386
  %v7388 = vsel %vm7330, %v7327, 0.0
  %v7389 = vadd.f32 %v7387, %v7388
  %v7390 = vsel %vm7330, %v7328, 0.0
  %v7391 = vadd.f32 %v7389, %v7390
  %vm7392 = vcmask 1024
  %v7393 = vsel %vm7392, %v7329, 0.0
  %v7394 = vadd.f32 %v7391, %v7393
  %v7395 = vrot.slane %v7394, 4
  %v7396 = vadd.f32 %v7394, %v7395
  %v7397 = vrot.slane %v7396, 2
  %v7398 = vadd.f32 %v7396, %v7397
  %v7399 = vrot.slane %v7398, 1
  %v7400 = vadd.f32 %v7398, %v7399
  %v7401 = vld [vmem:[#allocation5] sm:$0x1]
  %v7402 = vadd.f32 %v7400, %v7401
  %v7403 = vxor.u32 %v7402, 2147483648
  %v7404 = vmul.f32 %v7403, 1.442695
  %v7405 = vpow.pop %v7404
  %v7406 = vadd.f32 %v7405, 1.0
  %v7407 = vrcp.pop %v7406
  %v7408 = vmul.f32 1.0, %v7407
  %vm7409 = vcmask 0
  %7410 = vst.msk [vmem:[%s10] sm:$0x1] %vm7409, %v7408
  %v7411 = vld [vmem:[%s6162] sm:$0xff]
  %v7412 = vld [vmem:[%s6162 + $0x8] sm:$0xff]
  %v7413 = vld [vmem:[%s6162 + $0x10] sm:$0xff]
  %v7414 = vld [vmem:[%s6162 + $0x18] sm:$0xff]
  %v7415 = vld [vmem:[%s6162 + $0x20] sm:$0xff]
  %v7416 = vld [vmem:[%s6162 + $0x28] sm:$0xff]
  %v7417 = vld [vmem:[%s6162 + $0x30] sm:$0xff]
  %v7418 = vld [vmem:[%s6162 + $0x38] sm:$0xff]
  %v7419 = vld [vmem:[%s6162 + $0x40] sm:$0xff]
  %v7420 = vld [vmem:[%s6162 + $0x48] sm:$0xff]
  %v7421 = vld [vmem:[%s6162 + $0x50] sm:$0xff]
  %v7422 = vld [vmem:[%s6162 + $0x58] sm:$0xff]
  %v7423 = vld [vmem:[%s6162 + $0x60] sm:$0xff]
  %v7424 = vld [vmem:[%s6162 + $0x68] sm:$0xff]
  %v7425 = vld [vmem:[%s6162 + $0x70] sm:$0xff]
  %v7426 = vld [vmem:[%s6162 + $0x78] sm:$0xff]
  %v7427 = vld [vmem:[%s6162 + $0x80] sm:$0xff]
  %v7428 = vld [vmem:[%s6162 + $0x88] sm:$0xff]
  %v7429 = vld [vmem:[%s6162 + $0x90] sm:$0xff]
  %v7430 = vld [vmem:[%s6162 + $0x98] sm:$0xff]
  %v7431 = vld [vmem:[%s6162 + $0xa0] sm:$0xff]
  %v7432 = vld [vmem:[%s6162 + $0xa8] sm:$0xff]
  %v7433 = vld [vmem:[%s6162 + $0xb0] sm:$0xff]
  %v7434 = vld [vmem:[%s6162 + $0xb8] sm:$0xff]
  %v7435 = vld [vmem:[%s6162 + $0xc0] sm:$0xff]
  %v7436 = vld [vmem:[%s6162 + $0xc8] sm:$0xff]
  %v7437 = vld [vmem:[%s6162 + $0xd0] sm:$0xff]
  %v7438 = vld [vmem:[%s6162 + $0xd8] sm:$0xff]
  %v7439 = vld [vmem:[%s6162 + $0xe0] sm:$0xff]
  %v7440 = vld [vmem:[%s6162 + $0xe8] sm:$0xff]
  %v7441 = vld [vmem:[%s6162 + $0xf0] sm:$0xff]
  %v7442 = vld [vmem:[%s6162 + $0xf8] sm:$0xff]
  %v7443 = vld [vmem:[%s4] sm:$0xff]
  %v7444 = vld [vmem:[%s4 + $0x8] sm:$0xff]
  %v7445 = vld [vmem:[%s4 + $0x10] sm:$0xff]
  %v7446 = vld [vmem:[%s4 + $0x18] sm:$0xff]
  %v7447 = vld [vmem:[%s4 + $0x20] sm:$0xff]
  %v7448 = vld [vmem:[%s4 + $0x28] sm:$0xff]
  %v7449 = vld [vmem:[%s4 + $0x30] sm:$0xff]
  %v7450 = vld [vmem:[%s4 + $0x38] sm:$0xff]
  %v7451 = vld [vmem:[%s4 + $0x40] sm:$0xff]
  %v7452 = vld [vmem:[%s4 + $0x48] sm:$0xff]
  %v7453 = vld [vmem:[%s4 + $0x50] sm:$0xff]
  %v7454 = vld [vmem:[%s4 + $0x58] sm:$0xff]
  %v7455 = vld [vmem:[%s4 + $0x60] sm:$0xff]
  %v7456 = vld [vmem:[%s4 + $0x68] sm:$0xff]
  %v7457 = vld [vmem:[%s4 + $0x70] sm:$0xff]
  %v7458 = vld [vmem:[%s4 + $0x78] sm:$0xff]
  %v7459 = vld [vmem:[%s4 + $0x80] sm:$0xff]
  %v7460 = vld [vmem:[%s4 + $0x88] sm:$0xff]
  %v7461 = vld [vmem:[%s4 + $0x90] sm:$0xff]
  %v7462 = vld [vmem:[%s4 + $0x98] sm:$0xff]
  %v7463 = vld [vmem:[%s4 + $0xa0] sm:$0xff]
  %v7464 = vld [vmem:[%s4 + $0xa8] sm:$0xff]
  %v7465 = vld [vmem:[%s4 + $0xb0] sm:$0xff]
  %v7466 = vld [vmem:[%s4 + $0xb8] sm:$0xff]
  %v7467 = vld [vmem:[%s4 + $0xc0] sm:$0xff]
  %v7468 = vld [vmem:[%s4 + $0xc8] sm:$0xff]
  %v7469 = vld [vmem:[%s4 + $0xd0] sm:$0xff]
  %v7470 = vld [vmem:[%s4 + $0xd8] sm:$0xff]
  %v7471 = vld [vmem:[%s4 + $0xe0] sm:$0xff]
  %v7472 = vld [vmem:[%s4 + $0xe8] sm:$0xff]
  %v7473 = vld [vmem:[%s4 + $0xf0] sm:$0xff]
  %v7474 = vld [vmem:[%s4 + $0xf8] sm:$0xff]
  %v7476 = vsel %vm37, %v7443, 0
  %v7479 = vsel %vm37, %v7444, 0
  %v7482 = vsel %vm37, %v7445, 0
  %v7485 = vsel %vm37, %v7446, 0
  %v7488 = vsel %vm37, %v7447, 0
  %v7491 = vsel %vm37, %v7448, 0
  %v7494 = vsel %vm37, %v7449, 0
  %v7497 = vsel %vm37, %v7450, 0
  %v7500 = vsel %vm37, %v7451, 0
  %v7503 = vsel %vm37, %v7452, 0
  %v7506 = vsel %vm37, %v7453, 0
  %v7509 = vsel %vm37, %v7454, 0
  %v7512 = vsel %vm37, %v7455, 0
  %v7515 = vsel %vm37, %v7456, 0
  %v7518 = vsel %vm37, %v7457, 0
  %v7521 = vsel %vm37, %v7458, 0
  %v7524 = vsel %vm37, %v7459, 0
  %v7527 = vsel %vm37, %v7460, 0
  %v7530 = vsel %vm37, %v7461, 0
  %v7533 = vsel %vm37, %v7462, 0
  %v7536 = vsel %vm37, %v7463, 0
  %v7539 = vsel %vm37, %v7464, 0
  %v7542 = vsel %vm37, %v7465, 0
  %v7545 = vsel %vm37, %v7466, 0
  %v7548 = vsel %vm37, %v7467, 0
  %v7551 = vsel %vm37, %v7468, 0
  %v7554 = vsel %vm37, %v7469, 0
  %v7557 = vsel %vm37, %v7470, 0
  %v7560 = vsel %vm37, %v7471, 0
  %v7563 = vsel %vm37, %v7472, 0
  %v7566 = vsel %vm37, %v7473, 0
  %v7569 = vsel %vm37, %v7474, 0
  %7571 = vmatprep.subr.mxu0 0.0
  %7572 = vmatpush1.msra.mxu0 0.0
  %7573 = vmatprep.subr.mxu0 0.0
  %7574 = vmatpush1.msra.mxu0 0.0
  %7575 = vmatprep.subr.mxu0 0.0
  %7576 = vmatpush1.msra.mxu0 0.0
  %7577 = vmatprep.subr.mxu0 0.0
  %7578 = vmatpush1.msra.mxu0 0.0
  %7579 = vmatprep.subr.mxu0 0.0
  %7580 = vmatpush1.msra.mxu0 0.0
  %7581 = vmatprep.subr.mxu0 0.0
  %7582 = vmatpush1.msra.mxu0 0.0
  %7583 = vmatprep.subr.mxu0 0.0
  %7584 = vmatpush1.msra.mxu0 0.0
  %7585 = vmatprep.subr.mxu0 0.0
  %7586 = vmatpush1.msra.mxu0 0.0
  %7587 = vmatprep.subr.mxu0 0.0
  %7588 = vmatpush1.msra.mxu0 %v6808
  %7589 = vmatprep.subr.mxu0 0.0
  %7590 = vmatpush1.msra.mxu0 %v6807
  %7591 = vmatprep.subr.mxu0 0.0
  %7592 = vmatpush1.msra.mxu0 %v6806
  %7593 = vmatprep.subr.mxu0 0.0
  %7594 = vmatpush1.msra.mxu0 %v6805
  %7595 = vmatprep.subr.mxu0 0.0
  %7596 = vmatpush1.msra.mxu0 %v6804
  %7597 = vmatprep.subr.mxu0 0.0
  %7598 = vmatpush1.msra.mxu0 %v6803
  %7599 = vmatprep.subr.mxu0 0.0
  %7600 = vmatpush1.msra.mxu0 %v6802
  %7601 = vmatprep.subr.mxu0 0.0
  %7602 = vmatpush1.msra.mxu0 %v6801
  %7603 = vmatprep.subr.mxu0 0.0
  %7604 = vmatpush2.msra.mxu0 0.0
  %7605 = vmatprep.subr.mxu0 0.0
  %7606 = vmatpush2.msra.mxu0 0.0
  %7607 = vmatprep.subr.mxu0 0.0
  %7608 = vmatpush2.msra.mxu0 0.0
  %7609 = vmatprep.subr.mxu0 0.0
  %7610 = vmatpush2.msra.mxu0 0.0
  %7611 = vmatprep.subr.mxu0 0.0
  %7612 = vmatpush2.msra.mxu0 0.0
  %7613 = vmatprep.subr.mxu0 0.0
  %7614 = vmatpush2.msra.mxu0 0.0
  %7615 = vmatprep.subr.mxu0 0.0
  %7616 = vmatpush2.msra.mxu0 0.0
  %7617 = vmatprep.subr.mxu0 0.0
  %7618 = vmatpush2.msra.mxu0 0.0
  %7619 = vmatprep.subr.mxu0 0.0
  %7620 = vmatpush2.msra.mxu0 0.0
  %7621 = vmatprep.subr.mxu0 0.0
  %7622 = vmatpush2.msra.mxu0 0.0
  %7623 = vmatprep.subr.mxu0 0.0
  %7624 = vmatpush2.msra.mxu0 0.0
  %7625 = vmatprep.subr.mxu0 0.0
  %7626 = vmatpush2.msra.mxu0 0.0
  %7627 = vmatprep.subr.mxu0 0.0
  %7628 = vmatpush2.msra.mxu0 0.0
  %7629 = vmatprep.subr.mxu0 0.0
  %7630 = vmatpush2.msra.mxu0 0.0
  %7631 = vmatprep.subr.mxu0 0.0
  %7632 = vmatpush2.msra.mxu0 0.0
  %7633 = vmatprep.subr.mxu0 0.0
  %7634 = vmatpush2.msra.mxu0 0.0
  %7635 = vmatprep.mubr.f32.mxu0 0.0
  %7636 = vmatmul.mubr.f32.gmra.mxu0 %v7476
  %v7637 = vpop.f32.mrf.mxu0
  %v7638 = vadd.f32 0.0, %v7637
  %v7639 = vpop.f32.mrf.mxu0
  %7640 = vmatprep.mubr.f32.mxu0 0.0
  %7641 = vmatmul.mubr.f32.gmra.mxu0 %v7479
  %v7642 = vpop.f32.mrf.mxu0
  %v7643 = vadd.f32 0.0, %v7642
  %v7644 = vpop.f32.mrf.mxu0
  %7645 = vmatprep.mubr.f32.mxu0 0.0
  %7646 = vmatmul.mubr.f32.gmra.mxu0 %v7482
  %v7647 = vpop.f32.mrf.mxu0
  %v7648 = vadd.f32 0.0, %v7647
  %v7649 = vpop.f32.mrf.mxu0
  %7650 = vmatprep.mubr.f32.mxu0 0.0
  %7651 = vmatmul.mubr.f32.gmra.mxu0 %v7485
  %v7652 = vpop.f32.mrf.mxu0
  %v7653 = vadd.f32 0.0, %v7652
  %v7654 = vpop.f32.mrf.mxu0
  %7655 = vmatprep.mubr.f32.mxu0 0.0
  %7656 = vmatmul.mubr.f32.gmra.mxu0 %v7488
  %v7657 = vpop.f32.mrf.mxu0
  %v7658 = vadd.f32 0.0, %v7657
  %v7659 = vpop.f32.mrf.mxu0
  %7660 = vmatprep.mubr.f32.mxu0 0.0
  %7661 = vmatmul.mubr.f32.gmra.mxu0 %v7491
  %v7662 = vpop.f32.mrf.mxu0
  %v7663 = vadd.f32 0.0, %v7662
  %v7664 = vpop.f32.mrf.mxu0
  %7665 = vmatprep.mubr.f32.mxu0 0.0
  %7666 = vmatmul.mubr.f32.gmra.mxu0 %v7494
  %v7667 = vpop.f32.mrf.mxu0
  %v7668 = vadd.f32 0.0, %v7667
  %v7669 = vpop.f32.mrf.mxu0
  %7670 = vmatprep.mubr.f32.mxu0 0.0
  %7671 = vmatmul.mubr.f32.gmra.mxu0 %v7497
  %v7672 = vpop.f32.mrf.mxu0
  %v7673 = vadd.f32 0.0, %v7672
  %v7674 = vpop.f32.mrf.mxu0
  %7675 = vmatprep.mubr.f32.mxu0 0.0
  %7676 = vmatmul.mubr.f32.gmra.mxu0 %v7500
  %v7677 = vpop.f32.mrf.mxu0
  %v7678 = vadd.f32 0.0, %v7677
  %v7679 = vpop.f32.mrf.mxu0
  %7680 = vmatprep.mubr.f32.mxu0 0.0
  %7681 = vmatmul.mubr.f32.gmra.mxu0 %v7503
  %v7682 = vpop.f32.mrf.mxu0
  %v7683 = vadd.f32 0.0, %v7682
  %v7684 = vpop.f32.mrf.mxu0
  %7685 = vmatprep.mubr.f32.mxu0 0.0
  %7686 = vmatmul.mubr.f32.gmra.mxu0 %v7506
  %v7687 = vpop.f32.mrf.mxu0
  %v7688 = vadd.f32 0.0, %v7687
  %v7689 = vpop.f32.mrf.mxu0
  %7690 = vmatprep.mubr.f32.mxu0 0.0
  %7691 = vmatmul.mubr.f32.gmra.mxu0 %v7509
  %v7692 = vpop.f32.mrf.mxu0
  %v7693 = vadd.f32 0.0, %v7692
  %v7694 = vpop.f32.mrf.mxu0
  %7695 = vmatprep.mubr.f32.mxu0 0.0
  %7696 = vmatmul.mubr.f32.gmra.mxu0 %v7512
  %v7697 = vpop.f32.mrf.mxu0
  %v7698 = vadd.f32 0.0, %v7697
  %v7699 = vpop.f32.mrf.mxu0
  %7700 = vmatprep.mubr.f32.mxu0 0.0
  %7701 = vmatmul.mubr.f32.gmra.mxu0 %v7515
  %v7702 = vpop.f32.mrf.mxu0
  %v7703 = vadd.f32 0.0, %v7702
  %v7704 = vpop.f32.mrf.mxu0
  %7705 = vmatprep.mubr.f32.mxu0 0.0
  %7706 = vmatmul.mubr.f32.gmra.mxu0 %v7518
  %v7707 = vpop.f32.mrf.mxu0
  %v7708 = vadd.f32 0.0, %v7707
  %v7709 = vpop.f32.mrf.mxu0
  %7710 = vmatprep.mubr.f32.mxu0 0.0
  %7711 = vmatmul.mubr.f32.gmra.mxu0 %v7521
  %v7712 = vpop.f32.mrf.mxu0
  %v7713 = vadd.f32 0.0, %v7712
  %v7714 = vpop.f32.mrf.mxu0
  %7715 = vmatprep.mubr.f32.mxu0 0.0
  %7716 = vmatmul.mubr.f32.gmra.mxu0 %v7524
  %v7717 = vpop.f32.mrf.mxu0
  %v7718 = vadd.f32 0.0, %v7717
  %v7719 = vpop.f32.mrf.mxu0
  %7720 = vmatprep.mubr.f32.mxu0 0.0
  %7721 = vmatmul.mubr.f32.gmra.mxu0 %v7527
  %v7722 = vpop.f32.mrf.mxu0
  %v7723 = vadd.f32 0.0, %v7722
  %v7724 = vpop.f32.mrf.mxu0
  %7725 = vmatprep.mubr.f32.mxu0 0.0
  %7726 = vmatmul.mubr.f32.gmra.mxu0 %v7530
  %v7727 = vpop.f32.mrf.mxu0
  %v7728 = vadd.f32 0.0, %v7727
  %v7729 = vpop.f32.mrf.mxu0
  %7730 = vmatprep.mubr.f32.mxu0 0.0
  %7731 = vmatmul.mubr.f32.gmra.mxu0 %v7533
  %v7732 = vpop.f32.mrf.mxu0
  %v7733 = vadd.f32 0.0, %v7732
  %v7734 = vpop.f32.mrf.mxu0
  %7735 = vmatprep.mubr.f32.mxu0 0.0
  %7736 = vmatmul.mubr.f32.gmra.mxu0 %v7536
  %v7737 = vpop.f32.mrf.mxu0
  %v7738 = vadd.f32 0.0, %v7737
  %v7739 = vpop.f32.mrf.mxu0
  %7740 = vmatprep.mubr.f32.mxu0 0.0
  %7741 = vmatmul.mubr.f32.gmra.mxu0 %v7539
  %v7742 = vpop.f32.mrf.mxu0
  %v7743 = vadd.f32 0.0, %v7742
  %v7744 = vpop.f32.mrf.mxu0
  %7745 = vmatprep.mubr.f32.mxu0 0.0
  %7746 = vmatmul.mubr.f32.gmra.mxu0 %v7542
  %v7747 = vpop.f32.mrf.mxu0
  %v7748 = vadd.f32 0.0, %v7747
  %v7749 = vpop.f32.mrf.mxu0
  %7750 = vmatprep.mubr.f32.mxu0 0.0
  %7751 = vmatmul.mubr.f32.gmra.mxu0 %v7545
  %v7752 = vpop.f32.mrf.mxu0
  %v7753 = vadd.f32 0.0, %v7752
  %v7754 = vpop.f32.mrf.mxu0
  %7755 = vmatprep.mubr.f32.mxu0 0.0
  %7756 = vmatmul.mubr.f32.gmra.mxu0 %v7548
  %v7757 = vpop.f32.mrf.mxu0
  %v7758 = vadd.f32 0.0, %v7757
  %v7759 = vpop.f32.mrf.mxu0
  %7760 = vmatprep.mubr.f32.mxu0 0.0
  %7761 = vmatmul.mubr.f32.gmra.mxu0 %v7551
  %v7762 = vpop.f32.mrf.mxu0
  %v7763 = vadd.f32 0.0, %v7762
  %v7764 = vpop.f32.mrf.mxu0
  %7765 = vmatprep.mubr.f32.mxu0 0.0
  %7766 = vmatmul.mubr.f32.gmra.mxu0 %v7554
  %v7767 = vpop.f32.mrf.mxu0
  %v7768 = vadd.f32 0.0, %v7767
  %v7769 = vpop.f32.mrf.mxu0
  %7770 = vmatprep.mubr.f32.mxu0 0.0
  %7771 = vmatmul.mubr.f32.gmra.mxu0 %v7557
  %v7772 = vpop.f32.mrf.mxu0
  %v7773 = vadd.f32 0.0, %v7772
  %v7774 = vpop.f32.mrf.mxu0
  %7775 = vmatprep.mubr.f32.mxu0 0.0
  %7776 = vmatmul.mubr.f32.gmra.mxu0 %v7560
  %v7777 = vpop.f32.mrf.mxu0
  %v7778 = vadd.f32 0.0, %v7777
  %v7779 = vpop.f32.mrf.mxu0
  %7780 = vmatprep.mubr.f32.mxu0 0.0
  %7781 = vmatmul.mubr.f32.gmra.mxu0 %v7563
  %v7782 = vpop.f32.mrf.mxu0
  %v7783 = vadd.f32 0.0, %v7782
  %v7784 = vpop.f32.mrf.mxu0
  %7785 = vmatprep.mubr.f32.mxu0 0.0
  %7786 = vmatmul.mubr.f32.gmra.mxu0 %v7566
  %v7787 = vpop.f32.mrf.mxu0
  %v7788 = vadd.f32 0.0, %v7787
  %v7789 = vpop.f32.mrf.mxu0
  %7790 = vmatprep.mubr.f32.mxu0 0.0
  %7791 = vmatmul.mubr.f32.gmra.mxu0 %v7569
  %v7792 = vpop.f32.mrf.mxu0
  %v7793 = vadd.f32 0.0, %v7792
  %v7794 = vpop.f32.mrf.mxu0
  %7795 = vdwg.mxu0
  %v7796 = vadd.f32 %v7411, %v7638
  %v7797 = vadd.f32 %v7412, %v7643
  %v7798 = vadd.f32 %v7413, %v7648
  %v7799 = vadd.f32 %v7414, %v7653
  %v7800 = vadd.f32 %v7415, %v7658
  %v7801 = vadd.f32 %v7416, %v7663
  %v7802 = vadd.f32 %v7417, %v7668
  %v7803 = vadd.f32 %v7418, %v7673
  %v7804 = vadd.f32 %v7419, %v7678
  %v7805 = vadd.f32 %v7420, %v7683
  %v7806 = vadd.f32 %v7421, %v7688
  %v7807 = vadd.f32 %v7422, %v7693
  %v7808 = vadd.f32 %v7423, %v7698
  %v7809 = vadd.f32 %v7424, %v7703
  %v7810 = vadd.f32 %v7425, %v7708
  %v7811 = vadd.f32 %v7426, %v7713
  %v7812 = vadd.f32 %v7427, %v7718
  %v7813 = vadd.f32 %v7428, %v7723
  %v7814 = vadd.f32 %v7429, %v7728
  %v7815 = vadd.f32 %v7430, %v7733
  %v7816 = vadd.f32 %v7431, %v7738
  %v7817 = vadd.f32 %v7432, %v7743
  %v7818 = vadd.f32 %v7433, %v7748
  %v7819 = vadd.f32 %v7434, %v7753
  %v7820 = vadd.f32 %v7435, %v7758
  %v7821 = vadd.f32 %v7436, %v7763
  %v7822 = vadd.f32 %v7437, %v7768
  %v7823 = vadd.f32 %v7438, %v7773
  %v7824 = vadd.f32 %v7439, %v7778
  %v7825 = vadd.f32 %v7440, %v7783
  %v7826 = vadd.f32 %v7441, %v7788
  %v7827 = vadd.f32 %v7442, %v7793
  %v7828 = vxor.u32 %v7796, 2147483648
  %v7829 = vxor.u32 %v7797, 2147483648
  %v7830 = vxor.u32 %v7798, 2147483648
  %v7831 = vxor.u32 %v7799, 2147483648
  %v7832 = vxor.u32 %v7800, 2147483648
  %v7833 = vxor.u32 %v7801, 2147483648
  %v7834 = vxor.u32 %v7802, 2147483648
  %v7835 = vxor.u32 %v7803, 2147483648
  %v7836 = vmul.f32 %v7828, 1.442695
  %v7837 = vpow.pop %v7836
  %v7838 = vmul.f32 %v7829, 1.442695
  %v7839 = vpow.pop %v7838
  %v7840 = vmul.f32 %v7830, 1.442695
  %v7841 = vpow.pop %v7840
  %v7842 = vmul.f32 %v7831, 1.442695
  %v7843 = vpow.pop %v7842
  %v7844 = vmul.f32 %v7832, 1.442695
  %v7845 = vpow.pop %v7844
  %v7846 = vmul.f32 %v7833, 1.442695
  %v7847 = vpow.pop %v7846
  %v7848 = vmul.f32 %v7834, 1.442695
  %v7849 = vpow.pop %v7848
  %v7850 = vmul.f32 %v7835, 1.442695
  %v7851 = vpow.pop %v7850
  %v7852 = vadd.f32 %v7837, 1.0
  %v7853 = vadd.f32 %v7839, 1.0
  %v7854 = vadd.f32 %v7841, 1.0
  %v7855 = vadd.f32 %v7843, 1.0
  %v7856 = vadd.f32 %v7845, 1.0
  %v7857 = vadd.f32 %v7847, 1.0
  %v7858 = vadd.f32 %v7849, 1.0
  %v7859 = vadd.f32 %v7851, 1.0
  %v7860 = vrcp.pop %v7852
  %v7861 = vmul.f32 1.0, %v7860
  %v7862 = vrcp.pop %v7853
  %v7863 = vmul.f32 1.0, %v7862
  %v7864 = vrcp.pop %v7854
  %v7865 = vmul.f32 1.0, %v7864
  %v7866 = vrcp.pop %v7855
  %v7867 = vmul.f32 1.0, %v7866
  %v7868 = vrcp.pop %v7856
  %v7869 = vmul.f32 1.0, %v7868
  %v7870 = vrcp.pop %v7857
  %v7871 = vmul.f32 1.0, %v7870
  %v7872 = vrcp.pop %v7858
  %v7873 = vmul.f32 1.0, %v7872
  %v7874 = vrcp.pop %v7859
  %v7875 = vmul.f32 1.0, %v7874
  %v7876 = vxor.u32 %v7804, 2147483648
  %v7877 = vxor.u32 %v7805, 2147483648
  %v7878 = vxor.u32 %v7806, 2147483648
  %v7879 = vxor.u32 %v7807, 2147483648
  %v7880 = vxor.u32 %v7808, 2147483648
  %v7881 = vxor.u32 %v7809, 2147483648
  %v7882 = vxor.u32 %v7810, 2147483648
  %v7883 = vxor.u32 %v7811, 2147483648
  %v7884 = vmul.f32 %v7876, 1.442695
  %v7885 = vpow.pop %v7884
  %v7886 = vmul.f32 %v7877, 1.442695
  %v7887 = vpow.pop %v7886
  %v7888 = vmul.f32 %v7878, 1.442695
  %v7889 = vpow.pop %v7888
  %v7890 = vmul.f32 %v7879, 1.442695
  %v7891 = vpow.pop %v7890
  %v7892 = vmul.f32 %v7880, 1.442695
  %v7893 = vpow.pop %v7892
  %v7894 = vmul.f32 %v7881, 1.442695
  %v7895 = vpow.pop %v7894
  %v7896 = vmul.f32 %v7882, 1.442695
  %v7897 = vpow.pop %v7896
  %v7898 = vmul.f32 %v7883, 1.442695
  %v7899 = vpow.pop %v7898
  %v7900 = vadd.f32 %v7885, 1.0
  %v7901 = vadd.f32 %v7887, 1.0
  %v7902 = vadd.f32 %v7889, 1.0
  %v7903 = vadd.f32 %v7891, 1.0
  %v7904 = vadd.f32 %v7893, 1.0
  %v7905 = vadd.f32 %v7895, 1.0
  %v7906 = vadd.f32 %v7897, 1.0
  %v7907 = vadd.f32 %v7899, 1.0
  %v7908 = vrcp.pop %v7900
  %v7909 = vmul.f32 1.0, %v7908
  %v7910 = vrcp.pop %v7901
  %v7911 = vmul.f32 1.0, %v7910
  %v7912 = vrcp.pop %v7902
  %v7913 = vmul.f32 1.0, %v7912
  %v7914 = vrcp.pop %v7903
  %v7915 = vmul.f32 1.0, %v7914
  %v7916 = vrcp.pop %v7904
  %v7917 = vmul.f32 1.0, %v7916
  %v7918 = vrcp.pop %v7905
  %v7919 = vmul.f32 1.0, %v7918
  %v7920 = vrcp.pop %v7906
  %v7921 = vmul.f32 1.0, %v7920
  %v7922 = vrcp.pop %v7907
  %v7923 = vmul.f32 1.0, %v7922
  %v7924 = vtanh.pop %v7812
  %v7925 = vtanh.pop %v7813
  %v7926 = vtanh.pop %v7814
  %v7927 = vtanh.pop %v7815
  %v7928 = vtanh.pop %v7816
  %v7929 = vtanh.pop %v7817
  %v7930 = vtanh.pop %v7818
  %v7931 = vtanh.pop %v7819
  %v7932 = vxor.u32 %v7820, 2147483648
  %v7933 = vxor.u32 %v7821, 2147483648
  %v7934 = vxor.u32 %v7822, 2147483648
  %v7935 = vxor.u32 %v7823, 2147483648
  %v7936 = vxor.u32 %v7824, 2147483648
  %v7937 = vxor.u32 %v7825, 2147483648
  %v7938 = vxor.u32 %v7826, 2147483648
  %v7939 = vxor.u32 %v7827, 2147483648
  %v7940 = vmul.f32 %v7932, 1.442695
  %v7941 = vpow.pop %v7940
  %v7942 = vmul.f32 %v7933, 1.442695
  %v7943 = vpow.pop %v7942
  %v7944 = vmul.f32 %v7934, 1.442695
  %v7945 = vpow.pop %v7944
  %v7946 = vmul.f32 %v7935, 1.442695
  %v7947 = vpow.pop %v7946
  %v7948 = vmul.f32 %v7936, 1.442695
  %v7949 = vpow.pop %v7948
  %v7950 = vmul.f32 %v7937, 1.442695
  %v7951 = vpow.pop %v7950
  %v7952 = vmul.f32 %v7938, 1.442695
  %v7953 = vpow.pop %v7952
  %v7954 = vmul.f32 %v7939, 1.442695
  %v7955 = vpow.pop %v7954
  %v7956 = vadd.f32 %v7941, 1.0
  %v7957 = vadd.f32 %v7943, 1.0
  %v7958 = vadd.f32 %v7945, 1.0
  %v7959 = vadd.f32 %v7947, 1.0
  %v7960 = vadd.f32 %v7949, 1.0
  %v7961 = vadd.f32 %v7951, 1.0
  %v7962 = vadd.f32 %v7953, 1.0
  %v7963 = vadd.f32 %v7955, 1.0
  %v7964 = vrcp.pop %v7956
  %v7965 = vmul.f32 1.0, %v7964
  %v7966 = vrcp.pop %v7957
  %v7967 = vmul.f32 1.0, %v7966
  %v7968 = vrcp.pop %v7958
  %v7969 = vmul.f32 1.0, %v7968
  %v7970 = vrcp.pop %v7959
  %v7971 = vmul.f32 1.0, %v7970
  %v7972 = vrcp.pop %v7960
  %v7973 = vmul.f32 1.0, %v7972
  %v7974 = vrcp.pop %v7961
  %v7975 = vmul.f32 1.0, %v7974
  %v7976 = vrcp.pop %v7962
  %v7977 = vmul.f32 1.0, %v7976
  %v7978 = vrcp.pop %v7963
  %v7979 = vmul.f32 1.0, %v7978
  %v7980 = vmul.f32 %v7909, %v6785
  %v7981 = vmul.f32 %v7911, %v6786
  %v7982 = vmul.f32 %v7913, %v6787
  %v7983 = vmul.f32 %v7915, %v6788
  %v7984 = vmul.f32 %v7917, %v6789
  %v7985 = vmul.f32 %v7919, %v6790
  %v7986 = vmul.f32 %v7921, %v6791
  %v7987 = vmul.f32 %v7923, %v6792
  %v7988 = vmul.f32 %v7861, %v7924
  %v7989 = vmul.f32 %v7863, %v7925
  %v7990 = vmul.f32 %v7865, %v7926
  %v7991 = vmul.f32 %v7867, %v7927
  %v7992 = vmul.f32 %v7869, %v7928
  %v7993 = vmul.f32 %v7871, %v7929
  %v7994 = vmul.f32 %v7873, %v7930
  %v7995 = vmul.f32 %v7875, %v7931
  %v7996 = vadd.f32 %v7980, %v7988
  %v7997 = vadd.f32 %v7981, %v7989
  %v7998 = vadd.f32 %v7982, %v7990
  %v7999 = vadd.f32 %v7983, %v7991
  %v8000 = vadd.f32 %v7984, %v7992
  %v8001 = vadd.f32 %v7985, %v7993
  %v8002 = vadd.f32 %v7986, %v7994
  %v8003 = vadd.f32 %v7987, %v7995
  %v8004 = vtanh.pop %v7996
  %v8005 = vtanh.pop %v7997
  %v8006 = vtanh.pop %v7998
  %v8007 = vtanh.pop %v7999
  %v8008 = vtanh.pop %v8000
  %v8009 = vtanh.pop %v8001
  %v8010 = vtanh.pop %v8002
  %v8011 = vtanh.pop %v8003
  %v8012 = vmul.f32 %v7965, %v8004
  %v8013 = vmul.f32 %v7967, %v8005
  %v8014 = vmul.f32 %v7969, %v8006
  %v8015 = vmul.f32 %v7971, %v8007
  %v8016 = vmul.f32 %v7973, %v8008
  %v8017 = vmul.f32 %v7975, %v8009
  %v8018 = vmul.f32 %v7977, %v8010
  %v8019 = vmul.f32 %v7979, %v8011
  %v8020 = vmul.f32 %v8012, %v6199
  %v8021 = vmul.f32 %v8013, %v6199
  %v8022 = vmul.f32 %v8014, %v6199
  %v8023 = vmul.f32 %v8015, %v6199
  %v8024 = vmul.f32 %v8016, %v6199
  %v8025 = vmul.f32 %v8017, %v6199
  %v8026 = vmul.f32 %v8018, %v6199
  %v8027 = vmul.f32 %v8019, %v6199
  %v8028 = vsel %vm4553, %v8020, 0.0
  %8029 = vadd.xlane.f32.xlu0 %v8028
  %v8030 = vpop.xlane.xlu0 %8029
  %v8031 = vsel %vm4553, %v8021, 0.0
  %8032 = vadd.xlane.f32.xlu0 %v8031
  %v8033 = vpop.xlane.xlu0 %8032
  %v8034 = vsel %vm4553, %v8022, 0.0
  %8035 = vadd.xlane.f32.xlu0 %v8034
  %v8036 = vpop.xlane.xlu0 %8035
  %v8037 = vsel %vm4553, %v8023, 0.0
  %8038 = vadd.xlane.f32.xlu0 %v8037
  %v8039 = vpop.xlane.xlu0 %8038
  %v8040 = vsel %vm4553, %v8024, 0.0
  %8041 = vadd.xlane.f32.xlu0 %v8040
  %v8042 = vpop.xlane.xlu0 %8041
  %v8043 = vsel %vm4553, %v8025, 0.0
  %8044 = vadd.xlane.f32.xlu0 %v8043
  %v8045 = vpop.xlane.xlu0 %8044
  %v8046 = vsel %vm4553, %v8026, 0.0
  %8047 = vadd.xlane.f32.xlu0 %v8046
  %v8048 = vpop.xlane.xlu0 %8047
  %v8049 = vsel %vm4553, %v8027, 0.0
  %8050 = vadd.xlane.f32.xlu0 %v8049
  %v8051 = vpop.xlane.xlu0 %8050
  %v8052 = vtanh.pop %v8030
  %v8053 = vtanh.pop %v8033
  %v8054 = vtanh.pop %v8036
  %v8055 = vtanh.pop %v8039
  %v8056 = vtanh.pop %v8042
  %v8057 = vtanh.pop %v8045
  %v8058 = vtanh.pop %v8048
  %v8059 = vtanh.pop %v8051
  %v8060 = vld [vmem:[%s6] sm:$0xff]
  %v8061 = vld [vmem:[%s6 + $0x8] sm:$0xff]
  %v8062 = vld [vmem:[%s6 + $0x10] sm:$0xff]
  %v8063 = vld [vmem:[%s6 + $0x18] sm:$0xff]
  %v8064 = vld [vmem:[%s6 + $0x20] sm:$0xff]
  %v8065 = vld [vmem:[%s6 + $0x28] sm:$0xff]
  %v8066 = vld [vmem:[%s6 + $0x30] sm:$0xff]
  %v8067 = vld [vmem:[%s6 + $0x38] sm:$0xff]
  %v8068 = vld [vmem:[%s6 + $0x40] sm:$0xff]
  %v8069 = vld [vmem:[%s6 + $0x48] sm:$0xff]
  %v8070 = vld [vmem:[%s6 + $0x50] sm:$0xff]
  %v8071 = vld [vmem:[%s6 + $0x58] sm:$0xff]
  %v8072 = vld [vmem:[%s6 + $0x60] sm:$0xff]
  %v8073 = vld [vmem:[%s6 + $0x68] sm:$0xff]
  %v8074 = vld [vmem:[%s6 + $0x70] sm:$0xff]
  %v8075 = vld [vmem:[%s6 + $0x78] sm:$0xff]
  %v8076 = vld [vmem:[%s6 + $0x80] sm:$0xff]
  %v8077 = vld [vmem:[%s6 + $0x88] sm:$0xff]
  %v8078 = vld [vmem:[%s6 + $0x90] sm:$0xff]
  %v8079 = vld [vmem:[%s6 + $0x98] sm:$0xff]
  %v8080 = vld [vmem:[%s6 + $0xa0] sm:$0xff]
  %v8081 = vld [vmem:[%s6 + $0xa8] sm:$0xff]
  %v8082 = vld [vmem:[%s6 + $0xb0] sm:$0xff]
  %v8083 = vld [vmem:[%s6 + $0xb8] sm:$0xff]
  %v8084 = vld [vmem:[%s6 + $0xc0] sm:$0xff]
  %v8085 = vld [vmem:[%s6 + $0xc8] sm:$0xff]
  %v8086 = vld [vmem:[%s6 + $0xd0] sm:$0xff]
  %v8087 = vld [vmem:[%s6 + $0xd8] sm:$0xff]
  %v8088 = vld [vmem:[%s6 + $0xe0] sm:$0xff]
  %v8089 = vld [vmem:[%s6 + $0xe8] sm:$0xff]
  %v8090 = vld [vmem:[%s6 + $0xf0] sm:$0xff]
  %v8091 = vld [vmem:[%s6 + $0xf8] sm:$0x3]
  %v8092 = vld [vmem:[%s7] sm:$0xff]
  %v8093 = vld [vmem:[%s7 + $0x8] sm:$0xff]
  %v8094 = vld [vmem:[%s7 + $0x10] sm:$0xff]
  %v8095 = vld [vmem:[%s7 + $0x18] sm:$0xff]
  %v8096 = vld [vmem:[%s7 + $0x20] sm:$0xff]
  %v8097 = vld [vmem:[%s7 + $0x28] sm:$0xff]
  %v8098 = vld [vmem:[%s7 + $0x30] sm:$0xff]
  %v8099 = vld [vmem:[%s7 + $0x38] sm:$0xff]
  %v8100 = vld [vmem:[%s7 + $0x40] sm:$0xff]
  %v8101 = vld [vmem:[%s7 + $0x48] sm:$0xff]
  %v8102 = vld [vmem:[%s7 + $0x50] sm:$0xff]
  %v8103 = vld [vmem:[%s7 + $0x58] sm:$0xff]
  %v8104 = vld [vmem:[%s7 + $0x60] sm:$0xff]
  %v8105 = vld [vmem:[%s7 + $0x68] sm:$0xff]
  %v8106 = vld [vmem:[%s7 + $0x70] sm:$0xff]
  %v8107 = vld [vmem:[%s7 + $0x78] sm:$0xff]
  %v8108 = vld [vmem:[%s7 + $0x80] sm:$0xff]
  %v8109 = vld [vmem:[%s7 + $0x88] sm:$0xff]
  %v8110 = vld [vmem:[%s7 + $0x90] sm:$0xff]
  %v8111 = vld [vmem:[%s7 + $0x98] sm:$0xff]
  %v8112 = vld [vmem:[%s7 + $0xa0] sm:$0xff]
  %v8113 = vld [vmem:[%s7 + $0xa8] sm:$0xff]
  %v8114 = vld [vmem:[%s7 + $0xb0] sm:$0xff]
  %v8115 = vld [vmem:[%s7 + $0xb8] sm:$0xff]
  %v8116 = vld [vmem:[%s7 + $0xc0] sm:$0xff]
  %v8117 = vld [vmem:[%s7 + $0xc8] sm:$0xff]
  %v8118 = vld [vmem:[%s7 + $0xd0] sm:$0xff]
  %v8119 = vld [vmem:[%s7 + $0xd8] sm:$0xff]
  %v8120 = vld [vmem:[%s7 + $0xe0] sm:$0xff]
  %v8121 = vld [vmem:[%s7 + $0xe8] sm:$0xff]
  %v8122 = vld [vmem:[%s7 + $0xf0] sm:$0xff]
  %v8123 = vld [vmem:[%s7 + $0xf8] sm:$0x3]
  %v8125 = vsel %vm37, %v8060, 0
  %v8128 = vsel %vm37, %v8061, 0
  %v8131 = vsel %vm37, %v8062, 0
  %v8134 = vsel %vm37, %v8063, 0
  %v8137 = vsel %vm37, %v8064, 0
  %v8140 = vsel %vm37, %v8065, 0
  %v8143 = vsel %vm37, %v8066, 0
  %v8146 = vsel %vm37, %v8067, 0
  %v8149 = vsel %vm37, %v8068, 0
  %v8152 = vsel %vm37, %v8069, 0
  %v8155 = vsel %vm37, %v8070, 0
  %v8158 = vsel %vm37, %v8071, 0
  %v8161 = vsel %vm37, %v8072, 0
  %v8164 = vsel %vm37, %v8073, 0
  %v8167 = vsel %vm37, %v8074, 0
  %v8170 = vsel %vm37, %v8075, 0
  %v8173 = vsel %vm37, %v8076, 0
  %v8176 = vsel %vm37, %v8077, 0
  %v8179 = vsel %vm37, %v8078, 0
  %v8182 = vsel %vm37, %v8079, 0
  %v8185 = vsel %vm37, %v8080, 0
  %v8188 = vsel %vm37, %v8081, 0
  %v8191 = vsel %vm37, %v8082, 0
  %v8194 = vsel %vm37, %v8083, 0
  %v8197 = vsel %vm37, %v8084, 0
  %v8200 = vsel %vm37, %v8085, 0
  %v8203 = vsel %vm37, %v8086, 0
  %v8206 = vsel %vm37, %v8087, 0
  %v8209 = vsel %vm37, %v8088, 0
  %v8212 = vsel %vm37, %v8089, 0
  %v8215 = vsel %vm37, %v8090, 0
  %v8218 = vsel %vm37, %v8091, 0
  %8220 = vmatprep.subr.mxu0 0.0
  %8221 = vmatpush1.msra.mxu0 0.0
  %8222 = vmatprep.subr.mxu0 0.0
  %8223 = vmatpush1.msra.mxu0 0.0
  %8224 = vmatprep.subr.mxu0 0.0
  %8225 = vmatpush1.msra.mxu0 0.0
  %8226 = vmatprep.subr.mxu0 0.0
  %8227 = vmatpush1.msra.mxu0 0.0
  %8228 = vmatprep.subr.mxu0 0.0
  %8229 = vmatpush1.msra.mxu0 0.0
  %8230 = vmatprep.subr.mxu0 0.0
  %8231 = vmatpush1.msra.mxu0 0.0
  %8232 = vmatprep.subr.mxu0 0.0
  %8233 = vmatpush1.msra.mxu0 0.0
  %8234 = vmatprep.subr.mxu0 0.0
  %8235 = vmatpush1.msra.mxu0 0.0
  %8236 = vmatprep.subr.mxu0 0.0
  %8237 = vmatpush1.msra.mxu0 %v8059
  %8238 = vmatprep.subr.mxu0 0.0
  %8239 = vmatpush1.msra.mxu0 %v8058
  %8240 = vmatprep.subr.mxu0 0.0
  %8241 = vmatpush1.msra.mxu0 %v8057
  %8242 = vmatprep.subr.mxu0 0.0
  %8243 = vmatpush1.msra.mxu0 %v8056
  %8244 = vmatprep.subr.mxu0 0.0
  %8245 = vmatpush1.msra.mxu0 %v8055
  %8246 = vmatprep.subr.mxu0 0.0
  %8247 = vmatpush1.msra.mxu0 %v8054
  %8248 = vmatprep.subr.mxu0 0.0
  %8249 = vmatpush1.msra.mxu0 %v8053
  %8250 = vmatprep.subr.mxu0 0.0
  %8251 = vmatpush1.msra.mxu0 %v8052
  %8252 = vmatprep.subr.mxu0 0.0
  %8253 = vmatpush2.msra.mxu0 0.0
  %8254 = vmatprep.subr.mxu0 0.0
  %8255 = vmatpush2.msra.mxu0 0.0
  %8256 = vmatprep.subr.mxu0 0.0
  %8257 = vmatpush2.msra.mxu0 0.0
  %8258 = vmatprep.subr.mxu0 0.0
  %8259 = vmatpush2.msra.mxu0 0.0
  %8260 = vmatprep.subr.mxu0 0.0
  %8261 = vmatpush2.msra.mxu0 0.0
  %8262 = vmatprep.subr.mxu0 0.0
  %8263 = vmatpush2.msra.mxu0 0.0
  %8264 = vmatprep.subr.mxu0 0.0
  %8265 = vmatpush2.msra.mxu0 0.0
  %8266 = vmatprep.subr.mxu0 0.0
  %8267 = vmatpush2.msra.mxu0 0.0
  %8268 = vmatprep.subr.mxu0 0.0
  %8269 = vmatpush2.msra.mxu0 0.0
  %8270 = vmatprep.subr.mxu0 0.0
  %8271 = vmatpush2.msra.mxu0 0.0
  %8272 = vmatprep.subr.mxu0 0.0
  %8273 = vmatpush2.msra.mxu0 0.0
  %8274 = vmatprep.subr.mxu0 0.0
  %8275 = vmatpush2.msra.mxu0 0.0
  %8276 = vmatprep.subr.mxu0 0.0
  %8277 = vmatpush2.msra.mxu0 0.0
  %8278 = vmatprep.subr.mxu0 0.0
  %8279 = vmatpush2.msra.mxu0 0.0
  %8280 = vmatprep.subr.mxu0 0.0
  %8281 = vmatpush2.msra.mxu0 0.0
  %8282 = vmatprep.subr.mxu0 0.0
  %8283 = vmatpush2.msra.mxu0 0.0
  %8284 = vmatprep.mubr.f32.mxu0 0.0
  %8285 = vmatmul.mubr.f32.gmra.mxu0 %v8125
  %v8286 = vpop.f32.mrf.mxu0
  %v8287 = vadd.f32 %v8092, %v8286
  %v8288 = vpop.f32.mrf.mxu0
  %8289 = vmatprep.mubr.f32.mxu0 0.0
  %8290 = vmatmul.mubr.f32.gmra.mxu0 %v8128
  %v8291 = vpop.f32.mrf.mxu0
  %v8292 = vadd.f32 %v8093, %v8291
  %v8293 = vpop.f32.mrf.mxu0
  %8294 = vmatprep.mubr.f32.mxu0 0.0
  %8295 = vmatmul.mubr.f32.gmra.mxu0 %v8131
  %v8296 = vpop.f32.mrf.mxu0
  %v8297 = vadd.f32 %v8094, %v8296
  %v8298 = vpop.f32.mrf.mxu0
  %8299 = vmatprep.mubr.f32.mxu0 0.0
  %8300 = vmatmul.mubr.f32.gmra.mxu0 %v8134
  %v8301 = vpop.f32.mrf.mxu0
  %v8302 = vadd.f32 %v8095, %v8301
  %v8303 = vpop.f32.mrf.mxu0
  %8304 = vmatprep.mubr.f32.mxu0 0.0
  %8305 = vmatmul.mubr.f32.gmra.mxu0 %v8137
  %v8306 = vpop.f32.mrf.mxu0
  %v8307 = vadd.f32 %v8096, %v8306
  %v8308 = vpop.f32.mrf.mxu0
  %8309 = vmatprep.mubr.f32.mxu0 0.0
  %8310 = vmatmul.mubr.f32.gmra.mxu0 %v8140
  %v8311 = vpop.f32.mrf.mxu0
  %v8312 = vadd.f32 %v8097, %v8311
  %v8313 = vpop.f32.mrf.mxu0
  %8314 = vmatprep.mubr.f32.mxu0 0.0
  %8315 = vmatmul.mubr.f32.gmra.mxu0 %v8143
  %v8316 = vpop.f32.mrf.mxu0
  %v8317 = vadd.f32 %v8098, %v8316
  %v8318 = vpop.f32.mrf.mxu0
  %8319 = vmatprep.mubr.f32.mxu0 0.0
  %8320 = vmatmul.mubr.f32.gmra.mxu0 %v8146
  %v8321 = vpop.f32.mrf.mxu0
  %v8322 = vadd.f32 %v8099, %v8321
  %v8323 = vpop.f32.mrf.mxu0
  %8324 = vmatprep.mubr.f32.mxu0 0.0
  %8325 = vmatmul.mubr.f32.gmra.mxu0 %v8149
  %v8326 = vpop.f32.mrf.mxu0
  %v8327 = vadd.f32 %v8100, %v8326
  %v8328 = vpop.f32.mrf.mxu0
  %8329 = vmatprep.mubr.f32.mxu0 0.0
  %8330 = vmatmul.mubr.f32.gmra.mxu0 %v8152
  %v8331 = vpop.f32.mrf.mxu0
  %v8332 = vadd.f32 %v8101, %v8331
  %v8333 = vpop.f32.mrf.mxu0
  %8334 = vmatprep.mubr.f32.mxu0 0.0
  %8335 = vmatmul.mubr.f32.gmra.mxu0 %v8155
  %v8336 = vpop.f32.mrf.mxu0
  %v8337 = vadd.f32 %v8102, %v8336
  %v8338 = vpop.f32.mrf.mxu0
  %8339 = vmatprep.mubr.f32.mxu0 0.0
  %8340 = vmatmul.mubr.f32.gmra.mxu0 %v8158
  %v8341 = vpop.f32.mrf.mxu0
  %v8342 = vadd.f32 %v8103, %v8341
  %v8343 = vpop.f32.mrf.mxu0
  %8344 = vmatprep.mubr.f32.mxu0 0.0
  %8345 = vmatmul.mubr.f32.gmra.mxu0 %v8161
  %v8346 = vpop.f32.mrf.mxu0
  %v8347 = vadd.f32 %v8104, %v8346
  %v8348 = vpop.f32.mrf.mxu0
  %8349 = vmatprep.mubr.f32.mxu0 0.0
  %8350 = vmatmul.mubr.f32.gmra.mxu0 %v8164
  %v8351 = vpop.f32.mrf.mxu0
  %v8352 = vadd.f32 %v8105, %v8351
  %v8353 = vpop.f32.mrf.mxu0
  %8354 = vmatprep.mubr.f32.mxu0 0.0
  %8355 = vmatmul.mubr.f32.gmra.mxu0 %v8167
  %v8356 = vpop.f32.mrf.mxu0
  %v8357 = vadd.f32 %v8106, %v8356
  %v8358 = vpop.f32.mrf.mxu0
  %8359 = vmatprep.mubr.f32.mxu0 0.0
  %8360 = vmatmul.mubr.f32.gmra.mxu0 %v8170
  %v8361 = vpop.f32.mrf.mxu0
  %v8362 = vadd.f32 %v8107, %v8361
  %v8363 = vpop.f32.mrf.mxu0
  %8364 = vmatprep.mubr.f32.mxu0 0.0
  %8365 = vmatmul.mubr.f32.gmra.mxu0 %v8173
  %v8366 = vpop.f32.mrf.mxu0
  %v8367 = vadd.f32 %v8108, %v8366
  %v8368 = vpop.f32.mrf.mxu0
  %8369 = vmatprep.mubr.f32.mxu0 0.0
  %8370 = vmatmul.mubr.f32.gmra.mxu0 %v8176
  %v8371 = vpop.f32.mrf.mxu0
  %v8372 = vadd.f32 %v8109, %v8371
  %v8373 = vpop.f32.mrf.mxu0
  %8374 = vmatprep.mubr.f32.mxu0 0.0
  %8375 = vmatmul.mubr.f32.gmra.mxu0 %v8179
  %v8376 = vpop.f32.mrf.mxu0
  %v8377 = vadd.f32 %v8110, %v8376
  %v8378 = vpop.f32.mrf.mxu0
  %8379 = vmatprep.mubr.f32.mxu0 0.0
  %8380 = vmatmul.mubr.f32.gmra.mxu0 %v8182
  %v8381 = vpop.f32.mrf.mxu0
  %v8382 = vadd.f32 %v8111, %v8381
  %v8383 = vpop.f32.mrf.mxu0
  %8384 = vmatprep.mubr.f32.mxu0 0.0
  %8385 = vmatmul.mubr.f32.gmra.mxu0 %v8185
  %v8386 = vpop.f32.mrf.mxu0
  %v8387 = vadd.f32 %v8112, %v8386
  %v8388 = vpop.f32.mrf.mxu0
  %8389 = vmatprep.mubr.f32.mxu0 0.0
  %8390 = vmatmul.mubr.f32.gmra.mxu0 %v8188
  %v8391 = vpop.f32.mrf.mxu0
  %v8392 = vadd.f32 %v8113, %v8391
  %v8393 = vpop.f32.mrf.mxu0
  %8394 = vmatprep.mubr.f32.mxu0 0.0
  %8395 = vmatmul.mubr.f32.gmra.mxu0 %v8191
  %v8396 = vpop.f32.mrf.mxu0
  %v8397 = vadd.f32 %v8114, %v8396
  %v8398 = vpop.f32.mrf.mxu0
  %8399 = vmatprep.mubr.f32.mxu0 0.0
  %8400 = vmatmul.mubr.f32.gmra.mxu0 %v8194
  %v8401 = vpop.f32.mrf.mxu0
  %v8402 = vadd.f32 %v8115, %v8401
  %v8403 = vpop.f32.mrf.mxu0
  %8404 = vmatprep.mubr.f32.mxu0 0.0
  %8405 = vmatmul.mubr.f32.gmra.mxu0 %v8197
  %v8406 = vpop.f32.mrf.mxu0
  %v8407 = vadd.f32 %v8116, %v8406
  %v8408 = vpop.f32.mrf.mxu0
  %8409 = vmatprep.mubr.f32.mxu0 0.0
  %8410 = vmatmul.mubr.f32.gmra.mxu0 %v8200
  %v8411 = vpop.f32.mrf.mxu0
  %v8412 = vadd.f32 %v8117, %v8411
  %v8413 = vpop.f32.mrf.mxu0
  %8414 = vmatprep.mubr.f32.mxu0 0.0
  %8415 = vmatmul.mubr.f32.gmra.mxu0 %v8203
  %v8416 = vpop.f32.mrf.mxu0
  %v8417 = vadd.f32 %v8118, %v8416
  %v8418 = vpop.f32.mrf.mxu0
  %8419 = vmatprep.mubr.f32.mxu0 0.0
  %8420 = vmatmul.mubr.f32.gmra.mxu0 %v8206
  %v8421 = vpop.f32.mrf.mxu0
  %v8422 = vadd.f32 %v8119, %v8421
  %v8423 = vpop.f32.mrf.mxu0
  %8424 = vmatprep.mubr.f32.mxu0 0.0
  %8425 = vmatmul.mubr.f32.gmra.mxu0 %v8209
  %v8426 = vpop.f32.mrf.mxu0
  %v8427 = vadd.f32 %v8120, %v8426
  %v8428 = vpop.f32.mrf.mxu0
  %8429 = vmatprep.mubr.f32.mxu0 0.0
  %8430 = vmatmul.mubr.f32.gmra.mxu0 %v8212
  %v8431 = vpop.f32.mrf.mxu0
  %v8432 = vadd.f32 %v8121, %v8431
  %v8433 = vpop.f32.mrf.mxu0
  %8434 = vmatprep.mubr.f32.mxu0 0.0
  %8435 = vmatmul.mubr.f32.gmra.mxu0 %v8215
  %v8436 = vpop.f32.mrf.mxu0
  %v8437 = vadd.f32 %v8122, %v8436
  %v8438 = vpop.f32.mrf.mxu0
  %8439 = vmatprep.mubr.f32.mxu0 0.0
  %8440 = vmatmul.mubr.f32.gmra.mxu0 %v8218
  %v8441 = vpop.f32.mrf.mxu0
  %v8442 = vadd.f32 %v8123, %v8441
  %v8443 = vpop.f32.mrf.mxu0
  %8444 = vdwg.mxu0
  %v8445 = vmax.f32 %v8287, 0.0
  %v8446 = vmax.f32 %v8292, 0.0
  %v8447 = vmax.f32 %v8297, 0.0
  %v8448 = vmax.f32 %v8302, 0.0
  %v8449 = vmax.f32 %v8307, 0.0
  %v8450 = vmax.f32 %v8312, 0.0
  %v8451 = vmax.f32 %v8317, 0.0
  %v8452 = vmax.f32 %v8322, 0.0
  %v8453 = vmax.f32 %v8327, 0.0
  %v8454 = vmax.f32 %v8332, 0.0
  %v8455 = vmax.f32 %v8337, 0.0
  %v8456 = vmax.f32 %v8342, 0.0
  %v8457 = vmax.f32 %v8347, 0.0
  %v8458 = vmax.f32 %v8352, 0.0
  %v8459 = vmax.f32 %v8357, 0.0
  %v8460 = vmax.f32 %v8362, 0.0
  %v8461 = vmax.f32 %v8367, 0.0
  %v8462 = vmax.f32 %v8372, 0.0
  %v8463 = vmax.f32 %v8377, 0.0
  %v8464 = vmax.f32 %v8382, 0.0
  %v8465 = vmax.f32 %v8387, 0.0
  %v8466 = vmax.f32 %v8392, 0.0
  %v8467 = vmax.f32 %v8397, 0.0
  %v8468 = vmax.f32 %v8402, 0.0
  %v8469 = vmax.f32 %v8407, 0.0
  %v8470 = vmax.f32 %v8412, 0.0
  %v8471 = vmax.f32 %v8417, 0.0
  %v8472 = vmax.f32 %v8422, 0.0
  %v8473 = vmax.f32 %v8427, 0.0
  %v8474 = vmax.f32 %v8432, 0.0
  %v8475 = vmax.f32 %v8437, 0.0
  %v8476 = vmax.f32 %v8442, 0.0
  %v8477 = vld [vmem:[%s8] sm:$0xff]
  %v8478 = vld [vmem:[%s8 + $0x8] sm:$0xff]
  %v8479 = vld [vmem:[%s8 + $0x10] sm:$0xff]
  %v8480 = vld [vmem:[%s8 + $0x18] sm:$0xff]
  %v8481 = vld [vmem:[%s8 + $0x20] sm:$0xff]
  %v8482 = vld [vmem:[%s8 + $0x28] sm:$0xff]
  %v8483 = vld [vmem:[%s8 + $0x30] sm:$0xff]
  %v8484 = vld [vmem:[%s8 + $0x38] sm:$0xff]
  %v8485 = vld [vmem:[%s8 + $0x40] sm:$0xff]
  %v8486 = vld [vmem:[%s8 + $0x48] sm:$0xff]
  %v8487 = vld [vmem:[%s8 + $0x50] sm:$0xff]
  %v8488 = vld [vmem:[%s8 + $0x58] sm:$0xff]
  %v8489 = vld [vmem:[%s8 + $0x60] sm:$0xff]
  %v8490 = vld [vmem:[%s8 + $0x68] sm:$0xff]
  %v8491 = vld [vmem:[%s8 + $0x70] sm:$0xff]
  %v8492 = vld [vmem:[%s8 + $0x78] sm:$0xff]
  %v8493 = vld [vmem:[%s8 + $0x80] sm:$0xff]
  %v8494 = vld [vmem:[%s8 + $0x88] sm:$0xff]
  %v8495 = vld [vmem:[%s8 + $0x90] sm:$0xff]
  %v8496 = vld [vmem:[%s8 + $0x98] sm:$0xff]
  %v8497 = vld [vmem:[%s8 + $0xa0] sm:$0xff]
  %v8498 = vld [vmem:[%s8 + $0xa8] sm:$0xff]
  %v8499 = vld [vmem:[%s8 + $0xb0] sm:$0xff]
  %v8500 = vld [vmem:[%s8 + $0xb8] sm:$0xff]
  %v8501 = vld [vmem:[%s8 + $0xc0] sm:$0xff]
  %v8502 = vld [vmem:[%s8 + $0xc8] sm:$0xff]
  %v8503 = vld [vmem:[%s8 + $0xd0] sm:$0xff]
  %v8504 = vld [vmem:[%s8 + $0xd8] sm:$0xff]
  %v8505 = vld [vmem:[%s8 + $0xe0] sm:$0xff]
  %v8506 = vld [vmem:[%s8 + $0xe8] sm:$0xff]
  %v8507 = vld [vmem:[%s8 + $0xf0] sm:$0xff]
  %v8508 = vld [vmem:[%s8 + $0xf8] sm:$0x3]
  %v8509 = vmul.f32 %v8477, %v8445
  %v8510 = vmul.f32 %v8478, %v8446
  %v8511 = vmul.f32 %v8479, %v8447
  %v8512 = vmul.f32 %v8480, %v8448
  %v8513 = vmul.f32 %v8481, %v8449
  %v8514 = vmul.f32 %v8482, %v8450
  %v8515 = vmul.f32 %v8483, %v8451
  %v8516 = vmul.f32 %v8484, %v8452
  %v8517 = vmul.f32 %v8485, %v8453
  %v8518 = vmul.f32 %v8486, %v8454
  %v8519 = vmul.f32 %v8487, %v8455
  %v8520 = vmul.f32 %v8488, %v8456
  %v8521 = vmul.f32 %v8489, %v8457
  %v8522 = vmul.f32 %v8490, %v8458
  %v8523 = vmul.f32 %v8491, %v8459
  %v8524 = vmul.f32 %v8492, %v8460
  %v8525 = vmul.f32 %v8493, %v8461
  %v8526 = vmul.f32 %v8494, %v8462
  %v8527 = vmul.f32 %v8495, %v8463
  %v8528 = vmul.f32 %v8496, %v8464
  %v8529 = vmul.f32 %v8497, %v8465
  %v8530 = vmul.f32 %v8498, %v8466
  %v8531 = vmul.f32 %v8499, %v8467
  %v8532 = vmul.f32 %v8500, %v8468
  %v8533 = vmul.f32 %v8501, %v8469
  %v8534 = vmul.f32 %v8502, %v8470
  %v8535 = vmul.f32 %v8503, %v8471
  %v8536 = vmul.f32 %v8504, %v8472
  %v8537 = vmul.f32 %v8505, %v8473
  %v8538 = vmul.f32 %v8506, %v8474
  %v8539 = vmul.f32 %v8507, %v8475
  %v8540 = vmul.f32 %v8508, %v8476
  %v8541 = vsel %vm7330, %v8509, 0.0
  %v8542 = vsel %vm7330, %v8510, 0.0
  %v8543 = vadd.f32 %v8541, %v8542
  %v8544 = vsel %vm7330, %v8511, 0.0
  %v8545 = vadd.f32 %v8543, %v8544
  %v8546 = vsel %vm7330, %v8512, 0.0
  %v8547 = vadd.f32 %v8545, %v8546
  %v8548 = vsel %vm7330, %v8513, 0.0
  %v8549 = vadd.f32 %v8547, %v8548
  %v8550 = vsel %vm7330, %v8514, 0.0
  %v8551 = vadd.f32 %v8549, %v8550
  %v8552 = vsel %vm7330, %v8515, 0.0
  %v8553 = vadd.f32 %v8551, %v8552
  %v8554 = vsel %vm7330, %v8516, 0.0
  %v8555 = vadd.f32 %v8553, %v8554
  %v8556 = vsel %vm7330, %v8517, 0.0
  %v8557 = vadd.f32 %v8555, %v8556
  %v8558 = vsel %vm7330, %v8518, 0.0
  %v8559 = vadd.f32 %v8557, %v8558
  %v8560 = vsel %vm7330, %v8519, 0.0
  %v8561 = vadd.f32 %v8559, %v8560
  %v8562 = vsel %vm7330, %v8520, 0.0
  %v8563 = vadd.f32 %v8561, %v8562
  %v8564 = vsel %vm7330, %v8521, 0.0
  %v8565 = vadd.f32 %v8563, %v8564
  %v8566 = vsel %vm7330, %v8522, 0.0
  %v8567 = vadd.f32 %v8565, %v8566
  %v8568 = vsel %vm7330, %v8523, 0.0
  %v8569 = vadd.f32 %v8567, %v8568
  %v8570 = vsel %vm7330, %v8524, 0.0
  %v8571 = vadd.f32 %v8569, %v8570
  %v8572 = vsel %vm7330, %v8525, 0.0
  %v8573 = vadd.f32 %v8571, %v8572
  %v8574 = vsel %vm7330, %v8526, 0.0
  %v8575 = vadd.f32 %v8573, %v8574
  %v8576 = vsel %vm7330, %v8527, 0.0
  %v8577 = vadd.f32 %v8575, %v8576
  %v8578 = vsel %vm7330, %v8528, 0.0
  %v8579 = vadd.f32 %v8577, %v8578
  %v8580 = vsel %vm7330, %v8529, 0.0
  %v8581 = vadd.f32 %v8579, %v8580
  %v8582 = vsel %vm7330, %v8530, 0.0
  %v8583 = vadd.f32 %v8581, %v8582
  %v8584 = vsel %vm7330, %v8531, 0.0
  %v8585 = vadd.f32 %v8583, %v8584
  %v8586 = vsel %vm7330, %v8532, 0.0
  %v8587 = vadd.f32 %v8585, %v8586
  %v8588 = vsel %vm7330, %v8533, 0.0
  %v8589 = vadd.f32 %v8587, %v8588
  %v8590 = vsel %vm7330, %v8534, 0.0
  %v8591 = vadd.f32 %v8589, %v8590
  %v8592 = vsel %vm7330, %v8535, 0.0
  %v8593 = vadd.f32 %v8591, %v8592
  %v8594 = vsel %vm7330, %v8536, 0.0
  %v8595 = vadd.f32 %v8593, %v8594
  %v8596 = vsel %vm7330, %v8537, 0.0
  %v8597 = vadd.f32 %v8595, %v8596
  %v8598 = vsel %vm7330, %v8538, 0.0
  %v8599 = vadd.f32 %v8597, %v8598
  %v8600 = vsel %vm7330, %v8539, 0.0
  %v8601 = vadd.f32 %v8599, %v8600
  %v8602 = vsel %vm7392, %v8540, 0.0
  %v8603 = vadd.f32 %v8601, %v8602
  %v8604 = vrot.slane %v8603, 4
  %v8605 = vadd.f32 %v8603, %v8604
  %v8606 = vrot.slane %v8605, 2
  %v8607 = vadd.f32 %v8605, %v8606
  %v8608 = vrot.slane %v8607, 1
  %v8609 = vadd.f32 %v8607, %v8608
  %v8610 = vld [vmem:[#allocation5] sm:$0x1]
  %v8611 = vadd.f32 %v8609, %v8610
  %v8612 = vxor.u32 %v8611, 2147483648
  %v8613 = vmul.f32 %v8612, 1.442695
  %v8614 = vpow.pop %v8613
  %v8615 = vadd.f32 %v8614, 1.0
  %v8616 = vrcp.pop %v8615
  %v8617 = vmul.f32 1.0, %v8616
  %8618 = vst.msk [vmem:[%s10 + $0x1] sm:$0x1] %vm7409, %v8617
  // Predicated region
  $region42: #{review_sentiment_forward.1} parent=0 // pred_check
    _
  $region43: #{review_sentiment_forward.1} parent=0 // pred_check_branch
    %8620 = sbr.rel (0) target = $region45
  $region44: #{review_sentiment_forward.1} parent=0 // pred_region
    _
  $region45: #{review_sentiment_forward.1} parent=0 // pred_fallthru
    _
  // Predicated region
  $region46: #{review_sentiment_forward.1} parent=0 // pred_check
    _
  $region47: #{review_sentiment_forward.1} parent=0 // pred_check_branch
    %8622 = sbr.rel (0) target = $region49
  $region48: #{review_sentiment_forward.1} parent=0 // pred_region
    _
  $region49: #{review_sentiment_forward.1} parent=0 // pred_fallthru
    _

</llo_original>
